<compile_context>
chip_gen: v5e
topology: v5e:2x2
jax: 0.10.0
libtpu: 0.0.40
codegen_flags: <defaults>
</compile_context>

<pallas_src>
import jax
import jax.numpy as jnp
from jax import lax
from jax.experimental import pallas as pl
from jax.experimental.pallas import tpu as pltpu

_WOFF = 8  # sublane-aligned (f32) left-padding offset used inside VMEM scratches


# ----------------------------------------------------------------------------
# In-kernel helpers (operate on VMEM values / scratch refs)
# ----------------------------------------------------------------------------
def _init_zero_borders(pad_ref, h, w):
    """Zero only the halo cells of a FReLU pad scratch that are ever read.

    Interior (rows 1..h, cols _WOFF.._WOFF+w-1) is fully overwritten by
    _frelu_apply; the halo that is read is the top/bottom row plus the single
    column on each side of the interior.  Writing just those cells is far
    cheaper than refilling the whole scratch, and doing it every grid step
    keeps the kernel correct under any megacore grid partitioning.
    """
    c = pad_ref.shape[-1]
    zrow = jnp.zeros((1, 1, w + 2 * _WOFF, c), jnp.float32)
    zcol = jnp.zeros((1, h + 2, 1, c), jnp.float32)
    pad_ref[:, 0:1, :, :] = zrow
    pad_ref[:, h + 1:h + 2, :, :] = zrow
    pad_ref[:, :, _WOFF - 1:_WOFF, :] = zcol
    pad_ref[:, :, _WOFF + w:_WOFF + w + 1, :] = zcol


def _init_pool_borders(wpad_ref, hpad_ref, h, w):
    """-inf only the halo cells of the pooling scratches that are ever read."""
    c = wpad_ref.shape[-1]
    ncol = jnp.full((1, h, 2, c), -jnp.inf, jnp.float32)
    wpad_ref[:, :, _WOFF - 2:_WOFF, :] = ncol
    wpad_ref[:, :, _WOFF + w:_WOFF + w + 2, :] = ncol
    nrow = jnp.full((1, 2, w, c), -jnp.inf, jnp.float32)
    hpad_ref[:, 0:2, :, :] = nrow
    hpad_ref[:, h + 2:h + 4, :, :] = nrow


def _frelu_apply(a, wk, sf, bf, pad_ref):
    """FReLU: max(a, BN(depthwise 3x3 conv(a))), zero 'same' padding.

    a:       (1, H, W, C) f32 value (kept in VMEM).
    wk:      (3, 3, C) f32 depthwise weights.
    sf, bf:  (1, C) f32 folded BN scale / bias.
    pad_ref: (1, H + 2, W + 2*_WOFF, C) f32 scratch; the halo cells were
             zeroed by _init_zero_borders; only the interior is written here
             (aligned store at offset (1, _WOFF)).
    """
    _, h, w, _ = a.shape
    pad_ref[:, 1:h + 1, _WOFF:_WOFF + w, :] = a
    # Hoist the 9 per-tap weight broadcasts out of the accumulation loop.
    wtap = [[wk[di, dj][None, None, None, :] for dj in range(3)]
            for di in range(3)]
    acc = pad_ref[:, 0:h, _WOFF - 1:_WOFF - 1 + w, :] * wtap[0][0]
    for di in range(3):
        for dj in range(3):
            if di == 0 and dj == 0:
                continue
            j0 = _WOFF + dj - 1
            acc = acc + pad_ref[:, di:di + h, j0:j0 + w, :] * wtap[di][dj]
    conv = acc * sf + bf
    return jnp.maximum(a, conv)


def _pool5_same(src, wpad_ref, hpad_ref):
    """5x5 stride-1 'same' max pool (separable: W pass then H pass), -inf pad.

    src:      (1, H, W, C) f32 value.
    wpad_ref: (1, H, W + 2*_WOFF, C) f32 scratch; halo pre-set to -inf.
    hpad_ref: (1, H + 4, W, C) f32 scratch; halo pre-set to -inf.
    Only the interiors are written here; the halos are never written (the
    caller's one-per-image border init relies on that invariant).
    """
    _, h, w, _ = src.shape
    wpad_ref[:, :, _WOFF:_WOFF + w, :] = src
    colmax = wpad_ref[:, :, _WOFF - 2:_WOFF - 2 + w, :]
    for dj in range(1, 5):
        j0 = _WOFF - 2 + dj
        colmax = jnp.maximum(colmax, wpad_ref[:, :, j0:j0 + w, :])
    hpad_ref[:, 2:h + 2, :, :] = colmax
    out = hpad_ref[:, 0:h, :, :]
    for di in range(1, 5):
        out = jnp.maximum(out, hpad_ref[:, di:di + h, :, :])
    return out


# ----------------------------------------------------------------------------
# Fully fused SPP kernel: cv1 + FReLU + pools + virtual concat + cv2 + FReLU
# ----------------------------------------------------------------------------
def _spp_fused_kernel(x_ref, w1_ref, s1_ref, b1_ref, wf1_ref, sf1_ref, bf1_ref,
                      w2_ref, s2_ref, b2_ref, wf2_ref, sf2_ref, bf2_ref,
                      o_ref,
                      pad1_ref, wpad_ref, hpad_ref, pad2_ref, cat_ref):
    _, h, w, cin = x_ref.shape
    cmid = w1_ref.shape[1]
    cout = w2_ref.shape[1]

    # Cheap per-image halo setup (borders only; interiors are always fully
    # overwritten, borders are never written by the interior stores).
    _init_zero_borders(pad1_ref, h, w)
    _init_zero_borders(pad2_ref, h, w)
    _init_pool_borders(wpad_ref, hpad_ref, h, w)

    # ---- cv1: 1x1 conv (bf16 MXU, f32 acc) + folded BN + FReLU ----
    # NOTE: reshape(h*w, cin) is copy-free only when W % 8 == 0 (true here).
    x2 = x_ref[...].reshape(h * w, cin).astype(jnp.bfloat16)
    a = jnp.dot(x2, w1_ref[...], preferred_element_type=jnp.float32)
    a = a * s1_ref[...] + b1_ref[...]
    a = a.reshape(1, h, w, cmid)
    y = _frelu_apply(a, wf1_ref[...], sf1_ref[...], bf1_ref[...], pad1_ref)

    # ---- SPP cascaded pools (5∘5 == 9, 5∘5∘5 == 13); each tensor is cast to
    #      bf16 and streamed into the concat scratch so only one full-size
    #      f32 tile is live at a time.  Concat order: [y, p5, p9, p13]. ----
    cat_ref[:, 0:cmid] = y.reshape(h * w, cmid).astype(jnp.bfloat16)
    p5 = _pool5_same(y, wpad_ref, hpad_ref)
    cat_ref[:, cmid:2 * cmid] = p5.reshape(h * w, cmid).astype(jnp.bfloat16)
    p9 = _pool5_same(p5, wpad_ref, hpad_ref)
    cat_ref[:, 2 * cmid:3 * cmid] = p9.reshape(h * w, cmid).astype(jnp.bfloat16)
    p13 = _pool5_same(p9, wpad_ref, hpad_ref)
    cat_ref[:, 3 * cmid:4 * cmid] = p13.reshape(h * w, cmid).astype(jnp.bfloat16)

    # ---- cv2: one K=4*cmid matmul on the bf16 concat + folded BN + FReLU ----
    acc = jnp.dot(cat_ref[...], w2_ref[...], preferred_element_type=jnp.float32)
    bpre = (acc * s2_ref[...] + b2_ref[...]).reshape(1, h, w, cout)
    out = _frelu_apply(bpre, wf2_ref[...], sf2_ref[...], bf2_ref[...], pad2_ref)
    o_ref[...] = out.astype(o_ref.dtype)


# ----------------------------------------------------------------------------
# pallas_call wrapper
# ----------------------------------------------------------------------------
def _bcast_spec(shape):
    return pl.BlockSpec(shape, lambda i: (0,) * len(shape))


def _vmem_limit_bytes():
    # ~75% of per-core physical VMEM, leaving headroom for Pallas double
    # buffers / internal scratch: ~48 MiB on v7x (64 MiB/TC), ~96 MiB on
    # v5e/v6e (128 MiB).  Fallback if the query is unavailable.
    try:
        cap = int(pltpu.get_tpu_info().vmem_capacity_bytes)
        if cap > 0:
            return (cap * 3) // 4
    except Exception:
        pass
    return 48 * 1024 * 1024


def _spp_fused(x, w1, s1, b1, wf1, sf1, bf1, w2, s2, b2, wf2, sf2, bf2):
    n, h, w, cin = x.shape
    cmid = w1.shape[1]
    cout = w2.shape[1]
    grid_spec = pltpu.PrefetchScalarGridSpec(
        num_scalar_prefetch=0,
        grid=(n,),
        in_specs=[
            pl.BlockSpec((1, h, w, cin), lambda i: (i, 0, 0, 0)),
            _bcast_spec((cin, cmid)),
            _bcast_spec((1, cmid)),
            _bcast_spec((1, cmid)),
            _bcast_spec((3, 3, cmid)),
            _bcast_spec((1, cmid)),
            _bcast_spec((1, cmid)),
            _bcast_spec((4 * cmid, cout)),
            _bcast_spec((1, cout)),
            _bcast_spec((1, cout)),
            _bcast_spec((3, 3, cout)),
            _bcast_spec((1, cout)),
            _bcast_spec((1, cout)),
        ],
        out_specs=pl.BlockSpec((1, h, w, cout), lambda i: (i, 0, 0, 0)),
        scratch_shapes=[
            pltpu.VMEM((1, h + 2, w + 2 * _WOFF, cmid), jnp.float32),  # pad1
            pltpu.VMEM((1, h, w + 2 * _WOFF, cmid), jnp.float32),      # wpad
            pltpu.VMEM((1, h + 4, w, cmid), jnp.float32),              # hpad
            pltpu.VMEM((1, h + 2, w + 2 * _WOFF, cout), jnp.float32),  # pad2
            pltpu.VMEM((h * w, 4 * cmid), jnp.bfloat16),               # concat
        ],
    )
    cparams = pltpu.CompilerParams(
        dimension_semantics=("parallel",),   # batch axis -> megacore sharding
        vmem_limit_bytes=_vmem_limit_bytes(),
    )
    return pl.pallas_call(
        _spp_fused_kernel,
        out_shape=jax.ShapeDtypeStruct((n, h, w, cout), x.dtype),
        grid_spec=grid_spec,
        compiler_params=cparams,
    )(x,
      w1.astype(jnp.bfloat16),
      s1.reshape(1, cmid), b1.reshape(1, cmid), wf1,
      sf1.reshape(1, cmid), bf1.reshape(1, cmid),
      w2.astype(jnp.bfloat16),
      s2.reshape(1, cout), b2.reshape(1, cout), wf2,
      sf2.reshape(1, cout), bf2.reshape(1, cout))


# ----------------------------------------------------------------------------
# Parameters (deterministic synthetic init) and forward pass
# ----------------------------------------------------------------------------
def fold_bn(gamma, beta, mean, var, eps):
    scale = gamma / jnp.sqrt(var + eps)
    return scale, beta - mean * scale


def init_params(key, c1, c2):
    c_ = c1 // 2
    ks = jax.random.split(key, 20)

    def bn_params(i, c):
        gamma = 1.0 + 0.1 * jax.random.normal(ks[i], (c,), jnp.float32)
        beta = 0.1 * jax.random.normal(ks[i + 1], (c,), jnp.float32)
        mean = 0.1 * jax.random.normal(ks[i + 2], (c,), jnp.float32)
        var = 0.5 + jax.random.uniform(ks[i + 3], (c,), jnp.float32)
        return gamma, beta, mean, var

    return {
        # cv1: 1x1 conv (Cin, Cout) + BN(eps=1e-3) + FReLU(c_)
        "w1": 0.5 * jax.random.normal(ks[16], (c1, c_), jnp.float32),
        "bn1": bn_params(0, c_) + (1e-3,),
        "wf1": 0.5 * jax.random.normal(ks[17], (3, 3, c_), jnp.float32),
        "bnf1": bn_params(4, c_) + (1e-5,),
        # cv2: 1x1 conv on 4*c_ channels + BN(eps=1e-3) + FReLU(c2)
        "w2": 0.5 * jax.random.normal(ks[18], (4 * c_, c2), jnp.float32),
        "bn2": bn_params(8, c2) + (1e-3,),
        "wf2": 0.5 * jax.random.normal(ks[19], (3, 3, c2), jnp.float32),
        "bnf2": bn_params(12, c2) + (1e-5,),
    }


@jax.jit
def spp_forward(x_nchw, p):
    x = jnp.transpose(x_nchw, (0, 2, 3, 1))              # NCHW -> NHWC
    s1, b1 = fold_bn(*p["bn1"])
    sf1, bf1 = fold_bn(*p["bnf1"])
    s2, b2 = fold_bn(*p["bn2"])
    sf2, bf2 = fold_bn(*p["bnf2"])
    y = _spp_fused(x,
                   p["w1"], s1, b1, p["wf1"], sf1, bf1,
                   p["w2"], s2, b2, p["wf2"], sf2, bf2)
    return jnp.transpose(y, (0, 3, 1, 2))                 # NHWC -> NCHW


# ----------------------------------------------------------------------------
# Pure-JAX reference (same semantics; matmul operands also bf16) for verification
# ----------------------------------------------------------------------------
def spp_reference(x_nchw, p):
    x = jnp.transpose(x_nchw, (0, 2, 3, 1))

    def pw(t, w, bnp):
        s, b = fold_bn(*bnp)
        y = jnp.einsum("nhwc,cd->nhwd", t.astype(jnp.bfloat16),
                       w.astype(jnp.bfloat16),
                       preferred_element_type=jnp.float32)
        return y * s + b

    def frelu(t, wk, bnp):
        s, b = fold_bn(*bnp)
        n, h, wd, c = t.shape
        tp = jnp.pad(t, ((0, 0), (1, 1), (1, 1), (0, 0)))
        conv = jnp.zeros_like(t)
        for di in range(3):
            for dj in range(3):
                conv = conv + tp[:, di:di + h, dj:dj + wd, :] * wk[di, dj]
        return jnp.maximum(t, conv * s + b)

    def maxpool(t, k):
        pad = k // 2
        return lax.reduce_window(t, -jnp.inf, lax.max, (1, k, k, 1),
                                 (1, 1, 1, 1),
                                 [(0, 0), (pad, pad), (pad, pad), (0, 0)])

    a = frelu(pw(x, p["w1"], p["bn1"]), p["wf1"], p["bnf1"])
    z = jnp.concatenate([a] + [maxpool(a, k) for k in (5, 9, 13)], axis=-1)
    out = frelu(pw(z, p["w2"], p["bn2"]), p["wf2"], p["bnf2"])
    return jnp.transpose(out, (0, 3, 1, 2))


if __name__ == "__main__":
    key = jax.random.PRNGKey(0)
    kx, kp = jax.random.split(key)

    N, C1, H, W = 2, 4, 16, 16      # NCHW input, like the PyTorch module
    C2 = 8                          # SPP(c1=4, c2=8)

    x = jax.random.normal(kx, (N, C1, H, W), jnp.float32)
    params = init_params(kp, C1, C2)

    out = spp_forward(x, params)
    jax.block_until_ready(out)

    assert out.shape == (N, C2, H, W), out.shape
    ref = spp_reference(x, params)
    err = float(jnp.max(jnp.abs(out - ref)))
    # bf16 MXU operands (f32 accumulation) -> allow for small bf16
    # re-quantization differences between the fused kernel and the reference.
    if err > 5e-2:
        raise AssertionError(f"Pallas output mismatch vs reference, max abs err = {err}")

    print("KERNEL_OK")
</pallas_src>

<mosaic_0001>
module attributes {stable_mosaic.version = 11 : i64} {
  func.func @_spp_fused_kernel(%arg0: i32, %arg1: memref<1x16x16x4xf32, #tpu.memory_space<vmem>>, %arg2: memref<4x2xbf16, #tpu.memory_space<vmem>>, %arg3: memref<1x2xf32, #tpu.memory_space<vmem>>, %arg4: memref<1x2xf32, #tpu.memory_space<vmem>>, %arg5: memref<3x3x2xf32, #tpu.memory_space<vmem>>, %arg6: memref<1x2xf32, #tpu.memory_space<vmem>>, %arg7: memref<1x2xf32, #tpu.memory_space<vmem>>, %arg8: memref<8x8xbf16, #tpu.memory_space<vmem>>, %arg9: memref<1x8xf32, #tpu.memory_space<vmem>>, %arg10: memref<1x8xf32, #tpu.memory_space<vmem>>, %arg11: memref<3x3x8xf32, #tpu.memory_space<vmem>>, %arg12: memref<1x8xf32, #tpu.memory_space<vmem>>, %arg13: memref<1x8xf32, #tpu.memory_space<vmem>>, %arg14: memref<1x16x16x8xf32, #tpu.memory_space<vmem>>, %arg15: memref<1x18x32x2xf32, #tpu.memory_space<vmem>>, %arg16: memref<1x16x32x2xf32, #tpu.memory_space<vmem>>, %arg17: memref<1x20x16x2xf32, #tpu.memory_space<vmem>>, %arg18: memref<1x18x32x8xf32, #tpu.memory_space<vmem>>, %arg19: memref<256x8xbf16, #tpu.memory_space<vmem>>) attributes {dimension_semantics = [#tpu.dimension_semantics<parallel>], iteration_bounds = array<i64: 2>, scalar_prefetch = 0 : i64, scratch_operands = 5 : i64, tpu.core_type = #tpu.core_type<tc>, window_params = [{transform_indices = @transform_0, window_bounds = array<i64: 1, 16, 16, 4>}, {pipeline_mode = #tpu.pipeline_mode<synchronous>, transform_indices = @transform_1, window_bounds = array<i64: 4, 2>}, {pipeline_mode = #tpu.pipeline_mode<synchronous>, transform_indices = @transform_2, window_bounds = array<i64: 1, 2>}, {pipeline_mode = #tpu.pipeline_mode<synchronous>, transform_indices = @transform_3, window_bounds = array<i64: 1, 2>}, {pipeline_mode = #tpu.pipeline_mode<synchronous>, transform_indices = @transform_4, window_bounds = array<i64: 3, 3, 2>}, {pipeline_mode = #tpu.pipeline_mode<synchronous>, transform_indices = @transform_5, window_bounds = array<i64: 1, 2>}, {pipeline_mode = #tpu.pipeline_mode<synchronous>, transform_indices = @transform_6, window_bounds = array<i64: 1, 2>}, {pipeline_mode = #tpu.pipeline_mode<synchronous>, transform_indices = @transform_7, window_bounds = array<i64: 8, 8>}, {pipeline_mode = #tpu.pipeline_mode<synchronous>, transform_indices = @transform_8, window_bounds = array<i64: 1, 8>}, {pipeline_mode = #tpu.pipeline_mode<synchronous>, transform_indices = @transform_9, window_bounds = array<i64: 1, 8>}, {pipeline_mode = #tpu.pipeline_mode<synchronous>, transform_indices = @transform_10, window_bounds = array<i64: 3, 3, 8>}, {pipeline_mode = #tpu.pipeline_mode<synchronous>, transform_indices = @transform_11, window_bounds = array<i64: 1, 8>}, {pipeline_mode = #tpu.pipeline_mode<synchronous>, transform_indices = @transform_12, window_bounds = array<i64: 1, 8>}, {transform_indices = @transform_13, window_bounds = array<i64: 1, 16, 16, 8>}]} {
    %cst = arith.constant 0.000000e+00 : f32
    %0 = vector.broadcast %cst : f32 to vector<1x1x32x2xf32>
    %cst_0 = arith.constant 0.000000e+00 : f32
    %1 = vector.broadcast %cst_0 : f32 to vector<1x18x1x2xf32>
    %c0 = arith.constant 0 : index
    %c0_1 = arith.constant 0 : index
    %c0_2 = arith.constant 0 : index
    %c0_3 = arith.constant 0 : index
    %2 = vector.load %arg15[%c0, %c0_1, %c0_2, %c0_3] : memref<1x18x32x2xf32, #tpu.memory_space<vmem>>, vector<1x1x32x2xf32>
    tpu.vector_store %arg15[%c0, %c0_1, %c0_2, %c0_3], %0 {strides = array<i32>} : memref<1x18x32x2xf32, #tpu.memory_space<vmem>>, vector<1x1x32x2xf32>,
    %c0_4 = arith.constant 0 : index
    %c17 = arith.constant 17 : index
    %c0_5 = arith.constant 0 : index
    %c0_6 = arith.constant 0 : index
    %3 = vector.load %arg15[%c0_4, %c17, %c0_5, %c0_6] : memref<1x18x32x2xf32, #tpu.memory_space<vmem>>, vector<1x1x32x2xf32>
    tpu.vector_store %arg15[%c0_4, %c17, %c0_5, %c0_6], %0 {strides = array<i32>} : memref<1x18x32x2xf32, #tpu.memory_space<vmem>>, vector<1x1x32x2xf32>,
    %c0_7 = arith.constant 0 : index
    %c0_8 = arith.constant 0 : index
    %c7 = arith.constant 7 : index
    %c0_9 = arith.constant 0 : index
    %4 = vector.load %arg15[%c0_7, %c0_8, %c7, %c0_9] : memref<1x18x32x2xf32, #tpu.memory_space<vmem>>, vector<1x18x1x2xf32>
    tpu.vector_store %arg15[%c0_7, %c0_8, %c7, %c0_9], %1 {strides = array<i32>} : memref<1x18x32x2xf32, #tpu.memory_space<vmem>>, vector<1x18x1x2xf32>,
    %c0_10 = arith.constant 0 : index
    %c0_11 = arith.constant 0 : index
    %c24 = arith.constant 24 : index
    %c0_12 = arith.constant 0 : index
    %5 = vector.load %arg15[%c0_10, %c0_11, %c24, %c0_12] : memref<1x18x32x2xf32, #tpu.memory_space<vmem>>, vector<1x18x1x2xf32>
    tpu.vector_store %arg15[%c0_10, %c0_11, %c24, %c0_12], %1 {strides = array<i32>} : memref<1x18x32x2xf32, #tpu.memory_space<vmem>>, vector<1x18x1x2xf32>,
    %cst_13 = arith.constant 0.000000e+00 : f32
    %6 = vector.broadcast %cst_13 : f32 to vector<1x1x32x8xf32>
    %cst_14 = arith.constant 0.000000e+00 : f32
    %7 = vector.broadcast %cst_14 : f32 to vector<1x18x1x8xf32>
    %c0_15 = arith.constant 0 : index
    %c0_16 = arith.constant 0 : index
    %c0_17 = arith.constant 0 : index
    %c0_18 = arith.constant 0 : index
    %8 = vector.load %arg18[%c0_15, %c0_16, %c0_17, %c0_18] : memref<1x18x32x8xf32, #tpu.memory_space<vmem>>, vector<1x1x32x8xf32>
    tpu.vector_store %arg18[%c0_15, %c0_16, %c0_17, %c0_18], %6 {strides = array<i32>} : memref<1x18x32x8xf32, #tpu.memory_space<vmem>>, vector<1x1x32x8xf32>,
    %c0_19 = arith.constant 0 : index
    %c17_20 = arith.constant 17 : index
    %c0_21 = arith.constant 0 : index
    %c0_22 = arith.constant 0 : index
    %9 = vector.load %arg18[%c0_19, %c17_20, %c0_21, %c0_22] : memref<1x18x32x8xf32, #tpu.memory_space<vmem>>, vector<1x1x32x8xf32>
    tpu.vector_store %arg18[%c0_19, %c17_20, %c0_21, %c0_22], %6 {strides = array<i32>} : memref<1x18x32x8xf32, #tpu.memory_space<vmem>>, vector<1x1x32x8xf32>,
    %c0_23 = arith.constant 0 : index
    %c0_24 = arith.constant 0 : index
    %c7_25 = arith.constant 7 : index
    %c0_26 = arith.constant 0 : index
    %10 = vector.load %arg18[%c0_23, %c0_24, %c7_25, %c0_26] : memref<1x18x32x8xf32, #tpu.memory_space<vmem>>, vector<1x18x1x8xf32>
    tpu.vector_store %arg18[%c0_23, %c0_24, %c7_25, %c0_26], %7 {strides = array<i32>} : memref<1x18x32x8xf32, #tpu.memory_space<vmem>>, vector<1x18x1x8xf32>,
    %c0_27 = arith.constant 0 : index
    %c0_28 = arith.constant 0 : index
    %c24_29 = arith.constant 24 : index
    %c0_30 = arith.constant 0 : index
    %11 = vector.load %arg18[%c0_27, %c0_28, %c24_29, %c0_30] : memref<1x18x32x8xf32, #tpu.memory_space<vmem>>, vector<1x18x1x8xf32>
    tpu.vector_store %arg18[%c0_27, %c0_28, %c24_29, %c0_30], %7 {strides = array<i32>} : memref<1x18x32x8xf32, #tpu.memory_space<vmem>>, vector<1x18x1x8xf32>,
    %cst_31 = arith.constant 0xFF800000 : f32
    %12 = vector.broadcast %cst_31 : f32 to vector<1x16x2x2xf32>
    %c0_32 = arith.constant 0 : index
    %c0_33 = arith.constant 0 : index
    %c6 = arith.constant 6 : index
    %c0_34 = arith.constant 0 : index
    %13 = vector.load %arg16[%c0_32, %c0_33, %c6, %c0_34] : memref<1x16x32x2xf32, #tpu.memory_space<vmem>>, vector<1x16x2x2xf32>
    tpu.vector_store %arg16[%c0_32, %c0_33, %c6, %c0_34], %12 {strides = array<i32>} : memref<1x16x32x2xf32, #tpu.memory_space<vmem>>, vector<1x16x2x2xf32>,
    %c0_35 = arith.constant 0 : index
    %c0_36 = arith.constant 0 : index
    %c24_37 = arith.constant 24 : index
    %c0_38 = arith.constant 0 : index
    %14 = vector.load %arg16[%c0_35, %c0_36, %c24_37, %c0_38] : memref<1x16x32x2xf32, #tpu.memory_space<vmem>>, vector<1x16x2x2xf32>
    tpu.vector_store %arg16[%c0_35, %c0_36, %c24_37, %c0_38], %12 {strides = array<i32>} : memref<1x16x32x2xf32, #tpu.memory_space<vmem>>, vector<1x16x2x2xf32>,
    %cst_39 = arith.constant 0xFF800000 : f32
    %15 = vector.broadcast %cst_39 : f32 to vector<1x2x16x2xf32>
    %c0_40 = arith.constant 0 : index
    %c0_41 = arith.constant 0 : index
    %c0_42 = arith.constant 0 : index
    %c0_43 = arith.constant 0 : index
    %16 = vector.load %arg17[%c0_40, %c0_41, %c0_42, %c0_43] : memref<1x20x16x2xf32, #tpu.memory_space<vmem>>, vector<1x2x16x2xf32>
    tpu.vector_store %arg17[%c0_40, %c0_41, %c0_42, %c0_43], %15 {strides = array<i32>} : memref<1x20x16x2xf32, #tpu.memory_space<vmem>>, vector<1x2x16x2xf32>,
    %c0_44 = arith.constant 0 : index
    %c18 = arith.constant 18 : index
    %c0_45 = arith.constant 0 : index
    %c0_46 = arith.constant 0 : index
    %17 = vector.load %arg17[%c0_44, %c18, %c0_45, %c0_46] : memref<1x20x16x2xf32, #tpu.memory_space<vmem>>, vector<1x2x16x2xf32>
    tpu.vector_store %arg17[%c0_44, %c18, %c0_45, %c0_46], %15 {strides = array<i32>} : memref<1x20x16x2xf32, #tpu.memory_space<vmem>>, vector<1x2x16x2xf32>,
    %c0_47 = arith.constant 0 : index
    %c0_48 = arith.constant 0 : index
    %c0_49 = arith.constant 0 : index
    %c0_50 = arith.constant 0 : index
    %18 = vector.load %arg1[%c0_47, %c0_48, %c0_49, %c0_50] : memref<1x16x16x4xf32, #tpu.memory_space<vmem>>, vector<1x16x16x4xf32>
    %19 = vector.shape_cast %18 : vector<1x16x16x4xf32> to vector<256x4xf32>
    %20 = arith.truncf %19 : vector<256x4xf32> to vector<256x4xbf16>
    %c0_51 = arith.constant 0 : index
    %c0_52 = arith.constant 0 : index
    %21 = vector.load %arg2[%c0_51, %c0_52] : memref<4x2xbf16, #tpu.memory_space<vmem>>, vector<4x2xbf16>
    %cst_53 = arith.constant dense<0.000000e+00> : vector<256x2xf32>
    %22 = tpu.matmul %20, %21, %cst_53 {dimension_numbers = #tpu.dot_dimension_numbers<[1], [0], [0], [1], [0, 0, 1, 1], [], []>} : vector<256x4xbf16>, vector<4x2xbf16>, vector<256x2xf32> -> vector<256x2xf32>
    %c0_54 = arith.constant 0 : index
    %c0_55 = arith.constant 0 : index
    %23 = vector.load %arg3[%c0_54, %c0_55] : memref<1x2xf32, #tpu.memory_space<vmem>>, vector<1x2xf32>
    %24 = vector.broadcast %23 : vector<1x2xf32> to vector<256x2xf32>
    %25 = arith.mulf %22, %24 : vector<256x2xf32>
    %c0_56 = arith.constant 0 : index
    %c0_57 = arith.constant 0 : index
    %26 = vector.load %arg4[%c0_56, %c0_57] : memref<1x2xf32, #tpu.memory_space<vmem>>, vector<1x2xf32>
    %27 = vector.broadcast %26 : vector<1x2xf32> to vector<256x2xf32>
    %28 = arith.addf %25, %27 : vector<256x2xf32>
    %29 = vector.shape_cast %28 : vector<256x2xf32> to vector<1x16x16x2xf32>
    %c0_58 = arith.constant 0 : index
    %c0_59 = arith.constant 0 : index
    %c0_60 = arith.constant 0 : index
    %30 = vector.load %arg5[%c0_58, %c0_59, %c0_60] : memref<3x3x2xf32, #tpu.memory_space<vmem>>, vector<3x3x2xf32>
    %c0_61 = arith.constant 0 : index
    %c0_62 = arith.constant 0 : index
    %31 = vector.load %arg6[%c0_61, %c0_62] : memref<1x2xf32, #tpu.memory_space<vmem>>, vector<1x2xf32>
    %c0_63 = arith.constant 0 : index
    %c0_64 = arith.constant 0 : index
    %32 = vector.load %arg7[%c0_63, %c0_64] : memref<1x2xf32, #tpu.memory_space<vmem>>, vector<1x2xf32>
    %c0_65 = arith.constant 0 : index
    %c1 = arith.constant 1 : index
    %c8 = arith.constant 8 : index
    %c0_66 = arith.constant 0 : index
    %33 = vector.load %arg15[%c0_65, %c1, %c8, %c0_66] : memref<1x18x32x2xf32, #tpu.memory_space<vmem>>, vector<1x16x16x2xf32>
    tpu.vector_store %arg15[%c0_65, %c1, %c8, %c0_66], %29 {strides = array<i32>} : memref<1x18x32x2xf32, #tpu.memory_space<vmem>>, vector<1x16x16x2xf32>,
    %34 = vector.extract_strided_slice %30 {offsets = [0, 0, 0], sizes = [1, 1, 2], strides = [1, 1, 1]} : vector<3x3x2xf32> to vector<1x1x2xf32>
    %35 = vector.shape_cast %34 : vector<1x1x2xf32> to vector<2xf32>
    %36 = vector.shape_cast %35 : vector<2xf32> to vector<1x1x1x2xf32>
    %37 = vector.extract_strided_slice %30 {offsets = [0, 1, 0], sizes = [1, 1, 2], strides = [1, 1, 1]} : vector<3x3x2xf32> to vector<1x1x2xf32>
    %38 = vector.shape_cast %37 : vector<1x1x2xf32> to vector<2xf32>
    %39 = vector.shape_cast %38 : vector<2xf32> to vector<1x1x1x2xf32>
    %40 = vector.extract_strided_slice %30 {offsets = [0, 2, 0], sizes = [1, 1, 2], strides = [1, 1, 1]} : vector<3x3x2xf32> to vector<1x1x2xf32>
    %41 = vector.shape_cast %40 : vector<1x1x2xf32> to vector<2xf32>
    %42 = vector.shape_cast %41 : vector<2xf32> to vector<1x1x1x2xf32>
    %43 = vector.extract_strided_slice %30 {offsets = [1, 0, 0], sizes = [1, 1, 2], strides = [1, 1, 1]} : vector<3x3x2xf32> to vector<1x1x2xf32>
    %44 = vector.shape_cast %43 : vector<1x1x2xf32> to vector<2xf32>
    %45 = vector.shape_cast %44 : vector<2xf32> to vector<1x1x1x2xf32>
    %46 = vector.extract_strided_slice %30 {offsets = [1, 1, 0], sizes = [1, 1, 2], strides = [1, 1, 1]} : vector<3x3x2xf32> to vector<1x1x2xf32>
    %47 = vector.shape_cast %46 : vector<1x1x2xf32> to vector<2xf32>
    %48 = vector.shape_cast %47 : vector<2xf32> to vector<1x1x1x2xf32>
    %49 = vector.extract_strided_slice %30 {offsets = [1, 2, 0], sizes = [1, 1, 2], strides = [1, 1, 1]} : vector<3x3x2xf32> to vector<1x1x2xf32>
    %50 = vector.shape_cast %49 : vector<1x1x2xf32> to vector<2xf32>
    %51 = vector.shape_cast %50 : vector<2xf32> to vector<1x1x1x2xf32>
    %52 = vector.extract_strided_slice %30 {offsets = [2, 0, 0], sizes = [1, 1, 2], strides = [1, 1, 1]} : vector<3x3x2xf32> to vector<1x1x2xf32>
    %53 = vector.shape_cast %52 : vector<1x1x2xf32> to vector<2xf32>
    %54 = vector.shape_cast %53 : vector<2xf32> to vector<1x1x1x2xf32>
    %55 = vector.extract_strided_slice %30 {offsets = [2, 1, 0], sizes = [1, 1, 2], strides = [1, 1, 1]} : vector<3x3x2xf32> to vector<1x1x2xf32>
    %56 = vector.shape_cast %55 : vector<1x1x2xf32> to vector<2xf32>
    %57 = vector.shape_cast %56 : vector<2xf32> to vector<1x1x1x2xf32>
    %58 = vector.extract_strided_slice %30 {offsets = [2, 2, 0], sizes = [1, 1, 2], strides = [1, 1, 1]} : vector<3x3x2xf32> to vector<1x1x2xf32>
    %59 = vector.shape_cast %58 : vector<1x1x2xf32> to vector<2xf32>
    %60 = vector.shape_cast %59 : vector<2xf32> to vector<1x1x1x2xf32>
    %c0_67 = arith.constant 0 : index
    %c0_68 = arith.constant 0 : index
    %c7_69 = arith.constant 7 : index
    %c0_70 = arith.constant 0 : index
    %61 = vector.load %arg15[%c0_67, %c0_68, %c7_69, %c0_70] : memref<1x18x32x2xf32, #tpu.memory_space<vmem>>, vector<1x16x16x2xf32>
    %62 = vector.broadcast %36 : vector<1x1x1x2xf32> to vector<1x16x16x2xf32>
    %63 = arith.mulf %61, %62 : vector<1x16x16x2xf32>
    %c0_71 = arith.constant 0 : index
    %c0_72 = arith.constant 0 : index
    %c8_73 = arith.constant 8 : index
    %c0_74 = arith.constant 0 : index
    %64 = vector.load %arg15[%c0_71, %c0_72, %c8_73, %c0_74] : memref<1x18x32x2xf32, #tpu.memory_space<vmem>>, vector<1x16x16x2xf32>
    %65 = vector.broadcast %39 : vector<1x1x1x2xf32> to vector<1x16x16x2xf32>
    %66 = arith.mulf %64, %65 : vector<1x16x16x2xf32>
    %67 = arith.addf %63, %66 : vector<1x16x16x2xf32>
    %c0_75 = arith.constant 0 : index
    %c0_76 = arith.constant 0 : index
    %c9 = arith.constant 9 : index
    %c0_77 = arith.constant 0 : index
    %68 = vector.load %arg15[%c0_75, %c0_76, %c9, %c0_77] : memref<1x18x32x2xf32, #tpu.memory_space<vmem>>, vector<1x16x16x2xf32>
    %69 = vector.broadcast %42 : vector<1x1x1x2xf32> to vector<1x16x16x2xf32>
    %70 = arith.mulf %68, %69 : vector<1x16x16x2xf32>
    %71 = arith.addf %67, %70 : vector<1x16x16x2xf32>
    %c0_78 = arith.constant 0 : index
    %c1_79 = arith.constant 1 : index
    %c7_80 = arith.constant 7 : index
    %c0_81 = arith.constant 0 : index
    %72 = vector.load %arg15[%c0_78, %c1_79, %c7_80, %c0_81] : memref<1x18x32x2xf32, #tpu.memory_space<vmem>>, vector<1x16x16x2xf32>
    %73 = vector.broadcast %45 : vector<1x1x1x2xf32> to vector<1x16x16x2xf32>
    %74 = arith.mulf %72, %73 : vector<1x16x16x2xf32>
    %75 = arith.addf %71, %74 : vector<1x16x16x2xf32>
    %c0_82 = arith.constant 0 : index
    %c1_83 = arith.constant 1 : index
    %c8_84 = arith.constant 8 : index
    %c0_85 = arith.constant 0 : index
    %76 = vector.load %arg15[%c0_82, %c1_83, %c8_84, %c0_85] : memref<1x18x32x2xf32, #tpu.memory_space<vmem>>, vector<1x16x16x2xf32>
    %77 = vector.broadcast %48 : vector<1x1x1x2xf32> to vector<1x16x16x2xf32>
    %78 = arith.mulf %76, %77 : vector<1x16x16x2xf32>
    %79 = arith.addf %75, %78 : vector<1x16x16x2xf32>
    %c0_86 = arith.constant 0 : index
    %c1_87 = arith.constant 1 : index
    %c9_88 = arith.constant 9 : index
    %c0_89 = arith.constant 0 : index
    %80 = vector.load %arg15[%c0_86, %c1_87, %c9_88, %c0_89] : memref<1x18x32x2xf32, #tpu.memory_space<vmem>>, vector<1x16x16x2xf32>
    %81 = vector.broadcast %51 : vector<1x1x1x2xf32> to vector<1x16x16x2xf32>
    %82 = arith.mulf %80, %81 : vector<1x16x16x2xf32>
    %83 = arith.addf %79, %82 : vector<1x16x16x2xf32>
    %c0_90 = arith.constant 0 : index
    %c2 = arith.constant 2 : index
    %c7_91 = arith.constant 7 : index
    %c0_92 = arith.constant 0 : index
    %84 = vector.load %arg15[%c0_90, %c2, %c7_91, %c0_92] : memref<1x18x32x2xf32, #tpu.memory_space<vmem>>, vector<1x16x16x2xf32>
    %85 = vector.broadcast %54 : vector<1x1x1x2xf32> to vector<1x16x16x2xf32>
    %86 = arith.mulf %84, %85 : vector<1x16x16x2xf32>
    %87 = arith.addf %83, %86 : vector<1x16x16x2xf32>
    %c0_93 = arith.constant 0 : index
    %c2_94 = arith.constant 2 : index
    %c8_95 = arith.constant 8 : index
    %c0_96 = arith.constant 0 : index
    %88 = vector.load %arg15[%c0_93, %c2_94, %c8_95, %c0_96] : memref<1x18x32x2xf32, #tpu.memory_space<vmem>>, vector<1x16x16x2xf32>
    %89 = vector.broadcast %57 : vector<1x1x1x2xf32> to vector<1x16x16x2xf32>
    %90 = arith.mulf %88, %89 : vector<1x16x16x2xf32>
    %91 = arith.addf %87, %90 : vector<1x16x16x2xf32>
    %c0_97 = arith.constant 0 : index
    %c2_98 = arith.constant 2 : index
    %c9_99 = arith.constant 9 : index
    %c0_100 = arith.constant 0 : index
    %92 = vector.load %arg15[%c0_97, %c2_98, %c9_99, %c0_100] : memref<1x18x32x2xf32, #tpu.memory_space<vmem>>, vector<1x16x16x2xf32>
    %93 = vector.broadcast %60 : vector<1x1x1x2xf32> to vector<1x16x16x2xf32>
    %94 = arith.mulf %92, %93 : vector<1x16x16x2xf32>
    %95 = arith.addf %91, %94 : vector<1x16x16x2xf32>
    %96 = vector.shape_cast %31 : vector<1x2xf32> to vector<1x1x1x2xf32>
    %97 = vector.broadcast %96 : vector<1x1x1x2xf32> to vector<1x16x16x2xf32>
    %98 = arith.mulf %95, %97 : vector<1x16x16x2xf32>
    %99 = vector.shape_cast %32 : vector<1x2xf32> to vector<1x1x1x2xf32>
    %100 = vector.broadcast %99 : vector<1x1x1x2xf32> to vector<1x16x16x2xf32>
    %101 = arith.addf %98, %100 : vector<1x16x16x2xf32>
    %102 = arith.maximumf %29, %101 : vector<1x16x16x2xf32>
    %103 = vector.shape_cast %102 : vector<1x16x16x2xf32> to vector<256x2xf32>
    %104 = arith.truncf %103 : vector<256x2xf32> to vector<256x2xbf16>
    %c0_101 = arith.constant 0 : index
    %c0_102 = arith.constant 0 : index
    %105 = vector.load %arg19[%c0_101, %c0_102] : memref<256x8xbf16, #tpu.memory_space<vmem>>, vector<256x2xbf16>
    tpu.vector_store %arg19[%c0_101, %c0_102], %104 {strides = array<i32>} : memref<256x8xbf16, #tpu.memory_space<vmem>>, vector<256x2xbf16>,
    %c0_103 = arith.constant 0 : index
    %c0_104 = arith.constant 0 : index
    %c8_105 = arith.constant 8 : index
    %c0_106 = arith.constant 0 : index
    %106 = vector.load %arg16[%c0_103, %c0_104, %c8_105, %c0_106] : memref<1x16x32x2xf32, #tpu.memory_space<vmem>>, vector<1x16x16x2xf32>
    tpu.vector_store %arg16[%c0_103, %c0_104, %c8_105, %c0_106], %102 {strides = array<i32>} : memref<1x16x32x2xf32, #tpu.memory_space<vmem>>, vector<1x16x16x2xf32>,
    %c0_107 = arith.constant 0 : index
    %c0_108 = arith.constant 0 : index
    %c6_109 = arith.constant 6 : index
    %c0_110 = arith.constant 0 : index
    %107 = vector.load %arg16[%c0_107, %c0_108, %c6_109, %c0_110] : memref<1x16x32x2xf32, #tpu.memory_space<vmem>>, vector<1x16x16x2xf32>
    %c0_111 = arith.constant 0 : index
    %c0_112 = arith.constant 0 : index
    %c7_113 = arith.constant 7 : index
    %c0_114 = arith.constant 0 : index
    %108 = vector.load %arg16[%c0_111, %c0_112, %c7_113, %c0_114] : memref<1x16x32x2xf32, #tpu.memory_space<vmem>>, vector<1x16x16x2xf32>
    %109 = arith.maximumf %107, %108 : vector<1x16x16x2xf32>
    %c0_115 = arith.constant 0 : index
    %c0_116 = arith.constant 0 : index
    %c8_117 = arith.constant 8 : index
    %c0_118 = arith.constant 0 : index
    %110 = vector.load %arg16[%c0_115, %c0_116, %c8_117, %c0_118] : memref<1x16x32x2xf32, #tpu.memory_space<vmem>>, vector<1x16x16x2xf32>
    %111 = arith.maximumf %109, %110 : vector<1x16x16x2xf32>
    %c0_119 = arith.constant 0 : index
    %c0_120 = arith.constant 0 : index
    %c9_121 = arith.constant 9 : index
    %c0_122 = arith.constant 0 : index
    %112 = vector.load %arg16[%c0_119, %c0_120, %c9_121, %c0_122] : memref<1x16x32x2xf32, #tpu.memory_space<vmem>>, vector<1x16x16x2xf32>
    %113 = arith.maximumf %111, %112 : vector<1x16x16x2xf32>
    %c0_123 = arith.constant 0 : index
    %c0_124 = arith.constant 0 : index
    %c10 = arith.constant 10 : index
    %c0_125 = arith.constant 0 : index
    %114 = vector.load %arg16[%c0_123, %c0_124, %c10, %c0_125] : memref<1x16x32x2xf32, #tpu.memory_space<vmem>>, vector<1x16x16x2xf32>
    %115 = arith.maximumf %113, %114 : vector<1x16x16x2xf32>
    %c0_126 = arith.constant 0 : index
    %c2_127 = arith.constant 2 : index
    %c0_128 = arith.constant 0 : index
    %c0_129 = arith.constant 0 : index
    %116 = vector.load %arg17[%c0_126, %c2_127, %c0_128, %c0_129] : memref<1x20x16x2xf32, #tpu.memory_space<vmem>>, vector<1x16x16x2xf32>
    tpu.vector_store %arg17[%c0_126, %c2_127, %c0_128, %c0_129], %115 {strides = array<i32>} : memref<1x20x16x2xf32, #tpu.memory_space<vmem>>, vector<1x16x16x2xf32>,
    %c0_130 = arith.constant 0 : index
    %c0_131 = arith.constant 0 : index
    %c0_132 = arith.constant 0 : index
    %c0_133 = arith.constant 0 : index
    %117 = vector.load %arg17[%c0_130, %c0_131, %c0_132, %c0_133] : memref<1x20x16x2xf32, #tpu.memory_space<vmem>>, vector<1x16x16x2xf32>
    %c0_134 = arith.constant 0 : index
    %c1_135 = arith.constant 1 : index
    %c0_136 = arith.constant 0 : index
    %c0_137 = arith.constant 0 : index
    %118 = vector.load %arg17[%c0_134, %c1_135, %c0_136, %c0_137] : memref<1x20x16x2xf32, #tpu.memory_space<vmem>>, vector<1x16x16x2xf32>
    %119 = arith.maximumf %117, %118 : vector<1x16x16x2xf32>
    %c0_138 = arith.constant 0 : index
    %c2_139 = arith.constant 2 : index
    %c0_140 = arith.constant 0 : index
    %c0_141 = arith.constant 0 : index
    %120 = vector.load %arg17[%c0_138, %c2_139, %c0_140, %c0_141] : memref<1x20x16x2xf32, #tpu.memory_space<vmem>>, vector<1x16x16x2xf32>
    %121 = arith.maximumf %119, %120 : vector<1x16x16x2xf32>
    %c0_142 = arith.constant 0 : index
    %c3 = arith.constant 3 : index
    %c0_143 = arith.constant 0 : index
    %c0_144 = arith.constant 0 : index
    %122 = vector.load %arg17[%c0_142, %c3, %c0_143, %c0_144] : memref<1x20x16x2xf32, #tpu.memory_space<vmem>>, vector<1x16x16x2xf32>
    %123 = arith.maximumf %121, %122 : vector<1x16x16x2xf32>
    %c0_145 = arith.constant 0 : index
    %c4 = arith.constant 4 : index
    %c0_146 = arith.constant 0 : index
    %c0_147 = arith.constant 0 : index
    %124 = vector.load %arg17[%c0_145, %c4, %c0_146, %c0_147] : memref<1x20x16x2xf32, #tpu.memory_space<vmem>>, vector<1x16x16x2xf32>
    %125 = arith.maximumf %123, %124 : vector<1x16x16x2xf32>
    %126 = vector.shape_cast %125 : vector<1x16x16x2xf32> to vector<256x2xf32>
    %127 = arith.truncf %126 : vector<256x2xf32> to vector<256x2xbf16>
    %c0_148 = arith.constant 0 : index
    %c2_149 = arith.constant 2 : index
    %128 = vector.load %arg19[%c0_148, %c2_149] : memref<256x8xbf16, #tpu.memory_space<vmem>>, vector<256x2xbf16>
    tpu.vector_store %arg19[%c0_148, %c2_149], %127 {strides = array<i32>} : memref<256x8xbf16, #tpu.memory_space<vmem>>, vector<256x2xbf16>,
    %c0_150 = arith.constant 0 : index
    %c0_151 = arith.constant 0 : index
    %c8_152 = arith.constant 8 : index
    %c0_153 = arith.constant 0 : index
    %129 = vector.load %arg16[%c0_150, %c0_151, %c8_152, %c0_153] : memref<1x16x32x2xf32, #tpu.memory_space<vmem>>, vector<1x16x16x2xf32>
    tpu.vector_store %arg16[%c0_150, %c0_151, %c8_152, %c0_153], %125 {strides = array<i32>} : memref<1x16x32x2xf32, #tpu.memory_space<vmem>>, vector<1x16x16x2xf32>,
    %c0_154 = arith.constant 0 : index
    %c0_155 = arith.constant 0 : index
    %c6_156 = arith.constant 6 : index
    %c0_157 = arith.constant 0 : index
    %130 = vector.load %arg16[%c0_154, %c0_155, %c6_156, %c0_157] : memref<1x16x32x2xf32, #tpu.memory_space<vmem>>, vector<1x16x16x2xf32>
    %c0_158 = arith.constant 0 : index
    %c0_159 = arith.constant 0 : index
    %c7_160 = arith.constant 7 : index
    %c0_161 = arith.constant 0 : index
    %131 = vector.load %arg16[%c0_158, %c0_159, %c7_160, %c0_161] : memref<1x16x32x2xf32, #tpu.memory_space<vmem>>, vector<1x16x16x2xf32>
    %132 = arith.maximumf %130, %131 : vector<1x16x16x2xf32>
    %c0_162 = arith.constant 0 : index
    %c0_163 = arith.constant 0 : index
    %c8_164 = arith.constant 8 : index
    %c0_165 = arith.constant 0 : index
    %133 = vector.load %arg16[%c0_162, %c0_163, %c8_164, %c0_165] : memref<1x16x32x2xf32, #tpu.memory_space<vmem>>, vector<1x16x16x2xf32>
    %134 = arith.maximumf %132, %133 : vector<1x16x16x2xf32>
    %c0_166 = arith.constant 0 : index
    %c0_167 = arith.constant 0 : index
    %c9_168 = arith.constant 9 : index
    %c0_169 = arith.constant 0 : index
    %135 = vector.load %arg16[%c0_166, %c0_167, %c9_168, %c0_169] : memref<1x16x32x2xf32, #tpu.memory_space<vmem>>, vector<1x16x16x2xf32>
    %136 = arith.maximumf %134, %135 : vector<1x16x16x2xf32>
    %c0_170 = arith.constant 0 : index
    %c0_171 = arith.constant 0 : index
    %c10_172 = arith.constant 10 : index
    %c0_173 = arith.constant 0 : index
    %137 = vector.load %arg16[%c0_170, %c0_171, %c10_172, %c0_173] : memref<1x16x32x2xf32, #tpu.memory_space<vmem>>, vector<1x16x16x2xf32>
    %138 = arith.maximumf %136, %137 : vector<1x16x16x2xf32>
    %c0_174 = arith.constant 0 : index
    %c2_175 = arith.constant 2 : index
    %c0_176 = arith.constant 0 : index
    %c0_177 = arith.constant 0 : index
    %139 = vector.load %arg17[%c0_174, %c2_175, %c0_176, %c0_177] : memref<1x20x16x2xf32, #tpu.memory_space<vmem>>, vector<1x16x16x2xf32>
    tpu.vector_store %arg17[%c0_174, %c2_175, %c0_176, %c0_177], %138 {strides = array<i32>} : memref<1x20x16x2xf32, #tpu.memory_space<vmem>>, vector<1x16x16x2xf32>,
    %c0_178 = arith.constant 0 : index
    %c0_179 = arith.constant 0 : index
    %c0_180 = arith.constant 0 : index
    %c0_181 = arith.constant 0 : index
    %140 = vector.load %arg17[%c0_178, %c0_179, %c0_180, %c0_181] : memref<1x20x16x2xf32, #tpu.memory_space<vmem>>, vector<1x16x16x2xf32>
    %c0_182 = arith.constant 0 : index
    %c1_183 = arith.constant 1 : index
    %c0_184 = arith.constant 0 : index
    %c0_185 = arith.constant 0 : index
    %141 = vector.load %arg17[%c0_182, %c1_183, %c0_184, %c0_185] : memref<1x20x16x2xf32, #tpu.memory_space<vmem>>, vector<1x16x16x2xf32>
    %142 = arith.maximumf %140, %141 : vector<1x16x16x2xf32>
    %c0_186 = arith.constant 0 : index
    %c2_187 = arith.constant 2 : index
    %c0_188 = arith.constant 0 : index
    %c0_189 = arith.constant 0 : index
    %143 = vector.load %arg17[%c0_186, %c2_187, %c0_188, %c0_189] : memref<1x20x16x2xf32, #tpu.memory_space<vmem>>, vector<1x16x16x2xf32>
    %144 = arith.maximumf %142, %143 : vector<1x16x16x2xf32>
    %c0_190 = arith.constant 0 : index
    %c3_191 = arith.constant 3 : index
    %c0_192 = arith.constant 0 : index
    %c0_193 = arith.constant 0 : index
    %145 = vector.load %arg17[%c0_190, %c3_191, %c0_192, %c0_193] : memref<1x20x16x2xf32, #tpu.memory_space<vmem>>, vector<1x16x16x2xf32>
    %146 = arith.maximumf %144, %145 : vector<1x16x16x2xf32>
    %c0_194 = arith.constant 0 : index
    %c4_195 = arith.constant 4 : index
    %c0_196 = arith.constant 0 : index
    %c0_197 = arith.constant 0 : index
    %147 = vector.load %arg17[%c0_194, %c4_195, %c0_196, %c0_197] : memref<1x20x16x2xf32, #tpu.memory_space<vmem>>, vector<1x16x16x2xf32>
    %148 = arith.maximumf %146, %147 : vector<1x16x16x2xf32>
    %149 = vector.shape_cast %148 : vector<1x16x16x2xf32> to vector<256x2xf32>
    %150 = arith.truncf %149 : vector<256x2xf32> to vector<256x2xbf16>
    %c0_198 = arith.constant 0 : index
    %c4_199 = arith.constant 4 : index
    %151 = vector.load %arg19[%c0_198, %c4_199] : memref<256x8xbf16, #tpu.memory_space<vmem>>, vector<256x2xbf16>
    tpu.vector_store %arg19[%c0_198, %c4_199], %150 {strides = array<i32>} : memref<256x8xbf16, #tpu.memory_space<vmem>>, vector<256x2xbf16>,
    %c0_200 = arith.constant 0 : index
    %c0_201 = arith.constant 0 : index
    %c8_202 = arith.constant 8 : index
    %c0_203 = arith.constant 0 : index
    %152 = vector.load %arg16[%c0_200, %c0_201, %c8_202, %c0_203] : memref<1x16x32x2xf32, #tpu.memory_space<vmem>>, vector<1x16x16x2xf32>
    tpu.vector_store %arg16[%c0_200, %c0_201, %c8_202, %c0_203], %148 {strides = array<i32>} : memref<1x16x32x2xf32, #tpu.memory_space<vmem>>, vector<1x16x16x2xf32>,
    %c0_204 = arith.constant 0 : index
    %c0_205 = arith.constant 0 : index
    %c6_206 = arith.constant 6 : index
    %c0_207 = arith.constant 0 : index
    %153 = vector.load %arg16[%c0_204, %c0_205, %c6_206, %c0_207] : memref<1x16x32x2xf32, #tpu.memory_space<vmem>>, vector<1x16x16x2xf32>
    %c0_208 = arith.constant 0 : index
    %c0_209 = arith.constant 0 : index
    %c7_210 = arith.constant 7 : index
    %c0_211 = arith.constant 0 : index
    %154 = vector.load %arg16[%c0_208, %c0_209, %c7_210, %c0_211] : memref<1x16x32x2xf32, #tpu.memory_space<vmem>>, vector<1x16x16x2xf32>
    %155 = arith.maximumf %153, %154 : vector<1x16x16x2xf32>
    %c0_212 = arith.constant 0 : index
    %c0_213 = arith.constant 0 : index
    %c8_214 = arith.constant 8 : index
    %c0_215 = arith.constant 0 : index
    %156 = vector.load %arg16[%c0_212, %c0_213, %c8_214, %c0_215] : memref<1x16x32x2xf32, #tpu.memory_space<vmem>>, vector<1x16x16x2xf32>
    %157 = arith.maximumf %155, %156 : vector<1x16x16x2xf32>
    %c0_216 = arith.constant 0 : index
    %c0_217 = arith.constant 0 : index
    %c9_218 = arith.constant 9 : index
    %c0_219 = arith.constant 0 : index
    %158 = vector.load %arg16[%c0_216, %c0_217, %c9_218, %c0_219] : memref<1x16x32x2xf32, #tpu.memory_space<vmem>>, vector<1x16x16x2xf32>
    %159 = arith.maximumf %157, %158 : vector<1x16x16x2xf32>
    %c0_220 = arith.constant 0 : index
    %c0_221 = arith.constant 0 : index
    %c10_222 = arith.constant 10 : index
    %c0_223 = arith.constant 0 : index
    %160 = vector.load %arg16[%c0_220, %c0_221, %c10_222, %c0_223] : memref<1x16x32x2xf32, #tpu.memory_space<vmem>>, vector<1x16x16x2xf32>
    %161 = arith.maximumf %159, %160 : vector<1x16x16x2xf32>
    %c0_224 = arith.constant 0 : index
    %c2_225 = arith.constant 2 : index
    %c0_226 = arith.constant 0 : index
    %c0_227 = arith.constant 0 : index
    %162 = vector.load %arg17[%c0_224, %c2_225, %c0_226, %c0_227] : memref<1x20x16x2xf32, #tpu.memory_space<vmem>>, vector<1x16x16x2xf32>
    tpu.vector_store %arg17[%c0_224, %c2_225, %c0_226, %c0_227], %161 {strides = array<i32>} : memref<1x20x16x2xf32, #tpu.memory_space<vmem>>, vector<1x16x16x2xf32>,
    %c0_228 = arith.constant 0 : index
    %c0_229 = arith.constant 0 : index
    %c0_230 = arith.constant 0 : index
    %c0_231 = arith.constant 0 : index
    %163 = vector.load %arg17[%c0_228, %c0_229, %c0_230, %c0_231] : memref<1x20x16x2xf32, #tpu.memory_space<vmem>>, vector<1x16x16x2xf32>
    %c0_232 = arith.constant 0 : index
    %c1_233 = arith.constant 1 : index
    %c0_234 = arith.constant 0 : index
    %c0_235 = arith.constant 0 : index
    %164 = vector.load %arg17[%c0_232, %c1_233, %c0_234, %c0_235] : memref<1x20x16x2xf32, #tpu.memory_space<vmem>>, vector<1x16x16x2xf32>
    %165 = arith.maximumf %163, %164 : vector<1x16x16x2xf32>
    %c0_236 = arith.constant 0 : index
    %c2_237 = arith.constant 2 : index
    %c0_238 = arith.constant 0 : index
    %c0_239 = arith.constant 0 : index
    %166 = vector.load %arg17[%c0_236, %c2_237, %c0_238, %c0_239] : memref<1x20x16x2xf32, #tpu.memory_space<vmem>>, vector<1x16x16x2xf32>
    %167 = arith.maximumf %165, %166 : vector<1x16x16x2xf32>
    %c0_240 = arith.constant 0 : index
    %c3_241 = arith.constant 3 : index
    %c0_242 = arith.constant 0 : index
    %c0_243 = arith.constant 0 : index
    %168 = vector.load %arg17[%c0_240, %c3_241, %c0_242, %c0_243] : memref<1x20x16x2xf32, #tpu.memory_space<vmem>>, vector<1x16x16x2xf32>
    %169 = arith.maximumf %167, %168 : vector<1x16x16x2xf32>
    %c0_244 = arith.constant 0 : index
    %c4_245 = arith.constant 4 : index
    %c0_246 = arith.constant 0 : index
    %c0_247 = arith.constant 0 : index
    %170 = vector.load %arg17[%c0_244, %c4_245, %c0_246, %c0_247] : memref<1x20x16x2xf32, #tpu.memory_space<vmem>>, vector<1x16x16x2xf32>
    %171 = arith.maximumf %169, %170 : vector<1x16x16x2xf32>
    %172 = vector.shape_cast %171 : vector<1x16x16x2xf32> to vector<256x2xf32>
    %173 = arith.truncf %172 : vector<256x2xf32> to vector<256x2xbf16>
    %c0_248 = arith.constant 0 : index
    %c6_249 = arith.constant 6 : index
    %174 = vector.load %arg19[%c0_248, %c6_249] : memref<256x8xbf16, #tpu.memory_space<vmem>>, vector<256x2xbf16>
    tpu.vector_store %arg19[%c0_248, %c6_249], %173 {strides = array<i32>} : memref<256x8xbf16, #tpu.memory_space<vmem>>, vector<256x2xbf16>,
    %c0_250 = arith.constant 0 : index
    %c0_251 = arith.constant 0 : index
    %175 = vector.load %arg19[%c0_250, %c0_251] : memref<256x8xbf16, #tpu.memory_space<vmem>>, vector<256x8xbf16>
    %c0_252 = arith.constant 0 : index
    %c0_253 = arith.constant 0 : index
    %176 = vector.load %arg8[%c0_252, %c0_253] : memref<8x8xbf16, #tpu.memory_space<vmem>>, vector<8x8xbf16>
    %cst_254 = arith.constant dense<0.000000e+00> : vector<256x8xf32>
    %177 = tpu.matmul %175, %176, %cst_254 {dimension_numbers = #tpu.dot_dimension_numbers<[1], [0], [0], [1], [0, 0, 1, 1], [], []>} : vector<256x8xbf16>, vector<8x8xbf16>, vector<256x8xf32> -> vector<256x8xf32>
    %c0_255 = arith.constant 0 : index
    %c0_256 = arith.constant 0 : index
    %178 = vector.load %arg9[%c0_255, %c0_256] : memref<1x8xf32, #tpu.memory_space<vmem>>, vector<1x8xf32>
    %179 = vector.broadcast %178 : vector<1x8xf32> to vector<256x8xf32>
    %180 = arith.mulf %177, %179 : vector<256x8xf32>
    %c0_257 = arith.constant 0 : index
    %c0_258 = arith.constant 0 : index
    %181 = vector.load %arg10[%c0_257, %c0_258] : memref<1x8xf32, #tpu.memory_space<vmem>>, vector<1x8xf32>
    %182 = vector.broadcast %181 : vector<1x8xf32> to vector<256x8xf32>
    %183 = arith.addf %180, %182 : vector<256x8xf32>
    %184 = vector.shape_cast %183 : vector<256x8xf32> to vector<1x16x16x8xf32>
    %c0_259 = arith.constant 0 : index
    %c0_260 = arith.constant 0 : index
    %c0_261 = arith.constant 0 : index
    %185 = vector.load %arg11[%c0_259, %c0_260, %c0_261] : memref<3x3x8xf32, #tpu.memory_space<vmem>>, vector<3x3x8xf32>
    %c0_262 = arith.constant 0 : index
    %c0_263 = arith.constant 0 : index
    %186 = vector.load %arg12[%c0_262, %c0_263] : memref<1x8xf32, #tpu.memory_space<vmem>>, vector<1x8xf32>
    %c0_264 = arith.constant 0 : index
    %c0_265 = arith.constant 0 : index
    %187 = vector.load %arg13[%c0_264, %c0_265] : memref<1x8xf32, #tpu.memory_space<vmem>>, vector<1x8xf32>
    %c0_266 = arith.constant 0 : index
    %c1_267 = arith.constant 1 : index
    %c8_268 = arith.constant 8 : index
    %c0_269 = arith.constant 0 : index
    %188 = vector.load %arg18[%c0_266, %c1_267, %c8_268, %c0_269] : memref<1x18x32x8xf32, #tpu.memory_space<vmem>>, vector<1x16x16x8xf32>
    tpu.vector_store %arg18[%c0_266, %c1_267, %c8_268, %c0_269], %184 {strides = array<i32>} : memref<1x18x32x8xf32, #tpu.memory_space<vmem>>, vector<1x16x16x8xf32>,
    %189 = vector.extract_strided_slice %185 {offsets = [0, 0, 0], sizes = [1, 1, 8], strides = [1, 1, 1]} : vector<3x3x8xf32> to vector<1x1x8xf32>
    %190 = vector.shape_cast %189 : vector<1x1x8xf32> to vector<8xf32>
    %191 = vector.shape_cast %190 : vector<8xf32> to vector<1x1x1x8xf32>
    %192 = vector.extract_strided_slice %185 {offsets = [0, 1, 0], sizes = [1, 1, 8], strides = [1, 1, 1]} : vector<3x3x8xf32> to vector<1x1x8xf32>
    %193 = vector.shape_cast %192 : vector<1x1x8xf32> to vector<8xf32>
    %194 = vector.shape_cast %193 : vector<8xf32> to vector<1x1x1x8xf32>
    %195 = vector.extract_strided_slice %185 {offsets = [0, 2, 0], sizes = [1, 1, 8], strides = [1, 1, 1]} : vector<3x3x8xf32> to vector<1x1x8xf32>
    %196 = vector.shape_cast %195 : vector<1x1x8xf32> to vector<8xf32>
    %197 = vector.shape_cast %196 : vector<8xf32> to vector<1x1x1x8xf32>
    %198 = vector.extract_strided_slice %185 {offsets = [1, 0, 0], sizes = [1, 1, 8], strides = [1, 1, 1]} : vector<3x3x8xf32> to vector<1x1x8xf32>
    %199 = vector.shape_cast %198 : vector<1x1x8xf32> to vector<8xf32>
    %200 = vector.shape_cast %199 : vector<8xf32> to vector<1x1x1x8xf32>
    %201 = vector.extract_strided_slice %185 {offsets = [1, 1, 0], sizes = [1, 1, 8], strides = [1, 1, 1]} : vector<3x3x8xf32> to vector<1x1x8xf32>
    %202 = vector.shape_cast %201 : vector<1x1x8xf32> to vector<8xf32>
    %203 = vector.shape_cast %202 : vector<8xf32> to vector<1x1x1x8xf32>
    %204 = vector.extract_strided_slice %185 {offsets = [1, 2, 0], sizes = [1, 1, 8], strides = [1, 1, 1]} : vector<3x3x8xf32> to vector<1x1x8xf32>
    %205 = vector.shape_cast %204 : vector<1x1x8xf32> to vector<8xf32>
    %206 = vector.shape_cast %205 : vector<8xf32> to vector<1x1x1x8xf32>
    %207 = vector.extract_strided_slice %185 {offsets = [2, 0, 0], sizes = [1, 1, 8], strides = [1, 1, 1]} : vector<3x3x8xf32> to vector<1x1x8xf32>
    %208 = vector.shape_cast %207 : vector<1x1x8xf32> to vector<8xf32>
    %209 = vector.shape_cast %208 : vector<8xf32> to vector<1x1x1x8xf32>
    %210 = vector.extract_strided_slice %185 {offsets = [2, 1, 0], sizes = [1, 1, 8], strides = [1, 1, 1]} : vector<3x3x8xf32> to vector<1x1x8xf32>
    %211 = vector.shape_cast %210 : vector<1x1x8xf32> to vector<8xf32>
    %212 = vector.shape_cast %211 : vector<8xf32> to vector<1x1x1x8xf32>
    %213 = vector.extract_strided_slice %185 {offsets = [2, 2, 0], sizes = [1, 1, 8], strides = [1, 1, 1]} : vector<3x3x8xf32> to vector<1x1x8xf32>
    %214 = vector.shape_cast %213 : vector<1x1x8xf32> to vector<8xf32>
    %215 = vector.shape_cast %214 : vector<8xf32> to vector<1x1x1x8xf32>
    %c0_270 = arith.constant 0 : index
    %c0_271 = arith.constant 0 : index
    %c7_272 = arith.constant 7 : index
    %c0_273 = arith.constant 0 : index
    %216 = vector.load %arg18[%c0_270, %c0_271, %c7_272, %c0_273] : memref<1x18x32x8xf32, #tpu.memory_space<vmem>>, vector<1x16x16x8xf32>
    %217 = vector.broadcast %191 : vector<1x1x1x8xf32> to vector<1x16x16x8xf32>
    %218 = arith.mulf %216, %217 : vector<1x16x16x8xf32>
    %c0_274 = arith.constant 0 : index
    %c0_275 = arith.constant 0 : index
    %c8_276 = arith.constant 8 : index
    %c0_277 = arith.constant 0 : index
    %219 = vector.load %arg18[%c0_274, %c0_275, %c8_276, %c0_277] : memref<1x18x32x8xf32, #tpu.memory_space<vmem>>, vector<1x16x16x8xf32>
    %220 = vector.broadcast %194 : vector<1x1x1x8xf32> to vector<1x16x16x8xf32>
    %221 = arith.mulf %219, %220 : vector<1x16x16x8xf32>
    %222 = arith.addf %218, %221 : vector<1x16x16x8xf32>
    %c0_278 = arith.constant 0 : index
    %c0_279 = arith.constant 0 : index
    %c9_280 = arith.constant 9 : index
    %c0_281 = arith.constant 0 : index
    %223 = vector.load %arg18[%c0_278, %c0_279, %c9_280, %c0_281] : memref<1x18x32x8xf32, #tpu.memory_space<vmem>>, vector<1x16x16x8xf32>
    %224 = vector.broadcast %197 : vector<1x1x1x8xf32> to vector<1x16x16x8xf32>
    %225 = arith.mulf %223, %224 : vector<1x16x16x8xf32>
    %226 = arith.addf %222, %225 : vector<1x16x16x8xf32>
    %c0_282 = arith.constant 0 : index
    %c1_283 = arith.constant 1 : index
    %c7_284 = arith.constant 7 : index
    %c0_285 = arith.constant 0 : index
    %227 = vector.load %arg18[%c0_282, %c1_283, %c7_284, %c0_285] : memref<1x18x32x8xf32, #tpu.memory_space<vmem>>, vector<1x16x16x8xf32>
    %228 = vector.broadcast %200 : vector<1x1x1x8xf32> to vector<1x16x16x8xf32>
    %229 = arith.mulf %227, %228 : vector<1x16x16x8xf32>
    %230 = arith.addf %226, %229 : vector<1x16x16x8xf32>
    %c0_286 = arith.constant 0 : index
    %c1_287 = arith.constant 1 : index
    %c8_288 = arith.constant 8 : index
    %c0_289 = arith.constant 0 : index
    %231 = vector.load %arg18[%c0_286, %c1_287, %c8_288, %c0_289] : memref<1x18x32x8xf32, #tpu.memory_space<vmem>>, vector<1x16x16x8xf32>
    %232 = vector.broadcast %203 : vector<1x1x1x8xf32> to vector<1x16x16x8xf32>
    %233 = arith.mulf %231, %232 : vector<1x16x16x8xf32>
    %234 = arith.addf %230, %233 : vector<1x16x16x8xf32>
    %c0_290 = arith.constant 0 : index
    %c1_291 = arith.constant 1 : index
    %c9_292 = arith.constant 9 : index
    %c0_293 = arith.constant 0 : index
    %235 = vector.load %arg18[%c0_290, %c1_291, %c9_292, %c0_293] : memref<1x18x32x8xf32, #tpu.memory_space<vmem>>, vector<1x16x16x8xf32>
    %236 = vector.broadcast %206 : vector<1x1x1x8xf32> to vector<1x16x16x8xf32>
    %237 = arith.mulf %235, %236 : vector<1x16x16x8xf32>
    %238 = arith.addf %234, %237 : vector<1x16x16x8xf32>
    %c0_294 = arith.constant 0 : index
    %c2_295 = arith.constant 2 : index
    %c7_296 = arith.constant 7 : index
    %c0_297 = arith.constant 0 : index
    %239 = vector.load %arg18[%c0_294, %c2_295, %c7_296, %c0_297] : memref<1x18x32x8xf32, #tpu.memory_space<vmem>>, vector<1x16x16x8xf32>
    %240 = vector.broadcast %209 : vector<1x1x1x8xf32> to vector<1x16x16x8xf32>
    %241 = arith.mulf %239, %240 : vector<1x16x16x8xf32>
    %242 = arith.addf %238, %241 : vector<1x16x16x8xf32>
    %c0_298 = arith.constant 0 : index
    %c2_299 = arith.constant 2 : index
    %c8_300 = arith.constant 8 : index
    %c0_301 = arith.constant 0 : index
    %243 = vector.load %arg18[%c0_298, %c2_299, %c8_300, %c0_301] : memref<1x18x32x8xf32, #tpu.memory_space<vmem>>, vector<1x16x16x8xf32>
    %244 = vector.broadcast %212 : vector<1x1x1x8xf32> to vector<1x16x16x8xf32>
    %245 = arith.mulf %243, %244 : vector<1x16x16x8xf32>
    %246 = arith.addf %242, %245 : vector<1x16x16x8xf32>
    %c0_302 = arith.constant 0 : index
    %c2_303 = arith.constant 2 : index
    %c9_304 = arith.constant 9 : index
    %c0_305 = arith.constant 0 : index
    %247 = vector.load %arg18[%c0_302, %c2_303, %c9_304, %c0_305] : memref<1x18x32x8xf32, #tpu.memory_space<vmem>>, vector<1x16x16x8xf32>
    %248 = vector.broadcast %215 : vector<1x1x1x8xf32> to vector<1x16x16x8xf32>
    %249 = arith.mulf %247, %248 : vector<1x16x16x8xf32>
    %250 = arith.addf %246, %249 : vector<1x16x16x8xf32>
    %251 = vector.shape_cast %186 : vector<1x8xf32> to vector<1x1x1x8xf32>
    %252 = vector.broadcast %251 : vector<1x1x1x8xf32> to vector<1x16x16x8xf32>
    %253 = arith.mulf %250, %252 : vector<1x16x16x8xf32>
    %254 = vector.shape_cast %187 : vector<1x8xf32> to vector<1x1x1x8xf32>
    %255 = vector.broadcast %254 : vector<1x1x1x8xf32> to vector<1x16x16x8xf32>
    %256 = arith.addf %253, %255 : vector<1x16x16x8xf32>
    %257 = arith.maximumf %184, %256 : vector<1x16x16x8xf32>
    %c0_306 = arith.constant 0 : index
    %c0_307 = arith.constant 0 : index
    %c0_308 = arith.constant 0 : index
    %c0_309 = arith.constant 0 : index
    %258 = vector.load %arg14[%c0_306, %c0_307, %c0_308, %c0_309] : memref<1x16x16x8xf32, #tpu.memory_space<vmem>>, vector<1x16x16x8xf32>
    tpu.vector_store %arg14[%c0_306, %c0_307, %c0_308, %c0_309], %257 {strides = array<i32>} : memref<1x16x16x8xf32, #tpu.memory_space<vmem>>, vector<1x16x16x8xf32>,
    return
  }
  func.func @transform_0(%arg0: i32) -> (i32, i32, i32, i32) {
    %c0_i32 = arith.constant 0 : i32
    %c0_i32_0 = arith.constant 0 : i32
    %c0_i32_1 = arith.constant 0 : i32
    %c0_i32_2 = arith.constant 0 : i32
    return %arg0, %c0_i32, %c0_i32_0, %c0_i32_1 : i32, i32, i32, i32
  }
  func.func @transform_1(%arg0: i32) -> (i32, i32) {
    %c0_i32 = arith.constant 0 : i32
    %c0_i32_0 = arith.constant 0 : i32
    %c0_i32_1 = arith.constant 0 : i32
    return %c0_i32, %c0_i32_0 : i32, i32
  }
  func.func @transform_2(%arg0: i32) -> (i32, i32) {
    %c0_i32 = arith.constant 0 : i32
    %c0_i32_0 = arith.constant 0 : i32
    %c0_i32_1 = arith.constant 0 : i32
    return %c0_i32, %c0_i32_0 : i32, i32
  }
  func.func @transform_3(%arg0: i32) -> (i32, i32) {
    %c0_i32 = arith.constant 0 : i32
    %c0_i32_0 = arith.constant 0 : i32
    %c0_i32_1 = arith.constant 0 : i32
    return %c0_i32, %c0_i32_0 : i32, i32
  }
  func.func @transform_4(%arg0: i32) -> (i32, i32, i32) {
    %c0_i32 = arith.constant 0 : i32
    %c0_i32_0 = arith.constant 0 : i32
    %c0_i32_1 = arith.constant 0 : i32
    %c0_i32_2 = arith.constant 0 : i32
    return %c0_i32, %c0_i32_0, %c0_i32_1 : i32, i32, i32
  }
  func.func @transform_5(%arg0: i32) -> (i32, i32) {
    %c0_i32 = arith.constant 0 : i32
    %c0_i32_0 = arith.constant 0 : i32
    %c0_i32_1 = arith.constant 0 : i32
    return %c0_i32, %c0_i32_0 : i32, i32
  }
  func.func @transform_6(%arg0: i32) -> (i32, i32) {
    %c0_i32 = arith.constant 0 : i32
    %c0_i32_0 = arith.constant 0 : i32
    %c0_i32_1 = arith.constant 0 : i32
    return %c0_i32, %c0_i32_0 : i32, i32
  }
  func.func @transform_7(%arg0: i32) -> (i32, i32) {
    %c0_i32 = arith.constant 0 : i32
    %c0_i32_0 = arith.constant 0 : i32
    %c0_i32_1 = arith.constant 0 : i32
    return %c0_i32, %c0_i32_0 : i32, i32
  }
  func.func @transform_8(%arg0: i32) -> (i32, i32) {
    %c0_i32 = arith.constant 0 : i32
    %c0_i32_0 = arith.constant 0 : i32
    %c0_i32_1 = arith.constant 0 : i32
    return %c0_i32, %c0_i32_0 : i32, i32
  }
  func.func @transform_9(%arg0: i32) -> (i32, i32) {
    %c0_i32 = arith.constant 0 : i32
    %c0_i32_0 = arith.constant 0 : i32
    %c0_i32_1 = arith.constant 0 : i32
    return %c0_i32, %c0_i32_0 : i32, i32
  }
  func.func @transform_10(%arg0: i32) -> (i32, i32, i32) {
    %c0_i32 = arith.constant 0 : i32
    %c0_i32_0 = arith.constant 0 : i32
    %c0_i32_1 = arith.constant 0 : i32
    %c0_i32_2 = arith.constant 0 : i32
    return %c0_i32, %c0_i32_0, %c0_i32_1 : i32, i32, i32
  }
  func.func @transform_11(%arg0: i32) -> (i32, i32) {
    %c0_i32 = arith.constant 0 : i32
    %c0_i32_0 = arith.constant 0 : i32
    %c0_i32_1 = arith.constant 0 : i32
    return %c0_i32, %c0_i32_0 : i32, i32
  }
  func.func @transform_12(%arg0: i32) -> (i32, i32) {
    %c0_i32 = arith.constant 0 : i32
    %c0_i32_0 = arith.constant 0 : i32
    %c0_i32_1 = arith.constant 0 : i32
    return %c0_i32, %c0_i32_0 : i32, i32
  }
  func.func @transform_13(%arg0: i32) -> (i32, i32, i32, i32) {
    %c0_i32 = arith.constant 0 : i32
    %c0_i32_0 = arith.constant 0 : i32
    %c0_i32_1 = arith.constant 0 : i32
    %c0_i32_2 = arith.constant 0 : i32
    return %arg0, %c0_i32, %c0_i32_0, %c0_i32_1 : i32, i32, i32, i32
  }
}

</mosaic_0001>

<llo_original>
// kernel: spp_forward.1
$region0: #{spp_forward.1}
  #allocation0 [shape = 'u32[]', space=smem, size = 0x4, offset = 0x4, fixed_abs, tag = 'smem constant byte address 0x4 - core index']
  #allocation1 [shape = 'u32[72,128]{1,0:T(1,128)}', space=vmem, size = 0x9000, scoped, tag = 'internal scratch']
  #allocation2 [shape = 'f32[1,18,32,2]{3,2,1,0:T(8,128)}', space=vmem, size = 0x48000, scoped, tag = 'scratch operand']
  #allocation3 [shape = 'f32[1,16,32,2]{3,2,1,0:T(8,128)}', space=vmem, size = 0x40000, scoped, tag = 'scratch operand']
  #allocation4 [shape = 'f32[1,20,16,2]{3,2,1,0:T(8,128)}', space=vmem, size = 0x28000, scoped, tag = 'scratch operand']
  #allocation5 [shape = 'f32[1,18,32,8]{3,2,1,0:T(8,128)}', space=vmem, size = 0x48000, scoped, tag = 'scratch operand']
  #allocation6 [shape = 'bf16[256,8]{1,0:T(8,128)(2,1)}', space=vmem, size = 0x10000, scoped, tag = 'scratch operand']
  %s0 = inlined_call_operand.vmem [shape: f32[2,16,16,4], index: 0, kind: input, shape index: {}]
  %s1 = inlined_call_operand.vmem [shape: bf16[4,2], index: 1, kind: input, shape index: {}]
  %s2 = inlined_call_operand.vmem [shape: f32[1,2], index: 2, kind: input, shape index: {}]
  %s3 = inlined_call_operand.vmem [shape: f32[1,2], index: 3, kind: input, shape index: {}]
  %s4 = inlined_call_operand.vmem [shape: f32[3,3,2], index: 4, kind: input, shape index: {}]
  %s5 = inlined_call_operand.vmem [shape: f32[1,2], index: 5, kind: input, shape index: {}]
  %s6 = inlined_call_operand.vmem [shape: f32[1,2], index: 6, kind: input, shape index: {}]
  %s7 = inlined_call_operand.vmem [shape: bf16[8,8], index: 7, kind: input, shape index: {}]
  %s8 = inlined_call_operand.vmem [shape: f32[1,8], index: 8, kind: input, shape index: {}]
  %s9 = inlined_call_operand.vmem [shape: f32[1,8], index: 9, kind: input, shape index: {}]
  %s10 = inlined_call_operand.vmem [shape: f32[3,3,8], index: 10, kind: input, shape index: {}]
  %s11 = inlined_call_operand.vmem [shape: f32[1,8], index: 11, kind: input, shape index: {}]
  %s12 = inlined_call_operand.vmem [shape: f32[1,8], index: 12, kind: input, shape index: {}]
  %s13 = inlined_call_operand.vmem [shape: f32[2,16,16,8], index: 13, kind: output, shape index: {}]
  %s14 = sld [smem:[#allocation0]]
  $region85: #{spp_forward.1} parent=0
    _
  %s16 = ssub.s32 1, %s14
  %s17 = scalar_select 0, %s16, %s14
  loop: start=0, step=1, limit=4
  $region2: #{spp_forward.1} parent=0 // loop_pre_header
    _
  $region3: #{spp_forward.1} parent=0 // loop_header
    %s19 = sphi 0, %s23
    %p20 = scmp.ge.s32.totalorder %s19, 4
    %s29 = sphi 0, %s31
    %s32 = sphi 0, %s29
    %s33 = sphi 0, %s32
    %s49 = sphi 0, %s33
    %s53 = sphi 0, %s53
    %s55 = sphi 0, %s53
    %s56 = sphi 0, %s55
    %s70 = sphi 0, %s56
    %s74 = sphi 0, %s74
    %s76 = sphi 0, %s74
    %s77 = sphi 0, %s76
    %s91 = sphi 0, %s77
    %s95 = sphi 0, %s95
    %s97 = sphi 0, %s95
    %s98 = sphi 0, %s97
    %s112 = sphi 0, %s98
    %s116 = sphi 0, %s116
    %s118 = sphi 0, %s116
    %s119 = sphi 0, %s118
    %s133 = sphi 0, %s119
    %s137 = sphi 0, %s137
    %s139 = sphi 0, %s137
    %s140 = sphi 0, %s139
    %s154 = sphi 0, %s140
    %s158 = sphi 0, %s158
    %s160 = sphi 0, %s158
    %s161 = sphi 0, %s160
    %s175 = sphi 0, %s161
    %s179 = sphi 0, %s179
    %s181 = sphi 0, %s179
    %s182 = sphi 0, %s181
    %s196 = sphi 0, %s182
    %s200 = sphi 0, %s200
    %s202 = sphi 0, %s200
    %s203 = sphi 0, %s202
    %s217 = sphi 0, %s203
    %s221 = sphi 0, %s221
    %s223 = sphi 0, %s221
    %s224 = sphi 0, %s223
    %s238 = sphi 0, %s224
    %s242 = sphi 0, %s242
    %s244 = sphi 0, %s242
    %s245 = sphi 0, %s244
    %s259 = sphi 0, %s245
    %s263 = sphi 0, %s263
    %s265 = sphi 0, %s263
    %s266 = sphi 0, %s265
    %s280 = sphi 0, %s266
    %s284 = sphi 0, %s284
    %s286 = sphi 0, %s284
    %s287 = sphi 0, %s286
    %s301 = sphi 0, %s287
    %s307 = sphi 0, %s309
    %s310 = sphi 0, %s307
    %s311 = sphi 0, %s310
    %s327 = sphi 0, %s311
  $region4: #{spp_forward.1} parent=0 // loop_header_branch
    %22 = sbr.rel (%p20) target = $region8
  $region5: #{spp_forward.1} parent=0 // loop_body
    %s24 = ssub.s32 %s19, 1
    %s25 = ssub.s32 %s19, 2
    %s26 = sadd.s32 %s19, 1
    %s27 = ssub.s32 %s19, %s26
    %p28 = scmp.eq.s32.totalorder %s27, 0
    %s30 = sadd.s32 %s29, 1
    %s31 = scalar_select %p28, %s29, %s30
    %p34 = pneg %p28
    %p35 = scmp.eq.s32.totalorder %s19, 1
    %p36 = por %p34, %p35
    %p37 = scmp.ne.s32.totalorder %s29, %s32
    %p38 = scmp.eq.s32.totalorder %s19, 0
    %p39 = por %p37, %p38
    %p40 = scmp.ne.s32.totalorder %s29, %s32
    %p41 = scmp.eq.s32.totalorder %s24, 1
    %p42 = por %p40, %p41
    %p43 = scmp.ne.s32.totalorder %s32, %s33
    %p44 = scmp.eq.s32.totalorder %s24, 0
    %p45 = por %p43, %p44
    %p46 = scmp.ne.s32.totalorder %s32, %s33
    %p47 = scmp.eq.s32.totalorder %s25, 1
    %p48 = por %p46, %p47
    %p50 = scmp.ne.s32.totalorder %s33, %s49
    %p51 = scmp.eq.s32.totalorder %s25, 0
    %p52 = por %p50, %p51
    %s54 = sadd.s32 %s53, 1
    %p57 = scmp.eq.s32.totalorder %s19, 1
    %p58 = scmp.ne.s32.totalorder %s53, %s55
    %p59 = scmp.eq.s32.totalorder %s19, 0
    %p60 = por %p58, %p59
    %p61 = scmp.ne.s32.totalorder %s53, %s55
    %p62 = scmp.eq.s32.totalorder %s24, 1
    %p63 = por %p61, %p62
    %p64 = scmp.ne.s32.totalorder %s55, %s56
    %p65 = scmp.eq.s32.totalorder %s24, 0
    %p66 = por %p64, %p65
    %p67 = scmp.ne.s32.totalorder %s55, %s56
    %p68 = scmp.eq.s32.totalorder %s25, 1
    %p69 = por %p67, %p68
    %p71 = scmp.ne.s32.totalorder %s56, %s70
    %p72 = scmp.eq.s32.totalorder %s25, 0
    %p73 = por %p71, %p72
    %s75 = sadd.s32 %s74, 1
    %p78 = scmp.eq.s32.totalorder %s19, 1
    %p79 = scmp.ne.s32.totalorder %s74, %s76
    %p80 = scmp.eq.s32.totalorder %s19, 0
    %p81 = por %p79, %p80
    %p82 = scmp.ne.s32.totalorder %s74, %s76
    %p83 = scmp.eq.s32.totalorder %s24, 1
    %p84 = por %p82, %p83
    %p85 = scmp.ne.s32.totalorder %s76, %s77
    %p86 = scmp.eq.s32.totalorder %s24, 0
    %p87 = por %p85, %p86
    %p88 = scmp.ne.s32.totalorder %s76, %s77
    %p89 = scmp.eq.s32.totalorder %s25, 1
    %p90 = por %p88, %p89
    %p92 = scmp.ne.s32.totalorder %s77, %s91
    %p93 = scmp.eq.s32.totalorder %s25, 0
    %p94 = por %p92, %p93
    %s96 = sadd.s32 %s95, 1
    %p99 = scmp.eq.s32.totalorder %s19, 1
    %p100 = scmp.ne.s32.totalorder %s95, %s97
    %p101 = scmp.eq.s32.totalorder %s19, 0
    %p102 = por %p100, %p101
    %p103 = scmp.ne.s32.totalorder %s95, %s97
    %p104 = scmp.eq.s32.totalorder %s24, 1
    %p105 = por %p103, %p104
    %p106 = scmp.ne.s32.totalorder %s97, %s98
    %p107 = scmp.eq.s32.totalorder %s24, 0
    %p108 = por %p106, %p107
    %p109 = scmp.ne.s32.totalorder %s97, %s98
    %p110 = scmp.eq.s32.totalorder %s25, 1
    %p111 = por %p109, %p110
    %p113 = scmp.ne.s32.totalorder %s98, %s112
    %p114 = scmp.eq.s32.totalorder %s25, 0
    %p115 = por %p113, %p114
    %s117 = sadd.s32 %s116, 1
    %p120 = scmp.eq.s32.totalorder %s19, 1
    %p121 = scmp.ne.s32.totalorder %s116, %s118
    %p122 = scmp.eq.s32.totalorder %s19, 0
    %p123 = por %p121, %p122
    %p124 = scmp.ne.s32.totalorder %s116, %s118
    %p125 = scmp.eq.s32.totalorder %s24, 1
    %p126 = por %p124, %p125
    %p127 = scmp.ne.s32.totalorder %s118, %s119
    %p128 = scmp.eq.s32.totalorder %s24, 0
    %p129 = por %p127, %p128
    %p130 = scmp.ne.s32.totalorder %s118, %s119
    %p131 = scmp.eq.s32.totalorder %s25, 1
    %p132 = por %p130, %p131
    %p134 = scmp.ne.s32.totalorder %s119, %s133
    %p135 = scmp.eq.s32.totalorder %s25, 0
    %p136 = por %p134, %p135
    %s138 = sadd.s32 %s137, 1
    %p141 = scmp.eq.s32.totalorder %s19, 1
    %p142 = scmp.ne.s32.totalorder %s137, %s139
    %p143 = scmp.eq.s32.totalorder %s19, 0
    %p144 = por %p142, %p143
    %p145 = scmp.ne.s32.totalorder %s137, %s139
    %p146 = scmp.eq.s32.totalorder %s24, 1
    %p147 = por %p145, %p146
    %p148 = scmp.ne.s32.totalorder %s139, %s140
    %p149 = scmp.eq.s32.totalorder %s24, 0
    %p150 = por %p148, %p149
    %p151 = scmp.ne.s32.totalorder %s139, %s140
    %p152 = scmp.eq.s32.totalorder %s25, 1
    %p153 = por %p151, %p152
    %p155 = scmp.ne.s32.totalorder %s140, %s154
    %p156 = scmp.eq.s32.totalorder %s25, 0
    %p157 = por %p155, %p156
    %s159 = sadd.s32 %s158, 1
    %p162 = scmp.eq.s32.totalorder %s19, 1
    %p163 = scmp.ne.s32.totalorder %s158, %s160
    %p164 = scmp.eq.s32.totalorder %s19, 0
    %p165 = por %p163, %p164
    %p166 = scmp.ne.s32.totalorder %s158, %s160
    %p167 = scmp.eq.s32.totalorder %s24, 1
    %p168 = por %p166, %p167
    %p169 = scmp.ne.s32.totalorder %s160, %s161
    %p170 = scmp.eq.s32.totalorder %s24, 0
    %p171 = por %p169, %p170
    %p172 = scmp.ne.s32.totalorder %s160, %s161
    %p173 = scmp.eq.s32.totalorder %s25, 1
    %p174 = por %p172, %p173
    %p176 = scmp.ne.s32.totalorder %s161, %s175
    %p177 = scmp.eq.s32.totalorder %s25, 0
    %p178 = por %p176, %p177
    %s180 = sadd.s32 %s179, 1
    %p183 = scmp.eq.s32.totalorder %s19, 1
    %p184 = scmp.ne.s32.totalorder %s179, %s181
    %p185 = scmp.eq.s32.totalorder %s19, 0
    %p186 = por %p184, %p185
    %p187 = scmp.ne.s32.totalorder %s179, %s181
    %p188 = scmp.eq.s32.totalorder %s24, 1
    %p189 = por %p187, %p188
    %p190 = scmp.ne.s32.totalorder %s181, %s182
    %p191 = scmp.eq.s32.totalorder %s24, 0
    %p192 = por %p190, %p191
    %p193 = scmp.ne.s32.totalorder %s181, %s182
    %p194 = scmp.eq.s32.totalorder %s25, 1
    %p195 = por %p193, %p194
    %p197 = scmp.ne.s32.totalorder %s182, %s196
    %p198 = scmp.eq.s32.totalorder %s25, 0
    %p199 = por %p197, %p198
    %s201 = sadd.s32 %s200, 1
    %p204 = scmp.eq.s32.totalorder %s19, 1
    %p205 = scmp.ne.s32.totalorder %s200, %s202
    %p206 = scmp.eq.s32.totalorder %s19, 0
    %p207 = por %p205, %p206
    %p208 = scmp.ne.s32.totalorder %s200, %s202
    %p209 = scmp.eq.s32.totalorder %s24, 1
    %p210 = por %p208, %p209
    %p211 = scmp.ne.s32.totalorder %s202, %s203
    %p212 = scmp.eq.s32.totalorder %s24, 0
    %p213 = por %p211, %p212
    %p214 = scmp.ne.s32.totalorder %s202, %s203
    %p215 = scmp.eq.s32.totalorder %s25, 1
    %p216 = por %p214, %p215
    %p218 = scmp.ne.s32.totalorder %s203, %s217
    %p219 = scmp.eq.s32.totalorder %s25, 0
    %p220 = por %p218, %p219
    %s222 = sadd.s32 %s221, 1
    %p225 = scmp.eq.s32.totalorder %s19, 1
    %p226 = scmp.ne.s32.totalorder %s221, %s223
    %p227 = scmp.eq.s32.totalorder %s19, 0
    %p228 = por %p226, %p227
    %p229 = scmp.ne.s32.totalorder %s221, %s223
    %p230 = scmp.eq.s32.totalorder %s24, 1
    %p231 = por %p229, %p230
    %p232 = scmp.ne.s32.totalorder %s223, %s224
    %p233 = scmp.eq.s32.totalorder %s24, 0
    %p234 = por %p232, %p233
    %p235 = scmp.ne.s32.totalorder %s223, %s224
    %p236 = scmp.eq.s32.totalorder %s25, 1
    %p237 = por %p235, %p236
    %p239 = scmp.ne.s32.totalorder %s224, %s238
    %p240 = scmp.eq.s32.totalorder %s25, 0
    %p241 = por %p239, %p240
    %s243 = sadd.s32 %s242, 1
    %p246 = scmp.eq.s32.totalorder %s19, 1
    %p247 = scmp.ne.s32.totalorder %s242, %s244
    %p248 = scmp.eq.s32.totalorder %s19, 0
    %p249 = por %p247, %p248
    %p250 = scmp.ne.s32.totalorder %s242, %s244
    %p251 = scmp.eq.s32.totalorder %s24, 1
    %p252 = por %p250, %p251
    %p253 = scmp.ne.s32.totalorder %s244, %s245
    %p254 = scmp.eq.s32.totalorder %s24, 0
    %p255 = por %p253, %p254
    %p256 = scmp.ne.s32.totalorder %s244, %s245
    %p257 = scmp.eq.s32.totalorder %s25, 1
    %p258 = por %p256, %p257
    %p260 = scmp.ne.s32.totalorder %s245, %s259
    %p261 = scmp.eq.s32.totalorder %s25, 0
    %p262 = por %p260, %p261
    %s264 = sadd.s32 %s263, 1
    %p267 = scmp.eq.s32.totalorder %s19, 1
    %p268 = scmp.ne.s32.totalorder %s263, %s265
    %p269 = scmp.eq.s32.totalorder %s19, 0
    %p270 = por %p268, %p269
    %p271 = scmp.ne.s32.totalorder %s263, %s265
    %p272 = scmp.eq.s32.totalorder %s24, 1
    %p273 = por %p271, %p272
    %p274 = scmp.ne.s32.totalorder %s265, %s266
    %p275 = scmp.eq.s32.totalorder %s24, 0
    %p276 = por %p274, %p275
    %p277 = scmp.ne.s32.totalorder %s265, %s266
    %p278 = scmp.eq.s32.totalorder %s25, 1
    %p279 = por %p277, %p278
    %p281 = scmp.ne.s32.totalorder %s266, %s280
    %p282 = scmp.eq.s32.totalorder %s25, 0
    %p283 = por %p281, %p282
    %s285 = sadd.s32 %s284, 1
    %p288 = scmp.eq.s32.totalorder %s19, 1
    %p289 = scmp.ne.s32.totalorder %s284, %s286
    %p290 = scmp.eq.s32.totalorder %s19, 0
    %p291 = por %p289, %p290
    %p292 = scmp.ne.s32.totalorder %s284, %s286
    %p293 = scmp.eq.s32.totalorder %s24, 1
    %p294 = por %p292, %p293
    %p295 = scmp.ne.s32.totalorder %s286, %s287
    %p296 = scmp.eq.s32.totalorder %s24, 0
    %p297 = por %p295, %p296
    %p298 = scmp.ne.s32.totalorder %s286, %s287
    %p299 = scmp.eq.s32.totalorder %s25, 1
    %p300 = por %p298, %p299
    %p302 = scmp.ne.s32.totalorder %s287, %s301
    %p303 = scmp.eq.s32.totalorder %s25, 0
    %p304 = por %p302, %p303
    %s305 = ssub.s32 %s19, %s26
    %p306 = scmp.eq.s32.totalorder %s305, 0
    %s308 = sadd.s32 %s307, 1
    %s309 = scalar_select %p306, %s307, %s308
    %p312 = pneg %p306
    %p313 = scmp.eq.s32.totalorder %s19, 1
    %p314 = por %p312, %p313
    %p315 = scmp.ne.s32.totalorder %s307, %s310
    %p316 = scmp.eq.s32.totalorder %s19, 0
    %p317 = por %p315, %p316
    %p318 = scmp.ne.s32.totalorder %s307, %s310
    %p319 = scmp.eq.s32.totalorder %s24, 1
    %p320 = por %p318, %p319
    %p321 = scmp.ne.s32.totalorder %s310, %s311
    %p322 = scmp.eq.s32.totalorder %s24, 0
    %p323 = por %p321, %p322
    %p324 = scmp.ne.s32.totalorder %s310, %s311
    %p325 = scmp.eq.s32.totalorder %s25, 1
    %p326 = por %p324, %p325
    %p328 = scmp.ne.s32.totalorder %s311, %s327
    %p329 = scmp.eq.s32.totalorder %s25, 0
    %p330 = por %p328, %p329
    %p331 = scmp.le.s32.totalorder 1, %s19
    %p332 = scmp.lt.s32.totalorder %s19, 3
    %p333 = pnand %p331, %p332
    %p334 = pneg %p333
    // Predicated region
    $region9: #{spp_forward.1} parent=5 // pred_check
      _
    $region10: #{spp_forward.1} parent=5 // pred_check_branch
      %336 = sbr.rel (%p333) target = $region12
    $region11: #{spp_forward.1} parent=5 // pred_region
      %s337 = ssub.s32 %s19, 1
      // Predicated region
      $region13: #{spp_forward.1} parent=11 // pred_check
        %p338 = pneg %p66
      $region14: #{spp_forward.1} parent=11 // pred_check_branch
        %340 = sbr.rel (%p338) target = $region16
      $region15: #{spp_forward.1} parent=11 // pred_region
        _
      $region16: #{spp_forward.1} parent=11 // pred_fallthru
        _
      // Predicated region
      $region17: #{spp_forward.1} parent=11 // pred_check
        %p341 = pneg %p87
      $region18: #{spp_forward.1} parent=11 // pred_check_branch
        %343 = sbr.rel (%p341) target = $region20
      $region19: #{spp_forward.1} parent=11 // pred_region
        _
      $region20: #{spp_forward.1} parent=11 // pred_fallthru
        _
      // Predicated region
      $region21: #{spp_forward.1} parent=11 // pred_check
        %p344 = pneg %p108
      $region22: #{spp_forward.1} parent=11 // pred_check_branch
        %346 = sbr.rel (%p344) target = $region24
      $region23: #{spp_forward.1} parent=11 // pred_region
        _
      $region24: #{spp_forward.1} parent=11 // pred_fallthru
        _
      // Predicated region
      $region25: #{spp_forward.1} parent=11 // pred_check
        %p347 = pneg %p129
      $region26: #{spp_forward.1} parent=11 // pred_check_branch
        %349 = sbr.rel (%p347) target = $region28
      $region27: #{spp_forward.1} parent=11 // pred_region
        _
      $region28: #{spp_forward.1} parent=11 // pred_fallthru
        _
      // Predicated region
      $region29: #{spp_forward.1} parent=11 // pred_check
        %p350 = pneg %p150
      $region30: #{spp_forward.1} parent=11 // pred_check_branch
        %352 = sbr.rel (%p350) target = $region32
      $region31: #{spp_forward.1} parent=11 // pred_region
        _
      $region32: #{spp_forward.1} parent=11 // pred_fallthru
        _
      // Predicated region
      $region33: #{spp_forward.1} parent=11 // pred_check
        %p353 = pneg %p171
      $region34: #{spp_forward.1} parent=11 // pred_check_branch
        %355 = sbr.rel (%p353) target = $region36
      $region35: #{spp_forward.1} parent=11 // pred_region
        _
      $region36: #{spp_forward.1} parent=11 // pred_fallthru
        _
      // Predicated region
      $region37: #{spp_forward.1} parent=11 // pred_check
        %p356 = pneg %p192
      $region38: #{spp_forward.1} parent=11 // pred_check_branch
        %358 = sbr.rel (%p356) target = $region40
      $region39: #{spp_forward.1} parent=11 // pred_region
        _
      $region40: #{spp_forward.1} parent=11 // pred_fallthru
        _
      // Predicated region
      $region41: #{spp_forward.1} parent=11 // pred_check
        %p359 = pneg %p213
      $region42: #{spp_forward.1} parent=11 // pred_check_branch
        %361 = sbr.rel (%p359) target = $region44
      $region43: #{spp_forward.1} parent=11 // pred_region
        _
      $region44: #{spp_forward.1} parent=11 // pred_fallthru
        _
      // Predicated region
      $region45: #{spp_forward.1} parent=11 // pred_check
        %p362 = pneg %p234
      $region46: #{spp_forward.1} parent=11 // pred_check_branch
        %364 = sbr.rel (%p362) target = $region48
      $region47: #{spp_forward.1} parent=11 // pred_region
        _
      $region48: #{spp_forward.1} parent=11 // pred_fallthru
        _
      // Predicated region
      $region49: #{spp_forward.1} parent=11 // pred_check
        %p365 = pneg %p255
      $region50: #{spp_forward.1} parent=11 // pred_check_branch
        %367 = sbr.rel (%p365) target = $region52
      $region51: #{spp_forward.1} parent=11 // pred_region
        _
      $region52: #{spp_forward.1} parent=11 // pred_fallthru
        _
      // Predicated region
      $region53: #{spp_forward.1} parent=11 // pred_check
        %p368 = pneg %p276
      $region54: #{spp_forward.1} parent=11 // pred_check_branch
        %370 = sbr.rel (%p368) target = $region56
      $region55: #{spp_forward.1} parent=11 // pred_region
        _
      $region56: #{spp_forward.1} parent=11 // pred_fallthru
        _
      // Predicated region
      $region57: #{spp_forward.1} parent=11 // pred_check
        %p371 = pneg %p297
      $region58: #{spp_forward.1} parent=11 // pred_check_branch
        %373 = sbr.rel (%p371) target = $region60
      $region59: #{spp_forward.1} parent=11 // pred_region
        _
      $region60: #{spp_forward.1} parent=11 // pred_fallthru
        _
    $region12: #{spp_forward.1} parent=5 // pred_fallthru
      _
    %p374 = scmp.lt.s32.totalorder %s19, 2
    // Predicated region
    $region61: #{spp_forward.1} parent=5 // pred_check
      %p375 = pneg %p374
    $region62: #{spp_forward.1} parent=5 // pred_check_branch
      %377 = sbr.rel (%p375) target = $region64
    $region63: #{spp_forward.1} parent=5 // pred_region
      // Predicated region
      $region65: #{spp_forward.1} parent=63 // pred_check
        %p378 = pneg %p39
      $region66: #{spp_forward.1} parent=63 // pred_check_branch
        %380 = sbr.rel (%p378) target = $region68
      $region67: #{spp_forward.1} parent=63 // pred_region
        %p381 = scmp.lt.s32.totalorder %s19, 1
        %s382 = scalar_select %p381, %s19, 1
        %s383 = smul.addr %s382, 32
        %s384 = smul.addr %s383, 8
        %s385 = scalar_lea.vmem %s0, %s384
      $region68: #{spp_forward.1} parent=63 // pred_fallthru
        _
    $region64: #{spp_forward.1} parent=5 // pred_fallthru
      _
    %p386 = scmp.le.s32.totalorder 1, %s19
    %p387 = scmp.lt.s32.totalorder %s19, 3
    %p388 = pnand %p386, %p387
    %p389 = pneg %p388
    // Predicated region
    $region69: #{spp_forward.1} parent=5 // pred_check
      _
    $region70: #{spp_forward.1} parent=5 // pred_check_branch
      %391 = sbr.rel (%p388) target = $region72
    $region71: #{spp_forward.1} parent=5 // pred_region
      %s392 = ssub.s32 %s19, 1
      %p393 = scmp.lt.s32.totalorder %s24, 1
      %s394 = scalar_select %p393, %s24, 1
      %s395 = smul.addr %s394, 32
      %s396 = smul.addr %s395, 8
      %s397 = scalar_lea.vmem %s0, %s396
      %p398 = pneg %p45
      %p399 = pneg %p42
      %p400 = pneg %p66
      %p401 = pneg %p63
      %p402 = pneg %p87
      %p403 = pneg %p84
      %p404 = pneg %p108
      %p405 = pneg %p105
      %p406 = pneg %p129
      %p407 = pneg %p126
      %p408 = pneg %p150
      %p409 = pneg %p147
      %p410 = pneg %p171
      %p411 = pneg %p168
      %p412 = pneg %p192
      %p413 = pneg %p189
      %p414 = pneg %p213
      %p415 = pneg %p210
      %p416 = pneg %p234
      %p417 = pneg %p231
      %p418 = pneg %p255
      %p419 = pneg %p252
      %p420 = pneg %p276
      %p421 = pneg %p273
      %p422 = pneg %p297
      %p423 = pneg %p294
      %p424 = pneg %p323
      %p425 = pneg %p320
      %p426 = scmp.lt.s32.totalorder %s24, 1
      %s427 = scalar_select %p426, %s24, 1
      %s428 = smul.addr %s427, 32
      %s429 = smul.addr %s428, 8
      %s430 = scalar_lea.vmem %s13, %s429
      %p431 = scmp.lt.s32.totalorder %s24, 1
      %s432 = scalar_select %p431, %s24, 1
      %s433 = smul.addr %s432, 32
      %s434 = smul.addr %s433, 8
      %s435 = scalar_lea.vmem %s0, %s434
      %p436 = scmp.lt.s32.totalorder %s24, 1
      %s437 = scalar_select %p436, %s24, 1
      %s438 = smul.addr %s437, 32
      %s439 = smul.addr %s438, 8
      %s440 = scalar_lea.vmem %s13, %s439
      %vm442 = vcmask 15360
      %443 = vst.msk [vmem:[#allocation2] sm:$0xff] %vm442, 0.0
      %444 = vst.msk [vmem:[#allocation2 + $0x8] sm:$0xff] %vm442, 0.0
      %445 = vst.msk [vmem:[#allocation2 + $0x10] sm:$0xff] %vm442, 0.0
      %446 = vst.msk [vmem:[#allocation2 + $0x18] sm:$0xff] %vm442, 0.0
      %s447 = scalar_lea.vmem [#allocation2], 544
      %448 = vst.msk [vmem:[%s447] sm:$0xff] %vm442, 0.0
      %449 = vst.msk [vmem:[%s447 + $0x8] sm:$0xff] %vm442, 0.0
      %450 = vst.msk [vmem:[%s447 + $0x10] sm:$0xff] %vm442, 0.0
      %451 = vst.msk [vmem:[%s447 + $0x18] sm:$0xff] %vm442, 0.0
      %vm452 = vcmask 8192
      %453 = vst.msk [vmem:[#allocation2 + $0x7] sm:$0x1] %vm452, 0.0
      %454 = vst.msk [vmem:[#allocation2 + $0x27] sm:$0x1] %vm452, 0.0
      %455 = vst.msk [vmem:[#allocation2 + $0x47] sm:$0x1] %vm452, 0.0
      %456 = vst.msk [vmem:[#allocation2 + $0x67] sm:$0x1] %vm452, 0.0
      %457 = vst.msk [vmem:[#allocation2 + $0x87] sm:$0x1] %vm452, 0.0
      %458 = vst.msk [vmem:[#allocation2 + $0xa7] sm:$0x1] %vm452, 0.0
      %459 = vst.msk [vmem:[#allocation2 + $0xc7] sm:$0x1] %vm452, 0.0
      %460 = vst.msk [vmem:[#allocation2 + $0xe7] sm:$0x1] %vm452, 0.0
      %461 = vst.msk [vmem:[#allocation2 + $0x107] sm:$0x1] %vm452, 0.0
      %462 = vst.msk [vmem:[#allocation2 + $0x127] sm:$0x1] %vm452, 0.0
      %463 = vst.msk [vmem:[#allocation2 + $0x147] sm:$0x1] %vm452, 0.0
      %464 = vst.msk [vmem:[#allocation2 + $0x167] sm:$0x1] %vm452, 0.0
      %465 = vst.msk [vmem:[#allocation2 + $0x187] sm:$0x1] %vm452, 0.0
      %466 = vst.msk [vmem:[#allocation2 + $0x1a7] sm:$0x1] %vm452, 0.0
      %467 = vst.msk [vmem:[#allocation2 + $0x1c7] sm:$0x1] %vm452, 0.0
      %468 = vst.msk [vmem:[#allocation2 + $0x1e7] sm:$0x1] %vm452, 0.0
      %469 = vst.msk [vmem:[#allocation2 + $0x207] sm:$0x1] %vm452, 0.0
      %470 = vst.msk [vmem:[#allocation2 + $0x227] sm:$0x1] %vm452, 0.0
      %471 = vst.msk [vmem:[#allocation2 + $0x18] sm:$0x1] %vm452, 0.0
      %472 = vst.msk [vmem:[#allocation2 + $0x38] sm:$0x1] %vm452, 0.0
      %473 = vst.msk [vmem:[#allocation2 + $0x58] sm:$0x1] %vm452, 0.0
      %474 = vst.msk [vmem:[#allocation2 + $0x78] sm:$0x1] %vm452, 0.0
      %475 = vst.msk [vmem:[#allocation2 + $0x98] sm:$0x1] %vm452, 0.0
      %476 = vst.msk [vmem:[#allocation2 + $0xb8] sm:$0x1] %vm452, 0.0
      %477 = vst.msk [vmem:[#allocation2 + $0xd8] sm:$0x1] %vm452, 0.0
      %478 = vst.msk [vmem:[#allocation2 + $0xf8] sm:$0x1] %vm452, 0.0
      %479 = vst.msk [vmem:[#allocation2 + $0x118] sm:$0x1] %vm452, 0.0
      %480 = vst.msk [vmem:[#allocation2 + $0x138] sm:$0x1] %vm452, 0.0
      %481 = vst.msk [vmem:[#allocation2 + $0x158] sm:$0x1] %vm452, 0.0
      %482 = vst.msk [vmem:[#allocation2 + $0x178] sm:$0x1] %vm452, 0.0
      %483 = vst.msk [vmem:[#allocation2 + $0x198] sm:$0x1] %vm452, 0.0
      %484 = vst.msk [vmem:[#allocation2 + $0x1b8] sm:$0x1] %vm452, 0.0
      %485 = vst.msk [vmem:[#allocation2 + $0x1d8] sm:$0x1] %vm452, 0.0
      %486 = vst.msk [vmem:[#allocation2 + $0x1f8] sm:$0x1] %vm452, 0.0
      %487 = vst.msk [vmem:[#allocation2 + $0x218] sm:$0x1] %vm452, 0.0
      %488 = vst.msk [vmem:[#allocation2 + $0x238] sm:$0x1] %vm452, 0.0
      %vm489 = vcmask 64512
      %490 = vst.msk [vmem:[#allocation5] sm:$0xff] %vm489, 0.0
      %491 = vst.msk [vmem:[#allocation5 + $0x8] sm:$0xff] %vm489, 0.0
      %492 = vst.msk [vmem:[#allocation5 + $0x10] sm:$0xff] %vm489, 0.0
      %493 = vst.msk [vmem:[#allocation5 + $0x18] sm:$0xff] %vm489, 0.0
      %s494 = scalar_lea.vmem [#allocation5], 544
      %495 = vst.msk [vmem:[%s494] sm:$0xff] %vm489, 0.0
      %496 = vst.msk [vmem:[%s494 + $0x8] sm:$0xff] %vm489, 0.0
      %497 = vst.msk [vmem:[%s494 + $0x10] sm:$0xff] %vm489, 0.0
      %498 = vst.msk [vmem:[%s494 + $0x18] sm:$0xff] %vm489, 0.0
      %vm499 = vcmask 57344
      %500 = vst.msk [vmem:[#allocation5 + $0x7] sm:$0x1] %vm499, 0.0
      %501 = vst.msk [vmem:[#allocation5 + $0x27] sm:$0x1] %vm499, 0.0
      %502 = vst.msk [vmem:[#allocation5 + $0x47] sm:$0x1] %vm499, 0.0
      %503 = vst.msk [vmem:[#allocation5 + $0x67] sm:$0x1] %vm499, 0.0
      %504 = vst.msk [vmem:[#allocation5 + $0x87] sm:$0x1] %vm499, 0.0
      %505 = vst.msk [vmem:[#allocation5 + $0xa7] sm:$0x1] %vm499, 0.0
      %506 = vst.msk [vmem:[#allocation5 + $0xc7] sm:$0x1] %vm499, 0.0
      %507 = vst.msk [vmem:[#allocation5 + $0xe7] sm:$0x1] %vm499, 0.0
      %508 = vst.msk [vmem:[#allocation5 + $0x107] sm:$0x1] %vm499, 0.0
      %509 = vst.msk [vmem:[#allocation5 + $0x127] sm:$0x1] %vm499, 0.0
      %510 = vst.msk [vmem:[#allocation5 + $0x147] sm:$0x1] %vm499, 0.0
      %511 = vst.msk [vmem:[#allocation5 + $0x167] sm:$0x1] %vm499, 0.0
      %512 = vst.msk [vmem:[#allocation5 + $0x187] sm:$0x1] %vm499, 0.0
      %513 = vst.msk [vmem:[#allocation5 + $0x1a7] sm:$0x1] %vm499, 0.0
      %514 = vst.msk [vmem:[#allocation5 + $0x1c7] sm:$0x1] %vm499, 0.0
      %515 = vst.msk [vmem:[#allocation5 + $0x1e7] sm:$0x1] %vm499, 0.0
      %516 = vst.msk [vmem:[#allocation5 + $0x207] sm:$0x1] %vm499, 0.0
      %517 = vst.msk [vmem:[#allocation5 + $0x227] sm:$0x1] %vm499, 0.0
      %518 = vst.msk [vmem:[#allocation5 + $0x18] sm:$0x1] %vm499, 0.0
      %519 = vst.msk [vmem:[#allocation5 + $0x38] sm:$0x1] %vm499, 0.0
      %520 = vst.msk [vmem:[#allocation5 + $0x58] sm:$0x1] %vm499, 0.0
      %521 = vst.msk [vmem:[#allocation5 + $0x78] sm:$0x1] %vm499, 0.0
      %522 = vst.msk [vmem:[#allocation5 + $0x98] sm:$0x1] %vm499, 0.0
      %523 = vst.msk [vmem:[#allocation5 + $0xb8] sm:$0x1] %vm499, 0.0
      %524 = vst.msk [vmem:[#allocation5 + $0xd8] sm:$0x1] %vm499, 0.0
      %525 = vst.msk [vmem:[#allocation5 + $0xf8] sm:$0x1] %vm499, 0.0
      %526 = vst.msk [vmem:[#allocation5 + $0x118] sm:$0x1] %vm499, 0.0
      %527 = vst.msk [vmem:[#allocation5 + $0x138] sm:$0x1] %vm499, 0.0
      %528 = vst.msk [vmem:[#allocation5 + $0x158] sm:$0x1] %vm499, 0.0
      %529 = vst.msk [vmem:[#allocation5 + $0x178] sm:$0x1] %vm499, 0.0
      %530 = vst.msk [vmem:[#allocation5 + $0x198] sm:$0x1] %vm499, 0.0
      %531 = vst.msk [vmem:[#allocation5 + $0x1b8] sm:$0x1] %vm499, 0.0
      %532 = vst.msk [vmem:[#allocation5 + $0x1d8] sm:$0x1] %vm499, 0.0
      %533 = vst.msk [vmem:[#allocation5 + $0x1f8] sm:$0x1] %vm499, 0.0
      %534 = vst.msk [vmem:[#allocation5 + $0x218] sm:$0x1] %vm499, 0.0
      %535 = vst.msk [vmem:[#allocation5 + $0x238] sm:$0x1] %vm499, 0.0
      %vm536 = vcmask 9216
      %537 = vst.msk [vmem:[#allocation3 + $0x6] sm:$0x3] %vm536, -inf
      %538 = vst.msk [vmem:[#allocation3 + $0x26] sm:$0x3] %vm536, -inf
      %539 = vst.msk [vmem:[#allocation3 + $0x46] sm:$0x3] %vm536, -inf
      %540 = vst.msk [vmem:[#allocation3 + $0x66] sm:$0x3] %vm536, -inf
      %541 = vst.msk [vmem:[#allocation3 + $0x86] sm:$0x3] %vm536, -inf
      %542 = vst.msk [vmem:[#allocation3 + $0xa6] sm:$0x3] %vm536, -inf
      %543 = vst.msk [vmem:[#allocation3 + $0xc6] sm:$0x3] %vm536, -inf
      %544 = vst.msk [vmem:[#allocation3 + $0xe6] sm:$0x3] %vm536, -inf
      %545 = vst.msk [vmem:[#allocation3 + $0x106] sm:$0x3] %vm536, -inf
      %546 = vst.msk [vmem:[#allocation3 + $0x126] sm:$0x3] %vm536, -inf
      %547 = vst.msk [vmem:[#allocation3 + $0x146] sm:$0x3] %vm536, -inf
      %548 = vst.msk [vmem:[#allocation3 + $0x166] sm:$0x3] %vm536, -inf
      %549 = vst.msk [vmem:[#allocation3 + $0x186] sm:$0x3] %vm536, -inf
      %550 = vst.msk [vmem:[#allocation3 + $0x1a6] sm:$0x3] %vm536, -inf
      %551 = vst.msk [vmem:[#allocation3 + $0x1c6] sm:$0x3] %vm536, -inf
      %552 = vst.msk [vmem:[#allocation3 + $0x1e6] sm:$0x3] %vm536, -inf
      %553 = vst.msk [vmem:[#allocation3 + $0x18] sm:$0x3] %vm536, -inf
      %554 = vst.msk [vmem:[#allocation3 + $0x38] sm:$0x3] %vm536, -inf
      %555 = vst.msk [vmem:[#allocation3 + $0x58] sm:$0x3] %vm536, -inf
      %556 = vst.msk [vmem:[#allocation3 + $0x78] sm:$0x3] %vm536, -inf
      %557 = vst.msk [vmem:[#allocation3 + $0x98] sm:$0x3] %vm536, -inf
      %558 = vst.msk [vmem:[#allocation3 + $0xb8] sm:$0x3] %vm536, -inf
      %559 = vst.msk [vmem:[#allocation3 + $0xd8] sm:$0x3] %vm536, -inf
      %560 = vst.msk [vmem:[#allocation3 + $0xf8] sm:$0x3] %vm536, -inf
      %561 = vst.msk [vmem:[#allocation3 + $0x118] sm:$0x3] %vm536, -inf
      %562 = vst.msk [vmem:[#allocation3 + $0x138] sm:$0x3] %vm536, -inf
      %563 = vst.msk [vmem:[#allocation3 + $0x158] sm:$0x3] %vm536, -inf
      %564 = vst.msk [vmem:[#allocation3 + $0x178] sm:$0x3] %vm536, -inf
      %565 = vst.msk [vmem:[#allocation3 + $0x198] sm:$0x3] %vm536, -inf
      %566 = vst.msk [vmem:[#allocation3 + $0x1b8] sm:$0x3] %vm536, -inf
      %567 = vst.msk [vmem:[#allocation3 + $0x1d8] sm:$0x3] %vm536, -inf
      %568 = vst.msk [vmem:[#allocation3 + $0x1f8] sm:$0x3] %vm536, -inf
      %569 = vst.msk [vmem:[#allocation4] sm:$0xff] %vm442, -inf
      %570 = vst.msk [vmem:[#allocation4 + $0x8] sm:$0xff] %vm442, -inf
      %571 = vst.msk [vmem:[#allocation4 + $0x10] sm:$0xff] %vm442, -inf
      %572 = vst.msk [vmem:[#allocation4 + $0x18] sm:$0xff] %vm442, -inf
      %s573 = scalar_lea.vmem [#allocation4], 288
      %574 = vst.msk [vmem:[%s573] sm:$0xff] %vm442, -inf
      %575 = vst.msk [vmem:[%s573 + $0x8] sm:$0xff] %vm442, -inf
      %576 = vst.msk [vmem:[%s573 + $0x10] sm:$0xff] %vm442, -inf
      %577 = vst.msk [vmem:[%s573 + $0x18] sm:$0xff] %vm442, -inf
      %v578 = vld [vmem:[%s435] sm:$0xff]
      %v579 = vld [vmem:[%s435 + $0x8] sm:$0xff]
      %v580 = vld [vmem:[%s435 + $0x10] sm:$0xff]
      %v581 = vld [vmem:[%s435 + $0x18] sm:$0xff]
      %v582 = vld [vmem:[%s435 + $0x20] sm:$0xff]
      %v583 = vld [vmem:[%s435 + $0x28] sm:$0xff]
      %v584 = vld [vmem:[%s435 + $0x30] sm:$0xff]
      %v585 = vld [vmem:[%s435 + $0x38] sm:$0xff]
      %v586 = vld [vmem:[%s435 + $0x40] sm:$0xff]
      %v587 = vld [vmem:[%s435 + $0x48] sm:$0xff]
      %v588 = vld [vmem:[%s435 + $0x50] sm:$0xff]
      %v589 = vld [vmem:[%s435 + $0x58] sm:$0xff]
      %v590 = vld [vmem:[%s435 + $0x60] sm:$0xff]
      %v591 = vld [vmem:[%s435 + $0x68] sm:$0xff]
      %v592 = vld [vmem:[%s435 + $0x70] sm:$0xff]
      %v593 = vld [vmem:[%s435 + $0x78] sm:$0xff]
      %v594 = vld [vmem:[%s435 + $0x80] sm:$0xff]
      %v595 = vld [vmem:[%s435 + $0x88] sm:$0xff]
      %v596 = vld [vmem:[%s435 + $0x90] sm:$0xff]
      %v597 = vld [vmem:[%s435 + $0x98] sm:$0xff]
      %v598 = vld [vmem:[%s435 + $0xa0] sm:$0xff]
      %v599 = vld [vmem:[%s435 + $0xa8] sm:$0xff]
      %v600 = vld [vmem:[%s435 + $0xb0] sm:$0xff]
      %v601 = vld [vmem:[%s435 + $0xb8] sm:$0xff]
      %v602 = vld [vmem:[%s435 + $0xc0] sm:$0xff]
      %v603 = vld [vmem:[%s435 + $0xc8] sm:$0xff]
      %v604 = vld [vmem:[%s435 + $0xd0] sm:$0xff]
      %v605 = vld [vmem:[%s435 + $0xd8] sm:$0xff]
      %v606 = vld [vmem:[%s435 + $0xe0] sm:$0xff]
      %v607 = vld [vmem:[%s435 + $0xe8] sm:$0xff]
      %v608 = vld [vmem:[%s435 + $0xf0] sm:$0xff]
      %v609 = vld [vmem:[%s435 + $0xf8] sm:$0xff]
      %v610 = vpack.c.bf16 %v579, %v578
      %v611 = vpack.c.bf16 %v581, %v580
      %v612 = vpack.c.bf16 %v583, %v582
      %v613 = vpack.c.bf16 %v585, %v584
      %v614 = vpack.c.bf16 %v587, %v586
      %v615 = vpack.c.bf16 %v589, %v588
      %v616 = vpack.c.bf16 %v591, %v590
      %v617 = vpack.c.bf16 %v593, %v592
      %v618 = vpack.c.bf16 %v595, %v594
      %v619 = vpack.c.bf16 %v597, %v596
      %v620 = vpack.c.bf16 %v599, %v598
      %v621 = vpack.c.bf16 %v601, %v600
      %v622 = vpack.c.bf16 %v603, %v602
      %v623 = vpack.c.bf16 %v605, %v604
      %v624 = vpack.c.bf16 %v607, %v606
      %v625 = vpack.c.bf16 %v609, %v608
      %v626 = vld [vmem:[%s1] sm:$0x3]
      %vm627 = vcmask 31744
      %v629 = vsel %vm627, %v610, 0
      %v632 = vsel %vm627, %v611, 0
      %v635 = vsel %vm627, %v612, 0
      %v638 = vsel %vm627, %v613, 0
      %v641 = vsel %vm627, %v614, 0
      %v644 = vsel %vm627, %v615, 0
      %v647 = vsel %vm627, %v616, 0
      %v650 = vsel %vm627, %v617, 0
      %v653 = vsel %vm627, %v618, 0
      %v656 = vsel %vm627, %v619, 0
      %v659 = vsel %vm627, %v620, 0
      %v662 = vsel %vm627, %v621, 0
      %v665 = vsel %vm627, %v622, 0
      %v668 = vsel %vm627, %v623, 0
      %v671 = vsel %vm627, %v624, 0
      %v674 = vsel %vm627, %v625, 0
      %vm676 = vcmask 1041408
      %v678 = vsel %vm676, %v626, 0
      %680 = vmatpush.bf16.msra.mxu0 0
      %681 = vmatpush.bf16.msra.mxu0 0
      %682 = vmatpush.bf16.msra.mxu0 0
      %683 = vmatpush.bf16.msra.mxu0 0
      %684 = vmatpush.bf16.msra.mxu0 0
      %685 = vmatpush.bf16.msra.mxu0 0
      %686 = vmatpush.bf16.msra.mxu0 0
      %687 = vmatpush.bf16.msra.mxu0 %v678
      %688 = vmatmul.bf16.gmra.mxu0 %v629
      %v689 = vpop.f32.mrf.mxu0
      %v690 = vadd.f32 0.0, %v689
      %v691 = vpop.f32.mrf.mxu0
      %v692 = vadd.f32 0.0, %v691
      %693 = vmatmul.bf16.gmra.mxu0 %v632
      %v694 = vpop.f32.mrf.mxu0
      %v695 = vadd.f32 0.0, %v694
      %v696 = vpop.f32.mrf.mxu0
      %v697 = vadd.f32 0.0, %v696
      %698 = vmatmul.bf16.gmra.mxu0 %v635
      %v699 = vpop.f32.mrf.mxu0
      %v700 = vadd.f32 0.0, %v699
      %v701 = vpop.f32.mrf.mxu0
      %v702 = vadd.f32 0.0, %v701
      %703 = vmatmul.bf16.gmra.mxu0 %v638
      %v704 = vpop.f32.mrf.mxu0
      %v705 = vadd.f32 0.0, %v704
      %v706 = vpop.f32.mrf.mxu0
      %v707 = vadd.f32 0.0, %v706
      %708 = vmatmul.bf16.gmra.mxu0 %v641
      %v709 = vpop.f32.mrf.mxu0
      %v710 = vadd.f32 0.0, %v709
      %v711 = vpop.f32.mrf.mxu0
      %v712 = vadd.f32 0.0, %v711
      %713 = vmatmul.bf16.gmra.mxu0 %v644
      %v714 = vpop.f32.mrf.mxu0
      %v715 = vadd.f32 0.0, %v714
      %v716 = vpop.f32.mrf.mxu0
      %v717 = vadd.f32 0.0, %v716
      %718 = vmatmul.bf16.gmra.mxu0 %v647
      %v719 = vpop.f32.mrf.mxu0
      %v720 = vadd.f32 0.0, %v719
      %v721 = vpop.f32.mrf.mxu0
      %v722 = vadd.f32 0.0, %v721
      %723 = vmatmul.bf16.gmra.mxu0 %v650
      %v724 = vpop.f32.mrf.mxu0
      %v725 = vadd.f32 0.0, %v724
      %v726 = vpop.f32.mrf.mxu0
      %v727 = vadd.f32 0.0, %v726
      %728 = vmatmul.bf16.gmra.mxu0 %v653
      %v729 = vpop.f32.mrf.mxu0
      %v730 = vadd.f32 0.0, %v729
      %v731 = vpop.f32.mrf.mxu0
      %v732 = vadd.f32 0.0, %v731
      %733 = vmatmul.bf16.gmra.mxu0 %v656
      %v734 = vpop.f32.mrf.mxu0
      %v735 = vadd.f32 0.0, %v734
      %v736 = vpop.f32.mrf.mxu0
      %v737 = vadd.f32 0.0, %v736
      %738 = vmatmul.bf16.gmra.mxu0 %v659
      %v739 = vpop.f32.mrf.mxu0
      %v740 = vadd.f32 0.0, %v739
      %v741 = vpop.f32.mrf.mxu0
      %v742 = vadd.f32 0.0, %v741
      %743 = vmatmul.bf16.gmra.mxu0 %v662
      %v744 = vpop.f32.mrf.mxu0
      %v745 = vadd.f32 0.0, %v744
      %v746 = vpop.f32.mrf.mxu0
      %v747 = vadd.f32 0.0, %v746
      %748 = vmatmul.bf16.gmra.mxu0 %v665
      %v749 = vpop.f32.mrf.mxu0
      %v750 = vadd.f32 0.0, %v749
      %v751 = vpop.f32.mrf.mxu0
      %v752 = vadd.f32 0.0, %v751
      %753 = vmatmul.bf16.gmra.mxu0 %v668
      %v754 = vpop.f32.mrf.mxu0
      %v755 = vadd.f32 0.0, %v754
      %v756 = vpop.f32.mrf.mxu0
      %v757 = vadd.f32 0.0, %v756
      %758 = vmatmul.bf16.gmra.mxu0 %v671
      %v759 = vpop.f32.mrf.mxu0
      %v760 = vadd.f32 0.0, %v759
      %v761 = vpop.f32.mrf.mxu0
      %v762 = vadd.f32 0.0, %v761
      %763 = vmatmul.bf16.gmra.mxu0 %v674
      %v764 = vpop.f32.mrf.mxu0
      %v765 = vadd.f32 0.0, %v764
      %v766 = vpop.f32.mrf.mxu0
      %v767 = vadd.f32 0.0, %v766
      %768 = vdwg.mxu0
      %v769 = vld [vmem:[%s2] sm:$0x1]
      %v771 = vperm.slane %v769, 0
      %v773 = vmul.f32 %v690, %v771
      %v774 = vmul.f32 %v692, %v771
      %v775 = vmul.f32 %v695, %v771
      %v776 = vmul.f32 %v697, %v771
      %v777 = vmul.f32 %v700, %v771
      %v778 = vmul.f32 %v702, %v771
      %v779 = vmul.f32 %v705, %v771
      %v780 = vmul.f32 %v707, %v771
      %v781 = vmul.f32 %v710, %v771
      %v782 = vmul.f32 %v712, %v771
      %v783 = vmul.f32 %v715, %v771
      %v784 = vmul.f32 %v717, %v771
      %v785 = vmul.f32 %v720, %v771
      %v786 = vmul.f32 %v722, %v771
      %v787 = vmul.f32 %v725, %v771
      %v788 = vmul.f32 %v727, %v771
      %v789 = vmul.f32 %v730, %v771
      %v790 = vmul.f32 %v732, %v771
      %v791 = vmul.f32 %v735, %v771
      %v792 = vmul.f32 %v737, %v771
      %v793 = vmul.f32 %v740, %v771
      %v794 = vmul.f32 %v742, %v771
      %v795 = vmul.f32 %v745, %v771
      %v796 = vmul.f32 %v747, %v771
      %v797 = vmul.f32 %v750, %v771
      %v798 = vmul.f32 %v752, %v771
      %v799 = vmul.f32 %v755, %v771
      %v800 = vmul.f32 %v757, %v771
      %v801 = vmul.f32 %v760, %v771
      %v802 = vmul.f32 %v762, %v771
      %v803 = vmul.f32 %v765, %v771
      %v804 = vmul.f32 %v767, %v771
      %v805 = vld [vmem:[%s3] sm:$0x1]
      %v807 = vperm.slane %v805, 0
      %v809 = vadd.f32 %v773, %v807
      %v810 = vadd.f32 %v774, %v807
      %v811 = vadd.f32 %v775, %v807
      %v812 = vadd.f32 %v776, %v807
      %v813 = vadd.f32 %v777, %v807
      %v814 = vadd.f32 %v778, %v807
      %v815 = vadd.f32 %v779, %v807
      %v816 = vadd.f32 %v780, %v807
      %v817 = vadd.f32 %v781, %v807
      %v818 = vadd.f32 %v782, %v807
      %v819 = vadd.f32 %v783, %v807
      %v820 = vadd.f32 %v784, %v807
      %v821 = vadd.f32 %v785, %v807
      %v822 = vadd.f32 %v786, %v807
      %v823 = vadd.f32 %v787, %v807
      %v824 = vadd.f32 %v788, %v807
      %v825 = vadd.f32 %v789, %v807
      %v826 = vadd.f32 %v790, %v807
      %v827 = vadd.f32 %v791, %v807
      %v828 = vadd.f32 %v792, %v807
      %v829 = vadd.f32 %v793, %v807
      %v830 = vadd.f32 %v794, %v807
      %v831 = vadd.f32 %v795, %v807
      %v832 = vadd.f32 %v796, %v807
      %v833 = vadd.f32 %v797, %v807
      %v834 = vadd.f32 %v798, %v807
      %v835 = vadd.f32 %v799, %v807
      %v836 = vadd.f32 %v800, %v807
      %v837 = vadd.f32 %v801, %v807
      %v838 = vadd.f32 %v802, %v807
      %v839 = vadd.f32 %v803, %v807
      %v840 = vadd.f32 %v804, %v807
      %v841 = vld [vmem:[%s4] sm:$0x7]
      %v842 = vld [vmem:[%s4 + $0x4] sm:$0x7]
      %v843 = vld [vmem:[%s4 + $0x8] sm:$0x7]
      %v844 = vld [vmem:[%s5] sm:$0x1]
      %v845 = vld [vmem:[%s6] sm:$0x1]
      %s846 = scalar_lea.vmem [#allocation2], 32
      %847 = vst.msk [vmem:[%s846 + $0x8] sm:$0xff] %vm442, %v809
      %848 = vst.msk [vmem:[%s846 + $0x10] sm:$0xff] %vm442, %v810
      %849 = vst.msk [vmem:[%s846 + $0x28] sm:$0xff] %vm442, %v811
      %850 = vst.msk [vmem:[%s846 + $0x30] sm:$0xff] %vm442, %v812
      %851 = vst.msk [vmem:[%s846 + $0x48] sm:$0xff] %vm442, %v813
      %852 = vst.msk [vmem:[%s846 + $0x50] sm:$0xff] %vm442, %v814
      %853 = vst.msk [vmem:[%s846 + $0x68] sm:$0xff] %vm442, %v815
      %854 = vst.msk [vmem:[%s846 + $0x70] sm:$0xff] %vm442, %v816
      %855 = vst.msk [vmem:[%s846 + $0x88] sm:$0xff] %vm442, %v817
      %856 = vst.msk [vmem:[%s846 + $0x90] sm:$0xff] %vm442, %v818
      %857 = vst.msk [vmem:[%s846 + $0xa8] sm:$0xff] %vm442, %v819
      %858 = vst.msk [vmem:[%s846 + $0xb0] sm:$0xff] %vm442, %v820
      %859 = vst.msk [vmem:[%s846 + $0xc8] sm:$0xff] %vm442, %v821
      %860 = vst.msk [vmem:[%s846 + $0xd0] sm:$0xff] %vm442, %v822
      %861 = vst.msk [vmem:[%s846 + $0xe8] sm:$0xff] %vm442, %v823
      %862 = vst.msk [vmem:[%s846 + $0xf0] sm:$0xff] %vm442, %v824
      %863 = vst.msk [vmem:[%s846 + $0x108] sm:$0xff] %vm442, %v825
      %864 = vst.msk [vmem:[%s846 + $0x110] sm:$0xff] %vm442, %v826
      %865 = vst.msk [vmem:[%s846 + $0x128] sm:$0xff] %vm442, %v827
      %866 = vst.msk [vmem:[%s846 + $0x130] sm:$0xff] %vm442, %v828
      %867 = vst.msk [vmem:[%s846 + $0x148] sm:$0xff] %vm442, %v829
      %868 = vst.msk [vmem:[%s846 + $0x150] sm:$0xff] %vm442, %v830
      %869 = vst.msk [vmem:[%s846 + $0x168] sm:$0xff] %vm442, %v831
      %870 = vst.msk [vmem:[%s846 + $0x170] sm:$0xff] %vm442, %v832
      %871 = vst.msk [vmem:[%s846 + $0x188] sm:$0xff] %vm442, %v833
      %872 = vst.msk [vmem:[%s846 + $0x190] sm:$0xff] %vm442, %v834
      %873 = vst.msk [vmem:[%s846 + $0x1a8] sm:$0xff] %vm442, %v835
      %874 = vst.msk [vmem:[%s846 + $0x1b0] sm:$0xff] %vm442, %v836
      %875 = vst.msk [vmem:[%s846 + $0x1c8] sm:$0xff] %vm442, %v837
      %876 = vst.msk [vmem:[%s846 + $0x1d0] sm:$0xff] %vm442, %v838
      %877 = vst.msk [vmem:[%s846 + $0x1e8] sm:$0xff] %vm442, %v839
      %878 = vst.msk [vmem:[%s846 + $0x1f0] sm:$0xff] %vm442, %v840
      %v879 = vld [vmem:[#allocation2 + $0x7] sm:$0xff]
      %v880 = vld [vmem:[#allocation2 + $0xf] sm:$0xff]
      %v881 = vld [vmem:[#allocation2 + $0x27] sm:$0xff]
      %v882 = vld [vmem:[#allocation2 + $0x2f] sm:$0xff]
      %v883 = vld [vmem:[#allocation2 + $0x47] sm:$0xff]
      %v884 = vld [vmem:[#allocation2 + $0x4f] sm:$0xff]
      %v885 = vld [vmem:[#allocation2 + $0x67] sm:$0xff]
      %v886 = vld [vmem:[#allocation2 + $0x6f] sm:$0xff]
      %v887 = vld [vmem:[#allocation2 + $0x87] sm:$0xff]
      %v888 = vld [vmem:[#allocation2 + $0x8f] sm:$0xff]
      %v889 = vld [vmem:[#allocation2 + $0xa7] sm:$0xff]
      %v890 = vld [vmem:[#allocation2 + $0xaf] sm:$0xff]
      %v891 = vld [vmem:[#allocation2 + $0xc7] sm:$0xff]
      %v892 = vld [vmem:[#allocation2 + $0xcf] sm:$0xff]
      %v893 = vld [vmem:[#allocation2 + $0xe7] sm:$0xff]
      %v894 = vld [vmem:[#allocation2 + $0xef] sm:$0xff]
      %v895 = vld [vmem:[#allocation2 + $0x107] sm:$0xff]
      %v896 = vld [vmem:[#allocation2 + $0x10f] sm:$0xff]
      %v897 = vld [vmem:[#allocation2 + $0x127] sm:$0xff]
      %v898 = vld [vmem:[#allocation2 + $0x12f] sm:$0xff]
      %v899 = vld [vmem:[#allocation2 + $0x147] sm:$0xff]
      %v900 = vld [vmem:[#allocation2 + $0x14f] sm:$0xff]
      %v901 = vld [vmem:[#allocation2 + $0x167] sm:$0xff]
      %v902 = vld [vmem:[#allocation2 + $0x16f] sm:$0xff]
      %v903 = vld [vmem:[#allocation2 + $0x187] sm:$0xff]
      %v904 = vld [vmem:[#allocation2 + $0x18f] sm:$0xff]
      %v905 = vld [vmem:[#allocation2 + $0x1a7] sm:$0xff]
      %v906 = vld [vmem:[#allocation2 + $0x1af] sm:$0xff]
      %v907 = vld [vmem:[#allocation2 + $0x1c7] sm:$0xff]
      %v908 = vld [vmem:[#allocation2 + $0x1cf] sm:$0xff]
      %v909 = vld [vmem:[#allocation2 + $0x1e7] sm:$0xff]
      %v910 = vld [vmem:[#allocation2 + $0x1ef] sm:$0xff]
      %v911 = vperm.slane %v841, 0
      %v912 = vmul.f32 %v879, %v911
      %v913 = vmul.f32 %v880, %v911
      %v914 = vmul.f32 %v881, %v911
      %v915 = vmul.f32 %v882, %v911
      %v916 = vmul.f32 %v883, %v911
      %v917 = vmul.f32 %v884, %v911
      %v918 = vmul.f32 %v885, %v911
      %v919 = vmul.f32 %v886, %v911
      %v920 = vmul.f32 %v887, %v911
      %v921 = vmul.f32 %v888, %v911
      %v922 = vmul.f32 %v889, %v911
      %v923 = vmul.f32 %v890, %v911
      %v924 = vmul.f32 %v891, %v911
      %v925 = vmul.f32 %v892, %v911
      %v926 = vmul.f32 %v893, %v911
      %v927 = vmul.f32 %v894, %v911
      %v928 = vmul.f32 %v895, %v911
      %v929 = vmul.f32 %v896, %v911
      %v930 = vmul.f32 %v897, %v911
      %v931 = vmul.f32 %v898, %v911
      %v932 = vmul.f32 %v899, %v911
      %v933 = vmul.f32 %v900, %v911
      %v934 = vmul.f32 %v901, %v911
      %v935 = vmul.f32 %v902, %v911
      %v936 = vmul.f32 %v903, %v911
      %v937 = vmul.f32 %v904, %v911
      %v938 = vmul.f32 %v905, %v911
      %v939 = vmul.f32 %v906, %v911
      %v940 = vmul.f32 %v907, %v911
      %v941 = vmul.f32 %v908, %v911
      %v942 = vmul.f32 %v909, %v911
      %v943 = vmul.f32 %v910, %v911
      %v944 = vld [vmem:[#allocation2 + $0x8] sm:$0xff]
      %v945 = vld [vmem:[#allocation2 + $0x10] sm:$0xff]
      %v946 = vld [vmem:[#allocation2 + $0x28] sm:$0xff]
      %v947 = vld [vmem:[#allocation2 + $0x30] sm:$0xff]
      %v948 = vld [vmem:[#allocation2 + $0x48] sm:$0xff]
      %v949 = vld [vmem:[#allocation2 + $0x50] sm:$0xff]
      %v950 = vld [vmem:[#allocation2 + $0x68] sm:$0xff]
      %v951 = vld [vmem:[#allocation2 + $0x70] sm:$0xff]
      %v952 = vld [vmem:[#allocation2 + $0x88] sm:$0xff]
      %v953 = vld [vmem:[#allocation2 + $0x90] sm:$0xff]
      %v954 = vld [vmem:[#allocation2 + $0xa8] sm:$0xff]
      %v955 = vld [vmem:[#allocation2 + $0xb0] sm:$0xff]
      %v956 = vld [vmem:[#allocation2 + $0xc8] sm:$0xff]
      %v957 = vld [vmem:[#allocation2 + $0xd0] sm:$0xff]
      %v958 = vld [vmem:[#allocation2 + $0xe8] sm:$0xff]
      %v959 = vld [vmem:[#allocation2 + $0xf0] sm:$0xff]
      %v960 = vld [vmem:[#allocation2 + $0x108] sm:$0xff]
      %v961 = vld [vmem:[#allocation2 + $0x110] sm:$0xff]
      %v962 = vld [vmem:[#allocation2 + $0x128] sm:$0xff]
      %v963 = vld [vmem:[#allocation2 + $0x130] sm:$0xff]
      %v964 = vld [vmem:[#allocation2 + $0x148] sm:$0xff]
      %v965 = vld [vmem:[#allocation2 + $0x150] sm:$0xff]
      %v966 = vld [vmem:[#allocation2 + $0x168] sm:$0xff]
      %v967 = vld [vmem:[#allocation2 + $0x170] sm:$0xff]
      %v968 = vld [vmem:[#allocation2 + $0x188] sm:$0xff]
      %v969 = vld [vmem:[#allocation2 + $0x190] sm:$0xff]
      %v970 = vld [vmem:[#allocation2 + $0x1a8] sm:$0xff]
      %v971 = vld [vmem:[#allocation2 + $0x1b0] sm:$0xff]
      %v972 = vld [vmem:[#allocation2 + $0x1c8] sm:$0xff]
      %v973 = vld [vmem:[#allocation2 + $0x1d0] sm:$0xff]
      %v974 = vld [vmem:[#allocation2 + $0x1e8] sm:$0xff]
      %v975 = vld [vmem:[#allocation2 + $0x1f0] sm:$0xff]
      %v976 = vperm.slane %v841, 1
      %v977 = vmul.f32 %v944, %v976
      %v978 = vmul.f32 %v945, %v976
      %v979 = vmul.f32 %v946, %v976
      %v980 = vmul.f32 %v947, %v976
      %v981 = vmul.f32 %v948, %v976
      %v982 = vmul.f32 %v949, %v976
      %v983 = vmul.f32 %v950, %v976
      %v984 = vmul.f32 %v951, %v976
      %v985 = vmul.f32 %v952, %v976
      %v986 = vmul.f32 %v953, %v976
      %v987 = vmul.f32 %v954, %v976
      %v988 = vmul.f32 %v955, %v976
      %v989 = vmul.f32 %v956, %v976
      %v990 = vmul.f32 %v957, %v976
      %v991 = vmul.f32 %v958, %v976
      %v992 = vmul.f32 %v959, %v976
      %v993 = vmul.f32 %v960, %v976
      %v994 = vmul.f32 %v961, %v976
      %v995 = vmul.f32 %v962, %v976
      %v996 = vmul.f32 %v963, %v976
      %v997 = vmul.f32 %v964, %v976
      %v998 = vmul.f32 %v965, %v976
      %v999 = vmul.f32 %v966, %v976
      %v1000 = vmul.f32 %v967, %v976
      %v1001 = vmul.f32 %v968, %v976
      %v1002 = vmul.f32 %v969, %v976
      %v1003 = vmul.f32 %v970, %v976
      %v1004 = vmul.f32 %v971, %v976
      %v1005 = vmul.f32 %v972, %v976
      %v1006 = vmul.f32 %v973, %v976
      %v1007 = vmul.f32 %v974, %v976
      %v1008 = vmul.f32 %v975, %v976
      %v1009 = vadd.f32 %v912, %v977
      %v1010 = vadd.f32 %v913, %v978
      %v1011 = vadd.f32 %v914, %v979
      %v1012 = vadd.f32 %v915, %v980
      %v1013 = vadd.f32 %v916, %v981
      %v1014 = vadd.f32 %v917, %v982
      %v1015 = vadd.f32 %v918, %v983
      %v1016 = vadd.f32 %v919, %v984
      %v1017 = vadd.f32 %v920, %v985
      %v1018 = vadd.f32 %v921, %v986
      %v1019 = vadd.f32 %v922, %v987
      %v1020 = vadd.f32 %v923, %v988
      %v1021 = vadd.f32 %v924, %v989
      %v1022 = vadd.f32 %v925, %v990
      %v1023 = vadd.f32 %v926, %v991
      %v1024 = vadd.f32 %v927, %v992
      %v1025 = vadd.f32 %v928, %v993
      %v1026 = vadd.f32 %v929, %v994
      %v1027 = vadd.f32 %v930, %v995
      %v1028 = vadd.f32 %v931, %v996
      %v1029 = vadd.f32 %v932, %v997
      %v1030 = vadd.f32 %v933, %v998
      %v1031 = vadd.f32 %v934, %v999
      %v1032 = vadd.f32 %v935, %v1000
      %v1033 = vadd.f32 %v936, %v1001
      %v1034 = vadd.f32 %v937, %v1002
      %v1035 = vadd.f32 %v938, %v1003
      %v1036 = vadd.f32 %v939, %v1004
      %v1037 = vadd.f32 %v940, %v1005
      %v1038 = vadd.f32 %v941, %v1006
      %v1039 = vadd.f32 %v942, %v1007
      %v1040 = vadd.f32 %v943, %v1008
      %v1041 = vld [vmem:[#allocation2 + $0x9] sm:$0xff]
      %v1042 = vld [vmem:[#allocation2 + $0x11] sm:$0xff]
      %v1043 = vld [vmem:[#allocation2 + $0x29] sm:$0xff]
      %v1044 = vld [vmem:[#allocation2 + $0x31] sm:$0xff]
      %v1045 = vld [vmem:[#allocation2 + $0x49] sm:$0xff]
      %v1046 = vld [vmem:[#allocation2 + $0x51] sm:$0xff]
      %v1047 = vld [vmem:[#allocation2 + $0x69] sm:$0xff]
      %v1048 = vld [vmem:[#allocation2 + $0x71] sm:$0xff]
      %v1049 = vld [vmem:[#allocation2 + $0x89] sm:$0xff]
      %v1050 = vld [vmem:[#allocation2 + $0x91] sm:$0xff]
      %v1051 = vld [vmem:[#allocation2 + $0xa9] sm:$0xff]
      %v1052 = vld [vmem:[#allocation2 + $0xb1] sm:$0xff]
      %v1053 = vld [vmem:[#allocation2 + $0xc9] sm:$0xff]
      %v1054 = vld [vmem:[#allocation2 + $0xd1] sm:$0xff]
      %v1055 = vld [vmem:[#allocation2 + $0xe9] sm:$0xff]
      %v1056 = vld [vmem:[#allocation2 + $0xf1] sm:$0xff]
      %v1057 = vld [vmem:[#allocation2 + $0x109] sm:$0xff]
      %v1058 = vld [vmem:[#allocation2 + $0x111] sm:$0xff]
      %v1059 = vld [vmem:[#allocation2 + $0x129] sm:$0xff]
      %v1060 = vld [vmem:[#allocation2 + $0x131] sm:$0xff]
      %v1061 = vld [vmem:[#allocation2 + $0x149] sm:$0xff]
      %v1062 = vld [vmem:[#allocation2 + $0x151] sm:$0xff]
      %v1063 = vld [vmem:[#allocation2 + $0x169] sm:$0xff]
      %v1064 = vld [vmem:[#allocation2 + $0x171] sm:$0xff]
      %v1065 = vld [vmem:[#allocation2 + $0x189] sm:$0xff]
      %v1066 = vld [vmem:[#allocation2 + $0x191] sm:$0xff]
      %v1067 = vld [vmem:[#allocation2 + $0x1a9] sm:$0xff]
      %v1068 = vld [vmem:[#allocation2 + $0x1b1] sm:$0xff]
      %v1069 = vld [vmem:[#allocation2 + $0x1c9] sm:$0xff]
      %v1070 = vld [vmem:[#allocation2 + $0x1d1] sm:$0xff]
      %v1071 = vld [vmem:[#allocation2 + $0x1e9] sm:$0xff]
      %v1072 = vld [vmem:[#allocation2 + $0x1f1] sm:$0xff]
      %v1073 = vperm.slane %v841, 2
      %v1074 = vmul.f32 %v1041, %v1073
      %v1075 = vmul.f32 %v1042, %v1073
      %v1076 = vmul.f32 %v1043, %v1073
      %v1077 = vmul.f32 %v1044, %v1073
      %v1078 = vmul.f32 %v1045, %v1073
      %v1079 = vmul.f32 %v1046, %v1073
      %v1080 = vmul.f32 %v1047, %v1073
      %v1081 = vmul.f32 %v1048, %v1073
      %v1082 = vmul.f32 %v1049, %v1073
      %v1083 = vmul.f32 %v1050, %v1073
      %v1084 = vmul.f32 %v1051, %v1073
      %v1085 = vmul.f32 %v1052, %v1073
      %v1086 = vmul.f32 %v1053, %v1073
      %v1087 = vmul.f32 %v1054, %v1073
      %v1088 = vmul.f32 %v1055, %v1073
      %v1089 = vmul.f32 %v1056, %v1073
      %v1090 = vmul.f32 %v1057, %v1073
      %v1091 = vmul.f32 %v1058, %v1073
      %v1092 = vmul.f32 %v1059, %v1073
      %v1093 = vmul.f32 %v1060, %v1073
      %v1094 = vmul.f32 %v1061, %v1073
      %v1095 = vmul.f32 %v1062, %v1073
      %v1096 = vmul.f32 %v1063, %v1073
      %v1097 = vmul.f32 %v1064, %v1073
      %v1098 = vmul.f32 %v1065, %v1073
      %v1099 = vmul.f32 %v1066, %v1073
      %v1100 = vmul.f32 %v1067, %v1073
      %v1101 = vmul.f32 %v1068, %v1073
      %v1102 = vmul.f32 %v1069, %v1073
      %v1103 = vmul.f32 %v1070, %v1073
      %v1104 = vmul.f32 %v1071, %v1073
      %v1105 = vmul.f32 %v1072, %v1073
      %v1106 = vadd.f32 %v1009, %v1074
      %v1107 = vadd.f32 %v1010, %v1075
      %v1108 = vadd.f32 %v1011, %v1076
      %v1109 = vadd.f32 %v1012, %v1077
      %v1110 = vadd.f32 %v1013, %v1078
      %v1111 = vadd.f32 %v1014, %v1079
      %v1112 = vadd.f32 %v1015, %v1080
      %v1113 = vadd.f32 %v1016, %v1081
      %v1114 = vadd.f32 %v1017, %v1082
      %v1115 = vadd.f32 %v1018, %v1083
      %v1116 = vadd.f32 %v1019, %v1084
      %v1117 = vadd.f32 %v1020, %v1085
      %v1118 = vadd.f32 %v1021, %v1086
      %v1119 = vadd.f32 %v1022, %v1087
      %v1120 = vadd.f32 %v1023, %v1088
      %v1121 = vadd.f32 %v1024, %v1089
      %v1122 = vadd.f32 %v1025, %v1090
      %v1123 = vadd.f32 %v1026, %v1091
      %v1124 = vadd.f32 %v1027, %v1092
      %v1125 = vadd.f32 %v1028, %v1093
      %v1126 = vadd.f32 %v1029, %v1094
      %v1127 = vadd.f32 %v1030, %v1095
      %v1128 = vadd.f32 %v1031, %v1096
      %v1129 = vadd.f32 %v1032, %v1097
      %v1130 = vadd.f32 %v1033, %v1098
      %v1131 = vadd.f32 %v1034, %v1099
      %v1132 = vadd.f32 %v1035, %v1100
      %v1133 = vadd.f32 %v1036, %v1101
      %v1134 = vadd.f32 %v1037, %v1102
      %v1135 = vadd.f32 %v1038, %v1103
      %v1136 = vadd.f32 %v1039, %v1104
      %v1137 = vadd.f32 %v1040, %v1105
      %v1138 = vld [vmem:[%s846 + $0x7] sm:$0xff]
      %v1139 = vld [vmem:[%s846 + $0xf] sm:$0xff]
      %v1140 = vld [vmem:[%s846 + $0x27] sm:$0xff]
      %v1141 = vld [vmem:[%s846 + $0x2f] sm:$0xff]
      %v1142 = vld [vmem:[%s846 + $0x47] sm:$0xff]
      %v1143 = vld [vmem:[%s846 + $0x4f] sm:$0xff]
      %v1144 = vld [vmem:[%s846 + $0x67] sm:$0xff]
      %v1145 = vld [vmem:[%s846 + $0x6f] sm:$0xff]
      %v1146 = vld [vmem:[%s846 + $0x87] sm:$0xff]
      %v1147 = vld [vmem:[%s846 + $0x8f] sm:$0xff]
      %v1148 = vld [vmem:[%s846 + $0xa7] sm:$0xff]
      %v1149 = vld [vmem:[%s846 + $0xaf] sm:$0xff]
      %v1150 = vld [vmem:[%s846 + $0xc7] sm:$0xff]
      %v1151 = vld [vmem:[%s846 + $0xcf] sm:$0xff]
      %v1152 = vld [vmem:[%s846 + $0xe7] sm:$0xff]
      %v1153 = vld [vmem:[%s846 + $0xef] sm:$0xff]
      %v1154 = vld [vmem:[%s846 + $0x107] sm:$0xff]
      %v1155 = vld [vmem:[%s846 + $0x10f] sm:$0xff]
      %v1156 = vld [vmem:[%s846 + $0x127] sm:$0xff]
      %v1157 = vld [vmem:[%s846 + $0x12f] sm:$0xff]
      %v1158 = vld [vmem:[%s846 + $0x147] sm:$0xff]
      %v1159 = vld [vmem:[%s846 + $0x14f] sm:$0xff]
      %v1160 = vld [vmem:[%s846 + $0x167] sm:$0xff]
      %v1161 = vld [vmem:[%s846 + $0x16f] sm:$0xff]
      %v1162 = vld [vmem:[%s846 + $0x187] sm:$0xff]
      %v1163 = vld [vmem:[%s846 + $0x18f] sm:$0xff]
      %v1164 = vld [vmem:[%s846 + $0x1a7] sm:$0xff]
      %v1165 = vld [vmem:[%s846 + $0x1af] sm:$0xff]
      %v1166 = vld [vmem:[%s846 + $0x1c7] sm:$0xff]
      %v1167 = vld [vmem:[%s846 + $0x1cf] sm:$0xff]
      %v1168 = vld [vmem:[%s846 + $0x1e7] sm:$0xff]
      %v1169 = vld [vmem:[%s846 + $0x1ef] sm:$0xff]
      %v1170 = vperm.slane %v842, 0
      %v1171 = vmul.f32 %v1138, %v1170
      %v1172 = vmul.f32 %v1139, %v1170
      %v1173 = vmul.f32 %v1140, %v1170
      %v1174 = vmul.f32 %v1141, %v1170
      %v1175 = vmul.f32 %v1142, %v1170
      %v1176 = vmul.f32 %v1143, %v1170
      %v1177 = vmul.f32 %v1144, %v1170
      %v1178 = vmul.f32 %v1145, %v1170
      %v1179 = vmul.f32 %v1146, %v1170
      %v1180 = vmul.f32 %v1147, %v1170
      %v1181 = vmul.f32 %v1148, %v1170
      %v1182 = vmul.f32 %v1149, %v1170
      %v1183 = vmul.f32 %v1150, %v1170
      %v1184 = vmul.f32 %v1151, %v1170
      %v1185 = vmul.f32 %v1152, %v1170
      %v1186 = vmul.f32 %v1153, %v1170
      %v1187 = vmul.f32 %v1154, %v1170
      %v1188 = vmul.f32 %v1155, %v1170
      %v1189 = vmul.f32 %v1156, %v1170
      %v1190 = vmul.f32 %v1157, %v1170
      %v1191 = vmul.f32 %v1158, %v1170
      %v1192 = vmul.f32 %v1159, %v1170
      %v1193 = vmul.f32 %v1160, %v1170
      %v1194 = vmul.f32 %v1161, %v1170
      %v1195 = vmul.f32 %v1162, %v1170
      %v1196 = vmul.f32 %v1163, %v1170
      %v1197 = vmul.f32 %v1164, %v1170
      %v1198 = vmul.f32 %v1165, %v1170
      %v1199 = vmul.f32 %v1166, %v1170
      %v1200 = vmul.f32 %v1167, %v1170
      %v1201 = vmul.f32 %v1168, %v1170
      %v1202 = vmul.f32 %v1169, %v1170
      %v1203 = vadd.f32 %v1106, %v1171
      %v1204 = vadd.f32 %v1107, %v1172
      %v1205 = vadd.f32 %v1108, %v1173
      %v1206 = vadd.f32 %v1109, %v1174
      %v1207 = vadd.f32 %v1110, %v1175
      %v1208 = vadd.f32 %v1111, %v1176
      %v1209 = vadd.f32 %v1112, %v1177
      %v1210 = vadd.f32 %v1113, %v1178
      %v1211 = vadd.f32 %v1114, %v1179
      %v1212 = vadd.f32 %v1115, %v1180
      %v1213 = vadd.f32 %v1116, %v1181
      %v1214 = vadd.f32 %v1117, %v1182
      %v1215 = vadd.f32 %v1118, %v1183
      %v1216 = vadd.f32 %v1119, %v1184
      %v1217 = vadd.f32 %v1120, %v1185
      %v1218 = vadd.f32 %v1121, %v1186
      %v1219 = vadd.f32 %v1122, %v1187
      %v1220 = vadd.f32 %v1123, %v1188
      %v1221 = vadd.f32 %v1124, %v1189
      %v1222 = vadd.f32 %v1125, %v1190
      %v1223 = vadd.f32 %v1126, %v1191
      %v1224 = vadd.f32 %v1127, %v1192
      %v1225 = vadd.f32 %v1128, %v1193
      %v1226 = vadd.f32 %v1129, %v1194
      %v1227 = vadd.f32 %v1130, %v1195
      %v1228 = vadd.f32 %v1131, %v1196
      %v1229 = vadd.f32 %v1132, %v1197
      %v1230 = vadd.f32 %v1133, %v1198
      %v1231 = vadd.f32 %v1134, %v1199
      %v1232 = vadd.f32 %v1135, %v1200
      %v1233 = vadd.f32 %v1136, %v1201
      %v1234 = vadd.f32 %v1137, %v1202
      %v1235 = vld [vmem:[%s846 + $0x8] sm:$0xff]
      %v1236 = vld [vmem:[%s846 + $0x10] sm:$0xff]
      %v1237 = vld [vmem:[%s846 + $0x28] sm:$0xff]
      %v1238 = vld [vmem:[%s846 + $0x30] sm:$0xff]
      %v1239 = vld [vmem:[%s846 + $0x48] sm:$0xff]
      %v1240 = vld [vmem:[%s846 + $0x50] sm:$0xff]
      %v1241 = vld [vmem:[%s846 + $0x68] sm:$0xff]
      %v1242 = vld [vmem:[%s846 + $0x70] sm:$0xff]
      %v1243 = vld [vmem:[%s846 + $0x88] sm:$0xff]
      %v1244 = vld [vmem:[%s846 + $0x90] sm:$0xff]
      %v1245 = vld [vmem:[%s846 + $0xa8] sm:$0xff]
      %v1246 = vld [vmem:[%s846 + $0xb0] sm:$0xff]
      %v1247 = vld [vmem:[%s846 + $0xc8] sm:$0xff]
      %v1248 = vld [vmem:[%s846 + $0xd0] sm:$0xff]
      %v1249 = vld [vmem:[%s846 + $0xe8] sm:$0xff]
      %v1250 = vld [vmem:[%s846 + $0xf0] sm:$0xff]
      %v1251 = vld [vmem:[%s846 + $0x108] sm:$0xff]
      %v1252 = vld [vmem:[%s846 + $0x110] sm:$0xff]
      %v1253 = vld [vmem:[%s846 + $0x128] sm:$0xff]
      %v1254 = vld [vmem:[%s846 + $0x130] sm:$0xff]
      %v1255 = vld [vmem:[%s846 + $0x148] sm:$0xff]
      %v1256 = vld [vmem:[%s846 + $0x150] sm:$0xff]
      %v1257 = vld [vmem:[%s846 + $0x168] sm:$0xff]
      %v1258 = vld [vmem:[%s846 + $0x170] sm:$0xff]
      %v1259 = vld [vmem:[%s846 + $0x188] sm:$0xff]
      %v1260 = vld [vmem:[%s846 + $0x190] sm:$0xff]
      %v1261 = vld [vmem:[%s846 + $0x1a8] sm:$0xff]
      %v1262 = vld [vmem:[%s846 + $0x1b0] sm:$0xff]
      %v1263 = vld [vmem:[%s846 + $0x1c8] sm:$0xff]
      %v1264 = vld [vmem:[%s846 + $0x1d0] sm:$0xff]
      %v1265 = vld [vmem:[%s846 + $0x1e8] sm:$0xff]
      %v1266 = vld [vmem:[%s846 + $0x1f0] sm:$0xff]
      %v1267 = vperm.slane %v842, 1
      %v1268 = vmul.f32 %v1235, %v1267
      %v1269 = vmul.f32 %v1236, %v1267
      %v1270 = vmul.f32 %v1237, %v1267
      %v1271 = vmul.f32 %v1238, %v1267
      %v1272 = vmul.f32 %v1239, %v1267
      %v1273 = vmul.f32 %v1240, %v1267
      %v1274 = vmul.f32 %v1241, %v1267
      %v1275 = vmul.f32 %v1242, %v1267
      %v1276 = vmul.f32 %v1243, %v1267
      %v1277 = vmul.f32 %v1244, %v1267
      %v1278 = vmul.f32 %v1245, %v1267
      %v1279 = vmul.f32 %v1246, %v1267
      %v1280 = vmul.f32 %v1247, %v1267
      %v1281 = vmul.f32 %v1248, %v1267
      %v1282 = vmul.f32 %v1249, %v1267
      %v1283 = vmul.f32 %v1250, %v1267
      %v1284 = vmul.f32 %v1251, %v1267
      %v1285 = vmul.f32 %v1252, %v1267
      %v1286 = vmul.f32 %v1253, %v1267
      %v1287 = vmul.f32 %v1254, %v1267
      %v1288 = vmul.f32 %v1255, %v1267
      %v1289 = vmul.f32 %v1256, %v1267
      %v1290 = vmul.f32 %v1257, %v1267
      %v1291 = vmul.f32 %v1258, %v1267
      %v1292 = vmul.f32 %v1259, %v1267
      %v1293 = vmul.f32 %v1260, %v1267
      %v1294 = vmul.f32 %v1261, %v1267
      %v1295 = vmul.f32 %v1262, %v1267
      %v1296 = vmul.f32 %v1263, %v1267
      %v1297 = vmul.f32 %v1264, %v1267
      %v1298 = vmul.f32 %v1265, %v1267
      %v1299 = vmul.f32 %v1266, %v1267
      %v1300 = vadd.f32 %v1203, %v1268
      %v1301 = vadd.f32 %v1204, %v1269
      %v1302 = vadd.f32 %v1205, %v1270
      %v1303 = vadd.f32 %v1206, %v1271
      %v1304 = vadd.f32 %v1207, %v1272
      %v1305 = vadd.f32 %v1208, %v1273
      %v1306 = vadd.f32 %v1209, %v1274
      %v1307 = vadd.f32 %v1210, %v1275
      %v1308 = vadd.f32 %v1211, %v1276
      %v1309 = vadd.f32 %v1212, %v1277
      %v1310 = vadd.f32 %v1213, %v1278
      %v1311 = vadd.f32 %v1214, %v1279
      %v1312 = vadd.f32 %v1215, %v1280
      %v1313 = vadd.f32 %v1216, %v1281
      %v1314 = vadd.f32 %v1217, %v1282
      %v1315 = vadd.f32 %v1218, %v1283
      %v1316 = vadd.f32 %v1219, %v1284
      %v1317 = vadd.f32 %v1220, %v1285
      %v1318 = vadd.f32 %v1221, %v1286
      %v1319 = vadd.f32 %v1222, %v1287
      %v1320 = vadd.f32 %v1223, %v1288
      %v1321 = vadd.f32 %v1224, %v1289
      %v1322 = vadd.f32 %v1225, %v1290
      %v1323 = vadd.f32 %v1226, %v1291
      %v1324 = vadd.f32 %v1227, %v1292
      %v1325 = vadd.f32 %v1228, %v1293
      %v1326 = vadd.f32 %v1229, %v1294
      %v1327 = vadd.f32 %v1230, %v1295
      %v1328 = vadd.f32 %v1231, %v1296
      %v1329 = vadd.f32 %v1232, %v1297
      %v1330 = vadd.f32 %v1233, %v1298
      %v1331 = vadd.f32 %v1234, %v1299
      %v1332 = vld [vmem:[%s846 + $0x9] sm:$0xff]
      %v1333 = vld [vmem:[%s846 + $0x11] sm:$0xff]
      %v1334 = vld [vmem:[%s846 + $0x29] sm:$0xff]
      %v1335 = vld [vmem:[%s846 + $0x31] sm:$0xff]
      %v1336 = vld [vmem:[%s846 + $0x49] sm:$0xff]
      %v1337 = vld [vmem:[%s846 + $0x51] sm:$0xff]
      %v1338 = vld [vmem:[%s846 + $0x69] sm:$0xff]
      %v1339 = vld [vmem:[%s846 + $0x71] sm:$0xff]
      %v1340 = vld [vmem:[%s846 + $0x89] sm:$0xff]
      %v1341 = vld [vmem:[%s846 + $0x91] sm:$0xff]
      %v1342 = vld [vmem:[%s846 + $0xa9] sm:$0xff]
      %v1343 = vld [vmem:[%s846 + $0xb1] sm:$0xff]
      %v1344 = vld [vmem:[%s846 + $0xc9] sm:$0xff]
      %v1345 = vld [vmem:[%s846 + $0xd1] sm:$0xff]
      %v1346 = vld [vmem:[%s846 + $0xe9] sm:$0xff]
      %v1347 = vld [vmem:[%s846 + $0xf1] sm:$0xff]
      %v1348 = vld [vmem:[%s846 + $0x109] sm:$0xff]
      %v1349 = vld [vmem:[%s846 + $0x111] sm:$0xff]
      %v1350 = vld [vmem:[%s846 + $0x129] sm:$0xff]
      %v1351 = vld [vmem:[%s846 + $0x131] sm:$0xff]
      %v1352 = vld [vmem:[%s846 + $0x149] sm:$0xff]
      %v1353 = vld [vmem:[%s846 + $0x151] sm:$0xff]
      %v1354 = vld [vmem:[%s846 + $0x169] sm:$0xff]
      %v1355 = vld [vmem:[%s846 + $0x171] sm:$0xff]
      %v1356 = vld [vmem:[%s846 + $0x189] sm:$0xff]
      %v1357 = vld [vmem:[%s846 + $0x191] sm:$0xff]
      %v1358 = vld [vmem:[%s846 + $0x1a9] sm:$0xff]
      %v1359 = vld [vmem:[%s846 + $0x1b1] sm:$0xff]
      %v1360 = vld [vmem:[%s846 + $0x1c9] sm:$0xff]
      %v1361 = vld [vmem:[%s846 + $0x1d1] sm:$0xff]
      %v1362 = vld [vmem:[%s846 + $0x1e9] sm:$0xff]
      %v1363 = vld [vmem:[%s846 + $0x1f1] sm:$0xff]
      %v1364 = vperm.slane %v842, 2
      %v1365 = vmul.f32 %v1332, %v1364
      %v1366 = vmul.f32 %v1333, %v1364
      %v1367 = vmul.f32 %v1334, %v1364
      %v1368 = vmul.f32 %v1335, %v1364
      %v1369 = vmul.f32 %v1336, %v1364
      %v1370 = vmul.f32 %v1337, %v1364
      %v1371 = vmul.f32 %v1338, %v1364
      %v1372 = vmul.f32 %v1339, %v1364
      %v1373 = vmul.f32 %v1340, %v1364
      %v1374 = vmul.f32 %v1341, %v1364
      %v1375 = vmul.f32 %v1342, %v1364
      %v1376 = vmul.f32 %v1343, %v1364
      %v1377 = vmul.f32 %v1344, %v1364
      %v1378 = vmul.f32 %v1345, %v1364
      %v1379 = vmul.f32 %v1346, %v1364
      %v1380 = vmul.f32 %v1347, %v1364
      %v1381 = vmul.f32 %v1348, %v1364
      %v1382 = vmul.f32 %v1349, %v1364
      %v1383 = vmul.f32 %v1350, %v1364
      %v1384 = vmul.f32 %v1351, %v1364
      %v1385 = vmul.f32 %v1352, %v1364
      %v1386 = vmul.f32 %v1353, %v1364
      %v1387 = vmul.f32 %v1354, %v1364
      %v1388 = vmul.f32 %v1355, %v1364
      %v1389 = vmul.f32 %v1356, %v1364
      %v1390 = vmul.f32 %v1357, %v1364
      %v1391 = vmul.f32 %v1358, %v1364
      %v1392 = vmul.f32 %v1359, %v1364
      %v1393 = vmul.f32 %v1360, %v1364
      %v1394 = vmul.f32 %v1361, %v1364
      %v1395 = vmul.f32 %v1362, %v1364
      %v1396 = vmul.f32 %v1363, %v1364
      %v1397 = vadd.f32 %v1300, %v1365
      %v1398 = vadd.f32 %v1301, %v1366
      %v1399 = vadd.f32 %v1302, %v1367
      %v1400 = vadd.f32 %v1303, %v1368
      %v1401 = vadd.f32 %v1304, %v1369
      %v1402 = vadd.f32 %v1305, %v1370
      %v1403 = vadd.f32 %v1306, %v1371
      %v1404 = vadd.f32 %v1307, %v1372
      %v1405 = vadd.f32 %v1308, %v1373
      %v1406 = vadd.f32 %v1309, %v1374
      %v1407 = vadd.f32 %v1310, %v1375
      %v1408 = vadd.f32 %v1311, %v1376
      %v1409 = vadd.f32 %v1312, %v1377
      %v1410 = vadd.f32 %v1313, %v1378
      %v1411 = vadd.f32 %v1314, %v1379
      %v1412 = vadd.f32 %v1315, %v1380
      %v1413 = vadd.f32 %v1316, %v1381
      %v1414 = vadd.f32 %v1317, %v1382
      %v1415 = vadd.f32 %v1318, %v1383
      %v1416 = vadd.f32 %v1319, %v1384
      %v1417 = vadd.f32 %v1320, %v1385
      %v1418 = vadd.f32 %v1321, %v1386
      %v1419 = vadd.f32 %v1322, %v1387
      %v1420 = vadd.f32 %v1323, %v1388
      %v1421 = vadd.f32 %v1324, %v1389
      %v1422 = vadd.f32 %v1325, %v1390
      %v1423 = vadd.f32 %v1326, %v1391
      %v1424 = vadd.f32 %v1327, %v1392
      %v1425 = vadd.f32 %v1328, %v1393
      %v1426 = vadd.f32 %v1329, %v1394
      %v1427 = vadd.f32 %v1330, %v1395
      %v1428 = vadd.f32 %v1331, %v1396
      %s1429 = scalar_lea.vmem [#allocation2], 64
      %v1430 = vld [vmem:[%s1429 + $0x7] sm:$0xff]
      %v1431 = vld [vmem:[%s1429 + $0xf] sm:$0xff]
      %v1432 = vld [vmem:[%s1429 + $0x27] sm:$0xff]
      %v1433 = vld [vmem:[%s1429 + $0x2f] sm:$0xff]
      %v1434 = vld [vmem:[%s1429 + $0x47] sm:$0xff]
      %v1435 = vld [vmem:[%s1429 + $0x4f] sm:$0xff]
      %v1436 = vld [vmem:[%s1429 + $0x67] sm:$0xff]
      %v1437 = vld [vmem:[%s1429 + $0x6f] sm:$0xff]
      %v1438 = vld [vmem:[%s1429 + $0x87] sm:$0xff]
      %v1439 = vld [vmem:[%s1429 + $0x8f] sm:$0xff]
      %v1440 = vld [vmem:[%s1429 + $0xa7] sm:$0xff]
      %v1441 = vld [vmem:[%s1429 + $0xaf] sm:$0xff]
      %v1442 = vld [vmem:[%s1429 + $0xc7] sm:$0xff]
      %v1443 = vld [vmem:[%s1429 + $0xcf] sm:$0xff]
      %v1444 = vld [vmem:[%s1429 + $0xe7] sm:$0xff]
      %v1445 = vld [vmem:[%s1429 + $0xef] sm:$0xff]
      %v1446 = vld [vmem:[%s1429 + $0x107] sm:$0xff]
      %v1447 = vld [vmem:[%s1429 + $0x10f] sm:$0xff]
      %v1448 = vld [vmem:[%s1429 + $0x127] sm:$0xff]
      %v1449 = vld [vmem:[%s1429 + $0x12f] sm:$0xff]
      %v1450 = vld [vmem:[%s1429 + $0x147] sm:$0xff]
      %v1451 = vld [vmem:[%s1429 + $0x14f] sm:$0xff]
      %v1452 = vld [vmem:[%s1429 + $0x167] sm:$0xff]
      %v1453 = vld [vmem:[%s1429 + $0x16f] sm:$0xff]
      %v1454 = vld [vmem:[%s1429 + $0x187] sm:$0xff]
      %v1455 = vld [vmem:[%s1429 + $0x18f] sm:$0xff]
      %v1456 = vld [vmem:[%s1429 + $0x1a7] sm:$0xff]
      %v1457 = vld [vmem:[%s1429 + $0x1af] sm:$0xff]
      %v1458 = vld [vmem:[%s1429 + $0x1c7] sm:$0xff]
      %v1459 = vld [vmem:[%s1429 + $0x1cf] sm:$0xff]
      %v1460 = vld [vmem:[%s1429 + $0x1e7] sm:$0xff]
      %v1461 = vld [vmem:[%s1429 + $0x1ef] sm:$0xff]
      %v1462 = vperm.slane %v843, 0
      %v1463 = vmul.f32 %v1430, %v1462
      %v1464 = vmul.f32 %v1431, %v1462
      %v1465 = vmul.f32 %v1432, %v1462
      %v1466 = vmul.f32 %v1433, %v1462
      %v1467 = vmul.f32 %v1434, %v1462
      %v1468 = vmul.f32 %v1435, %v1462
      %v1469 = vmul.f32 %v1436, %v1462
      %v1470 = vmul.f32 %v1437, %v1462
      %v1471 = vmul.f32 %v1438, %v1462
      %v1472 = vmul.f32 %v1439, %v1462
      %v1473 = vmul.f32 %v1440, %v1462
      %v1474 = vmul.f32 %v1441, %v1462
      %v1475 = vmul.f32 %v1442, %v1462
      %v1476 = vmul.f32 %v1443, %v1462
      %v1477 = vmul.f32 %v1444, %v1462
      %v1478 = vmul.f32 %v1445, %v1462
      %v1479 = vmul.f32 %v1446, %v1462
      %v1480 = vmul.f32 %v1447, %v1462
      %v1481 = vmul.f32 %v1448, %v1462
      %v1482 = vmul.f32 %v1449, %v1462
      %v1483 = vmul.f32 %v1450, %v1462
      %v1484 = vmul.f32 %v1451, %v1462
      %v1485 = vmul.f32 %v1452, %v1462
      %v1486 = vmul.f32 %v1453, %v1462
      %v1487 = vmul.f32 %v1454, %v1462
      %v1488 = vmul.f32 %v1455, %v1462
      %v1489 = vmul.f32 %v1456, %v1462
      %v1490 = vmul.f32 %v1457, %v1462
      %v1491 = vmul.f32 %v1458, %v1462
      %v1492 = vmul.f32 %v1459, %v1462
      %v1493 = vmul.f32 %v1460, %v1462
      %v1494 = vmul.f32 %v1461, %v1462
      %v1495 = vadd.f32 %v1397, %v1463
      %v1496 = vadd.f32 %v1398, %v1464
      %v1497 = vadd.f32 %v1399, %v1465
      %v1498 = vadd.f32 %v1400, %v1466
      %v1499 = vadd.f32 %v1401, %v1467
      %v1500 = vadd.f32 %v1402, %v1468
      %v1501 = vadd.f32 %v1403, %v1469
      %v1502 = vadd.f32 %v1404, %v1470
      %v1503 = vadd.f32 %v1405, %v1471
      %v1504 = vadd.f32 %v1406, %v1472
      %v1505 = vadd.f32 %v1407, %v1473
      %v1506 = vadd.f32 %v1408, %v1474
      %v1507 = vadd.f32 %v1409, %v1475
      %v1508 = vadd.f32 %v1410, %v1476
      %v1509 = vadd.f32 %v1411, %v1477
      %v1510 = vadd.f32 %v1412, %v1478
      %v1511 = vadd.f32 %v1413, %v1479
      %v1512 = vadd.f32 %v1414, %v1480
      %v1513 = vadd.f32 %v1415, %v1481
      %v1514 = vadd.f32 %v1416, %v1482
      %v1515 = vadd.f32 %v1417, %v1483
      %v1516 = vadd.f32 %v1418, %v1484
      %v1517 = vadd.f32 %v1419, %v1485
      %v1518 = vadd.f32 %v1420, %v1486
      %v1519 = vadd.f32 %v1421, %v1487
      %v1520 = vadd.f32 %v1422, %v1488
      %v1521 = vadd.f32 %v1423, %v1489
      %v1522 = vadd.f32 %v1424, %v1490
      %v1523 = vadd.f32 %v1425, %v1491
      %v1524 = vadd.f32 %v1426, %v1492
      %v1525 = vadd.f32 %v1427, %v1493
      %v1526 = vadd.f32 %v1428, %v1494
      %v1527 = vld [vmem:[%s1429 + $0x8] sm:$0xff]
      %v1528 = vld [vmem:[%s1429 + $0x10] sm:$0xff]
      %v1529 = vld [vmem:[%s1429 + $0x28] sm:$0xff]
      %v1530 = vld [vmem:[%s1429 + $0x30] sm:$0xff]
      %v1531 = vld [vmem:[%s1429 + $0x48] sm:$0xff]
      %v1532 = vld [vmem:[%s1429 + $0x50] sm:$0xff]
      %v1533 = vld [vmem:[%s1429 + $0x68] sm:$0xff]
      %v1534 = vld [vmem:[%s1429 + $0x70] sm:$0xff]
      %v1535 = vld [vmem:[%s1429 + $0x88] sm:$0xff]
      %v1536 = vld [vmem:[%s1429 + $0x90] sm:$0xff]
      %v1537 = vld [vmem:[%s1429 + $0xa8] sm:$0xff]
      %v1538 = vld [vmem:[%s1429 + $0xb0] sm:$0xff]
      %v1539 = vld [vmem:[%s1429 + $0xc8] sm:$0xff]
      %v1540 = vld [vmem:[%s1429 + $0xd0] sm:$0xff]
      %v1541 = vld [vmem:[%s1429 + $0xe8] sm:$0xff]
      %v1542 = vld [vmem:[%s1429 + $0xf0] sm:$0xff]
      %v1543 = vld [vmem:[%s1429 + $0x108] sm:$0xff]
      %v1544 = vld [vmem:[%s1429 + $0x110] sm:$0xff]
      %v1545 = vld [vmem:[%s1429 + $0x128] sm:$0xff]
      %v1546 = vld [vmem:[%s1429 + $0x130] sm:$0xff]
      %v1547 = vld [vmem:[%s1429 + $0x148] sm:$0xff]
      %v1548 = vld [vmem:[%s1429 + $0x150] sm:$0xff]
      %v1549 = vld [vmem:[%s1429 + $0x168] sm:$0xff]
      %v1550 = vld [vmem:[%s1429 + $0x170] sm:$0xff]
      %v1551 = vld [vmem:[%s1429 + $0x188] sm:$0xff]
      %v1552 = vld [vmem:[%s1429 + $0x190] sm:$0xff]
      %v1553 = vld [vmem:[%s1429 + $0x1a8] sm:$0xff]
      %v1554 = vld [vmem:[%s1429 + $0x1b0] sm:$0xff]
      %v1555 = vld [vmem:[%s1429 + $0x1c8] sm:$0xff]
      %v1556 = vld [vmem:[%s1429 + $0x1d0] sm:$0xff]
      %v1557 = vld [vmem:[%s1429 + $0x1e8] sm:$0xff]
      %v1558 = vld [vmem:[%s1429 + $0x1f0] sm:$0xff]
      %v1559 = vperm.slane %v843, 1
      %v1560 = vmul.f32 %v1527, %v1559
      %v1561 = vmul.f32 %v1528, %v1559
      %v1562 = vmul.f32 %v1529, %v1559
      %v1563 = vmul.f32 %v1530, %v1559
      %v1564 = vmul.f32 %v1531, %v1559
      %v1565 = vmul.f32 %v1532, %v1559
      %v1566 = vmul.f32 %v1533, %v1559
      %v1567 = vmul.f32 %v1534, %v1559
      %v1568 = vmul.f32 %v1535, %v1559
      %v1569 = vmul.f32 %v1536, %v1559
      %v1570 = vmul.f32 %v1537, %v1559
      %v1571 = vmul.f32 %v1538, %v1559
      %v1572 = vmul.f32 %v1539, %v1559
      %v1573 = vmul.f32 %v1540, %v1559
      %v1574 = vmul.f32 %v1541, %v1559
      %v1575 = vmul.f32 %v1542, %v1559
      %v1576 = vmul.f32 %v1543, %v1559
      %v1577 = vmul.f32 %v1544, %v1559
      %v1578 = vmul.f32 %v1545, %v1559
      %v1579 = vmul.f32 %v1546, %v1559
      %v1580 = vmul.f32 %v1547, %v1559
      %v1581 = vmul.f32 %v1548, %v1559
      %v1582 = vmul.f32 %v1549, %v1559
      %v1583 = vmul.f32 %v1550, %v1559
      %v1584 = vmul.f32 %v1551, %v1559
      %v1585 = vmul.f32 %v1552, %v1559
      %v1586 = vmul.f32 %v1553, %v1559
      %v1587 = vmul.f32 %v1554, %v1559
      %v1588 = vmul.f32 %v1555, %v1559
      %v1589 = vmul.f32 %v1556, %v1559
      %v1590 = vmul.f32 %v1557, %v1559
      %v1591 = vmul.f32 %v1558, %v1559
      %v1592 = vadd.f32 %v1495, %v1560
      %v1593 = vadd.f32 %v1496, %v1561
      %v1594 = vadd.f32 %v1497, %v1562
      %v1595 = vadd.f32 %v1498, %v1563
      %v1596 = vadd.f32 %v1499, %v1564
      %v1597 = vadd.f32 %v1500, %v1565
      %v1598 = vadd.f32 %v1501, %v1566
      %v1599 = vadd.f32 %v1502, %v1567
      %v1600 = vadd.f32 %v1503, %v1568
      %v1601 = vadd.f32 %v1504, %v1569
      %v1602 = vadd.f32 %v1505, %v1570
      %v1603 = vadd.f32 %v1506, %v1571
      %v1604 = vadd.f32 %v1507, %v1572
      %v1605 = vadd.f32 %v1508, %v1573
      %v1606 = vadd.f32 %v1509, %v1574
      %v1607 = vadd.f32 %v1510, %v1575
      %v1608 = vadd.f32 %v1511, %v1576
      %v1609 = vadd.f32 %v1512, %v1577
      %v1610 = vadd.f32 %v1513, %v1578
      %v1611 = vadd.f32 %v1514, %v1579
      %v1612 = vadd.f32 %v1515, %v1580
      %v1613 = vadd.f32 %v1516, %v1581
      %v1614 = vadd.f32 %v1517, %v1582
      %v1615 = vadd.f32 %v1518, %v1583
      %v1616 = vadd.f32 %v1519, %v1584
      %v1617 = vadd.f32 %v1520, %v1585
      %v1618 = vadd.f32 %v1521, %v1586
      %v1619 = vadd.f32 %v1522, %v1587
      %v1620 = vadd.f32 %v1523, %v1588
      %v1621 = vadd.f32 %v1524, %v1589
      %v1622 = vadd.f32 %v1525, %v1590
      %v1623 = vadd.f32 %v1526, %v1591
      %v1624 = vld [vmem:[%s1429 + $0x9] sm:$0xff]
      %v1625 = vld [vmem:[%s1429 + $0x11] sm:$0xff]
      %v1626 = vld [vmem:[%s1429 + $0x29] sm:$0xff]
      %v1627 = vld [vmem:[%s1429 + $0x31] sm:$0xff]
      %v1628 = vld [vmem:[%s1429 + $0x49] sm:$0xff]
      %v1629 = vld [vmem:[%s1429 + $0x51] sm:$0xff]
      %v1630 = vld [vmem:[%s1429 + $0x69] sm:$0xff]
      %v1631 = vld [vmem:[%s1429 + $0x71] sm:$0xff]
      %v1632 = vld [vmem:[%s1429 + $0x89] sm:$0xff]
      %v1633 = vld [vmem:[%s1429 + $0x91] sm:$0xff]
      %v1634 = vld [vmem:[%s1429 + $0xa9] sm:$0xff]
      %v1635 = vld [vmem:[%s1429 + $0xb1] sm:$0xff]
      %v1636 = vld [vmem:[%s1429 + $0xc9] sm:$0xff]
      %v1637 = vld [vmem:[%s1429 + $0xd1] sm:$0xff]
      %v1638 = vld [vmem:[%s1429 + $0xe9] sm:$0xff]
      %v1639 = vld [vmem:[%s1429 + $0xf1] sm:$0xff]
      %v1640 = vld [vmem:[%s1429 + $0x109] sm:$0xff]
      %v1641 = vld [vmem:[%s1429 + $0x111] sm:$0xff]
      %v1642 = vld [vmem:[%s1429 + $0x129] sm:$0xff]
      %v1643 = vld [vmem:[%s1429 + $0x131] sm:$0xff]
      %v1644 = vld [vmem:[%s1429 + $0x149] sm:$0xff]
      %v1645 = vld [vmem:[%s1429 + $0x151] sm:$0xff]
      %v1646 = vld [vmem:[%s1429 + $0x169] sm:$0xff]
      %v1647 = vld [vmem:[%s1429 + $0x171] sm:$0xff]
      %v1648 = vld [vmem:[%s1429 + $0x189] sm:$0xff]
      %v1649 = vld [vmem:[%s1429 + $0x191] sm:$0xff]
      %v1650 = vld [vmem:[%s1429 + $0x1a9] sm:$0xff]
      %v1651 = vld [vmem:[%s1429 + $0x1b1] sm:$0xff]
      %v1652 = vld [vmem:[%s1429 + $0x1c9] sm:$0xff]
      %v1653 = vld [vmem:[%s1429 + $0x1d1] sm:$0xff]
      %v1654 = vld [vmem:[%s1429 + $0x1e9] sm:$0xff]
      %v1655 = vld [vmem:[%s1429 + $0x1f1] sm:$0xff]
      %v1656 = vperm.slane %v843, 2
      %v1657 = vmul.f32 %v1624, %v1656
      %v1658 = vmul.f32 %v1625, %v1656
      %v1659 = vmul.f32 %v1626, %v1656
      %v1660 = vmul.f32 %v1627, %v1656
      %v1661 = vmul.f32 %v1628, %v1656
      %v1662 = vmul.f32 %v1629, %v1656
      %v1663 = vmul.f32 %v1630, %v1656
      %v1664 = vmul.f32 %v1631, %v1656
      %v1665 = vmul.f32 %v1632, %v1656
      %v1666 = vmul.f32 %v1633, %v1656
      %v1667 = vmul.f32 %v1634, %v1656
      %v1668 = vmul.f32 %v1635, %v1656
      %v1669 = vmul.f32 %v1636, %v1656
      %v1670 = vmul.f32 %v1637, %v1656
      %v1671 = vmul.f32 %v1638, %v1656
      %v1672 = vmul.f32 %v1639, %v1656
      %v1673 = vmul.f32 %v1640, %v1656
      %v1674 = vmul.f32 %v1641, %v1656
      %v1675 = vmul.f32 %v1642, %v1656
      %v1676 = vmul.f32 %v1643, %v1656
      %v1677 = vmul.f32 %v1644, %v1656
      %v1678 = vmul.f32 %v1645, %v1656
      %v1679 = vmul.f32 %v1646, %v1656
      %v1680 = vmul.f32 %v1647, %v1656
      %v1681 = vmul.f32 %v1648, %v1656
      %v1682 = vmul.f32 %v1649, %v1656
      %v1683 = vmul.f32 %v1650, %v1656
      %v1684 = vmul.f32 %v1651, %v1656
      %v1685 = vmul.f32 %v1652, %v1656
      %v1686 = vmul.f32 %v1653, %v1656
      %v1687 = vmul.f32 %v1654, %v1656
      %v1688 = vmul.f32 %v1655, %v1656
      %v1689 = vadd.f32 %v1592, %v1657
      %v1690 = vadd.f32 %v1593, %v1658
      %v1691 = vadd.f32 %v1594, %v1659
      %v1692 = vadd.f32 %v1595, %v1660
      %v1693 = vadd.f32 %v1596, %v1661
      %v1694 = vadd.f32 %v1597, %v1662
      %v1695 = vadd.f32 %v1598, %v1663
      %v1696 = vadd.f32 %v1599, %v1664
      %v1697 = vadd.f32 %v1600, %v1665
      %v1698 = vadd.f32 %v1601, %v1666
      %v1699 = vadd.f32 %v1602, %v1667
      %v1700 = vadd.f32 %v1603, %v1668
      %v1701 = vadd.f32 %v1604, %v1669
      %v1702 = vadd.f32 %v1605, %v1670
      %v1703 = vadd.f32 %v1606, %v1671
      %v1704 = vadd.f32 %v1607, %v1672
      %v1705 = vadd.f32 %v1608, %v1673
      %v1706 = vadd.f32 %v1609, %v1674
      %v1707 = vadd.f32 %v1610, %v1675
      %v1708 = vadd.f32 %v1611, %v1676
      %v1709 = vadd.f32 %v1612, %v1677
      %v1710 = vadd.f32 %v1613, %v1678
      %v1711 = vadd.f32 %v1614, %v1679
      %v1712 = vadd.f32 %v1615, %v1680
      %v1713 = vadd.f32 %v1616, %v1681
      %v1714 = vadd.f32 %v1617, %v1682
      %v1715 = vadd.f32 %v1618, %v1683
      %v1716 = vadd.f32 %v1619, %v1684
      %v1717 = vadd.f32 %v1620, %v1685
      %v1718 = vadd.f32 %v1621, %v1686
      %v1719 = vadd.f32 %v1622, %v1687
      %v1720 = vadd.f32 %v1623, %v1688
      %v1722 = vperm.slane %v844, 0
      %v1724 = vmul.f32 %v1689, %v1722
      %v1725 = vmul.f32 %v1690, %v1722
      %v1726 = vmul.f32 %v1691, %v1722
      %v1727 = vmul.f32 %v1692, %v1722
      %v1728 = vmul.f32 %v1693, %v1722
      %v1729 = vmul.f32 %v1694, %v1722
      %v1730 = vmul.f32 %v1695, %v1722
      %v1731 = vmul.f32 %v1696, %v1722
      %v1732 = vmul.f32 %v1697, %v1722
      %v1733 = vmul.f32 %v1698, %v1722
      %v1734 = vmul.f32 %v1699, %v1722
      %v1735 = vmul.f32 %v1700, %v1722
      %v1736 = vmul.f32 %v1701, %v1722
      %v1737 = vmul.f32 %v1702, %v1722
      %v1738 = vmul.f32 %v1703, %v1722
      %v1739 = vmul.f32 %v1704, %v1722
      %v1740 = vmul.f32 %v1705, %v1722
      %v1741 = vmul.f32 %v1706, %v1722
      %v1742 = vmul.f32 %v1707, %v1722
      %v1743 = vmul.f32 %v1708, %v1722
      %v1744 = vmul.f32 %v1709, %v1722
      %v1745 = vmul.f32 %v1710, %v1722
      %v1746 = vmul.f32 %v1711, %v1722
      %v1747 = vmul.f32 %v1712, %v1722
      %v1748 = vmul.f32 %v1713, %v1722
      %v1749 = vmul.f32 %v1714, %v1722
      %v1750 = vmul.f32 %v1715, %v1722
      %v1751 = vmul.f32 %v1716, %v1722
      %v1752 = vmul.f32 %v1717, %v1722
      %v1753 = vmul.f32 %v1718, %v1722
      %v1754 = vmul.f32 %v1719, %v1722
      %v1755 = vmul.f32 %v1720, %v1722
      %v1757 = vperm.slane %v845, 0
      %v1759 = vadd.f32 %v1724, %v1757
      %v1760 = vadd.f32 %v1725, %v1757
      %v1761 = vadd.f32 %v1726, %v1757
      %v1762 = vadd.f32 %v1727, %v1757
      %v1763 = vadd.f32 %v1728, %v1757
      %v1764 = vadd.f32 %v1729, %v1757
      %v1765 = vadd.f32 %v1730, %v1757
      %v1766 = vadd.f32 %v1731, %v1757
      %v1767 = vadd.f32 %v1732, %v1757
      %v1768 = vadd.f32 %v1733, %v1757
      %v1769 = vadd.f32 %v1734, %v1757
      %v1770 = vadd.f32 %v1735, %v1757
      %v1771 = vadd.f32 %v1736, %v1757
      %v1772 = vadd.f32 %v1737, %v1757
      %v1773 = vadd.f32 %v1738, %v1757
      %v1774 = vadd.f32 %v1739, %v1757
      %v1775 = vadd.f32 %v1740, %v1757
      %v1776 = vadd.f32 %v1741, %v1757
      %v1777 = vadd.f32 %v1742, %v1757
      %v1778 = vadd.f32 %v1743, %v1757
      %v1779 = vadd.f32 %v1744, %v1757
      %v1780 = vadd.f32 %v1745, %v1757
      %v1781 = vadd.f32 %v1746, %v1757
      %v1782 = vadd.f32 %v1747, %v1757
      %v1783 = vadd.f32 %v1748, %v1757
      %v1784 = vadd.f32 %v1749, %v1757
      %v1785 = vadd.f32 %v1750, %v1757
      %v1786 = vadd.f32 %v1751, %v1757
      %v1787 = vadd.f32 %v1752, %v1757
      %v1788 = vadd.f32 %v1753, %v1757
      %v1789 = vadd.f32 %v1754, %v1757
      %v1790 = vadd.f32 %v1755, %v1757
      %v1791 = vmax.f32 %v809, %v1759
      %v1792 = vmax.f32 %v810, %v1760
      %v1793 = vmax.f32 %v811, %v1761
      %v1794 = vmax.f32 %v812, %v1762
      %v1795 = vmax.f32 %v813, %v1763
      %v1796 = vmax.f32 %v814, %v1764
      %v1797 = vmax.f32 %v815, %v1765
      %v1798 = vmax.f32 %v816, %v1766
      %v1799 = vmax.f32 %v817, %v1767
      %v1800 = vmax.f32 %v818, %v1768
      %v1801 = vmax.f32 %v819, %v1769
      %v1802 = vmax.f32 %v820, %v1770
      %v1803 = vmax.f32 %v821, %v1771
      %v1804 = vmax.f32 %v822, %v1772
      %v1805 = vmax.f32 %v823, %v1773
      %v1806 = vmax.f32 %v824, %v1774
      %v1807 = vmax.f32 %v825, %v1775
      %v1808 = vmax.f32 %v826, %v1776
      %v1809 = vmax.f32 %v827, %v1777
      %v1810 = vmax.f32 %v828, %v1778
      %v1811 = vmax.f32 %v829, %v1779
      %v1812 = vmax.f32 %v830, %v1780
      %v1813 = vmax.f32 %v831, %v1781
      %v1814 = vmax.f32 %v832, %v1782
      %v1815 = vmax.f32 %v833, %v1783
      %v1816 = vmax.f32 %v834, %v1784
      %v1817 = vmax.f32 %v835, %v1785
      %v1818 = vmax.f32 %v836, %v1786
      %v1819 = vmax.f32 %v837, %v1787
      %v1820 = vmax.f32 %v838, %v1788
      %v1821 = vmax.f32 %v839, %v1789
      %v1822 = vmax.f32 %v840, %v1790
      %v1823 = vpack.c.bf16 %v1791, %v1791
      %v1824 = vpack.c.bf16 %v1792, %v1792
      %v1825 = vpack.c.bf16 %v1793, %v1793
      %v1826 = vpack.c.bf16 %v1794, %v1794
      %v1827 = vpack.c.bf16 %v1795, %v1795
      %v1828 = vpack.c.bf16 %v1796, %v1796
      %v1829 = vpack.c.bf16 %v1797, %v1797
      %v1830 = vpack.c.bf16 %v1798, %v1798
      %v1831 = vpack.c.bf16 %v1799, %v1799
      %v1832 = vpack.c.bf16 %v1800, %v1800
      %v1833 = vpack.c.bf16 %v1801, %v1801
      %v1834 = vpack.c.bf16 %v1802, %v1802
      %v1835 = vpack.c.bf16 %v1803, %v1803
      %v1836 = vpack.c.bf16 %v1804, %v1804
      %v1837 = vpack.c.bf16 %v1805, %v1805
      %v1838 = vpack.c.bf16 %v1806, %v1806
      %v1839 = vpack.c.bf16 %v1807, %v1807
      %v1840 = vpack.c.bf16 %v1808, %v1808
      %v1841 = vpack.c.bf16 %v1809, %v1809
      %v1842 = vpack.c.bf16 %v1810, %v1810
      %v1843 = vpack.c.bf16 %v1811, %v1811
      %v1844 = vpack.c.bf16 %v1812, %v1812
      %v1845 = vpack.c.bf16 %v1813, %v1813
      %v1846 = vpack.c.bf16 %v1814, %v1814
      %v1847 = vpack.c.bf16 %v1815, %v1815
      %v1848 = vpack.c.bf16 %v1816, %v1816
      %v1849 = vpack.c.bf16 %v1817, %v1817
      %v1850 = vpack.c.bf16 %v1818, %v1818
      %v1851 = vpack.c.bf16 %v1819, %v1819
      %v1852 = vpack.c.bf16 %v1820, %v1820
      %v1853 = vpack.c.bf16 %v1821, %v1821
      %v1854 = vpack.c.bf16 %v1822, %v1822
      %vm1855 = vcmask 11264
      %1856 = vst.msk [vmem:[#allocation6] sm:$0xf] %vm1855, %v1823
      %1857 = vst.msk [vmem:[#allocation6 + $0x4] sm:$0xf] %vm1855, %v1824
      %1858 = vst.msk [vmem:[#allocation6 + $0x8] sm:$0xf] %vm1855, %v1825
      %1859 = vst.msk [vmem:[#allocation6 + $0xc] sm:$0xf] %vm1855, %v1826
      %1860 = vst.msk [vmem:[#allocation6 + $0x10] sm:$0xf] %vm1855, %v1827
      %1861 = vst.msk [vmem:[#allocation6 + $0x14] sm:$0xf] %vm1855, %v1828
      %1862 = vst.msk [vmem:[#allocation6 + $0x18] sm:$0xf] %vm1855, %v1829
      %1863 = vst.msk [vmem:[#allocation6 + $0x1c] sm:$0xf] %vm1855, %v1830
      %1864 = vst.msk [vmem:[#allocation6 + $0x20] sm:$0xf] %vm1855, %v1831
      %1865 = vst.msk [vmem:[#allocation6 + $0x24] sm:$0xf] %vm1855, %v1832
      %1866 = vst.msk [vmem:[#allocation6 + $0x28] sm:$0xf] %vm1855, %v1833
      %1867 = vst.msk [vmem:[#allocation6 + $0x2c] sm:$0xf] %vm1855, %v1834
      %1868 = vst.msk [vmem:[#allocation6 + $0x30] sm:$0xf] %vm1855, %v1835
      %1869 = vst.msk [vmem:[#allocation6 + $0x34] sm:$0xf] %vm1855, %v1836
      %1870 = vst.msk [vmem:[#allocation6 + $0x38] sm:$0xf] %vm1855, %v1837
      %1871 = vst.msk [vmem:[#allocation6 + $0x3c] sm:$0xf] %vm1855, %v1838
      %1872 = vst.msk [vmem:[#allocation6 + $0x40] sm:$0xf] %vm1855, %v1839
      %1873 = vst.msk [vmem:[#allocation6 + $0x44] sm:$0xf] %vm1855, %v1840
      %1874 = vst.msk [vmem:[#allocation6 + $0x48] sm:$0xf] %vm1855, %v1841
      %1875 = vst.msk [vmem:[#allocation6 + $0x4c] sm:$0xf] %vm1855, %v1842
      %1876 = vst.msk [vmem:[#allocation6 + $0x50] sm:$0xf] %vm1855, %v1843
      %1877 = vst.msk [vmem:[#allocation6 + $0x54] sm:$0xf] %vm1855, %v1844
      %1878 = vst.msk [vmem:[#allocation6 + $0x58] sm:$0xf] %vm1855, %v1845
      %1879 = vst.msk [vmem:[#allocation6 + $0x5c] sm:$0xf] %vm1855, %v1846
      %1880 = vst.msk [vmem:[#allocation6 + $0x60] sm:$0xf] %vm1855, %v1847
      %1881 = vst.msk [vmem:[#allocation6 + $0x64] sm:$0xf] %vm1855, %v1848
      %1882 = vst.msk [vmem:[#allocation6 + $0x68] sm:$0xf] %vm1855, %v1849
      %1883 = vst.msk [vmem:[#allocation6 + $0x6c] sm:$0xf] %vm1855, %v1850
      %1884 = vst.msk [vmem:[#allocation6 + $0x70] sm:$0xf] %vm1855, %v1851
      %1885 = vst.msk [vmem:[#allocation6 + $0x74] sm:$0xf] %vm1855, %v1852
      %1886 = vst.msk [vmem:[#allocation6 + $0x78] sm:$0xf] %vm1855, %v1853
      %1887 = vst.msk [vmem:[#allocation6 + $0x7c] sm:$0xf] %vm1855, %v1854
      %1888 = vst.msk [vmem:[#allocation3 + $0x8] sm:$0xff] %vm442, %v1791
      %1889 = vst.msk [vmem:[#allocation3 + $0x10] sm:$0xff] %vm442, %v1792
      %1890 = vst.msk [vmem:[#allocation3 + $0x28] sm:$0xff] %vm442, %v1793
      %1891 = vst.msk [vmem:[#allocation3 + $0x30] sm:$0xff] %vm442, %v1794
      %1892 = vst.msk [vmem:[#allocation3 + $0x48] sm:$0xff] %vm442, %v1795
      %1893 = vst.msk [vmem:[#allocation3 + $0x50] sm:$0xff] %vm442, %v1796
      %1894 = vst.msk [vmem:[#allocation3 + $0x68] sm:$0xff] %vm442, %v1797
      %1895 = vst.msk [vmem:[#allocation3 + $0x70] sm:$0xff] %vm442, %v1798
      %1896 = vst.msk [vmem:[#allocation3 + $0x88] sm:$0xff] %vm442, %v1799
      %1897 = vst.msk [vmem:[#allocation3 + $0x90] sm:$0xff] %vm442, %v1800
      %1898 = vst.msk [vmem:[#allocation3 + $0xa8] sm:$0xff] %vm442, %v1801
      %1899 = vst.msk [vmem:[#allocation3 + $0xb0] sm:$0xff] %vm442, %v1802
      %1900 = vst.msk [vmem:[#allocation3 + $0xc8] sm:$0xff] %vm442, %v1803
      %1901 = vst.msk [vmem:[#allocation3 + $0xd0] sm:$0xff] %vm442, %v1804
      %1902 = vst.msk [vmem:[#allocation3 + $0xe8] sm:$0xff] %vm442, %v1805
      %1903 = vst.msk [vmem:[#allocation3 + $0xf0] sm:$0xff] %vm442, %v1806
      %1904 = vst.msk [vmem:[#allocation3 + $0x108] sm:$0xff] %vm442, %v1807
      %1905 = vst.msk [vmem:[#allocation3 + $0x110] sm:$0xff] %vm442, %v1808
      %1906 = vst.msk [vmem:[#allocation3 + $0x128] sm:$0xff] %vm442, %v1809
      %1907 = vst.msk [vmem:[#allocation3 + $0x130] sm:$0xff] %vm442, %v1810
      %1908 = vst.msk [vmem:[#allocation3 + $0x148] sm:$0xff] %vm442, %v1811
      %1909 = vst.msk [vmem:[#allocation3 + $0x150] sm:$0xff] %vm442, %v1812
      %1910 = vst.msk [vmem:[#allocation3 + $0x168] sm:$0xff] %vm442, %v1813
      %1911 = vst.msk [vmem:[#allocation3 + $0x170] sm:$0xff] %vm442, %v1814
      %1912 = vst.msk [vmem:[#allocation3 + $0x188] sm:$0xff] %vm442, %v1815
      %1913 = vst.msk [vmem:[#allocation3 + $0x190] sm:$0xff] %vm442, %v1816
      %1914 = vst.msk [vmem:[#allocation3 + $0x1a8] sm:$0xff] %vm442, %v1817
      %1915 = vst.msk [vmem:[#allocation3 + $0x1b0] sm:$0xff] %vm442, %v1818
      %1916 = vst.msk [vmem:[#allocation3 + $0x1c8] sm:$0xff] %vm442, %v1819
      %1917 = vst.msk [vmem:[#allocation3 + $0x1d0] sm:$0xff] %vm442, %v1820
      %1918 = vst.msk [vmem:[#allocation3 + $0x1e8] sm:$0xff] %vm442, %v1821
      %1919 = vst.msk [vmem:[#allocation3 + $0x1f0] sm:$0xff] %vm442, %v1822
      %v1920 = vld [vmem:[#allocation3 + $0x6] sm:$0xff]
      %v1921 = vld [vmem:[#allocation3 + $0xe] sm:$0xff]
      %v1922 = vld [vmem:[#allocation3 + $0x26] sm:$0xff]
      %v1923 = vld [vmem:[#allocation3 + $0x2e] sm:$0xff]
      %v1924 = vld [vmem:[#allocation3 + $0x46] sm:$0xff]
      %v1925 = vld [vmem:[#allocation3 + $0x4e] sm:$0xff]
      %v1926 = vld [vmem:[#allocation3 + $0x66] sm:$0xff]
      %v1927 = vld [vmem:[#allocation3 + $0x6e] sm:$0xff]
      %v1928 = vld [vmem:[#allocation3 + $0x86] sm:$0xff]
      %v1929 = vld [vmem:[#allocation3 + $0x8e] sm:$0xff]
      %v1930 = vld [vmem:[#allocation3 + $0xa6] sm:$0xff]
      %v1931 = vld [vmem:[#allocation3 + $0xae] sm:$0xff]
      %v1932 = vld [vmem:[#allocation3 + $0xc6] sm:$0xff]
      %v1933 = vld [vmem:[#allocation3 + $0xce] sm:$0xff]
      %v1934 = vld [vmem:[#allocation3 + $0xe6] sm:$0xff]
      %v1935 = vld [vmem:[#allocation3 + $0xee] sm:$0xff]
      %v1936 = vld [vmem:[#allocation3 + $0x106] sm:$0xff]
      %v1937 = vld [vmem:[#allocation3 + $0x10e] sm:$0xff]
      %v1938 = vld [vmem:[#allocation3 + $0x126] sm:$0xff]
      %v1939 = vld [vmem:[#allocation3 + $0x12e] sm:$0xff]
      %v1940 = vld [vmem:[#allocation3 + $0x146] sm:$0xff]
      %v1941 = vld [vmem:[#allocation3 + $0x14e] sm:$0xff]
      %v1942 = vld [vmem:[#allocation3 + $0x166] sm:$0xff]
      %v1943 = vld [vmem:[#allocation3 + $0x16e] sm:$0xff]
      %v1944 = vld [vmem:[#allocation3 + $0x186] sm:$0xff]
      %v1945 = vld [vmem:[#allocation3 + $0x18e] sm:$0xff]
      %v1946 = vld [vmem:[#allocation3 + $0x1a6] sm:$0xff]
      %v1947 = vld [vmem:[#allocation3 + $0x1ae] sm:$0xff]
      %v1948 = vld [vmem:[#allocation3 + $0x1c6] sm:$0xff]
      %v1949 = vld [vmem:[#allocation3 + $0x1ce] sm:$0xff]
      %v1950 = vld [vmem:[#allocation3 + $0x1e6] sm:$0xff]
      %v1951 = vld [vmem:[#allocation3 + $0x1ee] sm:$0xff]
      %v1952 = vld [vmem:[#allocation3 + $0x7] sm:$0xff]
      %v1953 = vld [vmem:[#allocation3 + $0xf] sm:$0xff]
      %v1954 = vld [vmem:[#allocation3 + $0x27] sm:$0xff]
      %v1955 = vld [vmem:[#allocation3 + $0x2f] sm:$0xff]
      %v1956 = vld [vmem:[#allocation3 + $0x47] sm:$0xff]
      %v1957 = vld [vmem:[#allocation3 + $0x4f] sm:$0xff]
      %v1958 = vld [vmem:[#allocation3 + $0x67] sm:$0xff]
      %v1959 = vld [vmem:[#allocation3 + $0x6f] sm:$0xff]
      %v1960 = vld [vmem:[#allocation3 + $0x87] sm:$0xff]
      %v1961 = vld [vmem:[#allocation3 + $0x8f] sm:$0xff]
      %v1962 = vld [vmem:[#allocation3 + $0xa7] sm:$0xff]
      %v1963 = vld [vmem:[#allocation3 + $0xaf] sm:$0xff]
      %v1964 = vld [vmem:[#allocation3 + $0xc7] sm:$0xff]
      %v1965 = vld [vmem:[#allocation3 + $0xcf] sm:$0xff]
      %v1966 = vld [vmem:[#allocation3 + $0xe7] sm:$0xff]
      %v1967 = vld [vmem:[#allocation3 + $0xef] sm:$0xff]
      %v1968 = vld [vmem:[#allocation3 + $0x107] sm:$0xff]
      %v1969 = vld [vmem:[#allocation3 + $0x10f] sm:$0xff]
      %v1970 = vld [vmem:[#allocation3 + $0x127] sm:$0xff]
      %v1971 = vld [vmem:[#allocation3 + $0x12f] sm:$0xff]
      %v1972 = vld [vmem:[#allocation3 + $0x147] sm:$0xff]
      %v1973 = vld [vmem:[#allocation3 + $0x14f] sm:$0xff]
      %v1974 = vld [vmem:[#allocation3 + $0x167] sm:$0xff]
      %v1975 = vld [vmem:[#allocation3 + $0x16f] sm:$0xff]
      %v1976 = vld [vmem:[#allocation3 + $0x187] sm:$0xff]
      %v1977 = vld [vmem:[#allocation3 + $0x18f] sm:$0xff]
      %v1978 = vld [vmem:[#allocation3 + $0x1a7] sm:$0xff]
      %v1979 = vld [vmem:[#allocation3 + $0x1af] sm:$0xff]
      %v1980 = vld [vmem:[#allocation3 + $0x1c7] sm:$0xff]
      %v1981 = vld [vmem:[#allocation3 + $0x1cf] sm:$0xff]
      %v1982 = vld [vmem:[#allocation3 + $0x1e7] sm:$0xff]
      %v1983 = vld [vmem:[#allocation3 + $0x1ef] sm:$0xff]
      %v1984 = vmax.f32 %v1920, %v1952
      %v1985 = vmax.f32 %v1921, %v1953
      %v1986 = vmax.f32 %v1922, %v1954
      %v1987 = vmax.f32 %v1923, %v1955
      %v1988 = vmax.f32 %v1924, %v1956
      %v1989 = vmax.f32 %v1925, %v1957
      %v1990 = vmax.f32 %v1926, %v1958
      %v1991 = vmax.f32 %v1927, %v1959
      %v1992 = vmax.f32 %v1928, %v1960
      %v1993 = vmax.f32 %v1929, %v1961
      %v1994 = vmax.f32 %v1930, %v1962
      %v1995 = vmax.f32 %v1931, %v1963
      %v1996 = vmax.f32 %v1932, %v1964
      %v1997 = vmax.f32 %v1933, %v1965
      %v1998 = vmax.f32 %v1934, %v1966
      %v1999 = vmax.f32 %v1935, %v1967
      %v2000 = vmax.f32 %v1936, %v1968
      %v2001 = vmax.f32 %v1937, %v1969
      %v2002 = vmax.f32 %v1938, %v1970
      %v2003 = vmax.f32 %v1939, %v1971
      %v2004 = vmax.f32 %v1940, %v1972
      %v2005 = vmax.f32 %v1941, %v1973
      %v2006 = vmax.f32 %v1942, %v1974
      %v2007 = vmax.f32 %v1943, %v1975
      %v2008 = vmax.f32 %v1944, %v1976
      %v2009 = vmax.f32 %v1945, %v1977
      %v2010 = vmax.f32 %v1946, %v1978
      %v2011 = vmax.f32 %v1947, %v1979
      %v2012 = vmax.f32 %v1948, %v1980
      %v2013 = vmax.f32 %v1949, %v1981
      %v2014 = vmax.f32 %v1950, %v1982
      %v2015 = vmax.f32 %v1951, %v1983
      %v2016 = vld [vmem:[#allocation3 + $0x8] sm:$0xff]
      %v2017 = vld [vmem:[#allocation3 + $0x10] sm:$0xff]
      %v2018 = vld [vmem:[#allocation3 + $0x28] sm:$0xff]
      %v2019 = vld [vmem:[#allocation3 + $0x30] sm:$0xff]
      %v2020 = vld [vmem:[#allocation3 + $0x48] sm:$0xff]
      %v2021 = vld [vmem:[#allocation3 + $0x50] sm:$0xff]
      %v2022 = vld [vmem:[#allocation3 + $0x68] sm:$0xff]
      %v2023 = vld [vmem:[#allocation3 + $0x70] sm:$0xff]
      %v2024 = vld [vmem:[#allocation3 + $0x88] sm:$0xff]
      %v2025 = vld [vmem:[#allocation3 + $0x90] sm:$0xff]
      %v2026 = vld [vmem:[#allocation3 + $0xa8] sm:$0xff]
      %v2027 = vld [vmem:[#allocation3 + $0xb0] sm:$0xff]
      %v2028 = vld [vmem:[#allocation3 + $0xc8] sm:$0xff]
      %v2029 = vld [vmem:[#allocation3 + $0xd0] sm:$0xff]
      %v2030 = vld [vmem:[#allocation3 + $0xe8] sm:$0xff]
      %v2031 = vld [vmem:[#allocation3 + $0xf0] sm:$0xff]
      %v2032 = vld [vmem:[#allocation3 + $0x108] sm:$0xff]
      %v2033 = vld [vmem:[#allocation3 + $0x110] sm:$0xff]
      %v2034 = vld [vmem:[#allocation3 + $0x128] sm:$0xff]
      %v2035 = vld [vmem:[#allocation3 + $0x130] sm:$0xff]
      %v2036 = vld [vmem:[#allocation3 + $0x148] sm:$0xff]
      %v2037 = vld [vmem:[#allocation3 + $0x150] sm:$0xff]
      %v2038 = vld [vmem:[#allocation3 + $0x168] sm:$0xff]
      %v2039 = vld [vmem:[#allocation3 + $0x170] sm:$0xff]
      %v2040 = vld [vmem:[#allocation3 + $0x188] sm:$0xff]
      %v2041 = vld [vmem:[#allocation3 + $0x190] sm:$0xff]
      %v2042 = vld [vmem:[#allocation3 + $0x1a8] sm:$0xff]
      %v2043 = vld [vmem:[#allocation3 + $0x1b0] sm:$0xff]
      %v2044 = vld [vmem:[#allocation3 + $0x1c8] sm:$0xff]
      %v2045 = vld [vmem:[#allocation3 + $0x1d0] sm:$0xff]
      %v2046 = vld [vmem:[#allocation3 + $0x1e8] sm:$0xff]
      %v2047 = vld [vmem:[#allocation3 + $0x1f0] sm:$0xff]
      %v2048 = vmax.f32 %v1984, %v2016
      %v2049 = vmax.f32 %v1985, %v2017
      %v2050 = vmax.f32 %v1986, %v2018
      %v2051 = vmax.f32 %v1987, %v2019
      %v2052 = vmax.f32 %v1988, %v2020
      %v2053 = vmax.f32 %v1989, %v2021
      %v2054 = vmax.f32 %v1990, %v2022
      %v2055 = vmax.f32 %v1991, %v2023
      %v2056 = vmax.f32 %v1992, %v2024
      %v2057 = vmax.f32 %v1993, %v2025
      %v2058 = vmax.f32 %v1994, %v2026
      %v2059 = vmax.f32 %v1995, %v2027
      %v2060 = vmax.f32 %v1996, %v2028
      %v2061 = vmax.f32 %v1997, %v2029
      %v2062 = vmax.f32 %v1998, %v2030
      %v2063 = vmax.f32 %v1999, %v2031
      %v2064 = vmax.f32 %v2000, %v2032
      %v2065 = vmax.f32 %v2001, %v2033
      %v2066 = vmax.f32 %v2002, %v2034
      %v2067 = vmax.f32 %v2003, %v2035
      %v2068 = vmax.f32 %v2004, %v2036
      %v2069 = vmax.f32 %v2005, %v2037
      %v2070 = vmax.f32 %v2006, %v2038
      %v2071 = vmax.f32 %v2007, %v2039
      %v2072 = vmax.f32 %v2008, %v2040
      %v2073 = vmax.f32 %v2009, %v2041
      %v2074 = vmax.f32 %v2010, %v2042
      %v2075 = vmax.f32 %v2011, %v2043
      %v2076 = vmax.f32 %v2012, %v2044
      %v2077 = vmax.f32 %v2013, %v2045
      %v2078 = vmax.f32 %v2014, %v2046
      %v2079 = vmax.f32 %v2015, %v2047
      %v2080 = vld [vmem:[#allocation3 + $0x9] sm:$0xff]
      %v2081 = vld [vmem:[#allocation3 + $0x11] sm:$0xff]
      %v2082 = vld [vmem:[#allocation3 + $0x29] sm:$0xff]
      %v2083 = vld [vmem:[#allocation3 + $0x31] sm:$0xff]
      %v2084 = vld [vmem:[#allocation3 + $0x49] sm:$0xff]
      %v2085 = vld [vmem:[#allocation3 + $0x51] sm:$0xff]
      %v2086 = vld [vmem:[#allocation3 + $0x69] sm:$0xff]
      %v2087 = vld [vmem:[#allocation3 + $0x71] sm:$0xff]
      %v2088 = vld [vmem:[#allocation3 + $0x89] sm:$0xff]
      %v2089 = vld [vmem:[#allocation3 + $0x91] sm:$0xff]
      %v2090 = vld [vmem:[#allocation3 + $0xa9] sm:$0xff]
      %v2091 = vld [vmem:[#allocation3 + $0xb1] sm:$0xff]
      %v2092 = vld [vmem:[#allocation3 + $0xc9] sm:$0xff]
      %v2093 = vld [vmem:[#allocation3 + $0xd1] sm:$0xff]
      %v2094 = vld [vmem:[#allocation3 + $0xe9] sm:$0xff]
      %v2095 = vld [vmem:[#allocation3 + $0xf1] sm:$0xff]
      %v2096 = vld [vmem:[#allocation3 + $0x109] sm:$0xff]
      %v2097 = vld [vmem:[#allocation3 + $0x111] sm:$0xff]
      %v2098 = vld [vmem:[#allocation3 + $0x129] sm:$0xff]
      %v2099 = vld [vmem:[#allocation3 + $0x131] sm:$0xff]
      %v2100 = vld [vmem:[#allocation3 + $0x149] sm:$0xff]
      %v2101 = vld [vmem:[#allocation3 + $0x151] sm:$0xff]
      %v2102 = vld [vmem:[#allocation3 + $0x169] sm:$0xff]
      %v2103 = vld [vmem:[#allocation3 + $0x171] sm:$0xff]
      %v2104 = vld [vmem:[#allocation3 + $0x189] sm:$0xff]
      %v2105 = vld [vmem:[#allocation3 + $0x191] sm:$0xff]
      %v2106 = vld [vmem:[#allocation3 + $0x1a9] sm:$0xff]
      %v2107 = vld [vmem:[#allocation3 + $0x1b1] sm:$0xff]
      %v2108 = vld [vmem:[#allocation3 + $0x1c9] sm:$0xff]
      %v2109 = vld [vmem:[#allocation3 + $0x1d1] sm:$0xff]
      %v2110 = vld [vmem:[#allocation3 + $0x1e9] sm:$0xff]
      %v2111 = vld [vmem:[#allocation3 + $0x1f1] sm:$0xff]
      %v2112 = vmax.f32 %v2048, %v2080
      %v2113 = vmax.f32 %v2049, %v2081
      %v2114 = vmax.f32 %v2050, %v2082
      %v2115 = vmax.f32 %v2051, %v2083
      %v2116 = vmax.f32 %v2052, %v2084
      %v2117 = vmax.f32 %v2053, %v2085
      %v2118 = vmax.f32 %v2054, %v2086
      %v2119 = vmax.f32 %v2055, %v2087
      %v2120 = vmax.f32 %v2056, %v2088
      %v2121 = vmax.f32 %v2057, %v2089
      %v2122 = vmax.f32 %v2058, %v2090
      %v2123 = vmax.f32 %v2059, %v2091
      %v2124 = vmax.f32 %v2060, %v2092
      %v2125 = vmax.f32 %v2061, %v2093
      %v2126 = vmax.f32 %v2062, %v2094
      %v2127 = vmax.f32 %v2063, %v2095
      %v2128 = vmax.f32 %v2064, %v2096
      %v2129 = vmax.f32 %v2065, %v2097
      %v2130 = vmax.f32 %v2066, %v2098
      %v2131 = vmax.f32 %v2067, %v2099
      %v2132 = vmax.f32 %v2068, %v2100
      %v2133 = vmax.f32 %v2069, %v2101
      %v2134 = vmax.f32 %v2070, %v2102
      %v2135 = vmax.f32 %v2071, %v2103
      %v2136 = vmax.f32 %v2072, %v2104
      %v2137 = vmax.f32 %v2073, %v2105
      %v2138 = vmax.f32 %v2074, %v2106
      %v2139 = vmax.f32 %v2075, %v2107
      %v2140 = vmax.f32 %v2076, %v2108
      %v2141 = vmax.f32 %v2077, %v2109
      %v2142 = vmax.f32 %v2078, %v2110
      %v2143 = vmax.f32 %v2079, %v2111
      %v2144 = vld [vmem:[#allocation3 + $0xa] sm:$0xff]
      %v2145 = vld [vmem:[#allocation3 + $0x12] sm:$0xff]
      %v2146 = vld [vmem:[#allocation3 + $0x2a] sm:$0xff]
      %v2147 = vld [vmem:[#allocation3 + $0x32] sm:$0xff]
      %v2148 = vld [vmem:[#allocation3 + $0x4a] sm:$0xff]
      %v2149 = vld [vmem:[#allocation3 + $0x52] sm:$0xff]
      %v2150 = vld [vmem:[#allocation3 + $0x6a] sm:$0xff]
      %v2151 = vld [vmem:[#allocation3 + $0x72] sm:$0xff]
      %v2152 = vld [vmem:[#allocation3 + $0x8a] sm:$0xff]
      %v2153 = vld [vmem:[#allocation3 + $0x92] sm:$0xff]
      %v2154 = vld [vmem:[#allocation3 + $0xaa] sm:$0xff]
      %v2155 = vld [vmem:[#allocation3 + $0xb2] sm:$0xff]
      %v2156 = vld [vmem:[#allocation3 + $0xca] sm:$0xff]
      %v2157 = vld [vmem:[#allocation3 + $0xd2] sm:$0xff]
      %v2158 = vld [vmem:[#allocation3 + $0xea] sm:$0xff]
      %v2159 = vld [vmem:[#allocation3 + $0xf2] sm:$0xff]
      %v2160 = vld [vmem:[#allocation3 + $0x10a] sm:$0xff]
      %v2161 = vld [vmem:[#allocation3 + $0x112] sm:$0xff]
      %v2162 = vld [vmem:[#allocation3 + $0x12a] sm:$0xff]
      %v2163 = vld [vmem:[#allocation3 + $0x132] sm:$0xff]
      %v2164 = vld [vmem:[#allocation3 + $0x14a] sm:$0xff]
      %v2165 = vld [vmem:[#allocation3 + $0x152] sm:$0xff]
      %v2166 = vld [vmem:[#allocation3 + $0x16a] sm:$0xff]
      %v2167 = vld [vmem:[#allocation3 + $0x172] sm:$0xff]
      %v2168 = vld [vmem:[#allocation3 + $0x18a] sm:$0xff]
      %v2169 = vld [vmem:[#allocation3 + $0x192] sm:$0xff]
      %v2170 = vld [vmem:[#allocation3 + $0x1aa] sm:$0xff]
      %v2171 = vld [vmem:[#allocation3 + $0x1b2] sm:$0xff]
      %v2172 = vld [vmem:[#allocation3 + $0x1ca] sm:$0xff]
      %v2173 = vld [vmem:[#allocation3 + $0x1d2] sm:$0xff]
      %v2174 = vld [vmem:[#allocation3 + $0x1ea] sm:$0xff]
      %v2175 = vld [vmem:[#allocation3 + $0x1f2] sm:$0xff]
      %v2176 = vmax.f32 %v2112, %v2144
      %v2177 = vmax.f32 %v2113, %v2145
      %v2178 = vmax.f32 %v2114, %v2146
      %v2179 = vmax.f32 %v2115, %v2147
      %v2180 = vmax.f32 %v2116, %v2148
      %v2181 = vmax.f32 %v2117, %v2149
      %v2182 = vmax.f32 %v2118, %v2150
      %v2183 = vmax.f32 %v2119, %v2151
      %v2184 = vmax.f32 %v2120, %v2152
      %v2185 = vmax.f32 %v2121, %v2153
      %v2186 = vmax.f32 %v2122, %v2154
      %v2187 = vmax.f32 %v2123, %v2155
      %v2188 = vmax.f32 %v2124, %v2156
      %v2189 = vmax.f32 %v2125, %v2157
      %v2190 = vmax.f32 %v2126, %v2158
      %v2191 = vmax.f32 %v2127, %v2159
      %v2192 = vmax.f32 %v2128, %v2160
      %v2193 = vmax.f32 %v2129, %v2161
      %v2194 = vmax.f32 %v2130, %v2162
      %v2195 = vmax.f32 %v2131, %v2163
      %v2196 = vmax.f32 %v2132, %v2164
      %v2197 = vmax.f32 %v2133, %v2165
      %v2198 = vmax.f32 %v2134, %v2166
      %v2199 = vmax.f32 %v2135, %v2167
      %v2200 = vmax.f32 %v2136, %v2168
      %v2201 = vmax.f32 %v2137, %v2169
      %v2202 = vmax.f32 %v2138, %v2170
      %v2203 = vmax.f32 %v2139, %v2171
      %v2204 = vmax.f32 %v2140, %v2172
      %v2205 = vmax.f32 %v2141, %v2173
      %v2206 = vmax.f32 %v2142, %v2174
      %v2207 = vmax.f32 %v2143, %v2175
      %s2208 = scalar_lea.vmem [#allocation4], 32
      %2209 = vst.msk [vmem:[%s2208] sm:$0xff] %vm442, %v2176
      %2210 = vst.msk [vmem:[%s2208 + $0x8] sm:$0xff] %vm442, %v2177
      %2211 = vst.msk [vmem:[%s2208 + $0x10] sm:$0xff] %vm442, %v2178
      %2212 = vst.msk [vmem:[%s2208 + $0x18] sm:$0xff] %vm442, %v2179
      %2213 = vst.msk [vmem:[%s2208 + $0x20] sm:$0xff] %vm442, %v2180
      %2214 = vst.msk [vmem:[%s2208 + $0x28] sm:$0xff] %vm442, %v2181
      %2215 = vst.msk [vmem:[%s2208 + $0x30] sm:$0xff] %vm442, %v2182
      %2216 = vst.msk [vmem:[%s2208 + $0x38] sm:$0xff] %vm442, %v2183
      %2217 = vst.msk [vmem:[%s2208 + $0x40] sm:$0xff] %vm442, %v2184
      %2218 = vst.msk [vmem:[%s2208 + $0x48] sm:$0xff] %vm442, %v2185
      %2219 = vst.msk [vmem:[%s2208 + $0x50] sm:$0xff] %vm442, %v2186
      %2220 = vst.msk [vmem:[%s2208 + $0x58] sm:$0xff] %vm442, %v2187
      %2221 = vst.msk [vmem:[%s2208 + $0x60] sm:$0xff] %vm442, %v2188
      %2222 = vst.msk [vmem:[%s2208 + $0x68] sm:$0xff] %vm442, %v2189
      %2223 = vst.msk [vmem:[%s2208 + $0x70] sm:$0xff] %vm442, %v2190
      %2224 = vst.msk [vmem:[%s2208 + $0x78] sm:$0xff] %vm442, %v2191
      %2225 = vst.msk [vmem:[%s2208 + $0x80] sm:$0xff] %vm442, %v2192
      %2226 = vst.msk [vmem:[%s2208 + $0x88] sm:$0xff] %vm442, %v2193
      %2227 = vst.msk [vmem:[%s2208 + $0x90] sm:$0xff] %vm442, %v2194
      %2228 = vst.msk [vmem:[%s2208 + $0x98] sm:$0xff] %vm442, %v2195
      %2229 = vst.msk [vmem:[%s2208 + $0xa0] sm:$0xff] %vm442, %v2196
      %2230 = vst.msk [vmem:[%s2208 + $0xa8] sm:$0xff] %vm442, %v2197
      %2231 = vst.msk [vmem:[%s2208 + $0xb0] sm:$0xff] %vm442, %v2198
      %2232 = vst.msk [vmem:[%s2208 + $0xb8] sm:$0xff] %vm442, %v2199
      %2233 = vst.msk [vmem:[%s2208 + $0xc0] sm:$0xff] %vm442, %v2200
      %2234 = vst.msk [vmem:[%s2208 + $0xc8] sm:$0xff] %vm442, %v2201
      %2235 = vst.msk [vmem:[%s2208 + $0xd0] sm:$0xff] %vm442, %v2202
      %2236 = vst.msk [vmem:[%s2208 + $0xd8] sm:$0xff] %vm442, %v2203
      %2237 = vst.msk [vmem:[%s2208 + $0xe0] sm:$0xff] %vm442, %v2204
      %2238 = vst.msk [vmem:[%s2208 + $0xe8] sm:$0xff] %vm442, %v2205
      %2239 = vst.msk [vmem:[%s2208 + $0xf0] sm:$0xff] %vm442, %v2206
      %2240 = vst.msk [vmem:[%s2208 + $0xf8] sm:$0xff] %vm442, %v2207
      %v2241 = vld [vmem:[#allocation4] sm:$0xff]
      %v2242 = vld [vmem:[#allocation4 + $0x8] sm:$0xff]
      %v2243 = vld [vmem:[#allocation4 + $0x10] sm:$0xff]
      %v2244 = vld [vmem:[#allocation4 + $0x18] sm:$0xff]
      %v2245 = vld [vmem:[#allocation4 + $0x20] sm:$0xff]
      %v2246 = vld [vmem:[#allocation4 + $0x28] sm:$0xff]
      %v2247 = vld [vmem:[#allocation4 + $0x30] sm:$0xff]
      %v2248 = vld [vmem:[#allocation4 + $0x38] sm:$0xff]
      %v2249 = vld [vmem:[#allocation4 + $0x40] sm:$0xff]
      %v2250 = vld [vmem:[#allocation4 + $0x48] sm:$0xff]
      %v2251 = vld [vmem:[#allocation4 + $0x50] sm:$0xff]
      %v2252 = vld [vmem:[#allocation4 + $0x58] sm:$0xff]
      %v2253 = vld [vmem:[#allocation4 + $0x60] sm:$0xff]
      %v2254 = vld [vmem:[#allocation4 + $0x68] sm:$0xff]
      %v2255 = vld [vmem:[#allocation4 + $0x70] sm:$0xff]
      %v2256 = vld [vmem:[#allocation4 + $0x78] sm:$0xff]
      %v2257 = vld [vmem:[#allocation4 + $0x80] sm:$0xff]
      %v2258 = vld [vmem:[#allocation4 + $0x88] sm:$0xff]
      %v2259 = vld [vmem:[#allocation4 + $0x90] sm:$0xff]
      %v2260 = vld [vmem:[#allocation4 + $0x98] sm:$0xff]
      %v2261 = vld [vmem:[#allocation4 + $0xa0] sm:$0xff]
      %v2262 = vld [vmem:[#allocation4 + $0xa8] sm:$0xff]
      %v2263 = vld [vmem:[#allocation4 + $0xb0] sm:$0xff]
      %v2264 = vld [vmem:[#allocation4 + $0xb8] sm:$0xff]
      %v2265 = vld [vmem:[#allocation4 + $0xc0] sm:$0xff]
      %v2266 = vld [vmem:[#allocation4 + $0xc8] sm:$0xff]
      %v2267 = vld [vmem:[#allocation4 + $0xd0] sm:$0xff]
      %v2268 = vld [vmem:[#allocation4 + $0xd8] sm:$0xff]
      %v2269 = vld [vmem:[#allocation4 + $0xe0] sm:$0xff]
      %v2270 = vld [vmem:[#allocation4 + $0xe8] sm:$0xff]
      %v2271 = vld [vmem:[#allocation4 + $0xf0] sm:$0xff]
      %v2272 = vld [vmem:[#allocation4 + $0xf8] sm:$0xff]
      %s2273 = scalar_lea.vmem [#allocation4], 16
      %v2274 = vld [vmem:[%s2273] sm:$0xff]
      %v2275 = vld [vmem:[%s2273 + $0x8] sm:$0xff]
      %v2276 = vld [vmem:[%s2273 + $0x10] sm:$0xff]
      %v2277 = vld [vmem:[%s2273 + $0x18] sm:$0xff]
      %v2278 = vld [vmem:[%s2273 + $0x20] sm:$0xff]
      %v2279 = vld [vmem:[%s2273 + $0x28] sm:$0xff]
      %v2280 = vld [vmem:[%s2273 + $0x30] sm:$0xff]
      %v2281 = vld [vmem:[%s2273 + $0x38] sm:$0xff]
      %v2282 = vld [vmem:[%s2273 + $0x40] sm:$0xff]
      %v2283 = vld [vmem:[%s2273 + $0x48] sm:$0xff]
      %v2284 = vld [vmem:[%s2273 + $0x50] sm:$0xff]
      %v2285 = vld [vmem:[%s2273 + $0x58] sm:$0xff]
      %v2286 = vld [vmem:[%s2273 + $0x60] sm:$0xff]
      %v2287 = vld [vmem:[%s2273 + $0x68] sm:$0xff]
      %v2288 = vld [vmem:[%s2273 + $0x70] sm:$0xff]
      %v2289 = vld [vmem:[%s2273 + $0x78] sm:$0xff]
      %v2290 = vld [vmem:[%s2273 + $0x80] sm:$0xff]
      %v2291 = vld [vmem:[%s2273 + $0x88] sm:$0xff]
      %v2292 = vld [vmem:[%s2273 + $0x90] sm:$0xff]
      %v2293 = vld [vmem:[%s2273 + $0x98] sm:$0xff]
      %v2294 = vld [vmem:[%s2273 + $0xa0] sm:$0xff]
      %v2295 = vld [vmem:[%s2273 + $0xa8] sm:$0xff]
      %v2296 = vld [vmem:[%s2273 + $0xb0] sm:$0xff]
      %v2297 = vld [vmem:[%s2273 + $0xb8] sm:$0xff]
      %v2298 = vld [vmem:[%s2273 + $0xc0] sm:$0xff]
      %v2299 = vld [vmem:[%s2273 + $0xc8] sm:$0xff]
      %v2300 = vld [vmem:[%s2273 + $0xd0] sm:$0xff]
      %v2301 = vld [vmem:[%s2273 + $0xd8] sm:$0xff]
      %v2302 = vld [vmem:[%s2273 + $0xe0] sm:$0xff]
      %v2303 = vld [vmem:[%s2273 + $0xe8] sm:$0xff]
      %v2304 = vld [vmem:[%s2273 + $0xf0] sm:$0xff]
      %v2305 = vld [vmem:[%s2273 + $0xf8] sm:$0xff]
      %v2306 = vmax.f32 %v2241, %v2274
      %v2307 = vmax.f32 %v2242, %v2275
      %v2308 = vmax.f32 %v2243, %v2276
      %v2309 = vmax.f32 %v2244, %v2277
      %v2310 = vmax.f32 %v2245, %v2278
      %v2311 = vmax.f32 %v2246, %v2279
      %v2312 = vmax.f32 %v2247, %v2280
      %v2313 = vmax.f32 %v2248, %v2281
      %v2314 = vmax.f32 %v2249, %v2282
      %v2315 = vmax.f32 %v2250, %v2283
      %v2316 = vmax.f32 %v2251, %v2284
      %v2317 = vmax.f32 %v2252, %v2285
      %v2318 = vmax.f32 %v2253, %v2286
      %v2319 = vmax.f32 %v2254, %v2287
      %v2320 = vmax.f32 %v2255, %v2288
      %v2321 = vmax.f32 %v2256, %v2289
      %v2322 = vmax.f32 %v2257, %v2290
      %v2323 = vmax.f32 %v2258, %v2291
      %v2324 = vmax.f32 %v2259, %v2292
      %v2325 = vmax.f32 %v2260, %v2293
      %v2326 = vmax.f32 %v2261, %v2294
      %v2327 = vmax.f32 %v2262, %v2295
      %v2328 = vmax.f32 %v2263, %v2296
      %v2329 = vmax.f32 %v2264, %v2297
      %v2330 = vmax.f32 %v2265, %v2298
      %v2331 = vmax.f32 %v2266, %v2299
      %v2332 = vmax.f32 %v2267, %v2300
      %v2333 = vmax.f32 %v2268, %v2301
      %v2334 = vmax.f32 %v2269, %v2302
      %v2335 = vmax.f32 %v2270, %v2303
      %v2336 = vmax.f32 %v2271, %v2304
      %v2337 = vmax.f32 %v2272, %v2305
      %v2338 = vld [vmem:[%s2208] sm:$0xff]
      %v2339 = vld [vmem:[%s2208 + $0x8] sm:$0xff]
      %v2340 = vld [vmem:[%s2208 + $0x10] sm:$0xff]
      %v2341 = vld [vmem:[%s2208 + $0x18] sm:$0xff]
      %v2342 = vld [vmem:[%s2208 + $0x20] sm:$0xff]
      %v2343 = vld [vmem:[%s2208 + $0x28] sm:$0xff]
      %v2344 = vld [vmem:[%s2208 + $0x30] sm:$0xff]
      %v2345 = vld [vmem:[%s2208 + $0x38] sm:$0xff]
      %v2346 = vld [vmem:[%s2208 + $0x40] sm:$0xff]
      %v2347 = vld [vmem:[%s2208 + $0x48] sm:$0xff]
      %v2348 = vld [vmem:[%s2208 + $0x50] sm:$0xff]
      %v2349 = vld [vmem:[%s2208 + $0x58] sm:$0xff]
      %v2350 = vld [vmem:[%s2208 + $0x60] sm:$0xff]
      %v2351 = vld [vmem:[%s2208 + $0x68] sm:$0xff]
      %v2352 = vld [vmem:[%s2208 + $0x70] sm:$0xff]
      %v2353 = vld [vmem:[%s2208 + $0x78] sm:$0xff]
      %v2354 = vld [vmem:[%s2208 + $0x80] sm:$0xff]
      %v2355 = vld [vmem:[%s2208 + $0x88] sm:$0xff]
      %v2356 = vld [vmem:[%s2208 + $0x90] sm:$0xff]
      %v2357 = vld [vmem:[%s2208 + $0x98] sm:$0xff]
      %v2358 = vld [vmem:[%s2208 + $0xa0] sm:$0xff]
      %v2359 = vld [vmem:[%s2208 + $0xa8] sm:$0xff]
      %v2360 = vld [vmem:[%s2208 + $0xb0] sm:$0xff]
      %v2361 = vld [vmem:[%s2208 + $0xb8] sm:$0xff]
      %v2362 = vld [vmem:[%s2208 + $0xc0] sm:$0xff]
      %v2363 = vld [vmem:[%s2208 + $0xc8] sm:$0xff]
      %v2364 = vld [vmem:[%s2208 + $0xd0] sm:$0xff]
      %v2365 = vld [vmem:[%s2208 + $0xd8] sm:$0xff]
      %v2366 = vld [vmem:[%s2208 + $0xe0] sm:$0xff]
      %v2367 = vld [vmem:[%s2208 + $0xe8] sm:$0xff]
      %v2368 = vld [vmem:[%s2208 + $0xf0] sm:$0xff]
      %v2369 = vld [vmem:[%s2208 + $0xf8] sm:$0xff]
      %v2370 = vmax.f32 %v2306, %v2338
      %v2371 = vmax.f32 %v2307, %v2339
      %v2372 = vmax.f32 %v2308, %v2340
      %v2373 = vmax.f32 %v2309, %v2341
      %v2374 = vmax.f32 %v2310, %v2342
      %v2375 = vmax.f32 %v2311, %v2343
      %v2376 = vmax.f32 %v2312, %v2344
      %v2377 = vmax.f32 %v2313, %v2345
      %v2378 = vmax.f32 %v2314, %v2346
      %v2379 = vmax.f32 %v2315, %v2347
      %v2380 = vmax.f32 %v2316, %v2348
      %v2381 = vmax.f32 %v2317, %v2349
      %v2382 = vmax.f32 %v2318, %v2350
      %v2383 = vmax.f32 %v2319, %v2351
      %v2384 = vmax.f32 %v2320, %v2352
      %v2385 = vmax.f32 %v2321, %v2353
      %v2386 = vmax.f32 %v2322, %v2354
      %v2387 = vmax.f32 %v2323, %v2355
      %v2388 = vmax.f32 %v2324, %v2356
      %v2389 = vmax.f32 %v2325, %v2357
      %v2390 = vmax.f32 %v2326, %v2358
      %v2391 = vmax.f32 %v2327, %v2359
      %v2392 = vmax.f32 %v2328, %v2360
      %v2393 = vmax.f32 %v2329, %v2361
      %v2394 = vmax.f32 %v2330, %v2362
      %v2395 = vmax.f32 %v2331, %v2363
      %v2396 = vmax.f32 %v2332, %v2364
      %v2397 = vmax.f32 %v2333, %v2365
      %v2398 = vmax.f32 %v2334, %v2366
      %v2399 = vmax.f32 %v2335, %v2367
      %v2400 = vmax.f32 %v2336, %v2368
      %v2401 = vmax.f32 %v2337, %v2369
      %s2402 = scalar_lea.vmem [#allocation4], 48
      %v2403 = vld [vmem:[%s2402] sm:$0xff]
      %v2404 = vld [vmem:[%s2402 + $0x8] sm:$0xff]
      %v2405 = vld [vmem:[%s2402 + $0x10] sm:$0xff]
      %v2406 = vld [vmem:[%s2402 + $0x18] sm:$0xff]
      %v2407 = vld [vmem:[%s2402 + $0x20] sm:$0xff]
      %v2408 = vld [vmem:[%s2402 + $0x28] sm:$0xff]
      %v2409 = vld [vmem:[%s2402 + $0x30] sm:$0xff]
      %v2410 = vld [vmem:[%s2402 + $0x38] sm:$0xff]
      %v2411 = vld [vmem:[%s2402 + $0x40] sm:$0xff]
      %v2412 = vld [vmem:[%s2402 + $0x48] sm:$0xff]
      %v2413 = vld [vmem:[%s2402 + $0x50] sm:$0xff]
      %v2414 = vld [vmem:[%s2402 + $0x58] sm:$0xff]
      %v2415 = vld [vmem:[%s2402 + $0x60] sm:$0xff]
      %v2416 = vld [vmem:[%s2402 + $0x68] sm:$0xff]
      %v2417 = vld [vmem:[%s2402 + $0x70] sm:$0xff]
      %v2418 = vld [vmem:[%s2402 + $0x78] sm:$0xff]
      %v2419 = vld [vmem:[%s2402 + $0x80] sm:$0xff]
      %v2420 = vld [vmem:[%s2402 + $0x88] sm:$0xff]
      %v2421 = vld [vmem:[%s2402 + $0x90] sm:$0xff]
      %v2422 = vld [vmem:[%s2402 + $0x98] sm:$0xff]
      %v2423 = vld [vmem:[%s2402 + $0xa0] sm:$0xff]
      %v2424 = vld [vmem:[%s2402 + $0xa8] sm:$0xff]
      %v2425 = vld [vmem:[%s2402 + $0xb0] sm:$0xff]
      %v2426 = vld [vmem:[%s2402 + $0xb8] sm:$0xff]
      %v2427 = vld [vmem:[%s2402 + $0xc0] sm:$0xff]
      %v2428 = vld [vmem:[%s2402 + $0xc8] sm:$0xff]
      %v2429 = vld [vmem:[%s2402 + $0xd0] sm:$0xff]
      %v2430 = vld [vmem:[%s2402 + $0xd8] sm:$0xff]
      %v2431 = vld [vmem:[%s2402 + $0xe0] sm:$0xff]
      %v2432 = vld [vmem:[%s2402 + $0xe8] sm:$0xff]
      %v2433 = vld [vmem:[%s2402 + $0xf0] sm:$0xff]
      %v2434 = vld [vmem:[%s2402 + $0xf8] sm:$0xff]
      %v2435 = vmax.f32 %v2370, %v2403
      %v2436 = vmax.f32 %v2371, %v2404
      %v2437 = vmax.f32 %v2372, %v2405
      %v2438 = vmax.f32 %v2373, %v2406
      %v2439 = vmax.f32 %v2374, %v2407
      %v2440 = vmax.f32 %v2375, %v2408
      %v2441 = vmax.f32 %v2376, %v2409
      %v2442 = vmax.f32 %v2377, %v2410
      %v2443 = vmax.f32 %v2378, %v2411
      %v2444 = vmax.f32 %v2379, %v2412
      %v2445 = vmax.f32 %v2380, %v2413
      %v2446 = vmax.f32 %v2381, %v2414
      %v2447 = vmax.f32 %v2382, %v2415
      %v2448 = vmax.f32 %v2383, %v2416
      %v2449 = vmax.f32 %v2384, %v2417
      %v2450 = vmax.f32 %v2385, %v2418
      %v2451 = vmax.f32 %v2386, %v2419
      %v2452 = vmax.f32 %v2387, %v2420
      %v2453 = vmax.f32 %v2388, %v2421
      %v2454 = vmax.f32 %v2389, %v2422
      %v2455 = vmax.f32 %v2390, %v2423
      %v2456 = vmax.f32 %v2391, %v2424
      %v2457 = vmax.f32 %v2392, %v2425
      %v2458 = vmax.f32 %v2393, %v2426
      %v2459 = vmax.f32 %v2394, %v2427
      %v2460 = vmax.f32 %v2395, %v2428
      %v2461 = vmax.f32 %v2396, %v2429
      %v2462 = vmax.f32 %v2397, %v2430
      %v2463 = vmax.f32 %v2398, %v2431
      %v2464 = vmax.f32 %v2399, %v2432
      %v2465 = vmax.f32 %v2400, %v2433
      %v2466 = vmax.f32 %v2401, %v2434
      %s2467 = scalar_lea.vmem [#allocation4], 64
      %v2468 = vld [vmem:[%s2467] sm:$0xff]
      %v2469 = vld [vmem:[%s2467 + $0x8] sm:$0xff]
      %v2470 = vld [vmem:[%s2467 + $0x10] sm:$0xff]
      %v2471 = vld [vmem:[%s2467 + $0x18] sm:$0xff]
      %v2472 = vld [vmem:[%s2467 + $0x20] sm:$0xff]
      %v2473 = vld [vmem:[%s2467 + $0x28] sm:$0xff]
      %v2474 = vld [vmem:[%s2467 + $0x30] sm:$0xff]
      %v2475 = vld [vmem:[%s2467 + $0x38] sm:$0xff]
      %v2476 = vld [vmem:[%s2467 + $0x40] sm:$0xff]
      %v2477 = vld [vmem:[%s2467 + $0x48] sm:$0xff]
      %v2478 = vld [vmem:[%s2467 + $0x50] sm:$0xff]
      %v2479 = vld [vmem:[%s2467 + $0x58] sm:$0xff]
      %v2480 = vld [vmem:[%s2467 + $0x60] sm:$0xff]
      %v2481 = vld [vmem:[%s2467 + $0x68] sm:$0xff]
      %v2482 = vld [vmem:[%s2467 + $0x70] sm:$0xff]
      %v2483 = vld [vmem:[%s2467 + $0x78] sm:$0xff]
      %v2484 = vld [vmem:[%s2467 + $0x80] sm:$0xff]
      %v2485 = vld [vmem:[%s2467 + $0x88] sm:$0xff]
      %v2486 = vld [vmem:[%s2467 + $0x90] sm:$0xff]
      %v2487 = vld [vmem:[%s2467 + $0x98] sm:$0xff]
      %v2488 = vld [vmem:[%s2467 + $0xa0] sm:$0xff]
      %v2489 = vld [vmem:[%s2467 + $0xa8] sm:$0xff]
      %v2490 = vld [vmem:[%s2467 + $0xb0] sm:$0xff]
      %v2491 = vld [vmem:[%s2467 + $0xb8] sm:$0xff]
      %v2492 = vld [vmem:[%s2467 + $0xc0] sm:$0xff]
      %v2493 = vld [vmem:[%s2467 + $0xc8] sm:$0xff]
      %v2494 = vld [vmem:[%s2467 + $0xd0] sm:$0xff]
      %v2495 = vld [vmem:[%s2467 + $0xd8] sm:$0xff]
      %v2496 = vld [vmem:[%s2467 + $0xe0] sm:$0xff]
      %v2497 = vld [vmem:[%s2467 + $0xe8] sm:$0xff]
      %v2498 = vld [vmem:[%s2467 + $0xf0] sm:$0xff]
      %v2499 = vld [vmem:[%s2467 + $0xf8] sm:$0xff]
      %v2500 = vmax.f32 %v2435, %v2468
      %v2501 = vmax.f32 %v2436, %v2469
      %v2502 = vmax.f32 %v2437, %v2470
      %v2503 = vmax.f32 %v2438, %v2471
      %v2504 = vmax.f32 %v2439, %v2472
      %v2505 = vmax.f32 %v2440, %v2473
      %v2506 = vmax.f32 %v2441, %v2474
      %v2507 = vmax.f32 %v2442, %v2475
      %v2508 = vmax.f32 %v2443, %v2476
      %v2509 = vmax.f32 %v2444, %v2477
      %v2510 = vmax.f32 %v2445, %v2478
      %v2511 = vmax.f32 %v2446, %v2479
      %v2512 = vmax.f32 %v2447, %v2480
      %v2513 = vmax.f32 %v2448, %v2481
      %v2514 = vmax.f32 %v2449, %v2482
      %v2515 = vmax.f32 %v2450, %v2483
      %v2516 = vmax.f32 %v2451, %v2484
      %v2517 = vmax.f32 %v2452, %v2485
      %v2518 = vmax.f32 %v2453, %v2486
      %v2519 = vmax.f32 %v2454, %v2487
      %v2520 = vmax.f32 %v2455, %v2488
      %v2521 = vmax.f32 %v2456, %v2489
      %v2522 = vmax.f32 %v2457, %v2490
      %v2523 = vmax.f32 %v2458, %v2491
      %v2524 = vmax.f32 %v2459, %v2492
      %v2525 = vmax.f32 %v2460, %v2493
      %v2526 = vmax.f32 %v2461, %v2494
      %v2527 = vmax.f32 %v2462, %v2495
      %v2528 = vmax.f32 %v2463, %v2496
      %v2529 = vmax.f32 %v2464, %v2497
      %v2530 = vmax.f32 %v2465, %v2498
      %v2531 = vmax.f32 %v2466, %v2499
      %v2532 = vpack.c.bf16 %v2500, %v2500
      %v2533 = vpack.c.bf16 %v2501, %v2501
      %v2534 = vpack.c.bf16 %v2502, %v2502
      %v2535 = vpack.c.bf16 %v2503, %v2503
      %v2536 = vpack.c.bf16 %v2504, %v2504
      %v2537 = vpack.c.bf16 %v2505, %v2505
      %v2538 = vpack.c.bf16 %v2506, %v2506
      %v2539 = vpack.c.bf16 %v2507, %v2507
      %v2540 = vpack.c.bf16 %v2508, %v2508
      %v2541 = vpack.c.bf16 %v2509, %v2509
      %v2542 = vpack.c.bf16 %v2510, %v2510
      %v2543 = vpack.c.bf16 %v2511, %v2511
      %v2544 = vpack.c.bf16 %v2512, %v2512
      %v2545 = vpack.c.bf16 %v2513, %v2513
      %v2546 = vpack.c.bf16 %v2514, %v2514
      %v2547 = vpack.c.bf16 %v2515, %v2515
      %v2548 = vpack.c.bf16 %v2516, %v2516
      %v2549 = vpack.c.bf16 %v2517, %v2517
      %v2550 = vpack.c.bf16 %v2518, %v2518
      %v2551 = vpack.c.bf16 %v2519, %v2519
      %v2552 = vpack.c.bf16 %v2520, %v2520
      %v2553 = vpack.c.bf16 %v2521, %v2521
      %v2554 = vpack.c.bf16 %v2522, %v2522
      %v2555 = vpack.c.bf16 %v2523, %v2523
      %v2556 = vpack.c.bf16 %v2524, %v2524
      %v2557 = vpack.c.bf16 %v2525, %v2525
      %v2558 = vpack.c.bf16 %v2526, %v2526
      %v2559 = vpack.c.bf16 %v2527, %v2527
      %v2560 = vpack.c.bf16 %v2528, %v2528
      %v2561 = vpack.c.bf16 %v2529, %v2529
      %v2562 = vpack.c.bf16 %v2530, %v2530
      %v2563 = vpack.c.bf16 %v2531, %v2531
      %2596 = vrot.lane.b32.xlu0 %v2532, 2
      %v2597 = vpop.permute.xlu0 %2596
      %2598 = vrot.lane.b32.xlu0 %v2533, 2
      %v2599 = vpop.permute.xlu0 %2598
      %2600 = vrot.lane.b32.xlu0 %v2534, 2
      %v2601 = vpop.permute.xlu0 %2600
      %2602 = vrot.lane.b32.xlu0 %v2535, 2
      %v2603 = vpop.permute.xlu0 %2602
      %2604 = vrot.lane.b32.xlu0 %v2536, 2
      %v2605 = vpop.permute.xlu0 %2604
      %2606 = vrot.lane.b32.xlu0 %v2537, 2
      %v2607 = vpop.permute.xlu0 %2606
      %2608 = vrot.lane.b32.xlu0 %v2538, 2
      %v2609 = vpop.permute.xlu0 %2608
      %2610 = vrot.lane.b32.xlu0 %v2539, 2
      %v2611 = vpop.permute.xlu0 %2610
      %2612 = vrot.lane.b32.xlu0 %v2540, 2
      %v2613 = vpop.permute.xlu0 %2612
      %2614 = vrot.lane.b32.xlu0 %v2541, 2
      %v2615 = vpop.permute.xlu0 %2614
      %2616 = vrot.lane.b32.xlu0 %v2542, 2
      %v2617 = vpop.permute.xlu0 %2616
      %2618 = vrot.lane.b32.xlu0 %v2543, 2
      %v2619 = vpop.permute.xlu0 %2618
      %2620 = vrot.lane.b32.xlu0 %v2544, 2
      %v2621 = vpop.permute.xlu0 %2620
      %2622 = vrot.lane.b32.xlu0 %v2545, 2
      %v2623 = vpop.permute.xlu0 %2622
      %2624 = vrot.lane.b32.xlu0 %v2546, 2
      %v2625 = vpop.permute.xlu0 %2624
      %2626 = vrot.lane.b32.xlu0 %v2547, 2
      %v2627 = vpop.permute.xlu0 %2626
      %2628 = vrot.lane.b32.xlu0 %v2548, 2
      %v2629 = vpop.permute.xlu0 %2628
      %2630 = vrot.lane.b32.xlu0 %v2549, 2
      %v2631 = vpop.permute.xlu0 %2630
      %2632 = vrot.lane.b32.xlu0 %v2550, 2
      %v2633 = vpop.permute.xlu0 %2632
      %2634 = vrot.lane.b32.xlu0 %v2551, 2
      %v2635 = vpop.permute.xlu0 %2634
      %2636 = vrot.lane.b32.xlu0 %v2552, 2
      %v2637 = vpop.permute.xlu0 %2636
      %2638 = vrot.lane.b32.xlu0 %v2553, 2
      %v2639 = vpop.permute.xlu0 %2638
      %2640 = vrot.lane.b32.xlu0 %v2554, 2
      %v2641 = vpop.permute.xlu0 %2640
      %2642 = vrot.lane.b32.xlu0 %v2555, 2
      %v2643 = vpop.permute.xlu0 %2642
      %2644 = vrot.lane.b32.xlu0 %v2556, 2
      %v2645 = vpop.permute.xlu0 %2644
      %2646 = vrot.lane.b32.xlu0 %v2557, 2
      %v2647 = vpop.permute.xlu0 %2646
      %2648 = vrot.lane.b32.xlu0 %v2558, 2
      %v2649 = vpop.permute.xlu0 %2648
      %2650 = vrot.lane.b32.xlu0 %v2559, 2
      %v2651 = vpop.permute.xlu0 %2650
      %2652 = vrot.lane.b32.xlu0 %v2560, 2
      %v2653 = vpop.permute.xlu0 %2652
      %2654 = vrot.lane.b32.xlu0 %v2561, 2
      %v2655 = vpop.permute.xlu0 %2654
      %2656 = vrot.lane.b32.xlu0 %v2562, 2
      %v2657 = vpop.permute.xlu0 %2656
      %2658 = vrot.lane.b32.xlu0 %v2563, 2
      %v2659 = vpop.permute.xlu0 %2658
      %vm2692 = vcmask 27664
      %2693 = vst.msk [vmem:[#allocation6] sm:$0xf] %vm2692, %v2597
      %2694 = vst.msk [vmem:[#allocation6 + $0x4] sm:$0xf] %vm2692, %v2599
      %2695 = vst.msk [vmem:[#allocation6 + $0x8] sm:$0xf] %vm2692, %v2601
      %2696 = vst.msk [vmem:[#allocation6 + $0xc] sm:$0xf] %vm2692, %v2603
      %2697 = vst.msk [vmem:[#allocation6 + $0x10] sm:$0xf] %vm2692, %v2605
      %2698 = vst.msk [vmem:[#allocation6 + $0x14] sm:$0xf] %vm2692, %v2607
      %2699 = vst.msk [vmem:[#allocation6 + $0x18] sm:$0xf] %vm2692, %v2609
      %2700 = vst.msk [vmem:[#allocation6 + $0x1c] sm:$0xf] %vm2692, %v2611
      %2701 = vst.msk [vmem:[#allocation6 + $0x20] sm:$0xf] %vm2692, %v2613
      %2702 = vst.msk [vmem:[#allocation6 + $0x24] sm:$0xf] %vm2692, %v2615
      %2703 = vst.msk [vmem:[#allocation6 + $0x28] sm:$0xf] %vm2692, %v2617
      %2704 = vst.msk [vmem:[#allocation6 + $0x2c] sm:$0xf] %vm2692, %v2619
      %2705 = vst.msk [vmem:[#allocation6 + $0x30] sm:$0xf] %vm2692, %v2621
      %2706 = vst.msk [vmem:[#allocation6 + $0x34] sm:$0xf] %vm2692, %v2623
      %2707 = vst.msk [vmem:[#allocation6 + $0x38] sm:$0xf] %vm2692, %v2625
      %2708 = vst.msk [vmem:[#allocation6 + $0x3c] sm:$0xf] %vm2692, %v2627
      %2709 = vst.msk [vmem:[#allocation6 + $0x40] sm:$0xf] %vm2692, %v2629
      %2710 = vst.msk [vmem:[#allocation6 + $0x44] sm:$0xf] %vm2692, %v2631
      %2711 = vst.msk [vmem:[#allocation6 + $0x48] sm:$0xf] %vm2692, %v2633
      %2712 = vst.msk [vmem:[#allocation6 + $0x4c] sm:$0xf] %vm2692, %v2635
      %2713 = vst.msk [vmem:[#allocation6 + $0x50] sm:$0xf] %vm2692, %v2637
      %2714 = vst.msk [vmem:[#allocation6 + $0x54] sm:$0xf] %vm2692, %v2639
      %2715 = vst.msk [vmem:[#allocation6 + $0x58] sm:$0xf] %vm2692, %v2641
      %2716 = vst.msk [vmem:[#allocation6 + $0x5c] sm:$0xf] %vm2692, %v2643
      %2717 = vst.msk [vmem:[#allocation6 + $0x60] sm:$0xf] %vm2692, %v2645
      %2718 = vst.msk [vmem:[#allocation6 + $0x64] sm:$0xf] %vm2692, %v2647
      %2719 = vst.msk [vmem:[#allocation6 + $0x68] sm:$0xf] %vm2692, %v2649
      %2720 = vst.msk [vmem:[#allocation6 + $0x6c] sm:$0xf] %vm2692, %v2651
      %2721 = vst.msk [vmem:[#allocation6 + $0x70] sm:$0xf] %vm2692, %v2653
      %2722 = vst.msk [vmem:[#allocation6 + $0x74] sm:$0xf] %vm2692, %v2655
      %2723 = vst.msk [vmem:[#allocation6 + $0x78] sm:$0xf] %vm2692, %v2657
      %2724 = vst.msk [vmem:[#allocation6 + $0x7c] sm:$0xf] %vm2692, %v2659
      %2725 = vst.msk [vmem:[#allocation3 + $0x8] sm:$0xff] %vm442, %v2500
      %2726 = vst.msk [vmem:[#allocation3 + $0x10] sm:$0xff] %vm442, %v2501
      %2727 = vst.msk [vmem:[#allocation3 + $0x28] sm:$0xff] %vm442, %v2502
      %2728 = vst.msk [vmem:[#allocation3 + $0x30] sm:$0xff] %vm442, %v2503
      %2729 = vst.msk [vmem:[#allocation3 + $0x48] sm:$0xff] %vm442, %v2504
      %2730 = vst.msk [vmem:[#allocation3 + $0x50] sm:$0xff] %vm442, %v2505
      %2731 = vst.msk [vmem:[#allocation3 + $0x68] sm:$0xff] %vm442, %v2506
      %2732 = vst.msk [vmem:[#allocation3 + $0x70] sm:$0xff] %vm442, %v2507
      %2733 = vst.msk [vmem:[#allocation3 + $0x88] sm:$0xff] %vm442, %v2508
      %2734 = vst.msk [vmem:[#allocation3 + $0x90] sm:$0xff] %vm442, %v2509
      %2735 = vst.msk [vmem:[#allocation3 + $0xa8] sm:$0xff] %vm442, %v2510
      %2736 = vst.msk [vmem:[#allocation3 + $0xb0] sm:$0xff] %vm442, %v2511
      %2737 = vst.msk [vmem:[#allocation3 + $0xc8] sm:$0xff] %vm442, %v2512
      %2738 = vst.msk [vmem:[#allocation3 + $0xd0] sm:$0xff] %vm442, %v2513
      %2739 = vst.msk [vmem:[#allocation3 + $0xe8] sm:$0xff] %vm442, %v2514
      %2740 = vst.msk [vmem:[#allocation3 + $0xf0] sm:$0xff] %vm442, %v2515
      %2741 = vst.msk [vmem:[#allocation3 + $0x108] sm:$0xff] %vm442, %v2516
      %2742 = vst.msk [vmem:[#allocation3 + $0x110] sm:$0xff] %vm442, %v2517
      %2743 = vst.msk [vmem:[#allocation3 + $0x128] sm:$0xff] %vm442, %v2518
      %2744 = vst.msk [vmem:[#allocation3 + $0x130] sm:$0xff] %vm442, %v2519
      %2745 = vst.msk [vmem:[#allocation3 + $0x148] sm:$0xff] %vm442, %v2520
      %2746 = vst.msk [vmem:[#allocation3 + $0x150] sm:$0xff] %vm442, %v2521
      %2747 = vst.msk [vmem:[#allocation3 + $0x168] sm:$0xff] %vm442, %v2522
      %2748 = vst.msk [vmem:[#allocation3 + $0x170] sm:$0xff] %vm442, %v2523
      %2749 = vst.msk [vmem:[#allocation3 + $0x188] sm:$0xff] %vm442, %v2524
      %2750 = vst.msk [vmem:[#allocation3 + $0x190] sm:$0xff] %vm442, %v2525
      %2751 = vst.msk [vmem:[#allocation3 + $0x1a8] sm:$0xff] %vm442, %v2526
      %2752 = vst.msk [vmem:[#allocation3 + $0x1b0] sm:$0xff] %vm442, %v2527
      %2753 = vst.msk [vmem:[#allocation3 + $0x1c8] sm:$0xff] %vm442, %v2528
      %2754 = vst.msk [vmem:[#allocation3 + $0x1d0] sm:$0xff] %vm442, %v2529
      %2755 = vst.msk [vmem:[#allocation3 + $0x1e8] sm:$0xff] %vm442, %v2530
      %2756 = vst.msk [vmem:[#allocation3 + $0x1f0] sm:$0xff] %vm442, %v2531
      %v2757 = vld [vmem:[#allocation3 + $0x6] sm:$0xff]
      %v2758 = vld [vmem:[#allocation3 + $0xe] sm:$0xff]
      %v2759 = vld [vmem:[#allocation3 + $0x26] sm:$0xff]
      %v2760 = vld [vmem:[#allocation3 + $0x2e] sm:$0xff]
      %v2761 = vld [vmem:[#allocation3 + $0x46] sm:$0xff]
      %v2762 = vld [vmem:[#allocation3 + $0x4e] sm:$0xff]
      %v2763 = vld [vmem:[#allocation3 + $0x66] sm:$0xff]
      %v2764 = vld [vmem:[#allocation3 + $0x6e] sm:$0xff]
      %v2765 = vld [vmem:[#allocation3 + $0x86] sm:$0xff]
      %v2766 = vld [vmem:[#allocation3 + $0x8e] sm:$0xff]
      %v2767 = vld [vmem:[#allocation3 + $0xa6] sm:$0xff]
      %v2768 = vld [vmem:[#allocation3 + $0xae] sm:$0xff]
      %v2769 = vld [vmem:[#allocation3 + $0xc6] sm:$0xff]
      %v2770 = vld [vmem:[#allocation3 + $0xce] sm:$0xff]
      %v2771 = vld [vmem:[#allocation3 + $0xe6] sm:$0xff]
      %v2772 = vld [vmem:[#allocation3 + $0xee] sm:$0xff]
      %v2773 = vld [vmem:[#allocation3 + $0x106] sm:$0xff]
      %v2774 = vld [vmem:[#allocation3 + $0x10e] sm:$0xff]
      %v2775 = vld [vmem:[#allocation3 + $0x126] sm:$0xff]
      %v2776 = vld [vmem:[#allocation3 + $0x12e] sm:$0xff]
      %v2777 = vld [vmem:[#allocation3 + $0x146] sm:$0xff]
      %v2778 = vld [vmem:[#allocation3 + $0x14e] sm:$0xff]
      %v2779 = vld [vmem:[#allocation3 + $0x166] sm:$0xff]
      %v2780 = vld [vmem:[#allocation3 + $0x16e] sm:$0xff]
      %v2781 = vld [vmem:[#allocation3 + $0x186] sm:$0xff]
      %v2782 = vld [vmem:[#allocation3 + $0x18e] sm:$0xff]
      %v2783 = vld [vmem:[#allocation3 + $0x1a6] sm:$0xff]
      %v2784 = vld [vmem:[#allocation3 + $0x1ae] sm:$0xff]
      %v2785 = vld [vmem:[#allocation3 + $0x1c6] sm:$0xff]
      %v2786 = vld [vmem:[#allocation3 + $0x1ce] sm:$0xff]
      %v2787 = vld [vmem:[#allocation3 + $0x1e6] sm:$0xff]
      %v2788 = vld [vmem:[#allocation3 + $0x1ee] sm:$0xff]
      %v2789 = vld [vmem:[#allocation3 + $0x7] sm:$0xff]
      %v2790 = vld [vmem:[#allocation3 + $0xf] sm:$0xff]
      %v2791 = vld [vmem:[#allocation3 + $0x27] sm:$0xff]
      %v2792 = vld [vmem:[#allocation3 + $0x2f] sm:$0xff]
      %v2793 = vld [vmem:[#allocation3 + $0x47] sm:$0xff]
      %v2794 = vld [vmem:[#allocation3 + $0x4f] sm:$0xff]
      %v2795 = vld [vmem:[#allocation3 + $0x67] sm:$0xff]
      %v2796 = vld [vmem:[#allocation3 + $0x6f] sm:$0xff]
      %v2797 = vld [vmem:[#allocation3 + $0x87] sm:$0xff]
      %v2798 = vld [vmem:[#allocation3 + $0x8f] sm:$0xff]
      %v2799 = vld [vmem:[#allocation3 + $0xa7] sm:$0xff]
      %v2800 = vld [vmem:[#allocation3 + $0xaf] sm:$0xff]
      %v2801 = vld [vmem:[#allocation3 + $0xc7] sm:$0xff]
      %v2802 = vld [vmem:[#allocation3 + $0xcf] sm:$0xff]
      %v2803 = vld [vmem:[#allocation3 + $0xe7] sm:$0xff]
      %v2804 = vld [vmem:[#allocation3 + $0xef] sm:$0xff]
      %v2805 = vld [vmem:[#allocation3 + $0x107] sm:$0xff]
      %v2806 = vld [vmem:[#allocation3 + $0x10f] sm:$0xff]
      %v2807 = vld [vmem:[#allocation3 + $0x127] sm:$0xff]
      %v2808 = vld [vmem:[#allocation3 + $0x12f] sm:$0xff]
      %v2809 = vld [vmem:[#allocation3 + $0x147] sm:$0xff]
      %v2810 = vld [vmem:[#allocation3 + $0x14f] sm:$0xff]
      %v2811 = vld [vmem:[#allocation3 + $0x167] sm:$0xff]
      %v2812 = vld [vmem:[#allocation3 + $0x16f] sm:$0xff]
      %v2813 = vld [vmem:[#allocation3 + $0x187] sm:$0xff]
      %v2814 = vld [vmem:[#allocation3 + $0x18f] sm:$0xff]
      %v2815 = vld [vmem:[#allocation3 + $0x1a7] sm:$0xff]
      %v2816 = vld [vmem:[#allocation3 + $0x1af] sm:$0xff]
      %v2817 = vld [vmem:[#allocation3 + $0x1c7] sm:$0xff]
      %v2818 = vld [vmem:[#allocation3 + $0x1cf] sm:$0xff]
      %v2819 = vld [vmem:[#allocation3 + $0x1e7] sm:$0xff]
      %v2820 = vld [vmem:[#allocation3 + $0x1ef] sm:$0xff]
      %v2821 = vmax.f32 %v2757, %v2789
      %v2822 = vmax.f32 %v2758, %v2790
      %v2823 = vmax.f32 %v2759, %v2791
      %v2824 = vmax.f32 %v2760, %v2792
      %v2825 = vmax.f32 %v2761, %v2793
      %v2826 = vmax.f32 %v2762, %v2794
      %v2827 = vmax.f32 %v2763, %v2795
      %v2828 = vmax.f32 %v2764, %v2796
      %v2829 = vmax.f32 %v2765, %v2797
      %v2830 = vmax.f32 %v2766, %v2798
      %v2831 = vmax.f32 %v2767, %v2799
      %v2832 = vmax.f32 %v2768, %v2800
      %v2833 = vmax.f32 %v2769, %v2801
      %v2834 = vmax.f32 %v2770, %v2802
      %v2835 = vmax.f32 %v2771, %v2803
      %v2836 = vmax.f32 %v2772, %v2804
      %v2837 = vmax.f32 %v2773, %v2805
      %v2838 = vmax.f32 %v2774, %v2806
      %v2839 = vmax.f32 %v2775, %v2807
      %v2840 = vmax.f32 %v2776, %v2808
      %v2841 = vmax.f32 %v2777, %v2809
      %v2842 = vmax.f32 %v2778, %v2810
      %v2843 = vmax.f32 %v2779, %v2811
      %v2844 = vmax.f32 %v2780, %v2812
      %v2845 = vmax.f32 %v2781, %v2813
      %v2846 = vmax.f32 %v2782, %v2814
      %v2847 = vmax.f32 %v2783, %v2815
      %v2848 = vmax.f32 %v2784, %v2816
      %v2849 = vmax.f32 %v2785, %v2817
      %v2850 = vmax.f32 %v2786, %v2818
      %v2851 = vmax.f32 %v2787, %v2819
      %v2852 = vmax.f32 %v2788, %v2820
      %v2853 = vld [vmem:[#allocation3 + $0x8] sm:$0xff]
      %v2854 = vld [vmem:[#allocation3 + $0x10] sm:$0xff]
      %v2855 = vld [vmem:[#allocation3 + $0x28] sm:$0xff]
      %v2856 = vld [vmem:[#allocation3 + $0x30] sm:$0xff]
      %v2857 = vld [vmem:[#allocation3 + $0x48] sm:$0xff]
      %v2858 = vld [vmem:[#allocation3 + $0x50] sm:$0xff]
      %v2859 = vld [vmem:[#allocation3 + $0x68] sm:$0xff]
      %v2860 = vld [vmem:[#allocation3 + $0x70] sm:$0xff]
      %v2861 = vld [vmem:[#allocation3 + $0x88] sm:$0xff]
      %v2862 = vld [vmem:[#allocation3 + $0x90] sm:$0xff]
      %v2863 = vld [vmem:[#allocation3 + $0xa8] sm:$0xff]
      %v2864 = vld [vmem:[#allocation3 + $0xb0] sm:$0xff]
      %v2865 = vld [vmem:[#allocation3 + $0xc8] sm:$0xff]
      %v2866 = vld [vmem:[#allocation3 + $0xd0] sm:$0xff]
      %v2867 = vld [vmem:[#allocation3 + $0xe8] sm:$0xff]
      %v2868 = vld [vmem:[#allocation3 + $0xf0] sm:$0xff]
      %v2869 = vld [vmem:[#allocation3 + $0x108] sm:$0xff]
      %v2870 = vld [vmem:[#allocation3 + $0x110] sm:$0xff]
      %v2871 = vld [vmem:[#allocation3 + $0x128] sm:$0xff]
      %v2872 = vld [vmem:[#allocation3 + $0x130] sm:$0xff]
      %v2873 = vld [vmem:[#allocation3 + $0x148] sm:$0xff]
      %v2874 = vld [vmem:[#allocation3 + $0x150] sm:$0xff]
      %v2875 = vld [vmem:[#allocation3 + $0x168] sm:$0xff]
      %v2876 = vld [vmem:[#allocation3 + $0x170] sm:$0xff]
      %v2877 = vld [vmem:[#allocation3 + $0x188] sm:$0xff]
      %v2878 = vld [vmem:[#allocation3 + $0x190] sm:$0xff]
      %v2879 = vld [vmem:[#allocation3 + $0x1a8] sm:$0xff]
      %v2880 = vld [vmem:[#allocation3 + $0x1b0] sm:$0xff]
      %v2881 = vld [vmem:[#allocation3 + $0x1c8] sm:$0xff]
      %v2882 = vld [vmem:[#allocation3 + $0x1d0] sm:$0xff]
      %v2883 = vld [vmem:[#allocation3 + $0x1e8] sm:$0xff]
      %v2884 = vld [vmem:[#allocation3 + $0x1f0] sm:$0xff]
      %v2885 = vmax.f32 %v2821, %v2853
      %v2886 = vmax.f32 %v2822, %v2854
      %v2887 = vmax.f32 %v2823, %v2855
      %v2888 = vmax.f32 %v2824, %v2856
      %v2889 = vmax.f32 %v2825, %v2857
      %v2890 = vmax.f32 %v2826, %v2858
      %v2891 = vmax.f32 %v2827, %v2859
      %v2892 = vmax.f32 %v2828, %v2860
      %v2893 = vmax.f32 %v2829, %v2861
      %v2894 = vmax.f32 %v2830, %v2862
      %v2895 = vmax.f32 %v2831, %v2863
      %v2896 = vmax.f32 %v2832, %v2864
      %v2897 = vmax.f32 %v2833, %v2865
      %v2898 = vmax.f32 %v2834, %v2866
      %v2899 = vmax.f32 %v2835, %v2867
      %v2900 = vmax.f32 %v2836, %v2868
      %v2901 = vmax.f32 %v2837, %v2869
      %v2902 = vmax.f32 %v2838, %v2870
      %v2903 = vmax.f32 %v2839, %v2871
      %v2904 = vmax.f32 %v2840, %v2872
      %v2905 = vmax.f32 %v2841, %v2873
      %v2906 = vmax.f32 %v2842, %v2874
      %v2907 = vmax.f32 %v2843, %v2875
      %v2908 = vmax.f32 %v2844, %v2876
      %v2909 = vmax.f32 %v2845, %v2877
      %v2910 = vmax.f32 %v2846, %v2878
      %v2911 = vmax.f32 %v2847, %v2879
      %v2912 = vmax.f32 %v2848, %v2880
      %v2913 = vmax.f32 %v2849, %v2881
      %v2914 = vmax.f32 %v2850, %v2882
      %v2915 = vmax.f32 %v2851, %v2883
      %v2916 = vmax.f32 %v2852, %v2884
      %v2917 = vld [vmem:[#allocation3 + $0x9] sm:$0xff]
      %v2918 = vld [vmem:[#allocation3 + $0x11] sm:$0xff]
      %v2919 = vld [vmem:[#allocation3 + $0x29] sm:$0xff]
      %v2920 = vld [vmem:[#allocation3 + $0x31] sm:$0xff]
      %v2921 = vld [vmem:[#allocation3 + $0x49] sm:$0xff]
      %v2922 = vld [vmem:[#allocation3 + $0x51] sm:$0xff]
      %v2923 = vld [vmem:[#allocation3 + $0x69] sm:$0xff]
      %v2924 = vld [vmem:[#allocation3 + $0x71] sm:$0xff]
      %v2925 = vld [vmem:[#allocation3 + $0x89] sm:$0xff]
      %v2926 = vld [vmem:[#allocation3 + $0x91] sm:$0xff]
      %v2927 = vld [vmem:[#allocation3 + $0xa9] sm:$0xff]
      %v2928 = vld [vmem:[#allocation3 + $0xb1] sm:$0xff]
      %v2929 = vld [vmem:[#allocation3 + $0xc9] sm:$0xff]
      %v2930 = vld [vmem:[#allocation3 + $0xd1] sm:$0xff]
      %v2931 = vld [vmem:[#allocation3 + $0xe9] sm:$0xff]
      %v2932 = vld [vmem:[#allocation3 + $0xf1] sm:$0xff]
      %v2933 = vld [vmem:[#allocation3 + $0x109] sm:$0xff]
      %v2934 = vld [vmem:[#allocation3 + $0x111] sm:$0xff]
      %v2935 = vld [vmem:[#allocation3 + $0x129] sm:$0xff]
      %v2936 = vld [vmem:[#allocation3 + $0x131] sm:$0xff]
      %v2937 = vld [vmem:[#allocation3 + $0x149] sm:$0xff]
      %v2938 = vld [vmem:[#allocation3 + $0x151] sm:$0xff]
      %v2939 = vld [vmem:[#allocation3 + $0x169] sm:$0xff]
      %v2940 = vld [vmem:[#allocation3 + $0x171] sm:$0xff]
      %v2941 = vld [vmem:[#allocation3 + $0x189] sm:$0xff]
      %v2942 = vld [vmem:[#allocation3 + $0x191] sm:$0xff]
      %v2943 = vld [vmem:[#allocation3 + $0x1a9] sm:$0xff]
      %v2944 = vld [vmem:[#allocation3 + $0x1b1] sm:$0xff]
      %v2945 = vld [vmem:[#allocation3 + $0x1c9] sm:$0xff]
      %v2946 = vld [vmem:[#allocation3 + $0x1d1] sm:$0xff]
      %v2947 = vld [vmem:[#allocation3 + $0x1e9] sm:$0xff]
      %v2948 = vld [vmem:[#allocation3 + $0x1f1] sm:$0xff]
      %v2949 = vmax.f32 %v2885, %v2917
      %v2950 = vmax.f32 %v2886, %v2918
      %v2951 = vmax.f32 %v2887, %v2919
      %v2952 = vmax.f32 %v2888, %v2920
      %v2953 = vmax.f32 %v2889, %v2921
      %v2954 = vmax.f32 %v2890, %v2922
      %v2955 = vmax.f32 %v2891, %v2923
      %v2956 = vmax.f32 %v2892, %v2924
      %v2957 = vmax.f32 %v2893, %v2925
      %v2958 = vmax.f32 %v2894, %v2926
      %v2959 = vmax.f32 %v2895, %v2927
      %v2960 = vmax.f32 %v2896, %v2928
      %v2961 = vmax.f32 %v2897, %v2929
      %v2962 = vmax.f32 %v2898, %v2930
      %v2963 = vmax.f32 %v2899, %v2931
      %v2964 = vmax.f32 %v2900, %v2932
      %v2965 = vmax.f32 %v2901, %v2933
      %v2966 = vmax.f32 %v2902, %v2934
      %v2967 = vmax.f32 %v2903, %v2935
      %v2968 = vmax.f32 %v2904, %v2936
      %v2969 = vmax.f32 %v2905, %v2937
      %v2970 = vmax.f32 %v2906, %v2938
      %v2971 = vmax.f32 %v2907, %v2939
      %v2972 = vmax.f32 %v2908, %v2940
      %v2973 = vmax.f32 %v2909, %v2941
      %v2974 = vmax.f32 %v2910, %v2942
      %v2975 = vmax.f32 %v2911, %v2943
      %v2976 = vmax.f32 %v2912, %v2944
      %v2977 = vmax.f32 %v2913, %v2945
      %v2978 = vmax.f32 %v2914, %v2946
      %v2979 = vmax.f32 %v2915, %v2947
      %v2980 = vmax.f32 %v2916, %v2948
      %v2981 = vld [vmem:[#allocation3 + $0xa] sm:$0xff]
      %v2982 = vld [vmem:[#allocation3 + $0x12] sm:$0xff]
      %v2983 = vld [vmem:[#allocation3 + $0x2a] sm:$0xff]
      %v2984 = vld [vmem:[#allocation3 + $0x32] sm:$0xff]
      %v2985 = vld [vmem:[#allocation3 + $0x4a] sm:$0xff]
      %v2986 = vld [vmem:[#allocation3 + $0x52] sm:$0xff]
      %v2987 = vld [vmem:[#allocation3 + $0x6a] sm:$0xff]
      %v2988 = vld [vmem:[#allocation3 + $0x72] sm:$0xff]
      %v2989 = vld [vmem:[#allocation3 + $0x8a] sm:$0xff]
      %v2990 = vld [vmem:[#allocation3 + $0x92] sm:$0xff]
      %v2991 = vld [vmem:[#allocation3 + $0xaa] sm:$0xff]
      %v2992 = vld [vmem:[#allocation3 + $0xb2] sm:$0xff]
      %v2993 = vld [vmem:[#allocation3 + $0xca] sm:$0xff]
      %v2994 = vld [vmem:[#allocation3 + $0xd2] sm:$0xff]
      %v2995 = vld [vmem:[#allocation3 + $0xea] sm:$0xff]
      %v2996 = vld [vmem:[#allocation3 + $0xf2] sm:$0xff]
      %v2997 = vld [vmem:[#allocation3 + $0x10a] sm:$0xff]
      %v2998 = vld [vmem:[#allocation3 + $0x112] sm:$0xff]
      %v2999 = vld [vmem:[#allocation3 + $0x12a] sm:$0xff]
      %v3000 = vld [vmem:[#allocation3 + $0x132] sm:$0xff]
      %v3001 = vld [vmem:[#allocation3 + $0x14a] sm:$0xff]
      %v3002 = vld [vmem:[#allocation3 + $0x152] sm:$0xff]
      %v3003 = vld [vmem:[#allocation3 + $0x16a] sm:$0xff]
      %v3004 = vld [vmem:[#allocation3 + $0x172] sm:$0xff]
      %v3005 = vld [vmem:[#allocation3 + $0x18a] sm:$0xff]
      %v3006 = vld [vmem:[#allocation3 + $0x192] sm:$0xff]
      %v3007 = vld [vmem:[#allocation3 + $0x1aa] sm:$0xff]
      %v3008 = vld [vmem:[#allocation3 + $0x1b2] sm:$0xff]
      %v3009 = vld [vmem:[#allocation3 + $0x1ca] sm:$0xff]
      %v3010 = vld [vmem:[#allocation3 + $0x1d2] sm:$0xff]
      %v3011 = vld [vmem:[#allocation3 + $0x1ea] sm:$0xff]
      %v3012 = vld [vmem:[#allocation3 + $0x1f2] sm:$0xff]
      %v3013 = vmax.f32 %v2949, %v2981
      %v3014 = vmax.f32 %v2950, %v2982
      %v3015 = vmax.f32 %v2951, %v2983
      %v3016 = vmax.f32 %v2952, %v2984
      %v3017 = vmax.f32 %v2953, %v2985
      %v3018 = vmax.f32 %v2954, %v2986
      %v3019 = vmax.f32 %v2955, %v2987
      %v3020 = vmax.f32 %v2956, %v2988
      %v3021 = vmax.f32 %v2957, %v2989
      %v3022 = vmax.f32 %v2958, %v2990
      %v3023 = vmax.f32 %v2959, %v2991
      %v3024 = vmax.f32 %v2960, %v2992
      %v3025 = vmax.f32 %v2961, %v2993
      %v3026 = vmax.f32 %v2962, %v2994
      %v3027 = vmax.f32 %v2963, %v2995
      %v3028 = vmax.f32 %v2964, %v2996
      %v3029 = vmax.f32 %v2965, %v2997
      %v3030 = vmax.f32 %v2966, %v2998
      %v3031 = vmax.f32 %v2967, %v2999
      %v3032 = vmax.f32 %v2968, %v3000
      %v3033 = vmax.f32 %v2969, %v3001
      %v3034 = vmax.f32 %v2970, %v3002
      %v3035 = vmax.f32 %v2971, %v3003
      %v3036 = vmax.f32 %v2972, %v3004
      %v3037 = vmax.f32 %v2973, %v3005
      %v3038 = vmax.f32 %v2974, %v3006
      %v3039 = vmax.f32 %v2975, %v3007
      %v3040 = vmax.f32 %v2976, %v3008
      %v3041 = vmax.f32 %v2977, %v3009
      %v3042 = vmax.f32 %v2978, %v3010
      %v3043 = vmax.f32 %v2979, %v3011
      %v3044 = vmax.f32 %v2980, %v3012
      %3045 = vst.msk [vmem:[%s2208] sm:$0xff] %vm442, %v3013
      %3046 = vst.msk [vmem:[%s2208 + $0x8] sm:$0xff] %vm442, %v3014
      %3047 = vst.msk [vmem:[%s2208 + $0x10] sm:$0xff] %vm442, %v3015
      %3048 = vst.msk [vmem:[%s2208 + $0x18] sm:$0xff] %vm442, %v3016
      %3049 = vst.msk [vmem:[%s2208 + $0x20] sm:$0xff] %vm442, %v3017
      %3050 = vst.msk [vmem:[%s2208 + $0x28] sm:$0xff] %vm442, %v3018
      %3051 = vst.msk [vmem:[%s2208 + $0x30] sm:$0xff] %vm442, %v3019
      %3052 = vst.msk [vmem:[%s2208 + $0x38] sm:$0xff] %vm442, %v3020
      %3053 = vst.msk [vmem:[%s2208 + $0x40] sm:$0xff] %vm442, %v3021
      %3054 = vst.msk [vmem:[%s2208 + $0x48] sm:$0xff] %vm442, %v3022
      %3055 = vst.msk [vmem:[%s2208 + $0x50] sm:$0xff] %vm442, %v3023
      %3056 = vst.msk [vmem:[%s2208 + $0x58] sm:$0xff] %vm442, %v3024
      %3057 = vst.msk [vmem:[%s2208 + $0x60] sm:$0xff] %vm442, %v3025
      %3058 = vst.msk [vmem:[%s2208 + $0x68] sm:$0xff] %vm442, %v3026
      %3059 = vst.msk [vmem:[%s2208 + $0x70] sm:$0xff] %vm442, %v3027
      %3060 = vst.msk [vmem:[%s2208 + $0x78] sm:$0xff] %vm442, %v3028
      %3061 = vst.msk [vmem:[%s2208 + $0x80] sm:$0xff] %vm442, %v3029
      %3062 = vst.msk [vmem:[%s2208 + $0x88] sm:$0xff] %vm442, %v3030
      %3063 = vst.msk [vmem:[%s2208 + $0x90] sm:$0xff] %vm442, %v3031
      %3064 = vst.msk [vmem:[%s2208 + $0x98] sm:$0xff] %vm442, %v3032
      %3065 = vst.msk [vmem:[%s2208 + $0xa0] sm:$0xff] %vm442, %v3033
      %3066 = vst.msk [vmem:[%s2208 + $0xa8] sm:$0xff] %vm442, %v3034
      %3067 = vst.msk [vmem:[%s2208 + $0xb0] sm:$0xff] %vm442, %v3035
      %3068 = vst.msk [vmem:[%s2208 + $0xb8] sm:$0xff] %vm442, %v3036
      %3069 = vst.msk [vmem:[%s2208 + $0xc0] sm:$0xff] %vm442, %v3037
      %3070 = vst.msk [vmem:[%s2208 + $0xc8] sm:$0xff] %vm442, %v3038
      %3071 = vst.msk [vmem:[%s2208 + $0xd0] sm:$0xff] %vm442, %v3039
      %3072 = vst.msk [vmem:[%s2208 + $0xd8] sm:$0xff] %vm442, %v3040
      %3073 = vst.msk [vmem:[%s2208 + $0xe0] sm:$0xff] %vm442, %v3041
      %3074 = vst.msk [vmem:[%s2208 + $0xe8] sm:$0xff] %vm442, %v3042
      %3075 = vst.msk [vmem:[%s2208 + $0xf0] sm:$0xff] %vm442, %v3043
      %3076 = vst.msk [vmem:[%s2208 + $0xf8] sm:$0xff] %vm442, %v3044
      %v3077 = vld [vmem:[#allocation4] sm:$0xff]
      %v3078 = vld [vmem:[#allocation4 + $0x8] sm:$0xff]
      %v3079 = vld [vmem:[#allocation4 + $0x10] sm:$0xff]
      %v3080 = vld [vmem:[#allocation4 + $0x18] sm:$0xff]
      %v3081 = vld [vmem:[#allocation4 + $0x20] sm:$0xff]
      %v3082 = vld [vmem:[#allocation4 + $0x28] sm:$0xff]
      %v3083 = vld [vmem:[#allocation4 + $0x30] sm:$0xff]
      %v3084 = vld [vmem:[#allocation4 + $0x38] sm:$0xff]
      %v3085 = vld [vmem:[#allocation4 + $0x40] sm:$0xff]
      %v3086 = vld [vmem:[#allocation4 + $0x48] sm:$0xff]
      %v3087 = vld [vmem:[#allocation4 + $0x50] sm:$0xff]
      %v3088 = vld [vmem:[#allocation4 + $0x58] sm:$0xff]
      %v3089 = vld [vmem:[#allocation4 + $0x60] sm:$0xff]
      %v3090 = vld [vmem:[#allocation4 + $0x68] sm:$0xff]
      %v3091 = vld [vmem:[#allocation4 + $0x70] sm:$0xff]
      %v3092 = vld [vmem:[#allocation4 + $0x78] sm:$0xff]
      %v3093 = vld [vmem:[#allocation4 + $0x80] sm:$0xff]
      %v3094 = vld [vmem:[#allocation4 + $0x88] sm:$0xff]
      %v3095 = vld [vmem:[#allocation4 + $0x90] sm:$0xff]
      %v3096 = vld [vmem:[#allocation4 + $0x98] sm:$0xff]
      %v3097 = vld [vmem:[#allocation4 + $0xa0] sm:$0xff]
      %v3098 = vld [vmem:[#allocation4 + $0xa8] sm:$0xff]
      %v3099 = vld [vmem:[#allocation4 + $0xb0] sm:$0xff]
      %v3100 = vld [vmem:[#allocation4 + $0xb8] sm:$0xff]
      %v3101 = vld [vmem:[#allocation4 + $0xc0] sm:$0xff]
      %v3102 = vld [vmem:[#allocation4 + $0xc8] sm:$0xff]
      %v3103 = vld [vmem:[#allocation4 + $0xd0] sm:$0xff]
      %v3104 = vld [vmem:[#allocation4 + $0xd8] sm:$0xff]
      %v3105 = vld [vmem:[#allocation4 + $0xe0] sm:$0xff]
      %v3106 = vld [vmem:[#allocation4 + $0xe8] sm:$0xff]
      %v3107 = vld [vmem:[#allocation4 + $0xf0] sm:$0xff]
      %v3108 = vld [vmem:[#allocation4 + $0xf8] sm:$0xff]
      %v3109 = vld [vmem:[%s2273] sm:$0xff]
      %v3110 = vld [vmem:[%s2273 + $0x8] sm:$0xff]
      %v3111 = vld [vmem:[%s2273 + $0x10] sm:$0xff]
      %v3112 = vld [vmem:[%s2273 + $0x18] sm:$0xff]
      %v3113 = vld [vmem:[%s2273 + $0x20] sm:$0xff]
      %v3114 = vld [vmem:[%s2273 + $0x28] sm:$0xff]
      %v3115 = vld [vmem:[%s2273 + $0x30] sm:$0xff]
      %v3116 = vld [vmem:[%s2273 + $0x38] sm:$0xff]
      %v3117 = vld [vmem:[%s2273 + $0x40] sm:$0xff]
      %v3118 = vld [vmem:[%s2273 + $0x48] sm:$0xff]
      %v3119 = vld [vmem:[%s2273 + $0x50] sm:$0xff]
      %v3120 = vld [vmem:[%s2273 + $0x58] sm:$0xff]
      %v3121 = vld [vmem:[%s2273 + $0x60] sm:$0xff]
      %v3122 = vld [vmem:[%s2273 + $0x68] sm:$0xff]
      %v3123 = vld [vmem:[%s2273 + $0x70] sm:$0xff]
      %v3124 = vld [vmem:[%s2273 + $0x78] sm:$0xff]
      %v3125 = vld [vmem:[%s2273 + $0x80] sm:$0xff]
      %v3126 = vld [vmem:[%s2273 + $0x88] sm:$0xff]
      %v3127 = vld [vmem:[%s2273 + $0x90] sm:$0xff]
      %v3128 = vld [vmem:[%s2273 + $0x98] sm:$0xff]
      %v3129 = vld [vmem:[%s2273 + $0xa0] sm:$0xff]
      %v3130 = vld [vmem:[%s2273 + $0xa8] sm:$0xff]
      %v3131 = vld [vmem:[%s2273 + $0xb0] sm:$0xff]
      %v3132 = vld [vmem:[%s2273 + $0xb8] sm:$0xff]
      %v3133 = vld [vmem:[%s2273 + $0xc0] sm:$0xff]
      %v3134 = vld [vmem:[%s2273 + $0xc8] sm:$0xff]
      %v3135 = vld [vmem:[%s2273 + $0xd0] sm:$0xff]
      %v3136 = vld [vmem:[%s2273 + $0xd8] sm:$0xff]
      %v3137 = vld [vmem:[%s2273 + $0xe0] sm:$0xff]
      %v3138 = vld [vmem:[%s2273 + $0xe8] sm:$0xff]
      %v3139 = vld [vmem:[%s2273 + $0xf0] sm:$0xff]
      %v3140 = vld [vmem:[%s2273 + $0xf8] sm:$0xff]
      %v3141 = vmax.f32 %v3077, %v3109
      %v3142 = vmax.f32 %v3078, %v3110
      %v3143 = vmax.f32 %v3079, %v3111
      %v3144 = vmax.f32 %v3080, %v3112
      %v3145 = vmax.f32 %v3081, %v3113
      %v3146 = vmax.f32 %v3082, %v3114
      %v3147 = vmax.f32 %v3083, %v3115
      %v3148 = vmax.f32 %v3084, %v3116
      %v3149 = vmax.f32 %v3085, %v3117
      %v3150 = vmax.f32 %v3086, %v3118
      %v3151 = vmax.f32 %v3087, %v3119
      %v3152 = vmax.f32 %v3088, %v3120
      %v3153 = vmax.f32 %v3089, %v3121
      %v3154 = vmax.f32 %v3090, %v3122
      %v3155 = vmax.f32 %v3091, %v3123
      %v3156 = vmax.f32 %v3092, %v3124
      %v3157 = vmax.f32 %v3093, %v3125
      %v3158 = vmax.f32 %v3094, %v3126
      %v3159 = vmax.f32 %v3095, %v3127
      %v3160 = vmax.f32 %v3096, %v3128
      %v3161 = vmax.f32 %v3097, %v3129
      %v3162 = vmax.f32 %v3098, %v3130
      %v3163 = vmax.f32 %v3099, %v3131
      %v3164 = vmax.f32 %v3100, %v3132
      %v3165 = vmax.f32 %v3101, %v3133
      %v3166 = vmax.f32 %v3102, %v3134
      %v3167 = vmax.f32 %v3103, %v3135
      %v3168 = vmax.f32 %v3104, %v3136
      %v3169 = vmax.f32 %v3105, %v3137
      %v3170 = vmax.f32 %v3106, %v3138
      %v3171 = vmax.f32 %v3107, %v3139
      %v3172 = vmax.f32 %v3108, %v3140
      %v3173 = vld [vmem:[%s2208] sm:$0xff]
      %v3174 = vld [vmem:[%s2208 + $0x8] sm:$0xff]
      %v3175 = vld [vmem:[%s2208 + $0x10] sm:$0xff]
      %v3176 = vld [vmem:[%s2208 + $0x18] sm:$0xff]
      %v3177 = vld [vmem:[%s2208 + $0x20] sm:$0xff]
      %v3178 = vld [vmem:[%s2208 + $0x28] sm:$0xff]
      %v3179 = vld [vmem:[%s2208 + $0x30] sm:$0xff]
      %v3180 = vld [vmem:[%s2208 + $0x38] sm:$0xff]
      %v3181 = vld [vmem:[%s2208 + $0x40] sm:$0xff]
      %v3182 = vld [vmem:[%s2208 + $0x48] sm:$0xff]
      %v3183 = vld [vmem:[%s2208 + $0x50] sm:$0xff]
      %v3184 = vld [vmem:[%s2208 + $0x58] sm:$0xff]
      %v3185 = vld [vmem:[%s2208 + $0x60] sm:$0xff]
      %v3186 = vld [vmem:[%s2208 + $0x68] sm:$0xff]
      %v3187 = vld [vmem:[%s2208 + $0x70] sm:$0xff]
      %v3188 = vld [vmem:[%s2208 + $0x78] sm:$0xff]
      %v3189 = vld [vmem:[%s2208 + $0x80] sm:$0xff]
      %v3190 = vld [vmem:[%s2208 + $0x88] sm:$0xff]
      %v3191 = vld [vmem:[%s2208 + $0x90] sm:$0xff]
      %v3192 = vld [vmem:[%s2208 + $0x98] sm:$0xff]
      %v3193 = vld [vmem:[%s2208 + $0xa0] sm:$0xff]
      %v3194 = vld [vmem:[%s2208 + $0xa8] sm:$0xff]
      %v3195 = vld [vmem:[%s2208 + $0xb0] sm:$0xff]
      %v3196 = vld [vmem:[%s2208 + $0xb8] sm:$0xff]
      %v3197 = vld [vmem:[%s2208 + $0xc0] sm:$0xff]
      %v3198 = vld [vmem:[%s2208 + $0xc8] sm:$0xff]
      %v3199 = vld [vmem:[%s2208 + $0xd0] sm:$0xff]
      %v3200 = vld [vmem:[%s2208 + $0xd8] sm:$0xff]
      %v3201 = vld [vmem:[%s2208 + $0xe0] sm:$0xff]
      %v3202 = vld [vmem:[%s2208 + $0xe8] sm:$0xff]
      %v3203 = vld [vmem:[%s2208 + $0xf0] sm:$0xff]
      %v3204 = vld [vmem:[%s2208 + $0xf8] sm:$0xff]
      %v3205 = vmax.f32 %v3141, %v3173
      %v3206 = vmax.f32 %v3142, %v3174
      %v3207 = vmax.f32 %v3143, %v3175
      %v3208 = vmax.f32 %v3144, %v3176
      %v3209 = vmax.f32 %v3145, %v3177
      %v3210 = vmax.f32 %v3146, %v3178
      %v3211 = vmax.f32 %v3147, %v3179
      %v3212 = vmax.f32 %v3148, %v3180
      %v3213 = vmax.f32 %v3149, %v3181
      %v3214 = vmax.f32 %v3150, %v3182
      %v3215 = vmax.f32 %v3151, %v3183
      %v3216 = vmax.f32 %v3152, %v3184
      %v3217 = vmax.f32 %v3153, %v3185
      %v3218 = vmax.f32 %v3154, %v3186
      %v3219 = vmax.f32 %v3155, %v3187
      %v3220 = vmax.f32 %v3156, %v3188
      %v3221 = vmax.f32 %v3157, %v3189
      %v3222 = vmax.f32 %v3158, %v3190
      %v3223 = vmax.f32 %v3159, %v3191
      %v3224 = vmax.f32 %v3160, %v3192
      %v3225 = vmax.f32 %v3161, %v3193
      %v3226 = vmax.f32 %v3162, %v3194
      %v3227 = vmax.f32 %v3163, %v3195
      %v3228 = vmax.f32 %v3164, %v3196
      %v3229 = vmax.f32 %v3165, %v3197
      %v3230 = vmax.f32 %v3166, %v3198
      %v3231 = vmax.f32 %v3167, %v3199
      %v3232 = vmax.f32 %v3168, %v3200
      %v3233 = vmax.f32 %v3169, %v3201
      %v3234 = vmax.f32 %v3170, %v3202
      %v3235 = vmax.f32 %v3171, %v3203
      %v3236 = vmax.f32 %v3172, %v3204
      %v3237 = vld [vmem:[%s2402] sm:$0xff]
      %v3238 = vld [vmem:[%s2402 + $0x8] sm:$0xff]
      %v3239 = vld [vmem:[%s2402 + $0x10] sm:$0xff]
      %v3240 = vld [vmem:[%s2402 + $0x18] sm:$0xff]
      %v3241 = vld [vmem:[%s2402 + $0x20] sm:$0xff]
      %v3242 = vld [vmem:[%s2402 + $0x28] sm:$0xff]
      %v3243 = vld [vmem:[%s2402 + $0x30] sm:$0xff]
      %v3244 = vld [vmem:[%s2402 + $0x38] sm:$0xff]
      %v3245 = vld [vmem:[%s2402 + $0x40] sm:$0xff]
      %v3246 = vld [vmem:[%s2402 + $0x48] sm:$0xff]
      %v3247 = vld [vmem:[%s2402 + $0x50] sm:$0xff]
      %v3248 = vld [vmem:[%s2402 + $0x58] sm:$0xff]
      %v3249 = vld [vmem:[%s2402 + $0x60] sm:$0xff]
      %v3250 = vld [vmem:[%s2402 + $0x68] sm:$0xff]
      %v3251 = vld [vmem:[%s2402 + $0x70] sm:$0xff]
      %v3252 = vld [vmem:[%s2402 + $0x78] sm:$0xff]
      %v3253 = vld [vmem:[%s2402 + $0x80] sm:$0xff]
      %v3254 = vld [vmem:[%s2402 + $0x88] sm:$0xff]
      %v3255 = vld [vmem:[%s2402 + $0x90] sm:$0xff]
      %v3256 = vld [vmem:[%s2402 + $0x98] sm:$0xff]
      %v3257 = vld [vmem:[%s2402 + $0xa0] sm:$0xff]
      %v3258 = vld [vmem:[%s2402 + $0xa8] sm:$0xff]
      %v3259 = vld [vmem:[%s2402 + $0xb0] sm:$0xff]
      %v3260 = vld [vmem:[%s2402 + $0xb8] sm:$0xff]
      %v3261 = vld [vmem:[%s2402 + $0xc0] sm:$0xff]
      %v3262 = vld [vmem:[%s2402 + $0xc8] sm:$0xff]
      %v3263 = vld [vmem:[%s2402 + $0xd0] sm:$0xff]
      %v3264 = vld [vmem:[%s2402 + $0xd8] sm:$0xff]
      %v3265 = vld [vmem:[%s2402 + $0xe0] sm:$0xff]
      %v3266 = vld [vmem:[%s2402 + $0xe8] sm:$0xff]
      %v3267 = vld [vmem:[%s2402 + $0xf0] sm:$0xff]
      %v3268 = vld [vmem:[%s2402 + $0xf8] sm:$0xff]
      %v3269 = vmax.f32 %v3205, %v3237
      %v3270 = vmax.f32 %v3206, %v3238
      %v3271 = vmax.f32 %v3207, %v3239
      %v3272 = vmax.f32 %v3208, %v3240
      %v3273 = vmax.f32 %v3209, %v3241
      %v3274 = vmax.f32 %v3210, %v3242
      %v3275 = vmax.f32 %v3211, %v3243
      %v3276 = vmax.f32 %v3212, %v3244
      %v3277 = vmax.f32 %v3213, %v3245
      %v3278 = vmax.f32 %v3214, %v3246
      %v3279 = vmax.f32 %v3215, %v3247
      %v3280 = vmax.f32 %v3216, %v3248
      %v3281 = vmax.f32 %v3217, %v3249
      %v3282 = vmax.f32 %v3218, %v3250
      %v3283 = vmax.f32 %v3219, %v3251
      %v3284 = vmax.f32 %v3220, %v3252
      %v3285 = vmax.f32 %v3221, %v3253
      %v3286 = vmax.f32 %v3222, %v3254
      %v3287 = vmax.f32 %v3223, %v3255
      %v3288 = vmax.f32 %v3224, %v3256
      %v3289 = vmax.f32 %v3225, %v3257
      %v3290 = vmax.f32 %v3226, %v3258
      %v3291 = vmax.f32 %v3227, %v3259
      %v3292 = vmax.f32 %v3228, %v3260
      %v3293 = vmax.f32 %v3229, %v3261
      %v3294 = vmax.f32 %v3230, %v3262
      %v3295 = vmax.f32 %v3231, %v3263
      %v3296 = vmax.f32 %v3232, %v3264
      %v3297 = vmax.f32 %v3233, %v3265
      %v3298 = vmax.f32 %v3234, %v3266
      %v3299 = vmax.f32 %v3235, %v3267
      %v3300 = vmax.f32 %v3236, %v3268
      %v3301 = vld [vmem:[%s2467] sm:$0xff]
      %v3302 = vld [vmem:[%s2467 + $0x8] sm:$0xff]
      %v3303 = vld [vmem:[%s2467 + $0x10] sm:$0xff]
      %v3304 = vld [vmem:[%s2467 + $0x18] sm:$0xff]
      %v3305 = vld [vmem:[%s2467 + $0x20] sm:$0xff]
      %v3306 = vld [vmem:[%s2467 + $0x28] sm:$0xff]
      %v3307 = vld [vmem:[%s2467 + $0x30] sm:$0xff]
      %v3308 = vld [vmem:[%s2467 + $0x38] sm:$0xff]
      %v3309 = vld [vmem:[%s2467 + $0x40] sm:$0xff]
      %v3310 = vld [vmem:[%s2467 + $0x48] sm:$0xff]
      %v3311 = vld [vmem:[%s2467 + $0x50] sm:$0xff]
      %v3312 = vld [vmem:[%s2467 + $0x58] sm:$0xff]
      %v3313 = vld [vmem:[%s2467 + $0x60] sm:$0xff]
      %v3314 = vld [vmem:[%s2467 + $0x68] sm:$0xff]
      %v3315 = vld [vmem:[%s2467 + $0x70] sm:$0xff]
      %v3316 = vld [vmem:[%s2467 + $0x78] sm:$0xff]
      %v3317 = vld [vmem:[%s2467 + $0x80] sm:$0xff]
      %v3318 = vld [vmem:[%s2467 + $0x88] sm:$0xff]
      %v3319 = vld [vmem:[%s2467 + $0x90] sm:$0xff]
      %v3320 = vld [vmem:[%s2467 + $0x98] sm:$0xff]
      %v3321 = vld [vmem:[%s2467 + $0xa0] sm:$0xff]
      %v3322 = vld [vmem:[%s2467 + $0xa8] sm:$0xff]
      %v3323 = vld [vmem:[%s2467 + $0xb0] sm:$0xff]
      %v3324 = vld [vmem:[%s2467 + $0xb8] sm:$0xff]
      %v3325 = vld [vmem:[%s2467 + $0xc0] sm:$0xff]
      %v3326 = vld [vmem:[%s2467 + $0xc8] sm:$0xff]
      %v3327 = vld [vmem:[%s2467 + $0xd0] sm:$0xff]
      %v3328 = vld [vmem:[%s2467 + $0xd8] sm:$0xff]
      %v3329 = vld [vmem:[%s2467 + $0xe0] sm:$0xff]
      %v3330 = vld [vmem:[%s2467 + $0xe8] sm:$0xff]
      %v3331 = vld [vmem:[%s2467 + $0xf0] sm:$0xff]
      %v3332 = vld [vmem:[%s2467 + $0xf8] sm:$0xff]
      %v3333 = vmax.f32 %v3269, %v3301
      %v3334 = vmax.f32 %v3270, %v3302
      %v3335 = vmax.f32 %v3271, %v3303
      %v3336 = vmax.f32 %v3272, %v3304
      %v3337 = vmax.f32 %v3273, %v3305
      %v3338 = vmax.f32 %v3274, %v3306
      %v3339 = vmax.f32 %v3275, %v3307
      %v3340 = vmax.f32 %v3276, %v3308
      %v3341 = vmax.f32 %v3277, %v3309
      %v3342 = vmax.f32 %v3278, %v3310
      %v3343 = vmax.f32 %v3279, %v3311
      %v3344 = vmax.f32 %v3280, %v3312
      %v3345 = vmax.f32 %v3281, %v3313
      %v3346 = vmax.f32 %v3282, %v3314
      %v3347 = vmax.f32 %v3283, %v3315
      %v3348 = vmax.f32 %v3284, %v3316
      %v3349 = vmax.f32 %v3285, %v3317
      %v3350 = vmax.f32 %v3286, %v3318
      %v3351 = vmax.f32 %v3287, %v3319
      %v3352 = vmax.f32 %v3288, %v3320
      %v3353 = vmax.f32 %v3289, %v3321
      %v3354 = vmax.f32 %v3290, %v3322
      %v3355 = vmax.f32 %v3291, %v3323
      %v3356 = vmax.f32 %v3292, %v3324
      %v3357 = vmax.f32 %v3293, %v3325
      %v3358 = vmax.f32 %v3294, %v3326
      %v3359 = vmax.f32 %v3295, %v3327
      %v3360 = vmax.f32 %v3296, %v3328
      %v3361 = vmax.f32 %v3297, %v3329
      %v3362 = vmax.f32 %v3298, %v3330
      %v3363 = vmax.f32 %v3299, %v3331
      %v3364 = vmax.f32 %v3300, %v3332
      %v3365 = vpack.c.bf16 %v3333, %v3333
      %v3366 = vpack.c.bf16 %v3334, %v3334
      %v3367 = vpack.c.bf16 %v3335, %v3335
      %v3368 = vpack.c.bf16 %v3336, %v3336
      %v3369 = vpack.c.bf16 %v3337, %v3337
      %v3370 = vpack.c.bf16 %v3338, %v3338
      %v3371 = vpack.c.bf16 %v3339, %v3339
      %v3372 = vpack.c.bf16 %v3340, %v3340
      %v3373 = vpack.c.bf16 %v3341, %v3341
      %v3374 = vpack.c.bf16 %v3342, %v3342
      %v3375 = vpack.c.bf16 %v3343, %v3343
      %v3376 = vpack.c.bf16 %v3344, %v3344
      %v3377 = vpack.c.bf16 %v3345, %v3345
      %v3378 = vpack.c.bf16 %v3346, %v3346
      %v3379 = vpack.c.bf16 %v3347, %v3347
      %v3380 = vpack.c.bf16 %v3348, %v3348
      %v3381 = vpack.c.bf16 %v3349, %v3349
      %v3382 = vpack.c.bf16 %v3350, %v3350
      %v3383 = vpack.c.bf16 %v3351, %v3351
      %v3384 = vpack.c.bf16 %v3352, %v3352
      %v3385 = vpack.c.bf16 %v3353, %v3353
      %v3386 = vpack.c.bf16 %v3354, %v3354
      %v3387 = vpack.c.bf16 %v3355, %v3355
      %v3388 = vpack.c.bf16 %v3356, %v3356
      %v3389 = vpack.c.bf16 %v3357, %v3357
      %v3390 = vpack.c.bf16 %v3358, %v3358
      %v3391 = vpack.c.bf16 %v3359, %v3359
      %v3392 = vpack.c.bf16 %v3360, %v3360
      %v3393 = vpack.c.bf16 %v3361, %v3361
      %v3394 = vpack.c.bf16 %v3362, %v3362
      %v3395 = vpack.c.bf16 %v3363, %v3363
      %v3396 = vpack.c.bf16 %v3364, %v3364
      %3429 = vrot.lane.b32.xlu0 %v3365, 4
      %v3430 = vpop.permute.xlu0 %3429
      %3431 = vrot.lane.b32.xlu0 %v3366, 4
      %v3432 = vpop.permute.xlu0 %3431
      %3433 = vrot.lane.b32.xlu0 %v3367, 4
      %v3434 = vpop.permute.xlu0 %3433
      %3435 = vrot.lane.b32.xlu0 %v3368, 4
      %v3436 = vpop.permute.xlu0 %3435
      %3437 = vrot.lane.b32.xlu0 %v3369, 4
      %v3438 = vpop.permute.xlu0 %3437
      %3439 = vrot.lane.b32.xlu0 %v3370, 4
      %v3440 = vpop.permute.xlu0 %3439
      %3441 = vrot.lane.b32.xlu0 %v3371, 4
      %v3442 = vpop.permute.xlu0 %3441
      %3443 = vrot.lane.b32.xlu0 %v3372, 4
      %v3444 = vpop.permute.xlu0 %3443
      %3445 = vrot.lane.b32.xlu0 %v3373, 4
      %v3446 = vpop.permute.xlu0 %3445
      %3447 = vrot.lane.b32.xlu0 %v3374, 4
      %v3448 = vpop.permute.xlu0 %3447
      %3449 = vrot.lane.b32.xlu0 %v3375, 4
      %v3450 = vpop.permute.xlu0 %3449
      %3451 = vrot.lane.b32.xlu0 %v3376, 4
      %v3452 = vpop.permute.xlu0 %3451
      %3453 = vrot.lane.b32.xlu0 %v3377, 4
      %v3454 = vpop.permute.xlu0 %3453
      %3455 = vrot.lane.b32.xlu0 %v3378, 4
      %v3456 = vpop.permute.xlu0 %3455
      %3457 = vrot.lane.b32.xlu0 %v3379, 4
      %v3458 = vpop.permute.xlu0 %3457
      %3459 = vrot.lane.b32.xlu0 %v3380, 4
      %v3460 = vpop.permute.xlu0 %3459
      %3461 = vrot.lane.b32.xlu0 %v3381, 4
      %v3462 = vpop.permute.xlu0 %3461
      %3463 = vrot.lane.b32.xlu0 %v3382, 4
      %v3464 = vpop.permute.xlu0 %3463
      %3465 = vrot.lane.b32.xlu0 %v3383, 4
      %v3466 = vpop.permute.xlu0 %3465
      %3467 = vrot.lane.b32.xlu0 %v3384, 4
      %v3468 = vpop.permute.xlu0 %3467
      %3469 = vrot.lane.b32.xlu0 %v3385, 4
      %v3470 = vpop.permute.xlu0 %3469
      %3471 = vrot.lane.b32.xlu0 %v3386, 4
      %v3472 = vpop.permute.xlu0 %3471
      %3473 = vrot.lane.b32.xlu0 %v3387, 4
      %v3474 = vpop.permute.xlu0 %3473
      %3475 = vrot.lane.b32.xlu0 %v3388, 4
      %v3476 = vpop.permute.xlu0 %3475
      %3477 = vrot.lane.b32.xlu0 %v3389, 4
      %v3478 = vpop.permute.xlu0 %3477
      %3479 = vrot.lane.b32.xlu0 %v3390, 4
      %v3480 = vpop.permute.xlu0 %3479
      %3481 = vrot.lane.b32.xlu0 %v3391, 4
      %v3482 = vpop.permute.xlu0 %3481
      %3483 = vrot.lane.b32.xlu0 %v3392, 4
      %v3484 = vpop.permute.xlu0 %3483
      %3485 = vrot.lane.b32.xlu0 %v3393, 4
      %v3486 = vpop.permute.xlu0 %3485
      %3487 = vrot.lane.b32.xlu0 %v3394, 4
      %v3488 = vpop.permute.xlu0 %3487
      %3489 = vrot.lane.b32.xlu0 %v3395, 4
      %v3490 = vpop.permute.xlu0 %3489
      %3491 = vrot.lane.b32.xlu0 %v3396, 4
      %v3492 = vpop.permute.xlu0 %3491
      %vm3525 = vcmask 44064
      %3526 = vst.msk [vmem:[#allocation6] sm:$0xf] %vm3525, %v3430
      %3527 = vst.msk [vmem:[#allocation6 + $0x4] sm:$0xf] %vm3525, %v3432
      %3528 = vst.msk [vmem:[#allocation6 + $0x8] sm:$0xf] %vm3525, %v3434
      %3529 = vst.msk [vmem:[#allocation6 + $0xc] sm:$0xf] %vm3525, %v3436
      %3530 = vst.msk [vmem:[#allocation6 + $0x10] sm:$0xf] %vm3525, %v3438
      %3531 = vst.msk [vmem:[#allocation6 + $0x14] sm:$0xf] %vm3525, %v3440
      %3532 = vst.msk [vmem:[#allocation6 + $0x18] sm:$0xf] %vm3525, %v3442
      %3533 = vst.msk [vmem:[#allocation6 + $0x1c] sm:$0xf] %vm3525, %v3444
      %3534 = vst.msk [vmem:[#allocation6 + $0x20] sm:$0xf] %vm3525, %v3446
      %3535 = vst.msk [vmem:[#allocation6 + $0x24] sm:$0xf] %vm3525, %v3448
      %3536 = vst.msk [vmem:[#allocation6 + $0x28] sm:$0xf] %vm3525, %v3450
      %3537 = vst.msk [vmem:[#allocation6 + $0x2c] sm:$0xf] %vm3525, %v3452
      %3538 = vst.msk [vmem:[#allocation6 + $0x30] sm:$0xf] %vm3525, %v3454
      %3539 = vst.msk [vmem:[#allocation6 + $0x34] sm:$0xf] %vm3525, %v3456
      %3540 = vst.msk [vmem:[#allocation6 + $0x38] sm:$0xf] %vm3525, %v3458
      %3541 = vst.msk [vmem:[#allocation6 + $0x3c] sm:$0xf] %vm3525, %v3460
      %3542 = vst.msk [vmem:[#allocation6 + $0x40] sm:$0xf] %vm3525, %v3462
      %3543 = vst.msk [vmem:[#allocation6 + $0x44] sm:$0xf] %vm3525, %v3464
      %3544 = vst.msk [vmem:[#allocation6 + $0x48] sm:$0xf] %vm3525, %v3466
      %3545 = vst.msk [vmem:[#allocation6 + $0x4c] sm:$0xf] %vm3525, %v3468
      %3546 = vst.msk [vmem:[#allocation6 + $0x50] sm:$0xf] %vm3525, %v3470
      %3547 = vst.msk [vmem:[#allocation6 + $0x54] sm:$0xf] %vm3525, %v3472
      %3548 = vst.msk [vmem:[#allocation6 + $0x58] sm:$0xf] %vm3525, %v3474
      %3549 = vst.msk [vmem:[#allocation6 + $0x5c] sm:$0xf] %vm3525, %v3476
      %3550 = vst.msk [vmem:[#allocation6 + $0x60] sm:$0xf] %vm3525, %v3478
      %3551 = vst.msk [vmem:[#allocation6 + $0x64] sm:$0xf] %vm3525, %v3480
      %3552 = vst.msk [vmem:[#allocation6 + $0x68] sm:$0xf] %vm3525, %v3482
      %3553 = vst.msk [vmem:[#allocation6 + $0x6c] sm:$0xf] %vm3525, %v3484
      %3554 = vst.msk [vmem:[#allocation6 + $0x70] sm:$0xf] %vm3525, %v3486
      %3555 = vst.msk [vmem:[#allocation6 + $0x74] sm:$0xf] %vm3525, %v3488
      %3556 = vst.msk [vmem:[#allocation6 + $0x78] sm:$0xf] %vm3525, %v3490
      %3557 = vst.msk [vmem:[#allocation6 + $0x7c] sm:$0xf] %vm3525, %v3492
      %3558 = vst.msk [vmem:[#allocation3 + $0x8] sm:$0xff] %vm442, %v3333
      %3559 = vst.msk [vmem:[#allocation3 + $0x10] sm:$0xff] %vm442, %v3334
      %3560 = vst.msk [vmem:[#allocation3 + $0x28] sm:$0xff] %vm442, %v3335
      %3561 = vst.msk [vmem:[#allocation3 + $0x30] sm:$0xff] %vm442, %v3336
      %3562 = vst.msk [vmem:[#allocation3 + $0x48] sm:$0xff] %vm442, %v3337
      %3563 = vst.msk [vmem:[#allocation3 + $0x50] sm:$0xff] %vm442, %v3338
      %3564 = vst.msk [vmem:[#allocation3 + $0x68] sm:$0xff] %vm442, %v3339
      %3565 = vst.msk [vmem:[#allocation3 + $0x70] sm:$0xff] %vm442, %v3340
      %3566 = vst.msk [vmem:[#allocation3 + $0x88] sm:$0xff] %vm442, %v3341
      %3567 = vst.msk [vmem:[#allocation3 + $0x90] sm:$0xff] %vm442, %v3342
      %3568 = vst.msk [vmem:[#allocation3 + $0xa8] sm:$0xff] %vm442, %v3343
      %3569 = vst.msk [vmem:[#allocation3 + $0xb0] sm:$0xff] %vm442, %v3344
      %3570 = vst.msk [vmem:[#allocation3 + $0xc8] sm:$0xff] %vm442, %v3345
      %3571 = vst.msk [vmem:[#allocation3 + $0xd0] sm:$0xff] %vm442, %v3346
      %3572 = vst.msk [vmem:[#allocation3 + $0xe8] sm:$0xff] %vm442, %v3347
      %3573 = vst.msk [vmem:[#allocation3 + $0xf0] sm:$0xff] %vm442, %v3348
      %3574 = vst.msk [vmem:[#allocation3 + $0x108] sm:$0xff] %vm442, %v3349
      %3575 = vst.msk [vmem:[#allocation3 + $0x110] sm:$0xff] %vm442, %v3350
      %3576 = vst.msk [vmem:[#allocation3 + $0x128] sm:$0xff] %vm442, %v3351
      %3577 = vst.msk [vmem:[#allocation3 + $0x130] sm:$0xff] %vm442, %v3352
      %3578 = vst.msk [vmem:[#allocation3 + $0x148] sm:$0xff] %vm442, %v3353
      %3579 = vst.msk [vmem:[#allocation3 + $0x150] sm:$0xff] %vm442, %v3354
      %3580 = vst.msk [vmem:[#allocation3 + $0x168] sm:$0xff] %vm442, %v3355
      %3581 = vst.msk [vmem:[#allocation3 + $0x170] sm:$0xff] %vm442, %v3356
      %3582 = vst.msk [vmem:[#allocation3 + $0x188] sm:$0xff] %vm442, %v3357
      %3583 = vst.msk [vmem:[#allocation3 + $0x190] sm:$0xff] %vm442, %v3358
      %3584 = vst.msk [vmem:[#allocation3 + $0x1a8] sm:$0xff] %vm442, %v3359
      %3585 = vst.msk [vmem:[#allocation3 + $0x1b0] sm:$0xff] %vm442, %v3360
      %3586 = vst.msk [vmem:[#allocation3 + $0x1c8] sm:$0xff] %vm442, %v3361
      %3587 = vst.msk [vmem:[#allocation3 + $0x1d0] sm:$0xff] %vm442, %v3362
      %3588 = vst.msk [vmem:[#allocation3 + $0x1e8] sm:$0xff] %vm442, %v3363
      %3589 = vst.msk [vmem:[#allocation3 + $0x1f0] sm:$0xff] %vm442, %v3364
      %v3590 = vld [vmem:[#allocation3 + $0x6] sm:$0xff]
      %v3591 = vld [vmem:[#allocation3 + $0xe] sm:$0xff]
      %v3592 = vld [vmem:[#allocation3 + $0x26] sm:$0xff]
      %v3593 = vld [vmem:[#allocation3 + $0x2e] sm:$0xff]
      %v3594 = vld [vmem:[#allocation3 + $0x46] sm:$0xff]
      %v3595 = vld [vmem:[#allocation3 + $0x4e] sm:$0xff]
      %v3596 = vld [vmem:[#allocation3 + $0x66] sm:$0xff]
      %v3597 = vld [vmem:[#allocation3 + $0x6e] sm:$0xff]
      %v3598 = vld [vmem:[#allocation3 + $0x86] sm:$0xff]
      %v3599 = vld [vmem:[#allocation3 + $0x8e] sm:$0xff]
      %v3600 = vld [vmem:[#allocation3 + $0xa6] sm:$0xff]
      %v3601 = vld [vmem:[#allocation3 + $0xae] sm:$0xff]
      %v3602 = vld [vmem:[#allocation3 + $0xc6] sm:$0xff]
      %v3603 = vld [vmem:[#allocation3 + $0xce] sm:$0xff]
      %v3604 = vld [vmem:[#allocation3 + $0xe6] sm:$0xff]
      %v3605 = vld [vmem:[#allocation3 + $0xee] sm:$0xff]
      %v3606 = vld [vmem:[#allocation3 + $0x106] sm:$0xff]
      %v3607 = vld [vmem:[#allocation3 + $0x10e] sm:$0xff]
      %v3608 = vld [vmem:[#allocation3 + $0x126] sm:$0xff]
      %v3609 = vld [vmem:[#allocation3 + $0x12e] sm:$0xff]
      %v3610 = vld [vmem:[#allocation3 + $0x146] sm:$0xff]
      %v3611 = vld [vmem:[#allocation3 + $0x14e] sm:$0xff]
      %v3612 = vld [vmem:[#allocation3 + $0x166] sm:$0xff]
      %v3613 = vld [vmem:[#allocation3 + $0x16e] sm:$0xff]
      %v3614 = vld [vmem:[#allocation3 + $0x186] sm:$0xff]
      %v3615 = vld [vmem:[#allocation3 + $0x18e] sm:$0xff]
      %v3616 = vld [vmem:[#allocation3 + $0x1a6] sm:$0xff]
      %v3617 = vld [vmem:[#allocation3 + $0x1ae] sm:$0xff]
      %v3618 = vld [vmem:[#allocation3 + $0x1c6] sm:$0xff]
      %v3619 = vld [vmem:[#allocation3 + $0x1ce] sm:$0xff]
      %v3620 = vld [vmem:[#allocation3 + $0x1e6] sm:$0xff]
      %v3621 = vld [vmem:[#allocation3 + $0x1ee] sm:$0xff]
      %v3622 = vld [vmem:[#allocation3 + $0x7] sm:$0xff]
      %v3623 = vld [vmem:[#allocation3 + $0xf] sm:$0xff]
      %v3624 = vld [vmem:[#allocation3 + $0x27] sm:$0xff]
      %v3625 = vld [vmem:[#allocation3 + $0x2f] sm:$0xff]
      %v3626 = vld [vmem:[#allocation3 + $0x47] sm:$0xff]
      %v3627 = vld [vmem:[#allocation3 + $0x4f] sm:$0xff]
      %v3628 = vld [vmem:[#allocation3 + $0x67] sm:$0xff]
      %v3629 = vld [vmem:[#allocation3 + $0x6f] sm:$0xff]
      %v3630 = vld [vmem:[#allocation3 + $0x87] sm:$0xff]
      %v3631 = vld [vmem:[#allocation3 + $0x8f] sm:$0xff]
      %v3632 = vld [vmem:[#allocation3 + $0xa7] sm:$0xff]
      %v3633 = vld [vmem:[#allocation3 + $0xaf] sm:$0xff]
      %v3634 = vld [vmem:[#allocation3 + $0xc7] sm:$0xff]
      %v3635 = vld [vmem:[#allocation3 + $0xcf] sm:$0xff]
      %v3636 = vld [vmem:[#allocation3 + $0xe7] sm:$0xff]
      %v3637 = vld [vmem:[#allocation3 + $0xef] sm:$0xff]
      %v3638 = vld [vmem:[#allocation3 + $0x107] sm:$0xff]
      %v3639 = vld [vmem:[#allocation3 + $0x10f] sm:$0xff]
      %v3640 = vld [vmem:[#allocation3 + $0x127] sm:$0xff]
      %v3641 = vld [vmem:[#allocation3 + $0x12f] sm:$0xff]
      %v3642 = vld [vmem:[#allocation3 + $0x147] sm:$0xff]
      %v3643 = vld [vmem:[#allocation3 + $0x14f] sm:$0xff]
      %v3644 = vld [vmem:[#allocation3 + $0x167] sm:$0xff]
      %v3645 = vld [vmem:[#allocation3 + $0x16f] sm:$0xff]
      %v3646 = vld [vmem:[#allocation3 + $0x187] sm:$0xff]
      %v3647 = vld [vmem:[#allocation3 + $0x18f] sm:$0xff]
      %v3648 = vld [vmem:[#allocation3 + $0x1a7] sm:$0xff]
      %v3649 = vld [vmem:[#allocation3 + $0x1af] sm:$0xff]
      %v3650 = vld [vmem:[#allocation3 + $0x1c7] sm:$0xff]
      %v3651 = vld [vmem:[#allocation3 + $0x1cf] sm:$0xff]
      %v3652 = vld [vmem:[#allocation3 + $0x1e7] sm:$0xff]
      %v3653 = vld [vmem:[#allocation3 + $0x1ef] sm:$0xff]
      %v3654 = vmax.f32 %v3590, %v3622
      %v3655 = vmax.f32 %v3591, %v3623
      %v3656 = vmax.f32 %v3592, %v3624
      %v3657 = vmax.f32 %v3593, %v3625
      %v3658 = vmax.f32 %v3594, %v3626
      %v3659 = vmax.f32 %v3595, %v3627
      %v3660 = vmax.f32 %v3596, %v3628
      %v3661 = vmax.f32 %v3597, %v3629
      %v3662 = vmax.f32 %v3598, %v3630
      %v3663 = vmax.f32 %v3599, %v3631
      %v3664 = vmax.f32 %v3600, %v3632
      %v3665 = vmax.f32 %v3601, %v3633
      %v3666 = vmax.f32 %v3602, %v3634
      %v3667 = vmax.f32 %v3603, %v3635
      %v3668 = vmax.f32 %v3604, %v3636
      %v3669 = vmax.f32 %v3605, %v3637
      %v3670 = vmax.f32 %v3606, %v3638
      %v3671 = vmax.f32 %v3607, %v3639
      %v3672 = vmax.f32 %v3608, %v3640
      %v3673 = vmax.f32 %v3609, %v3641
      %v3674 = vmax.f32 %v3610, %v3642
      %v3675 = vmax.f32 %v3611, %v3643
      %v3676 = vmax.f32 %v3612, %v3644
      %v3677 = vmax.f32 %v3613, %v3645
      %v3678 = vmax.f32 %v3614, %v3646
      %v3679 = vmax.f32 %v3615, %v3647
      %v3680 = vmax.f32 %v3616, %v3648
      %v3681 = vmax.f32 %v3617, %v3649
      %v3682 = vmax.f32 %v3618, %v3650
      %v3683 = vmax.f32 %v3619, %v3651
      %v3684 = vmax.f32 %v3620, %v3652
      %v3685 = vmax.f32 %v3621, %v3653
      %v3686 = vld [vmem:[#allocation3 + $0x8] sm:$0xff]
      %v3687 = vld [vmem:[#allocation3 + $0x10] sm:$0xff]
      %v3688 = vld [vmem:[#allocation3 + $0x28] sm:$0xff]
      %v3689 = vld [vmem:[#allocation3 + $0x30] sm:$0xff]
      %v3690 = vld [vmem:[#allocation3 + $0x48] sm:$0xff]
      %v3691 = vld [vmem:[#allocation3 + $0x50] sm:$0xff]
      %v3692 = vld [vmem:[#allocation3 + $0x68] sm:$0xff]
      %v3693 = vld [vmem:[#allocation3 + $0x70] sm:$0xff]
      %v3694 = vld [vmem:[#allocation3 + $0x88] sm:$0xff]
      %v3695 = vld [vmem:[#allocation3 + $0x90] sm:$0xff]
      %v3696 = vld [vmem:[#allocation3 + $0xa8] sm:$0xff]
      %v3697 = vld [vmem:[#allocation3 + $0xb0] sm:$0xff]
      %v3698 = vld [vmem:[#allocation3 + $0xc8] sm:$0xff]
      %v3699 = vld [vmem:[#allocation3 + $0xd0] sm:$0xff]
      %v3700 = vld [vmem:[#allocation3 + $0xe8] sm:$0xff]
      %v3701 = vld [vmem:[#allocation3 + $0xf0] sm:$0xff]
      %v3702 = vld [vmem:[#allocation3 + $0x108] sm:$0xff]
      %v3703 = vld [vmem:[#allocation3 + $0x110] sm:$0xff]
      %v3704 = vld [vmem:[#allocation3 + $0x128] sm:$0xff]
      %v3705 = vld [vmem:[#allocation3 + $0x130] sm:$0xff]
      %v3706 = vld [vmem:[#allocation3 + $0x148] sm:$0xff]
      %v3707 = vld [vmem:[#allocation3 + $0x150] sm:$0xff]
      %v3708 = vld [vmem:[#allocation3 + $0x168] sm:$0xff]
      %v3709 = vld [vmem:[#allocation3 + $0x170] sm:$0xff]
      %v3710 = vld [vmem:[#allocation3 + $0x188] sm:$0xff]
      %v3711 = vld [vmem:[#allocation3 + $0x190] sm:$0xff]
      %v3712 = vld [vmem:[#allocation3 + $0x1a8] sm:$0xff]
      %v3713 = vld [vmem:[#allocation3 + $0x1b0] sm:$0xff]
      %v3714 = vld [vmem:[#allocation3 + $0x1c8] sm:$0xff]
      %v3715 = vld [vmem:[#allocation3 + $0x1d0] sm:$0xff]
      %v3716 = vld [vmem:[#allocation3 + $0x1e8] sm:$0xff]
      %v3717 = vld [vmem:[#allocation3 + $0x1f0] sm:$0xff]
      %v3718 = vmax.f32 %v3654, %v3686
      %v3719 = vmax.f32 %v3655, %v3687
      %v3720 = vmax.f32 %v3656, %v3688
      %v3721 = vmax.f32 %v3657, %v3689
      %v3722 = vmax.f32 %v3658, %v3690
      %v3723 = vmax.f32 %v3659, %v3691
      %v3724 = vmax.f32 %v3660, %v3692
      %v3725 = vmax.f32 %v3661, %v3693
      %v3726 = vmax.f32 %v3662, %v3694
      %v3727 = vmax.f32 %v3663, %v3695
      %v3728 = vmax.f32 %v3664, %v3696
      %v3729 = vmax.f32 %v3665, %v3697
      %v3730 = vmax.f32 %v3666, %v3698
      %v3731 = vmax.f32 %v3667, %v3699
      %v3732 = vmax.f32 %v3668, %v3700
      %v3733 = vmax.f32 %v3669, %v3701
      %v3734 = vmax.f32 %v3670, %v3702
      %v3735 = vmax.f32 %v3671, %v3703
      %v3736 = vmax.f32 %v3672, %v3704
      %v3737 = vmax.f32 %v3673, %v3705
      %v3738 = vmax.f32 %v3674, %v3706
      %v3739 = vmax.f32 %v3675, %v3707
      %v3740 = vmax.f32 %v3676, %v3708
      %v3741 = vmax.f32 %v3677, %v3709
      %v3742 = vmax.f32 %v3678, %v3710
      %v3743 = vmax.f32 %v3679, %v3711
      %v3744 = vmax.f32 %v3680, %v3712
      %v3745 = vmax.f32 %v3681, %v3713
      %v3746 = vmax.f32 %v3682, %v3714
      %v3747 = vmax.f32 %v3683, %v3715
      %v3748 = vmax.f32 %v3684, %v3716
      %v3749 = vmax.f32 %v3685, %v3717
      %v3750 = vld [vmem:[#allocation3 + $0x9] sm:$0xff]
      %v3751 = vld [vmem:[#allocation3 + $0x11] sm:$0xff]
      %v3752 = vld [vmem:[#allocation3 + $0x29] sm:$0xff]
      %v3753 = vld [vmem:[#allocation3 + $0x31] sm:$0xff]
      %v3754 = vld [vmem:[#allocation3 + $0x49] sm:$0xff]
      %v3755 = vld [vmem:[#allocation3 + $0x51] sm:$0xff]
      %v3756 = vld [vmem:[#allocation3 + $0x69] sm:$0xff]
      %v3757 = vld [vmem:[#allocation3 + $0x71] sm:$0xff]
      %v3758 = vld [vmem:[#allocation3 + $0x89] sm:$0xff]
      %v3759 = vld [vmem:[#allocation3 + $0x91] sm:$0xff]
      %v3760 = vld [vmem:[#allocation3 + $0xa9] sm:$0xff]
      %v3761 = vld [vmem:[#allocation3 + $0xb1] sm:$0xff]
      %v3762 = vld [vmem:[#allocation3 + $0xc9] sm:$0xff]
      %v3763 = vld [vmem:[#allocation3 + $0xd1] sm:$0xff]
      %v3764 = vld [vmem:[#allocation3 + $0xe9] sm:$0xff]
      %v3765 = vld [vmem:[#allocation3 + $0xf1] sm:$0xff]
      %v3766 = vld [vmem:[#allocation3 + $0x109] sm:$0xff]
      %v3767 = vld [vmem:[#allocation3 + $0x111] sm:$0xff]
      %v3768 = vld [vmem:[#allocation3 + $0x129] sm:$0xff]
      %v3769 = vld [vmem:[#allocation3 + $0x131] sm:$0xff]
      %v3770 = vld [vmem:[#allocation3 + $0x149] sm:$0xff]
      %v3771 = vld [vmem:[#allocation3 + $0x151] sm:$0xff]
      %v3772 = vld [vmem:[#allocation3 + $0x169] sm:$0xff]
      %v3773 = vld [vmem:[#allocation3 + $0x171] sm:$0xff]
      %v3774 = vld [vmem:[#allocation3 + $0x189] sm:$0xff]
      %v3775 = vld [vmem:[#allocation3 + $0x191] sm:$0xff]
      %v3776 = vld [vmem:[#allocation3 + $0x1a9] sm:$0xff]
      %v3777 = vld [vmem:[#allocation3 + $0x1b1] sm:$0xff]
      %v3778 = vld [vmem:[#allocation3 + $0x1c9] sm:$0xff]
      %v3779 = vld [vmem:[#allocation3 + $0x1d1] sm:$0xff]
      %v3780 = vld [vmem:[#allocation3 + $0x1e9] sm:$0xff]
      %v3781 = vld [vmem:[#allocation3 + $0x1f1] sm:$0xff]
      %v3782 = vmax.f32 %v3718, %v3750
      %v3783 = vmax.f32 %v3719, %v3751
      %v3784 = vmax.f32 %v3720, %v3752
      %v3785 = vmax.f32 %v3721, %v3753
      %v3786 = vmax.f32 %v3722, %v3754
      %v3787 = vmax.f32 %v3723, %v3755
      %v3788 = vmax.f32 %v3724, %v3756
      %v3789 = vmax.f32 %v3725, %v3757
      %v3790 = vmax.f32 %v3726, %v3758
      %v3791 = vmax.f32 %v3727, %v3759
      %v3792 = vmax.f32 %v3728, %v3760
      %v3793 = vmax.f32 %v3729, %v3761
      %v3794 = vmax.f32 %v3730, %v3762
      %v3795 = vmax.f32 %v3731, %v3763
      %v3796 = vmax.f32 %v3732, %v3764
      %v3797 = vmax.f32 %v3733, %v3765
      %v3798 = vmax.f32 %v3734, %v3766
      %v3799 = vmax.f32 %v3735, %v3767
      %v3800 = vmax.f32 %v3736, %v3768
      %v3801 = vmax.f32 %v3737, %v3769
      %v3802 = vmax.f32 %v3738, %v3770
      %v3803 = vmax.f32 %v3739, %v3771
      %v3804 = vmax.f32 %v3740, %v3772
      %v3805 = vmax.f32 %v3741, %v3773
      %v3806 = vmax.f32 %v3742, %v3774
      %v3807 = vmax.f32 %v3743, %v3775
      %v3808 = vmax.f32 %v3744, %v3776
      %v3809 = vmax.f32 %v3745, %v3777
      %v3810 = vmax.f32 %v3746, %v3778
      %v3811 = vmax.f32 %v3747, %v3779
      %v3812 = vmax.f32 %v3748, %v3780
      %v3813 = vmax.f32 %v3749, %v3781
      %v3814 = vld [vmem:[#allocation3 + $0xa] sm:$0xff]
      %v3815 = vld [vmem:[#allocation3 + $0x12] sm:$0xff]
      %v3816 = vld [vmem:[#allocation3 + $0x2a] sm:$0xff]
      %v3817 = vld [vmem:[#allocation3 + $0x32] sm:$0xff]
      %v3818 = vld [vmem:[#allocation3 + $0x4a] sm:$0xff]
      %v3819 = vld [vmem:[#allocation3 + $0x52] sm:$0xff]
      %v3820 = vld [vmem:[#allocation3 + $0x6a] sm:$0xff]
      %v3821 = vld [vmem:[#allocation3 + $0x72] sm:$0xff]
      %v3822 = vld [vmem:[#allocation3 + $0x8a] sm:$0xff]
      %v3823 = vld [vmem:[#allocation3 + $0x92] sm:$0xff]
      %v3824 = vld [vmem:[#allocation3 + $0xaa] sm:$0xff]
      %v3825 = vld [vmem:[#allocation3 + $0xb2] sm:$0xff]
      %v3826 = vld [vmem:[#allocation3 + $0xca] sm:$0xff]
      %v3827 = vld [vmem:[#allocation3 + $0xd2] sm:$0xff]
      %v3828 = vld [vmem:[#allocation3 + $0xea] sm:$0xff]
      %v3829 = vld [vmem:[#allocation3 + $0xf2] sm:$0xff]
      %v3830 = vld [vmem:[#allocation3 + $0x10a] sm:$0xff]
      %v3831 = vld [vmem:[#allocation3 + $0x112] sm:$0xff]
      %v3832 = vld [vmem:[#allocation3 + $0x12a] sm:$0xff]
      %v3833 = vld [vmem:[#allocation3 + $0x132] sm:$0xff]
      %v3834 = vld [vmem:[#allocation3 + $0x14a] sm:$0xff]
      %v3835 = vld [vmem:[#allocation3 + $0x152] sm:$0xff]
      %v3836 = vld [vmem:[#allocation3 + $0x16a] sm:$0xff]
      %v3837 = vld [vmem:[#allocation3 + $0x172] sm:$0xff]
      %v3838 = vld [vmem:[#allocation3 + $0x18a] sm:$0xff]
      %v3839 = vld [vmem:[#allocation3 + $0x192] sm:$0xff]
      %v3840 = vld [vmem:[#allocation3 + $0x1aa] sm:$0xff]
      %v3841 = vld [vmem:[#allocation3 + $0x1b2] sm:$0xff]
      %v3842 = vld [vmem:[#allocation3 + $0x1ca] sm:$0xff]
      %v3843 = vld [vmem:[#allocation3 + $0x1d2] sm:$0xff]
      %v3844 = vld [vmem:[#allocation3 + $0x1ea] sm:$0xff]
      %v3845 = vld [vmem:[#allocation3 + $0x1f2] sm:$0xff]
      %v3846 = vmax.f32 %v3782, %v3814
      %v3847 = vmax.f32 %v3783, %v3815
      %v3848 = vmax.f32 %v3784, %v3816
      %v3849 = vmax.f32 %v3785, %v3817
      %v3850 = vmax.f32 %v3786, %v3818
      %v3851 = vmax.f32 %v3787, %v3819
      %v3852 = vmax.f32 %v3788, %v3820
      %v3853 = vmax.f32 %v3789, %v3821
      %v3854 = vmax.f32 %v3790, %v3822
      %v3855 = vmax.f32 %v3791, %v3823
      %v3856 = vmax.f32 %v3792, %v3824
      %v3857 = vmax.f32 %v3793, %v3825
      %v3858 = vmax.f32 %v3794, %v3826
      %v3859 = vmax.f32 %v3795, %v3827
      %v3860 = vmax.f32 %v3796, %v3828
      %v3861 = vmax.f32 %v3797, %v3829
      %v3862 = vmax.f32 %v3798, %v3830
      %v3863 = vmax.f32 %v3799, %v3831
      %v3864 = vmax.f32 %v3800, %v3832
      %v3865 = vmax.f32 %v3801, %v3833
      %v3866 = vmax.f32 %v3802, %v3834
      %v3867 = vmax.f32 %v3803, %v3835
      %v3868 = vmax.f32 %v3804, %v3836
      %v3869 = vmax.f32 %v3805, %v3837
      %v3870 = vmax.f32 %v3806, %v3838
      %v3871 = vmax.f32 %v3807, %v3839
      %v3872 = vmax.f32 %v3808, %v3840
      %v3873 = vmax.f32 %v3809, %v3841
      %v3874 = vmax.f32 %v3810, %v3842
      %v3875 = vmax.f32 %v3811, %v3843
      %v3876 = vmax.f32 %v3812, %v3844
      %v3877 = vmax.f32 %v3813, %v3845
      %3878 = vst.msk [vmem:[%s2208] sm:$0xff] %vm442, %v3846
      %3879 = vst.msk [vmem:[%s2208 + $0x8] sm:$0xff] %vm442, %v3847
      %3880 = vst.msk [vmem:[%s2208 + $0x10] sm:$0xff] %vm442, %v3848
      %3881 = vst.msk [vmem:[%s2208 + $0x18] sm:$0xff] %vm442, %v3849
      %3882 = vst.msk [vmem:[%s2208 + $0x20] sm:$0xff] %vm442, %v3850
      %3883 = vst.msk [vmem:[%s2208 + $0x28] sm:$0xff] %vm442, %v3851
      %3884 = vst.msk [vmem:[%s2208 + $0x30] sm:$0xff] %vm442, %v3852
      %3885 = vst.msk [vmem:[%s2208 + $0x38] sm:$0xff] %vm442, %v3853
      %3886 = vst.msk [vmem:[%s2208 + $0x40] sm:$0xff] %vm442, %v3854
      %3887 = vst.msk [vmem:[%s2208 + $0x48] sm:$0xff] %vm442, %v3855
      %3888 = vst.msk [vmem:[%s2208 + $0x50] sm:$0xff] %vm442, %v3856
      %3889 = vst.msk [vmem:[%s2208 + $0x58] sm:$0xff] %vm442, %v3857
      %3890 = vst.msk [vmem:[%s2208 + $0x60] sm:$0xff] %vm442, %v3858
      %3891 = vst.msk [vmem:[%s2208 + $0x68] sm:$0xff] %vm442, %v3859
      %3892 = vst.msk [vmem:[%s2208 + $0x70] sm:$0xff] %vm442, %v3860
      %3893 = vst.msk [vmem:[%s2208 + $0x78] sm:$0xff] %vm442, %v3861
      %3894 = vst.msk [vmem:[%s2208 + $0x80] sm:$0xff] %vm442, %v3862
      %3895 = vst.msk [vmem:[%s2208 + $0x88] sm:$0xff] %vm442, %v3863
      %3896 = vst.msk [vmem:[%s2208 + $0x90] sm:$0xff] %vm442, %v3864
      %3897 = vst.msk [vmem:[%s2208 + $0x98] sm:$0xff] %vm442, %v3865
      %3898 = vst.msk [vmem:[%s2208 + $0xa0] sm:$0xff] %vm442, %v3866
      %3899 = vst.msk [vmem:[%s2208 + $0xa8] sm:$0xff] %vm442, %v3867
      %3900 = vst.msk [vmem:[%s2208 + $0xb0] sm:$0xff] %vm442, %v3868
      %3901 = vst.msk [vmem:[%s2208 + $0xb8] sm:$0xff] %vm442, %v3869
      %3902 = vst.msk [vmem:[%s2208 + $0xc0] sm:$0xff] %vm442, %v3870
      %3903 = vst.msk [vmem:[%s2208 + $0xc8] sm:$0xff] %vm442, %v3871
      %3904 = vst.msk [vmem:[%s2208 + $0xd0] sm:$0xff] %vm442, %v3872
      %3905 = vst.msk [vmem:[%s2208 + $0xd8] sm:$0xff] %vm442, %v3873
      %3906 = vst.msk [vmem:[%s2208 + $0xe0] sm:$0xff] %vm442, %v3874
      %3907 = vst.msk [vmem:[%s2208 + $0xe8] sm:$0xff] %vm442, %v3875
      %3908 = vst.msk [vmem:[%s2208 + $0xf0] sm:$0xff] %vm442, %v3876
      %3909 = vst.msk [vmem:[%s2208 + $0xf8] sm:$0xff] %vm442, %v3877
      %v3910 = vld [vmem:[#allocation4] sm:$0xff]
      %v3911 = vld [vmem:[#allocation4 + $0x8] sm:$0xff]
      %v3912 = vld [vmem:[#allocation4 + $0x10] sm:$0xff]
      %v3913 = vld [vmem:[#allocation4 + $0x18] sm:$0xff]
      %v3914 = vld [vmem:[#allocation4 + $0x20] sm:$0xff]
      %v3915 = vld [vmem:[#allocation4 + $0x28] sm:$0xff]
      %v3916 = vld [vmem:[#allocation4 + $0x30] sm:$0xff]
      %v3917 = vld [vmem:[#allocation4 + $0x38] sm:$0xff]
      %v3918 = vld [vmem:[#allocation4 + $0x40] sm:$0xff]
      %v3919 = vld [vmem:[#allocation4 + $0x48] sm:$0xff]
      %v3920 = vld [vmem:[#allocation4 + $0x50] sm:$0xff]
      %v3921 = vld [vmem:[#allocation4 + $0x58] sm:$0xff]
      %v3922 = vld [vmem:[#allocation4 + $0x60] sm:$0xff]
      %v3923 = vld [vmem:[#allocation4 + $0x68] sm:$0xff]
      %v3924 = vld [vmem:[#allocation4 + $0x70] sm:$0xff]
      %v3925 = vld [vmem:[#allocation4 + $0x78] sm:$0xff]
      %v3926 = vld [vmem:[#allocation4 + $0x80] sm:$0xff]
      %v3927 = vld [vmem:[#allocation4 + $0x88] sm:$0xff]
      %v3928 = vld [vmem:[#allocation4 + $0x90] sm:$0xff]
      %v3929 = vld [vmem:[#allocation4 + $0x98] sm:$0xff]
      %v3930 = vld [vmem:[#allocation4 + $0xa0] sm:$0xff]
      %v3931 = vld [vmem:[#allocation4 + $0xa8] sm:$0xff]
      %v3932 = vld [vmem:[#allocation4 + $0xb0] sm:$0xff]
      %v3933 = vld [vmem:[#allocation4 + $0xb8] sm:$0xff]
      %v3934 = vld [vmem:[#allocation4 + $0xc0] sm:$0xff]
      %v3935 = vld [vmem:[#allocation4 + $0xc8] sm:$0xff]
      %v3936 = vld [vmem:[#allocation4 + $0xd0] sm:$0xff]
      %v3937 = vld [vmem:[#allocation4 + $0xd8] sm:$0xff]
      %v3938 = vld [vmem:[#allocation4 + $0xe0] sm:$0xff]
      %v3939 = vld [vmem:[#allocation4 + $0xe8] sm:$0xff]
      %v3940 = vld [vmem:[#allocation4 + $0xf0] sm:$0xff]
      %v3941 = vld [vmem:[#allocation4 + $0xf8] sm:$0xff]
      %v3942 = vld [vmem:[%s2273] sm:$0xff]
      %v3943 = vld [vmem:[%s2273 + $0x8] sm:$0xff]
      %v3944 = vld [vmem:[%s2273 + $0x10] sm:$0xff]
      %v3945 = vld [vmem:[%s2273 + $0x18] sm:$0xff]
      %v3946 = vld [vmem:[%s2273 + $0x20] sm:$0xff]
      %v3947 = vld [vmem:[%s2273 + $0x28] sm:$0xff]
      %v3948 = vld [vmem:[%s2273 + $0x30] sm:$0xff]
      %v3949 = vld [vmem:[%s2273 + $0x38] sm:$0xff]
      %v3950 = vld [vmem:[%s2273 + $0x40] sm:$0xff]
      %v3951 = vld [vmem:[%s2273 + $0x48] sm:$0xff]
      %v3952 = vld [vmem:[%s2273 + $0x50] sm:$0xff]
      %v3953 = vld [vmem:[%s2273 + $0x58] sm:$0xff]
      %v3954 = vld [vmem:[%s2273 + $0x60] sm:$0xff]
      %v3955 = vld [vmem:[%s2273 + $0x68] sm:$0xff]
      %v3956 = vld [vmem:[%s2273 + $0x70] sm:$0xff]
      %v3957 = vld [vmem:[%s2273 + $0x78] sm:$0xff]
      %v3958 = vld [vmem:[%s2273 + $0x80] sm:$0xff]
      %v3959 = vld [vmem:[%s2273 + $0x88] sm:$0xff]
      %v3960 = vld [vmem:[%s2273 + $0x90] sm:$0xff]
      %v3961 = vld [vmem:[%s2273 + $0x98] sm:$0xff]
      %v3962 = vld [vmem:[%s2273 + $0xa0] sm:$0xff]
      %v3963 = vld [vmem:[%s2273 + $0xa8] sm:$0xff]
      %v3964 = vld [vmem:[%s2273 + $0xb0] sm:$0xff]
      %v3965 = vld [vmem:[%s2273 + $0xb8] sm:$0xff]
      %v3966 = vld [vmem:[%s2273 + $0xc0] sm:$0xff]
      %v3967 = vld [vmem:[%s2273 + $0xc8] sm:$0xff]
      %v3968 = vld [vmem:[%s2273 + $0xd0] sm:$0xff]
      %v3969 = vld [vmem:[%s2273 + $0xd8] sm:$0xff]
      %v3970 = vld [vmem:[%s2273 + $0xe0] sm:$0xff]
      %v3971 = vld [vmem:[%s2273 + $0xe8] sm:$0xff]
      %v3972 = vld [vmem:[%s2273 + $0xf0] sm:$0xff]
      %v3973 = vld [vmem:[%s2273 + $0xf8] sm:$0xff]
      %v3974 = vmax.f32 %v3910, %v3942
      %v3975 = vmax.f32 %v3911, %v3943
      %v3976 = vmax.f32 %v3912, %v3944
      %v3977 = vmax.f32 %v3913, %v3945
      %v3978 = vmax.f32 %v3914, %v3946
      %v3979 = vmax.f32 %v3915, %v3947
      %v3980 = vmax.f32 %v3916, %v3948
      %v3981 = vmax.f32 %v3917, %v3949
      %v3982 = vmax.f32 %v3918, %v3950
      %v3983 = vmax.f32 %v3919, %v3951
      %v3984 = vmax.f32 %v3920, %v3952
      %v3985 = vmax.f32 %v3921, %v3953
      %v3986 = vmax.f32 %v3922, %v3954
      %v3987 = vmax.f32 %v3923, %v3955
      %v3988 = vmax.f32 %v3924, %v3956
      %v3989 = vmax.f32 %v3925, %v3957
      %v3990 = vmax.f32 %v3926, %v3958
      %v3991 = vmax.f32 %v3927, %v3959
      %v3992 = vmax.f32 %v3928, %v3960
      %v3993 = vmax.f32 %v3929, %v3961
      %v3994 = vmax.f32 %v3930, %v3962
      %v3995 = vmax.f32 %v3931, %v3963
      %v3996 = vmax.f32 %v3932, %v3964
      %v3997 = vmax.f32 %v3933, %v3965
      %v3998 = vmax.f32 %v3934, %v3966
      %v3999 = vmax.f32 %v3935, %v3967
      %v4000 = vmax.f32 %v3936, %v3968
      %v4001 = vmax.f32 %v3937, %v3969
      %v4002 = vmax.f32 %v3938, %v3970
      %v4003 = vmax.f32 %v3939, %v3971
      %v4004 = vmax.f32 %v3940, %v3972
      %v4005 = vmax.f32 %v3941, %v3973
      %v4006 = vld [vmem:[%s2208] sm:$0xff]
      %v4007 = vld [vmem:[%s2208 + $0x8] sm:$0xff]
      %v4008 = vld [vmem:[%s2208 + $0x10] sm:$0xff]
      %v4009 = vld [vmem:[%s2208 + $0x18] sm:$0xff]
      %v4010 = vld [vmem:[%s2208 + $0x20] sm:$0xff]
      %v4011 = vld [vmem:[%s2208 + $0x28] sm:$0xff]
      %v4012 = vld [vmem:[%s2208 + $0x30] sm:$0xff]
      %v4013 = vld [vmem:[%s2208 + $0x38] sm:$0xff]
      %v4014 = vld [vmem:[%s2208 + $0x40] sm:$0xff]
      %v4015 = vld [vmem:[%s2208 + $0x48] sm:$0xff]
      %v4016 = vld [vmem:[%s2208 + $0x50] sm:$0xff]
      %v4017 = vld [vmem:[%s2208 + $0x58] sm:$0xff]
      %v4018 = vld [vmem:[%s2208 + $0x60] sm:$0xff]
      %v4019 = vld [vmem:[%s2208 + $0x68] sm:$0xff]
      %v4020 = vld [vmem:[%s2208 + $0x70] sm:$0xff]
      %v4021 = vld [vmem:[%s2208 + $0x78] sm:$0xff]
      %v4022 = vld [vmem:[%s2208 + $0x80] sm:$0xff]
      %v4023 = vld [vmem:[%s2208 + $0x88] sm:$0xff]
      %v4024 = vld [vmem:[%s2208 + $0x90] sm:$0xff]
      %v4025 = vld [vmem:[%s2208 + $0x98] sm:$0xff]
      %v4026 = vld [vmem:[%s2208 + $0xa0] sm:$0xff]
      %v4027 = vld [vmem:[%s2208 + $0xa8] sm:$0xff]
      %v4028 = vld [vmem:[%s2208 + $0xb0] sm:$0xff]
      %v4029 = vld [vmem:[%s2208 + $0xb8] sm:$0xff]
      %v4030 = vld [vmem:[%s2208 + $0xc0] sm:$0xff]
      %v4031 = vld [vmem:[%s2208 + $0xc8] sm:$0xff]
      %v4032 = vld [vmem:[%s2208 + $0xd0] sm:$0xff]
      %v4033 = vld [vmem:[%s2208 + $0xd8] sm:$0xff]
      %v4034 = vld [vmem:[%s2208 + $0xe0] sm:$0xff]
      %v4035 = vld [vmem:[%s2208 + $0xe8] sm:$0xff]
      %v4036 = vld [vmem:[%s2208 + $0xf0] sm:$0xff]
      %v4037 = vld [vmem:[%s2208 + $0xf8] sm:$0xff]
      %v4038 = vmax.f32 %v3974, %v4006
      %v4039 = vmax.f32 %v3975, %v4007
      %v4040 = vmax.f32 %v3976, %v4008
      %v4041 = vmax.f32 %v3977, %v4009
      %v4042 = vmax.f32 %v3978, %v4010
      %v4043 = vmax.f32 %v3979, %v4011
      %v4044 = vmax.f32 %v3980, %v4012
      %v4045 = vmax.f32 %v3981, %v4013
      %v4046 = vmax.f32 %v3982, %v4014
      %v4047 = vmax.f32 %v3983, %v4015
      %v4048 = vmax.f32 %v3984, %v4016
      %v4049 = vmax.f32 %v3985, %v4017
      %v4050 = vmax.f32 %v3986, %v4018
      %v4051 = vmax.f32 %v3987, %v4019
      %v4052 = vmax.f32 %v3988, %v4020
      %v4053 = vmax.f32 %v3989, %v4021
      %v4054 = vmax.f32 %v3990, %v4022
      %v4055 = vmax.f32 %v3991, %v4023
      %v4056 = vmax.f32 %v3992, %v4024
      %v4057 = vmax.f32 %v3993, %v4025
      %v4058 = vmax.f32 %v3994, %v4026
      %v4059 = vmax.f32 %v3995, %v4027
      %v4060 = vmax.f32 %v3996, %v4028
      %v4061 = vmax.f32 %v3997, %v4029
      %v4062 = vmax.f32 %v3998, %v4030
      %v4063 = vmax.f32 %v3999, %v4031
      %v4064 = vmax.f32 %v4000, %v4032
      %v4065 = vmax.f32 %v4001, %v4033
      %v4066 = vmax.f32 %v4002, %v4034
      %v4067 = vmax.f32 %v4003, %v4035
      %v4068 = vmax.f32 %v4004, %v4036
      %v4069 = vmax.f32 %v4005, %v4037
      %v4070 = vld [vmem:[%s2402] sm:$0xff]
      %v4071 = vld [vmem:[%s2402 + $0x8] sm:$0xff]
      %v4072 = vld [vmem:[%s2402 + $0x10] sm:$0xff]
      %v4073 = vld [vmem:[%s2402 + $0x18] sm:$0xff]
      %v4074 = vld [vmem:[%s2402 + $0x20] sm:$0xff]
      %v4075 = vld [vmem:[%s2402 + $0x28] sm:$0xff]
      %v4076 = vld [vmem:[%s2402 + $0x30] sm:$0xff]
      %v4077 = vld [vmem:[%s2402 + $0x38] sm:$0xff]
      %v4078 = vld [vmem:[%s2402 + $0x40] sm:$0xff]
      %v4079 = vld [vmem:[%s2402 + $0x48] sm:$0xff]
      %v4080 = vld [vmem:[%s2402 + $0x50] sm:$0xff]
      %v4081 = vld [vmem:[%s2402 + $0x58] sm:$0xff]
      %v4082 = vld [vmem:[%s2402 + $0x60] sm:$0xff]
      %v4083 = vld [vmem:[%s2402 + $0x68] sm:$0xff]
      %v4084 = vld [vmem:[%s2402 + $0x70] sm:$0xff]
      %v4085 = vld [vmem:[%s2402 + $0x78] sm:$0xff]
      %v4086 = vld [vmem:[%s2402 + $0x80] sm:$0xff]
      %v4087 = vld [vmem:[%s2402 + $0x88] sm:$0xff]
      %v4088 = vld [vmem:[%s2402 + $0x90] sm:$0xff]
      %v4089 = vld [vmem:[%s2402 + $0x98] sm:$0xff]
      %v4090 = vld [vmem:[%s2402 + $0xa0] sm:$0xff]
      %v4091 = vld [vmem:[%s2402 + $0xa8] sm:$0xff]
      %v4092 = vld [vmem:[%s2402 + $0xb0] sm:$0xff]
      %v4093 = vld [vmem:[%s2402 + $0xb8] sm:$0xff]
      %v4094 = vld [vmem:[%s2402 + $0xc0] sm:$0xff]
      %v4095 = vld [vmem:[%s2402 + $0xc8] sm:$0xff]
      %v4096 = vld [vmem:[%s2402 + $0xd0] sm:$0xff]
      %v4097 = vld [vmem:[%s2402 + $0xd8] sm:$0xff]
      %v4098 = vld [vmem:[%s2402 + $0xe0] sm:$0xff]
      %v4099 = vld [vmem:[%s2402 + $0xe8] sm:$0xff]
      %v4100 = vld [vmem:[%s2402 + $0xf0] sm:$0xff]
      %v4101 = vld [vmem:[%s2402 + $0xf8] sm:$0xff]
      %v4102 = vmax.f32 %v4038, %v4070
      %v4103 = vmax.f32 %v4039, %v4071
      %v4104 = vmax.f32 %v4040, %v4072
      %v4105 = vmax.f32 %v4041, %v4073
      %v4106 = vmax.f32 %v4042, %v4074
      %v4107 = vmax.f32 %v4043, %v4075
      %v4108 = vmax.f32 %v4044, %v4076
      %v4109 = vmax.f32 %v4045, %v4077
      %v4110 = vmax.f32 %v4046, %v4078
      %v4111 = vmax.f32 %v4047, %v4079
      %v4112 = vmax.f32 %v4048, %v4080
      %v4113 = vmax.f32 %v4049, %v4081
      %v4114 = vmax.f32 %v4050, %v4082
      %v4115 = vmax.f32 %v4051, %v4083
      %v4116 = vmax.f32 %v4052, %v4084
      %v4117 = vmax.f32 %v4053, %v4085
      %v4118 = vmax.f32 %v4054, %v4086
      %v4119 = vmax.f32 %v4055, %v4087
      %v4120 = vmax.f32 %v4056, %v4088
      %v4121 = vmax.f32 %v4057, %v4089
      %v4122 = vmax.f32 %v4058, %v4090
      %v4123 = vmax.f32 %v4059, %v4091
      %v4124 = vmax.f32 %v4060, %v4092
      %v4125 = vmax.f32 %v4061, %v4093
      %v4126 = vmax.f32 %v4062, %v4094
      %v4127 = vmax.f32 %v4063, %v4095
      %v4128 = vmax.f32 %v4064, %v4096
      %v4129 = vmax.f32 %v4065, %v4097
      %v4130 = vmax.f32 %v4066, %v4098
      %v4131 = vmax.f32 %v4067, %v4099
      %v4132 = vmax.f32 %v4068, %v4100
      %v4133 = vmax.f32 %v4069, %v4101
      %v4134 = vld [vmem:[%s2467] sm:$0xff]
      %v4135 = vld [vmem:[%s2467 + $0x8] sm:$0xff]
      %v4136 = vld [vmem:[%s2467 + $0x10] sm:$0xff]
      %v4137 = vld [vmem:[%s2467 + $0x18] sm:$0xff]
      %v4138 = vld [vmem:[%s2467 + $0x20] sm:$0xff]
      %v4139 = vld [vmem:[%s2467 + $0x28] sm:$0xff]
      %v4140 = vld [vmem:[%s2467 + $0x30] sm:$0xff]
      %v4141 = vld [vmem:[%s2467 + $0x38] sm:$0xff]
      %v4142 = vld [vmem:[%s2467 + $0x40] sm:$0xff]
      %v4143 = vld [vmem:[%s2467 + $0x48] sm:$0xff]
      %v4144 = vld [vmem:[%s2467 + $0x50] sm:$0xff]
      %v4145 = vld [vmem:[%s2467 + $0x58] sm:$0xff]
      %v4146 = vld [vmem:[%s2467 + $0x60] sm:$0xff]
      %v4147 = vld [vmem:[%s2467 + $0x68] sm:$0xff]
      %v4148 = vld [vmem:[%s2467 + $0x70] sm:$0xff]
      %v4149 = vld [vmem:[%s2467 + $0x78] sm:$0xff]
      %v4150 = vld [vmem:[%s2467 + $0x80] sm:$0xff]
      %v4151 = vld [vmem:[%s2467 + $0x88] sm:$0xff]
      %v4152 = vld [vmem:[%s2467 + $0x90] sm:$0xff]
      %v4153 = vld [vmem:[%s2467 + $0x98] sm:$0xff]
      %v4154 = vld [vmem:[%s2467 + $0xa0] sm:$0xff]
      %v4155 = vld [vmem:[%s2467 + $0xa8] sm:$0xff]
      %v4156 = vld [vmem:[%s2467 + $0xb0] sm:$0xff]
      %v4157 = vld [vmem:[%s2467 + $0xb8] sm:$0xff]
      %v4158 = vld [vmem:[%s2467 + $0xc0] sm:$0xff]
      %v4159 = vld [vmem:[%s2467 + $0xc8] sm:$0xff]
      %v4160 = vld [vmem:[%s2467 + $0xd0] sm:$0xff]
      %v4161 = vld [vmem:[%s2467 + $0xd8] sm:$0xff]
      %v4162 = vld [vmem:[%s2467 + $0xe0] sm:$0xff]
      %v4163 = vld [vmem:[%s2467 + $0xe8] sm:$0xff]
      %v4164 = vld [vmem:[%s2467 + $0xf0] sm:$0xff]
      %v4165 = vld [vmem:[%s2467 + $0xf8] sm:$0xff]
      %v4166 = vmax.f32 %v4102, %v4134
      %v4167 = vmax.f32 %v4103, %v4135
      %v4168 = vmax.f32 %v4104, %v4136
      %v4169 = vmax.f32 %v4105, %v4137
      %v4170 = vmax.f32 %v4106, %v4138
      %v4171 = vmax.f32 %v4107, %v4139
      %v4172 = vmax.f32 %v4108, %v4140
      %v4173 = vmax.f32 %v4109, %v4141
      %v4174 = vmax.f32 %v4110, %v4142
      %v4175 = vmax.f32 %v4111, %v4143
      %v4176 = vmax.f32 %v4112, %v4144
      %v4177 = vmax.f32 %v4113, %v4145
      %v4178 = vmax.f32 %v4114, %v4146
      %v4179 = vmax.f32 %v4115, %v4147
      %v4180 = vmax.f32 %v4116, %v4148
      %v4181 = vmax.f32 %v4117, %v4149
      %v4182 = vmax.f32 %v4118, %v4150
      %v4183 = vmax.f32 %v4119, %v4151
      %v4184 = vmax.f32 %v4120, %v4152
      %v4185 = vmax.f32 %v4121, %v4153
      %v4186 = vmax.f32 %v4122, %v4154
      %v4187 = vmax.f32 %v4123, %v4155
      %v4188 = vmax.f32 %v4124, %v4156
      %v4189 = vmax.f32 %v4125, %v4157
      %v4190 = vmax.f32 %v4126, %v4158
      %v4191 = vmax.f32 %v4127, %v4159
      %v4192 = vmax.f32 %v4128, %v4160
      %v4193 = vmax.f32 %v4129, %v4161
      %v4194 = vmax.f32 %v4130, %v4162
      %v4195 = vmax.f32 %v4131, %v4163
      %v4196 = vmax.f32 %v4132, %v4164
      %v4197 = vmax.f32 %v4133, %v4165
      %v4198 = vpack.c.bf16 %v4166, %v4166
      %v4199 = vpack.c.bf16 %v4167, %v4167
      %v4200 = vpack.c.bf16 %v4168, %v4168
      %v4201 = vpack.c.bf16 %v4169, %v4169
      %v4202 = vpack.c.bf16 %v4170, %v4170
      %v4203 = vpack.c.bf16 %v4171, %v4171
      %v4204 = vpack.c.bf16 %v4172, %v4172
      %v4205 = vpack.c.bf16 %v4173, %v4173
      %v4206 = vpack.c.bf16 %v4174, %v4174
      %v4207 = vpack.c.bf16 %v4175, %v4175
      %v4208 = vpack.c.bf16 %v4176, %v4176
      %v4209 = vpack.c.bf16 %v4177, %v4177
      %v4210 = vpack.c.bf16 %v4178, %v4178
      %v4211 = vpack.c.bf16 %v4179, %v4179
      %v4212 = vpack.c.bf16 %v4180, %v4180
      %v4213 = vpack.c.bf16 %v4181, %v4181
      %v4214 = vpack.c.bf16 %v4182, %v4182
      %v4215 = vpack.c.bf16 %v4183, %v4183
      %v4216 = vpack.c.bf16 %v4184, %v4184
      %v4217 = vpack.c.bf16 %v4185, %v4185
      %v4218 = vpack.c.bf16 %v4186, %v4186
      %v4219 = vpack.c.bf16 %v4187, %v4187
      %v4220 = vpack.c.bf16 %v4188, %v4188
      %v4221 = vpack.c.bf16 %v4189, %v4189
      %v4222 = vpack.c.bf16 %v4190, %v4190
      %v4223 = vpack.c.bf16 %v4191, %v4191
      %v4224 = vpack.c.bf16 %v4192, %v4192
      %v4225 = vpack.c.bf16 %v4193, %v4193
      %v4226 = vpack.c.bf16 %v4194, %v4194
      %v4227 = vpack.c.bf16 %v4195, %v4195
      %v4228 = vpack.c.bf16 %v4196, %v4196
      %v4229 = vpack.c.bf16 %v4197, %v4197
      %4262 = vrot.lane.b32.xlu0 %v4198, 6
      %v4263 = vpop.permute.xlu0 %4262
      %4264 = vrot.lane.b32.xlu0 %v4199, 6
      %v4265 = vpop.permute.xlu0 %4264
      %4266 = vrot.lane.b32.xlu0 %v4200, 6
      %v4267 = vpop.permute.xlu0 %4266
      %4268 = vrot.lane.b32.xlu0 %v4201, 6
      %v4269 = vpop.permute.xlu0 %4268
      %4270 = vrot.lane.b32.xlu0 %v4202, 6
      %v4271 = vpop.permute.xlu0 %4270
      %4272 = vrot.lane.b32.xlu0 %v4203, 6
      %v4273 = vpop.permute.xlu0 %4272
      %4274 = vrot.lane.b32.xlu0 %v4204, 6
      %v4275 = vpop.permute.xlu0 %4274
      %4276 = vrot.lane.b32.xlu0 %v4205, 6
      %v4277 = vpop.permute.xlu0 %4276
      %4278 = vrot.lane.b32.xlu0 %v4206, 6
      %v4279 = vpop.permute.xlu0 %4278
      %4280 = vrot.lane.b32.xlu0 %v4207, 6
      %v4281 = vpop.permute.xlu0 %4280
      %4282 = vrot.lane.b32.xlu0 %v4208, 6
      %v4283 = vpop.permute.xlu0 %4282
      %4284 = vrot.lane.b32.xlu0 %v4209, 6
      %v4285 = vpop.permute.xlu0 %4284
      %4286 = vrot.lane.b32.xlu0 %v4210, 6
      %v4287 = vpop.permute.xlu0 %4286
      %4288 = vrot.lane.b32.xlu0 %v4211, 6
      %v4289 = vpop.permute.xlu0 %4288
      %4290 = vrot.lane.b32.xlu0 %v4212, 6
      %v4291 = vpop.permute.xlu0 %4290
      %4292 = vrot.lane.b32.xlu0 %v4213, 6
      %v4293 = vpop.permute.xlu0 %4292
      %4294 = vrot.lane.b32.xlu0 %v4214, 6
      %v4295 = vpop.permute.xlu0 %4294
      %4296 = vrot.lane.b32.xlu0 %v4215, 6
      %v4297 = vpop.permute.xlu0 %4296
      %4298 = vrot.lane.b32.xlu0 %v4216, 6
      %v4299 = vpop.permute.xlu0 %4298
      %4300 = vrot.lane.b32.xlu0 %v4217, 6
      %v4301 = vpop.permute.xlu0 %4300
      %4302 = vrot.lane.b32.xlu0 %v4218, 6
      %v4303 = vpop.permute.xlu0 %4302
      %4304 = vrot.lane.b32.xlu0 %v4219, 6
      %v4305 = vpop.permute.xlu0 %4304
      %4306 = vrot.lane.b32.xlu0 %v4220, 6
      %v4307 = vpop.permute.xlu0 %4306
      %4308 = vrot.lane.b32.xlu0 %v4221, 6
      %v4309 = vpop.permute.xlu0 %4308
      %4310 = vrot.lane.b32.xlu0 %v4222, 6
      %v4311 = vpop.permute.xlu0 %4310
      %4312 = vrot.lane.b32.xlu0 %v4223, 6
      %v4313 = vpop.permute.xlu0 %4312
      %4314 = vrot.lane.b32.xlu0 %v4224, 6
      %v4315 = vpop.permute.xlu0 %4314
      %4316 = vrot.lane.b32.xlu0 %v4225, 6
      %v4317 = vpop.permute.xlu0 %4316
      %4318 = vrot.lane.b32.xlu0 %v4226, 6
      %v4319 = vpop.permute.xlu0 %4318
      %4320 = vrot.lane.b32.xlu0 %v4227, 6
      %v4321 = vpop.permute.xlu0 %4320
      %4322 = vrot.lane.b32.xlu0 %v4228, 6
      %v4323 = vpop.permute.xlu0 %4322
      %4324 = vrot.lane.b32.xlu0 %v4229, 6
      %v4325 = vpop.permute.xlu0 %4324
      %vm4358 = vcmask 60464
      %4359 = vst.msk [vmem:[#allocation6] sm:$0xf] %vm4358, %v4263
      %4360 = vst.msk [vmem:[#allocation6 + $0x4] sm:$0xf] %vm4358, %v4265
      %4361 = vst.msk [vmem:[#allocation6 + $0x8] sm:$0xf] %vm4358, %v4267
      %4362 = vst.msk [vmem:[#allocation6 + $0xc] sm:$0xf] %vm4358, %v4269
      %4363 = vst.msk [vmem:[#allocation6 + $0x10] sm:$0xf] %vm4358, %v4271
      %4364 = vst.msk [vmem:[#allocation6 + $0x14] sm:$0xf] %vm4358, %v4273
      %4365 = vst.msk [vmem:[#allocation6 + $0x18] sm:$0xf] %vm4358, %v4275
      %4366 = vst.msk [vmem:[#allocation6 + $0x1c] sm:$0xf] %vm4358, %v4277
      %4367 = vst.msk [vmem:[#allocation6 + $0x20] sm:$0xf] %vm4358, %v4279
      %4368 = vst.msk [vmem:[#allocation6 + $0x24] sm:$0xf] %vm4358, %v4281
      %4369 = vst.msk [vmem:[#allocation6 + $0x28] sm:$0xf] %vm4358, %v4283
      %4370 = vst.msk [vmem:[#allocation6 + $0x2c] sm:$0xf] %vm4358, %v4285
      %4371 = vst.msk [vmem:[#allocation6 + $0x30] sm:$0xf] %vm4358, %v4287
      %4372 = vst.msk [vmem:[#allocation6 + $0x34] sm:$0xf] %vm4358, %v4289
      %4373 = vst.msk [vmem:[#allocation6 + $0x38] sm:$0xf] %vm4358, %v4291
      %4374 = vst.msk [vmem:[#allocation6 + $0x3c] sm:$0xf] %vm4358, %v4293
      %4375 = vst.msk [vmem:[#allocation6 + $0x40] sm:$0xf] %vm4358, %v4295
      %4376 = vst.msk [vmem:[#allocation6 + $0x44] sm:$0xf] %vm4358, %v4297
      %4377 = vst.msk [vmem:[#allocation6 + $0x48] sm:$0xf] %vm4358, %v4299
      %4378 = vst.msk [vmem:[#allocation6 + $0x4c] sm:$0xf] %vm4358, %v4301
      %4379 = vst.msk [vmem:[#allocation6 + $0x50] sm:$0xf] %vm4358, %v4303
      %4380 = vst.msk [vmem:[#allocation6 + $0x54] sm:$0xf] %vm4358, %v4305
      %4381 = vst.msk [vmem:[#allocation6 + $0x58] sm:$0xf] %vm4358, %v4307
      %4382 = vst.msk [vmem:[#allocation6 + $0x5c] sm:$0xf] %vm4358, %v4309
      %4383 = vst.msk [vmem:[#allocation6 + $0x60] sm:$0xf] %vm4358, %v4311
      %4384 = vst.msk [vmem:[#allocation6 + $0x64] sm:$0xf] %vm4358, %v4313
      %4385 = vst.msk [vmem:[#allocation6 + $0x68] sm:$0xf] %vm4358, %v4315
      %4386 = vst.msk [vmem:[#allocation6 + $0x6c] sm:$0xf] %vm4358, %v4317
      %4387 = vst.msk [vmem:[#allocation6 + $0x70] sm:$0xf] %vm4358, %v4319
      %4388 = vst.msk [vmem:[#allocation6 + $0x74] sm:$0xf] %vm4358, %v4321
      %4389 = vst.msk [vmem:[#allocation6 + $0x78] sm:$0xf] %vm4358, %v4323
      %4390 = vst.msk [vmem:[#allocation6 + $0x7c] sm:$0xf] %vm4358, %v4325
      %v4391 = vld [vmem:[#allocation6] sm:$0xf]
      %v4392 = vld [vmem:[#allocation6 + $0x4] sm:$0xf]
      %v4393 = vld [vmem:[#allocation6 + $0x8] sm:$0xf]
      %v4394 = vld [vmem:[#allocation6 + $0xc] sm:$0xf]
      %v4395 = vld [vmem:[#allocation6 + $0x10] sm:$0xf]
      %v4396 = vld [vmem:[#allocation6 + $0x14] sm:$0xf]
      %v4397 = vld [vmem:[#allocation6 + $0x18] sm:$0xf]
      %v4398 = vld [vmem:[#allocation6 + $0x1c] sm:$0xf]
      %v4399 = vld [vmem:[#allocation6 + $0x20] sm:$0xf]
      %v4400 = vld [vmem:[#allocation6 + $0x24] sm:$0xf]
      %v4401 = vld [vmem:[#allocation6 + $0x28] sm:$0xf]
      %v4402 = vld [vmem:[#allocation6 + $0x2c] sm:$0xf]
      %v4403 = vld [vmem:[#allocation6 + $0x30] sm:$0xf]
      %v4404 = vld [vmem:[#allocation6 + $0x34] sm:$0xf]
      %v4405 = vld [vmem:[#allocation6 + $0x38] sm:$0xf]
      %v4406 = vld [vmem:[#allocation6 + $0x3c] sm:$0xf]
      %v4407 = vld [vmem:[#allocation6 + $0x40] sm:$0xf]
      %v4408 = vld [vmem:[#allocation6 + $0x44] sm:$0xf]
      %v4409 = vld [vmem:[#allocation6 + $0x48] sm:$0xf]
      %v4410 = vld [vmem:[#allocation6 + $0x4c] sm:$0xf]
      %v4411 = vld [vmem:[#allocation6 + $0x50] sm:$0xf]
      %v4412 = vld [vmem:[#allocation6 + $0x54] sm:$0xf]
      %v4413 = vld [vmem:[#allocation6 + $0x58] sm:$0xf]
      %v4414 = vld [vmem:[#allocation6 + $0x5c] sm:$0xf]
      %v4415 = vld [vmem:[#allocation6 + $0x60] sm:$0xf]
      %v4416 = vld [vmem:[#allocation6 + $0x64] sm:$0xf]
      %v4417 = vld [vmem:[#allocation6 + $0x68] sm:$0xf]
      %v4418 = vld [vmem:[#allocation6 + $0x6c] sm:$0xf]
      %v4419 = vld [vmem:[#allocation6 + $0x70] sm:$0xf]
      %v4420 = vld [vmem:[#allocation6 + $0x74] sm:$0xf]
      %v4421 = vld [vmem:[#allocation6 + $0x78] sm:$0xf]
      %v4422 = vld [vmem:[#allocation6 + $0x7c] sm:$0xf]
      %v4423 = vld [vmem:[%s7] sm:$0xf]
      %v4456 = vunpack.c.l.b16 %v4391
      %v4457 = vunpack.c.l.b16 %v4392
      %v4458 = vunpack.c.l.b16 %v4393
      %v4459 = vunpack.c.l.b16 %v4394
      %v4460 = vunpack.c.l.b16 %v4395
      %v4461 = vunpack.c.l.b16 %v4396
      %v4462 = vunpack.c.l.b16 %v4397
      %v4463 = vunpack.c.l.b16 %v4398
      %v4464 = vunpack.c.l.b16 %v4399
      %v4465 = vunpack.c.l.b16 %v4400
      %v4466 = vunpack.c.l.b16 %v4401
      %v4467 = vunpack.c.l.b16 %v4402
      %v4468 = vunpack.c.l.b16 %v4403
      %v4469 = vunpack.c.l.b16 %v4404
      %v4470 = vunpack.c.l.b16 %v4405
      %v4471 = vunpack.c.l.b16 %v4406
      %v4472 = vunpack.c.l.b16 %v4407
      %v4473 = vunpack.c.l.b16 %v4408
      %v4474 = vunpack.c.l.b16 %v4409
      %v4475 = vunpack.c.l.b16 %v4410
      %v4476 = vunpack.c.l.b16 %v4411
      %v4477 = vunpack.c.l.b16 %v4412
      %v4478 = vunpack.c.l.b16 %v4413
      %v4479 = vunpack.c.l.b16 %v4414
      %v4480 = vunpack.c.l.b16 %v4415
      %v4481 = vunpack.c.l.b16 %v4416
      %v4482 = vunpack.c.l.b16 %v4417
      %v4483 = vunpack.c.l.b16 %v4418
      %v4484 = vunpack.c.l.b16 %v4419
      %v4485 = vunpack.c.l.b16 %v4420
      %v4486 = vunpack.c.l.b16 %v4421
      %v4487 = vunpack.c.l.b16 %v4422
      %v4488 = vpack.c.b16 %v4457, %v4456
      %v4489 = vpack.c.b16 %v4459, %v4458
      %v4490 = vpack.c.b16 %v4461, %v4460
      %v4491 = vpack.c.b16 %v4463, %v4462
      %v4492 = vpack.c.b16 %v4465, %v4464
      %v4493 = vpack.c.b16 %v4467, %v4466
      %v4494 = vpack.c.b16 %v4469, %v4468
      %v4495 = vpack.c.b16 %v4471, %v4470
      %v4496 = vpack.c.b16 %v4473, %v4472
      %v4497 = vpack.c.b16 %v4475, %v4474
      %v4498 = vpack.c.b16 %v4477, %v4476
      %v4499 = vpack.c.b16 %v4479, %v4478
      %v4500 = vpack.c.b16 %v4481, %v4480
      %v4501 = vpack.c.b16 %v4483, %v4482
      %v4502 = vpack.c.b16 %v4485, %v4484
      %v4503 = vpack.c.b16 %v4487, %v4486
      %v4505 = vsel %vm489, %v4488, 0
      %v4508 = vsel %vm489, %v4489, 0
      %v4511 = vsel %vm489, %v4490, 0
      %v4514 = vsel %vm489, %v4491, 0
      %v4517 = vsel %vm489, %v4492, 0
      %v4520 = vsel %vm489, %v4493, 0
      %v4523 = vsel %vm489, %v4494, 0
      %v4526 = vsel %vm489, %v4495, 0
      %v4529 = vsel %vm489, %v4496, 0
      %v4532 = vsel %vm489, %v4497, 0
      %v4535 = vsel %vm489, %v4498, 0
      %v4538 = vsel %vm489, %v4499, 0
      %v4541 = vsel %vm489, %v4500, 0
      %v4544 = vsel %vm489, %v4501, 0
      %v4547 = vsel %vm489, %v4502, 0
      %v4550 = vsel %vm489, %v4503, 0
      %vm4552 = vcmask 1043456
      %v4554 = vsel %vm4552, %v4423, 0
      %4556 = vmatpush.bf16.msra.mxu0 0
      %4557 = vmatpush.bf16.msra.mxu0 0
      %4558 = vmatpush.bf16.msra.mxu0 0
      %4559 = vmatpush.bf16.msra.mxu0 0
      %4560 = vmatpush.bf16.msra.mxu0 0
      %4561 = vmatpush.bf16.msra.mxu0 0
      %4562 = vmatpush.bf16.msra.mxu0 0
      %4563 = vmatpush.bf16.msra.mxu0 %v4554
      %4564 = vmatmul.bf16.gmra.mxu0 %v4505
      %v4565 = vpop.f32.mrf.mxu0
      %v4566 = vadd.f32 0.0, %v4565
      %v4567 = vpop.f32.mrf.mxu0
      %v4568 = vadd.f32 0.0, %v4567
      %4569 = vmatmul.bf16.gmra.mxu0 %v4508
      %v4570 = vpop.f32.mrf.mxu0
      %v4571 = vadd.f32 0.0, %v4570
      %v4572 = vpop.f32.mrf.mxu0
      %v4573 = vadd.f32 0.0, %v4572
      %4574 = vmatmul.bf16.gmra.mxu0 %v4511
      %v4575 = vpop.f32.mrf.mxu0
      %v4576 = vadd.f32 0.0, %v4575
      %v4577 = vpop.f32.mrf.mxu0
      %v4578 = vadd.f32 0.0, %v4577
      %4579 = vmatmul.bf16.gmra.mxu0 %v4514
      %v4580 = vpop.f32.mrf.mxu0
      %v4581 = vadd.f32 0.0, %v4580
      %v4582 = vpop.f32.mrf.mxu0
      %v4583 = vadd.f32 0.0, %v4582
      %4584 = vmatmul.bf16.gmra.mxu0 %v4517
      %v4585 = vpop.f32.mrf.mxu0
      %v4586 = vadd.f32 0.0, %v4585
      %v4587 = vpop.f32.mrf.mxu0
      %v4588 = vadd.f32 0.0, %v4587
      %4589 = vmatmul.bf16.gmra.mxu0 %v4520
      %v4590 = vpop.f32.mrf.mxu0
      %v4591 = vadd.f32 0.0, %v4590
      %v4592 = vpop.f32.mrf.mxu0
      %v4593 = vadd.f32 0.0, %v4592
      %4594 = vmatmul.bf16.gmra.mxu0 %v4523
      %v4595 = vpop.f32.mrf.mxu0
      %v4596 = vadd.f32 0.0, %v4595
      %v4597 = vpop.f32.mrf.mxu0
      %v4598 = vadd.f32 0.0, %v4597
      %4599 = vmatmul.bf16.gmra.mxu0 %v4526
      %v4600 = vpop.f32.mrf.mxu0
      %v4601 = vadd.f32 0.0, %v4600
      %v4602 = vpop.f32.mrf.mxu0
      %v4603 = vadd.f32 0.0, %v4602
      %4604 = vmatmul.bf16.gmra.mxu0 %v4529
      %v4605 = vpop.f32.mrf.mxu0
      %v4606 = vadd.f32 0.0, %v4605
      %v4607 = vpop.f32.mrf.mxu0
      %v4608 = vadd.f32 0.0, %v4607
      %4609 = vmatmul.bf16.gmra.mxu0 %v4532
      %v4610 = vpop.f32.mrf.mxu0
      %v4611 = vadd.f32 0.0, %v4610
      %v4612 = vpop.f32.mrf.mxu0
      %v4613 = vadd.f32 0.0, %v4612
      %4614 = vmatmul.bf16.gmra.mxu0 %v4535
      %v4615 = vpop.f32.mrf.mxu0
      %v4616 = vadd.f32 0.0, %v4615
      %v4617 = vpop.f32.mrf.mxu0
      %v4618 = vadd.f32 0.0, %v4617
      %4619 = vmatmul.bf16.gmra.mxu0 %v4538
      %v4620 = vpop.f32.mrf.mxu0
      %v4621 = vadd.f32 0.0, %v4620
      %v4622 = vpop.f32.mrf.mxu0
      %v4623 = vadd.f32 0.0, %v4622
      %4624 = vmatmul.bf16.gmra.mxu0 %v4541
      %v4625 = vpop.f32.mrf.mxu0
      %v4626 = vadd.f32 0.0, %v4625
      %v4627 = vpop.f32.mrf.mxu0
      %v4628 = vadd.f32 0.0, %v4627
      %4629 = vmatmul.bf16.gmra.mxu0 %v4544
      %v4630 = vpop.f32.mrf.mxu0
      %v4631 = vadd.f32 0.0, %v4630
      %v4632 = vpop.f32.mrf.mxu0
      %v4633 = vadd.f32 0.0, %v4632
      %4634 = vmatmul.bf16.gmra.mxu0 %v4547
      %v4635 = vpop.f32.mrf.mxu0
      %v4636 = vadd.f32 0.0, %v4635
      %v4637 = vpop.f32.mrf.mxu0
      %v4638 = vadd.f32 0.0, %v4637
      %4639 = vmatmul.bf16.gmra.mxu0 %v4550
      %v4640 = vpop.f32.mrf.mxu0
      %v4641 = vadd.f32 0.0, %v4640
      %v4642 = vpop.f32.mrf.mxu0
      %v4643 = vadd.f32 0.0, %v4642
      %4644 = vdwg.mxu0
      %v4645 = vld [vmem:[%s8] sm:$0x1]
      %v4647 = vperm.slane %v4645, 0
      %v4649 = vmul.f32 %v4566, %v4647
      %v4650 = vmul.f32 %v4568, %v4647
      %v4651 = vmul.f32 %v4571, %v4647
      %v4652 = vmul.f32 %v4573, %v4647
      %v4653 = vmul.f32 %v4576, %v4647
      %v4654 = vmul.f32 %v4578, %v4647
      %v4655 = vmul.f32 %v4581, %v4647
      %v4656 = vmul.f32 %v4583, %v4647
      %v4657 = vmul.f32 %v4586, %v4647
      %v4658 = vmul.f32 %v4588, %v4647
      %v4659 = vmul.f32 %v4591, %v4647
      %v4660 = vmul.f32 %v4593, %v4647
      %v4661 = vmul.f32 %v4596, %v4647
      %v4662 = vmul.f32 %v4598, %v4647
      %v4663 = vmul.f32 %v4601, %v4647
      %v4664 = vmul.f32 %v4603, %v4647
      %v4665 = vmul.f32 %v4606, %v4647
      %v4666 = vmul.f32 %v4608, %v4647
      %v4667 = vmul.f32 %v4611, %v4647
      %v4668 = vmul.f32 %v4613, %v4647
      %v4669 = vmul.f32 %v4616, %v4647
      %v4670 = vmul.f32 %v4618, %v4647
      %v4671 = vmul.f32 %v4621, %v4647
      %v4672 = vmul.f32 %v4623, %v4647
      %v4673 = vmul.f32 %v4626, %v4647
      %v4674 = vmul.f32 %v4628, %v4647
      %v4675 = vmul.f32 %v4631, %v4647
      %v4676 = vmul.f32 %v4633, %v4647
      %v4677 = vmul.f32 %v4636, %v4647
      %v4678 = vmul.f32 %v4638, %v4647
      %v4679 = vmul.f32 %v4641, %v4647
      %v4680 = vmul.f32 %v4643, %v4647
      %v4681 = vld [vmem:[%s9] sm:$0x1]
      %v4683 = vperm.slane %v4681, 0
      %v4685 = vadd.f32 %v4649, %v4683
      %v4686 = vadd.f32 %v4650, %v4683
      %v4687 = vadd.f32 %v4651, %v4683
      %v4688 = vadd.f32 %v4652, %v4683
      %v4689 = vadd.f32 %v4653, %v4683
      %v4690 = vadd.f32 %v4654, %v4683
      %v4691 = vadd.f32 %v4655, %v4683
      %v4692 = vadd.f32 %v4656, %v4683
      %v4693 = vadd.f32 %v4657, %v4683
      %v4694 = vadd.f32 %v4658, %v4683
      %v4695 = vadd.f32 %v4659, %v4683
      %v4696 = vadd.f32 %v4660, %v4683
      %v4697 = vadd.f32 %v4661, %v4683
      %v4698 = vadd.f32 %v4662, %v4683
      %v4699 = vadd.f32 %v4663, %v4683
      %v4700 = vadd.f32 %v4664, %v4683
      %v4701 = vadd.f32 %v4665, %v4683
      %v4702 = vadd.f32 %v4666, %v4683
      %v4703 = vadd.f32 %v4667, %v4683
      %v4704 = vadd.f32 %v4668, %v4683
      %v4705 = vadd.f32 %v4669, %v4683
      %v4706 = vadd.f32 %v4670, %v4683
      %v4707 = vadd.f32 %v4671, %v4683
      %v4708 = vadd.f32 %v4672, %v4683
      %v4709 = vadd.f32 %v4673, %v4683
      %v4710 = vadd.f32 %v4674, %v4683
      %v4711 = vadd.f32 %v4675, %v4683
      %v4712 = vadd.f32 %v4676, %v4683
      %v4713 = vadd.f32 %v4677, %v4683
      %v4714 = vadd.f32 %v4678, %v4683
      %v4715 = vadd.f32 %v4679, %v4683
      %v4716 = vadd.f32 %v4680, %v4683
      %v4717 = vld [vmem:[%s10] sm:$0x7]
      %v4718 = vld [vmem:[%s10 + $0x4] sm:$0x7]
      %v4719 = vld [vmem:[%s10 + $0x8] sm:$0x7]
      %v4720 = vld [vmem:[%s11] sm:$0x1]
      %v4721 = vld [vmem:[%s12] sm:$0x1]
      %s4722 = scalar_lea.vmem [#allocation5], 32
      %4723 = vst.msk [vmem:[%s4722 + $0x8] sm:$0xff] %vm489, %v4685
      %4724 = vst.msk [vmem:[%s4722 + $0x10] sm:$0xff] %vm489, %v4686
      %4725 = vst.msk [vmem:[%s4722 + $0x28] sm:$0xff] %vm489, %v4687
      %4726 = vst.msk [vmem:[%s4722 + $0x30] sm:$0xff] %vm489, %v4688
      %4727 = vst.msk [vmem:[%s4722 + $0x48] sm:$0xff] %vm489, %v4689
      %4728 = vst.msk [vmem:[%s4722 + $0x50] sm:$0xff] %vm489, %v4690
      %4729 = vst.msk [vmem:[%s4722 + $0x68] sm:$0xff] %vm489, %v4691
      %4730 = vst.msk [vmem:[%s4722 + $0x70] sm:$0xff] %vm489, %v4692
      %4731 = vst.msk [vmem:[%s4722 + $0x88] sm:$0xff] %vm489, %v4693
      %4732 = vst.msk [vmem:[%s4722 + $0x90] sm:$0xff] %vm489, %v4694
      %4733 = vst.msk [vmem:[%s4722 + $0xa8] sm:$0xff] %vm489, %v4695
      %4734 = vst.msk [vmem:[%s4722 + $0xb0] sm:$0xff] %vm489, %v4696
      %4735 = vst.msk [vmem:[%s4722 + $0xc8] sm:$0xff] %vm489, %v4697
      %4736 = vst.msk [vmem:[%s4722 + $0xd0] sm:$0xff] %vm489, %v4698
      %4737 = vst.msk [vmem:[%s4722 + $0xe8] sm:$0xff] %vm489, %v4699
      %4738 = vst.msk [vmem:[%s4722 + $0xf0] sm:$0xff] %vm489, %v4700
      %4739 = vst.msk [vmem:[%s4722 + $0x108] sm:$0xff] %vm489, %v4701
      %4740 = vst.msk [vmem:[%s4722 + $0x110] sm:$0xff] %vm489, %v4702
      %4741 = vst.msk [vmem:[%s4722 + $0x128] sm:$0xff] %vm489, %v4703
      %4742 = vst.msk [vmem:[%s4722 + $0x130] sm:$0xff] %vm489, %v4704
      %4743 = vst.msk [vmem:[%s4722 + $0x148] sm:$0xff] %vm489, %v4705
      %4744 = vst.msk [vmem:[%s4722 + $0x150] sm:$0xff] %vm489, %v4706
      %4745 = vst.msk [vmem:[%s4722 + $0x168] sm:$0xff] %vm489, %v4707
      %4746 = vst.msk [vmem:[%s4722 + $0x170] sm:$0xff] %vm489, %v4708
      %4747 = vst.msk [vmem:[%s4722 + $0x188] sm:$0xff] %vm489, %v4709
      %4748 = vst.msk [vmem:[%s4722 + $0x190] sm:$0xff] %vm489, %v4710
      %4749 = vst.msk [vmem:[%s4722 + $0x1a8] sm:$0xff] %vm489, %v4711
      %4750 = vst.msk [vmem:[%s4722 + $0x1b0] sm:$0xff] %vm489, %v4712
      %4751 = vst.msk [vmem:[%s4722 + $0x1c8] sm:$0xff] %vm489, %v4713
      %4752 = vst.msk [vmem:[%s4722 + $0x1d0] sm:$0xff] %vm489, %v4714
      %4753 = vst.msk [vmem:[%s4722 + $0x1e8] sm:$0xff] %vm489, %v4715
      %4754 = vst.msk [vmem:[%s4722 + $0x1f0] sm:$0xff] %vm489, %v4716
      %v4755 = vld [vmem:[#allocation5 + $0x7] sm:$0xff]
      %v4756 = vld [vmem:[#allocation5 + $0xf] sm:$0xff]
      %v4757 = vld [vmem:[#allocation5 + $0x27] sm:$0xff]
      %v4758 = vld [vmem:[#allocation5 + $0x2f] sm:$0xff]
      %v4759 = vld [vmem:[#allocation5 + $0x47] sm:$0xff]
      %v4760 = vld [vmem:[#allocation5 + $0x4f] sm:$0xff]
      %v4761 = vld [vmem:[#allocation5 + $0x67] sm:$0xff]
      %v4762 = vld [vmem:[#allocation5 + $0x6f] sm:$0xff]
      %v4763 = vld [vmem:[#allocation5 + $0x87] sm:$0xff]
      %v4764 = vld [vmem:[#allocation5 + $0x8f] sm:$0xff]
      %v4765 = vld [vmem:[#allocation5 + $0xa7] sm:$0xff]
      %v4766 = vld [vmem:[#allocation5 + $0xaf] sm:$0xff]
      %v4767 = vld [vmem:[#allocation5 + $0xc7] sm:$0xff]
      %v4768 = vld [vmem:[#allocation5 + $0xcf] sm:$0xff]
      %v4769 = vld [vmem:[#allocation5 + $0xe7] sm:$0xff]
      %v4770 = vld [vmem:[#allocation5 + $0xef] sm:$0xff]
      %v4771 = vld [vmem:[#allocation5 + $0x107] sm:$0xff]
      %v4772 = vld [vmem:[#allocation5 + $0x10f] sm:$0xff]
      %v4773 = vld [vmem:[#allocation5 + $0x127] sm:$0xff]
      %v4774 = vld [vmem:[#allocation5 + $0x12f] sm:$0xff]
      %v4775 = vld [vmem:[#allocation5 + $0x147] sm:$0xff]
      %v4776 = vld [vmem:[#allocation5 + $0x14f] sm:$0xff]
      %v4777 = vld [vmem:[#allocation5 + $0x167] sm:$0xff]
      %v4778 = vld [vmem:[#allocation5 + $0x16f] sm:$0xff]
      %v4779 = vld [vmem:[#allocation5 + $0x187] sm:$0xff]
      %v4780 = vld [vmem:[#allocation5 + $0x18f] sm:$0xff]
      %v4781 = vld [vmem:[#allocation5 + $0x1a7] sm:$0xff]
      %v4782 = vld [vmem:[#allocation5 + $0x1af] sm:$0xff]
      %v4783 = vld [vmem:[#allocation5 + $0x1c7] sm:$0xff]
      %v4784 = vld [vmem:[#allocation5 + $0x1cf] sm:$0xff]
      %v4785 = vld [vmem:[#allocation5 + $0x1e7] sm:$0xff]
      %v4786 = vld [vmem:[#allocation5 + $0x1ef] sm:$0xff]
      %v4787 = vperm.slane %v4717, 0
      %v4788 = vmul.f32 %v4755, %v4787
      %v4789 = vmul.f32 %v4756, %v4787
      %v4790 = vmul.f32 %v4757, %v4787
      %v4791 = vmul.f32 %v4758, %v4787
      %v4792 = vmul.f32 %v4759, %v4787
      %v4793 = vmul.f32 %v4760, %v4787
      %v4794 = vmul.f32 %v4761, %v4787
      %v4795 = vmul.f32 %v4762, %v4787
      %v4796 = vmul.f32 %v4763, %v4787
      %v4797 = vmul.f32 %v4764, %v4787
      %v4798 = vmul.f32 %v4765, %v4787
      %v4799 = vmul.f32 %v4766, %v4787
      %v4800 = vmul.f32 %v4767, %v4787
      %v4801 = vmul.f32 %v4768, %v4787
      %v4802 = vmul.f32 %v4769, %v4787
      %v4803 = vmul.f32 %v4770, %v4787
      %v4804 = vmul.f32 %v4771, %v4787
      %v4805 = vmul.f32 %v4772, %v4787
      %v4806 = vmul.f32 %v4773, %v4787
      %v4807 = vmul.f32 %v4774, %v4787
      %v4808 = vmul.f32 %v4775, %v4787
      %v4809 = vmul.f32 %v4776, %v4787
      %v4810 = vmul.f32 %v4777, %v4787
      %v4811 = vmul.f32 %v4778, %v4787
      %v4812 = vmul.f32 %v4779, %v4787
      %v4813 = vmul.f32 %v4780, %v4787
      %v4814 = vmul.f32 %v4781, %v4787
      %v4815 = vmul.f32 %v4782, %v4787
      %v4816 = vmul.f32 %v4783, %v4787
      %v4817 = vmul.f32 %v4784, %v4787
      %v4818 = vmul.f32 %v4785, %v4787
      %v4819 = vmul.f32 %v4786, %v4787
      %v4820 = vld [vmem:[#allocation5 + $0x8] sm:$0xff]
      %v4821 = vld [vmem:[#allocation5 + $0x10] sm:$0xff]
      %v4822 = vld [vmem:[#allocation5 + $0x28] sm:$0xff]
      %v4823 = vld [vmem:[#allocation5 + $0x30] sm:$0xff]
      %v4824 = vld [vmem:[#allocation5 + $0x48] sm:$0xff]
      %v4825 = vld [vmem:[#allocation5 + $0x50] sm:$0xff]
      %v4826 = vld [vmem:[#allocation5 + $0x68] sm:$0xff]
      %v4827 = vld [vmem:[#allocation5 + $0x70] sm:$0xff]
      %v4828 = vld [vmem:[#allocation5 + $0x88] sm:$0xff]
      %v4829 = vld [vmem:[#allocation5 + $0x90] sm:$0xff]
      %v4830 = vld [vmem:[#allocation5 + $0xa8] sm:$0xff]
      %v4831 = vld [vmem:[#allocation5 + $0xb0] sm:$0xff]
      %v4832 = vld [vmem:[#allocation5 + $0xc8] sm:$0xff]
      %v4833 = vld [vmem:[#allocation5 + $0xd0] sm:$0xff]
      %v4834 = vld [vmem:[#allocation5 + $0xe8] sm:$0xff]
      %v4835 = vld [vmem:[#allocation5 + $0xf0] sm:$0xff]
      %v4836 = vld [vmem:[#allocation5 + $0x108] sm:$0xff]
      %v4837 = vld [vmem:[#allocation5 + $0x110] sm:$0xff]
      %v4838 = vld [vmem:[#allocation5 + $0x128] sm:$0xff]
      %v4839 = vld [vmem:[#allocation5 + $0x130] sm:$0xff]
      %v4840 = vld [vmem:[#allocation5 + $0x148] sm:$0xff]
      %v4841 = vld [vmem:[#allocation5 + $0x150] sm:$0xff]
      %v4842 = vld [vmem:[#allocation5 + $0x168] sm:$0xff]
      %v4843 = vld [vmem:[#allocation5 + $0x170] sm:$0xff]
      %v4844 = vld [vmem:[#allocation5 + $0x188] sm:$0xff]
      %v4845 = vld [vmem:[#allocation5 + $0x190] sm:$0xff]
      %v4846 = vld [vmem:[#allocation5 + $0x1a8] sm:$0xff]
      %v4847 = vld [vmem:[#allocation5 + $0x1b0] sm:$0xff]
      %v4848 = vld [vmem:[#allocation5 + $0x1c8] sm:$0xff]
      %v4849 = vld [vmem:[#allocation5 + $0x1d0] sm:$0xff]
      %v4850 = vld [vmem:[#allocation5 + $0x1e8] sm:$0xff]
      %v4851 = vld [vmem:[#allocation5 + $0x1f0] sm:$0xff]
      %v4852 = vperm.slane %v4717, 1
      %v4853 = vmul.f32 %v4820, %v4852
      %v4854 = vmul.f32 %v4821, %v4852
      %v4855 = vmul.f32 %v4822, %v4852
      %v4856 = vmul.f32 %v4823, %v4852
      %v4857 = vmul.f32 %v4824, %v4852
      %v4858 = vmul.f32 %v4825, %v4852
      %v4859 = vmul.f32 %v4826, %v4852
      %v4860 = vmul.f32 %v4827, %v4852
      %v4861 = vmul.f32 %v4828, %v4852
      %v4862 = vmul.f32 %v4829, %v4852
      %v4863 = vmul.f32 %v4830, %v4852
      %v4864 = vmul.f32 %v4831, %v4852
      %v4865 = vmul.f32 %v4832, %v4852
      %v4866 = vmul.f32 %v4833, %v4852
      %v4867 = vmul.f32 %v4834, %v4852
      %v4868 = vmul.f32 %v4835, %v4852
      %v4869 = vmul.f32 %v4836, %v4852
      %v4870 = vmul.f32 %v4837, %v4852
      %v4871 = vmul.f32 %v4838, %v4852
      %v4872 = vmul.f32 %v4839, %v4852
      %v4873 = vmul.f32 %v4840, %v4852
      %v4874 = vmul.f32 %v4841, %v4852
      %v4875 = vmul.f32 %v4842, %v4852
      %v4876 = vmul.f32 %v4843, %v4852
      %v4877 = vmul.f32 %v4844, %v4852
      %v4878 = vmul.f32 %v4845, %v4852
      %v4879 = vmul.f32 %v4846, %v4852
      %v4880 = vmul.f32 %v4847, %v4852
      %v4881 = vmul.f32 %v4848, %v4852
      %v4882 = vmul.f32 %v4849, %v4852
      %v4883 = vmul.f32 %v4850, %v4852
      %v4884 = vmul.f32 %v4851, %v4852
      %v4885 = vadd.f32 %v4788, %v4853
      %v4886 = vadd.f32 %v4789, %v4854
      %v4887 = vadd.f32 %v4790, %v4855
      %v4888 = vadd.f32 %v4791, %v4856
      %v4889 = vadd.f32 %v4792, %v4857
      %v4890 = vadd.f32 %v4793, %v4858
      %v4891 = vadd.f32 %v4794, %v4859
      %v4892 = vadd.f32 %v4795, %v4860
      %v4893 = vadd.f32 %v4796, %v4861
      %v4894 = vadd.f32 %v4797, %v4862
      %v4895 = vadd.f32 %v4798, %v4863
      %v4896 = vadd.f32 %v4799, %v4864
      %v4897 = vadd.f32 %v4800, %v4865
      %v4898 = vadd.f32 %v4801, %v4866
      %v4899 = vadd.f32 %v4802, %v4867
      %v4900 = vadd.f32 %v4803, %v4868
      %v4901 = vadd.f32 %v4804, %v4869
      %v4902 = vadd.f32 %v4805, %v4870
      %v4903 = vadd.f32 %v4806, %v4871
      %v4904 = vadd.f32 %v4807, %v4872
      %v4905 = vadd.f32 %v4808, %v4873
      %v4906 = vadd.f32 %v4809, %v4874
      %v4907 = vadd.f32 %v4810, %v4875
      %v4908 = vadd.f32 %v4811, %v4876
      %v4909 = vadd.f32 %v4812, %v4877
      %v4910 = vadd.f32 %v4813, %v4878
      %v4911 = vadd.f32 %v4814, %v4879
      %v4912 = vadd.f32 %v4815, %v4880
      %v4913 = vadd.f32 %v4816, %v4881
      %v4914 = vadd.f32 %v4817, %v4882
      %v4915 = vadd.f32 %v4818, %v4883
      %v4916 = vadd.f32 %v4819, %v4884
      %v4917 = vld [vmem:[#allocation5 + $0x9] sm:$0xff]
      %v4918 = vld [vmem:[#allocation5 + $0x11] sm:$0xff]
      %v4919 = vld [vmem:[#allocation5 + $0x29] sm:$0xff]
      %v4920 = vld [vmem:[#allocation5 + $0x31] sm:$0xff]
      %v4921 = vld [vmem:[#allocation5 + $0x49] sm:$0xff]
      %v4922 = vld [vmem:[#allocation5 + $0x51] sm:$0xff]
      %v4923 = vld [vmem:[#allocation5 + $0x69] sm:$0xff]
      %v4924 = vld [vmem:[#allocation5 + $0x71] sm:$0xff]
      %v4925 = vld [vmem:[#allocation5 + $0x89] sm:$0xff]
      %v4926 = vld [vmem:[#allocation5 + $0x91] sm:$0xff]
      %v4927 = vld [vmem:[#allocation5 + $0xa9] sm:$0xff]
      %v4928 = vld [vmem:[#allocation5 + $0xb1] sm:$0xff]
      %v4929 = vld [vmem:[#allocation5 + $0xc9] sm:$0xff]
      %v4930 = vld [vmem:[#allocation5 + $0xd1] sm:$0xff]
      %v4931 = vld [vmem:[#allocation5 + $0xe9] sm:$0xff]
      %v4932 = vld [vmem:[#allocation5 + $0xf1] sm:$0xff]
      %v4933 = vld [vmem:[#allocation5 + $0x109] sm:$0xff]
      %v4934 = vld [vmem:[#allocation5 + $0x111] sm:$0xff]
      %v4935 = vld [vmem:[#allocation5 + $0x129] sm:$0xff]
      %v4936 = vld [vmem:[#allocation5 + $0x131] sm:$0xff]
      %v4937 = vld [vmem:[#allocation5 + $0x149] sm:$0xff]
      %v4938 = vld [vmem:[#allocation5 + $0x151] sm:$0xff]
      %v4939 = vld [vmem:[#allocation5 + $0x169] sm:$0xff]
      %v4940 = vld [vmem:[#allocation5 + $0x171] sm:$0xff]
      %v4941 = vld [vmem:[#allocation5 + $0x189] sm:$0xff]
      %v4942 = vld [vmem:[#allocation5 + $0x191] sm:$0xff]
      %v4943 = vld [vmem:[#allocation5 + $0x1a9] sm:$0xff]
      %v4944 = vld [vmem:[#allocation5 + $0x1b1] sm:$0xff]
      %v4945 = vld [vmem:[#allocation5 + $0x1c9] sm:$0xff]
      %v4946 = vld [vmem:[#allocation5 + $0x1d1] sm:$0xff]
      %v4947 = vld [vmem:[#allocation5 + $0x1e9] sm:$0xff]
      %v4948 = vld [vmem:[#allocation5 + $0x1f1] sm:$0xff]
      %v4949 = vperm.slane %v4717, 2
      %v4950 = vmul.f32 %v4917, %v4949
      %v4951 = vmul.f32 %v4918, %v4949
      %v4952 = vmul.f32 %v4919, %v4949
      %v4953 = vmul.f32 %v4920, %v4949
      %v4954 = vmul.f32 %v4921, %v4949
      %v4955 = vmul.f32 %v4922, %v4949
      %v4956 = vmul.f32 %v4923, %v4949
      %v4957 = vmul.f32 %v4924, %v4949
      %v4958 = vmul.f32 %v4925, %v4949
      %v4959 = vmul.f32 %v4926, %v4949
      %v4960 = vmul.f32 %v4927, %v4949
      %v4961 = vmul.f32 %v4928, %v4949
      %v4962 = vmul.f32 %v4929, %v4949
      %v4963 = vmul.f32 %v4930, %v4949
      %v4964 = vmul.f32 %v4931, %v4949
      %v4965 = vmul.f32 %v4932, %v4949
      %v4966 = vmul.f32 %v4933, %v4949
      %v4967 = vmul.f32 %v4934, %v4949
      %v4968 = vmul.f32 %v4935, %v4949
      %v4969 = vmul.f32 %v4936, %v4949
      %v4970 = vmul.f32 %v4937, %v4949
      %v4971 = vmul.f32 %v4938, %v4949
      %v4972 = vmul.f32 %v4939, %v4949
      %v4973 = vmul.f32 %v4940, %v4949
      %v4974 = vmul.f32 %v4941, %v4949
      %v4975 = vmul.f32 %v4942, %v4949
      %v4976 = vmul.f32 %v4943, %v4949
      %v4977 = vmul.f32 %v4944, %v4949
      %v4978 = vmul.f32 %v4945, %v4949
      %v4979 = vmul.f32 %v4946, %v4949
      %v4980 = vmul.f32 %v4947, %v4949
      %v4981 = vmul.f32 %v4948, %v4949
      %v4982 = vadd.f32 %v4885, %v4950
      %v4983 = vadd.f32 %v4886, %v4951
      %v4984 = vadd.f32 %v4887, %v4952
      %v4985 = vadd.f32 %v4888, %v4953
      %v4986 = vadd.f32 %v4889, %v4954
      %v4987 = vadd.f32 %v4890, %v4955
      %v4988 = vadd.f32 %v4891, %v4956
      %v4989 = vadd.f32 %v4892, %v4957
      %v4990 = vadd.f32 %v4893, %v4958
      %v4991 = vadd.f32 %v4894, %v4959
      %v4992 = vadd.f32 %v4895, %v4960
      %v4993 = vadd.f32 %v4896, %v4961
      %v4994 = vadd.f32 %v4897, %v4962
      %v4995 = vadd.f32 %v4898, %v4963
      %v4996 = vadd.f32 %v4899, %v4964
      %v4997 = vadd.f32 %v4900, %v4965
      %v4998 = vadd.f32 %v4901, %v4966
      %v4999 = vadd.f32 %v4902, %v4967
      %v5000 = vadd.f32 %v4903, %v4968
      %v5001 = vadd.f32 %v4904, %v4969
      %v5002 = vadd.f32 %v4905, %v4970
      %v5003 = vadd.f32 %v4906, %v4971
      %v5004 = vadd.f32 %v4907, %v4972
      %v5005 = vadd.f32 %v4908, %v4973
      %v5006 = vadd.f32 %v4909, %v4974
      %v5007 = vadd.f32 %v4910, %v4975
      %v5008 = vadd.f32 %v4911, %v4976
      %v5009 = vadd.f32 %v4912, %v4977
      %v5010 = vadd.f32 %v4913, %v4978
      %v5011 = vadd.f32 %v4914, %v4979
      %v5012 = vadd.f32 %v4915, %v4980
      %v5013 = vadd.f32 %v4916, %v4981
      %v5014 = vld [vmem:[%s4722 + $0x7] sm:$0xff]
      %v5015 = vld [vmem:[%s4722 + $0xf] sm:$0xff]
      %v5016 = vld [vmem:[%s4722 + $0x27] sm:$0xff]
      %v5017 = vld [vmem:[%s4722 + $0x2f] sm:$0xff]
      %v5018 = vld [vmem:[%s4722 + $0x47] sm:$0xff]
      %v5019 = vld [vmem:[%s4722 + $0x4f] sm:$0xff]
      %v5020 = vld [vmem:[%s4722 + $0x67] sm:$0xff]
      %v5021 = vld [vmem:[%s4722 + $0x6f] sm:$0xff]
      %v5022 = vld [vmem:[%s4722 + $0x87] sm:$0xff]
      %v5023 = vld [vmem:[%s4722 + $0x8f] sm:$0xff]
      %v5024 = vld [vmem:[%s4722 + $0xa7] sm:$0xff]
      %v5025 = vld [vmem:[%s4722 + $0xaf] sm:$0xff]
      %v5026 = vld [vmem:[%s4722 + $0xc7] sm:$0xff]
      %v5027 = vld [vmem:[%s4722 + $0xcf] sm:$0xff]
      %v5028 = vld [vmem:[%s4722 + $0xe7] sm:$0xff]
      %v5029 = vld [vmem:[%s4722 + $0xef] sm:$0xff]
      %v5030 = vld [vmem:[%s4722 + $0x107] sm:$0xff]
      %v5031 = vld [vmem:[%s4722 + $0x10f] sm:$0xff]
      %v5032 = vld [vmem:[%s4722 + $0x127] sm:$0xff]
      %v5033 = vld [vmem:[%s4722 + $0x12f] sm:$0xff]
      %v5034 = vld [vmem:[%s4722 + $0x147] sm:$0xff]
      %v5035 = vld [vmem:[%s4722 + $0x14f] sm:$0xff]
      %v5036 = vld [vmem:[%s4722 + $0x167] sm:$0xff]
      %v5037 = vld [vmem:[%s4722 + $0x16f] sm:$0xff]
      %v5038 = vld [vmem:[%s4722 + $0x187] sm:$0xff]
      %v5039 = vld [vmem:[%s4722 + $0x18f] sm:$0xff]
      %v5040 = vld [vmem:[%s4722 + $0x1a7] sm:$0xff]
      %v5041 = vld [vmem:[%s4722 + $0x1af] sm:$0xff]
      %v5042 = vld [vmem:[%s4722 + $0x1c7] sm:$0xff]
      %v5043 = vld [vmem:[%s4722 + $0x1cf] sm:$0xff]
      %v5044 = vld [vmem:[%s4722 + $0x1e7] sm:$0xff]
      %v5045 = vld [vmem:[%s4722 + $0x1ef] sm:$0xff]
      %v5046 = vperm.slane %v4718, 0
      %v5047 = vmul.f32 %v5014, %v5046
      %v5048 = vmul.f32 %v5015, %v5046
      %v5049 = vmul.f32 %v5016, %v5046
      %v5050 = vmul.f32 %v5017, %v5046
      %v5051 = vmul.f32 %v5018, %v5046
      %v5052 = vmul.f32 %v5019, %v5046
      %v5053 = vmul.f32 %v5020, %v5046
      %v5054 = vmul.f32 %v5021, %v5046
      %v5055 = vmul.f32 %v5022, %v5046
      %v5056 = vmul.f32 %v5023, %v5046
      %v5057 = vmul.f32 %v5024, %v5046
      %v5058 = vmul.f32 %v5025, %v5046
      %v5059 = vmul.f32 %v5026, %v5046
      %v5060 = vmul.f32 %v5027, %v5046
      %v5061 = vmul.f32 %v5028, %v5046
      %v5062 = vmul.f32 %v5029, %v5046
      %v5063 = vmul.f32 %v5030, %v5046
      %v5064 = vmul.f32 %v5031, %v5046
      %v5065 = vmul.f32 %v5032, %v5046
      %v5066 = vmul.f32 %v5033, %v5046
      %v5067 = vmul.f32 %v5034, %v5046
      %v5068 = vmul.f32 %v5035, %v5046
      %v5069 = vmul.f32 %v5036, %v5046
      %v5070 = vmul.f32 %v5037, %v5046
      %v5071 = vmul.f32 %v5038, %v5046
      %v5072 = vmul.f32 %v5039, %v5046
      %v5073 = vmul.f32 %v5040, %v5046
      %v5074 = vmul.f32 %v5041, %v5046
      %v5075 = vmul.f32 %v5042, %v5046
      %v5076 = vmul.f32 %v5043, %v5046
      %v5077 = vmul.f32 %v5044, %v5046
      %v5078 = vmul.f32 %v5045, %v5046
      %v5079 = vadd.f32 %v4982, %v5047
      %v5080 = vadd.f32 %v4983, %v5048
      %v5081 = vadd.f32 %v4984, %v5049
      %v5082 = vadd.f32 %v4985, %v5050
      %v5083 = vadd.f32 %v4986, %v5051
      %v5084 = vadd.f32 %v4987, %v5052
      %v5085 = vadd.f32 %v4988, %v5053
      %v5086 = vadd.f32 %v4989, %v5054
      %v5087 = vadd.f32 %v4990, %v5055
      %v5088 = vadd.f32 %v4991, %v5056
      %v5089 = vadd.f32 %v4992, %v5057
      %v5090 = vadd.f32 %v4993, %v5058
      %v5091 = vadd.f32 %v4994, %v5059
      %v5092 = vadd.f32 %v4995, %v5060
      %v5093 = vadd.f32 %v4996, %v5061
      %v5094 = vadd.f32 %v4997, %v5062
      %v5095 = vadd.f32 %v4998, %v5063
      %v5096 = vadd.f32 %v4999, %v5064
      %v5097 = vadd.f32 %v5000, %v5065
      %v5098 = vadd.f32 %v5001, %v5066
      %v5099 = vadd.f32 %v5002, %v5067
      %v5100 = vadd.f32 %v5003, %v5068
      %v5101 = vadd.f32 %v5004, %v5069
      %v5102 = vadd.f32 %v5005, %v5070
      %v5103 = vadd.f32 %v5006, %v5071
      %v5104 = vadd.f32 %v5007, %v5072
      %v5105 = vadd.f32 %v5008, %v5073
      %v5106 = vadd.f32 %v5009, %v5074
      %v5107 = vadd.f32 %v5010, %v5075
      %v5108 = vadd.f32 %v5011, %v5076
      %v5109 = vadd.f32 %v5012, %v5077
      %v5110 = vadd.f32 %v5013, %v5078
      %v5111 = vld [vmem:[%s4722 + $0x8] sm:$0xff]
      %v5112 = vld [vmem:[%s4722 + $0x10] sm:$0xff]
      %v5113 = vld [vmem:[%s4722 + $0x28] sm:$0xff]
      %v5114 = vld [vmem:[%s4722 + $0x30] sm:$0xff]
      %v5115 = vld [vmem:[%s4722 + $0x48] sm:$0xff]
      %v5116 = vld [vmem:[%s4722 + $0x50] sm:$0xff]
      %v5117 = vld [vmem:[%s4722 + $0x68] sm:$0xff]
      %v5118 = vld [vmem:[%s4722 + $0x70] sm:$0xff]
      %v5119 = vld [vmem:[%s4722 + $0x88] sm:$0xff]
      %v5120 = vld [vmem:[%s4722 + $0x90] sm:$0xff]
      %v5121 = vld [vmem:[%s4722 + $0xa8] sm:$0xff]
      %v5122 = vld [vmem:[%s4722 + $0xb0] sm:$0xff]
      %v5123 = vld [vmem:[%s4722 + $0xc8] sm:$0xff]
      %v5124 = vld [vmem:[%s4722 + $0xd0] sm:$0xff]
      %v5125 = vld [vmem:[%s4722 + $0xe8] sm:$0xff]
      %v5126 = vld [vmem:[%s4722 + $0xf0] sm:$0xff]
      %v5127 = vld [vmem:[%s4722 + $0x108] sm:$0xff]
      %v5128 = vld [vmem:[%s4722 + $0x110] sm:$0xff]
      %v5129 = vld [vmem:[%s4722 + $0x128] sm:$0xff]
      %v5130 = vld [vmem:[%s4722 + $0x130] sm:$0xff]
      %v5131 = vld [vmem:[%s4722 + $0x148] sm:$0xff]
      %v5132 = vld [vmem:[%s4722 + $0x150] sm:$0xff]
      %v5133 = vld [vmem:[%s4722 + $0x168] sm:$0xff]
      %v5134 = vld [vmem:[%s4722 + $0x170] sm:$0xff]
      %v5135 = vld [vmem:[%s4722 + $0x188] sm:$0xff]
      %v5136 = vld [vmem:[%s4722 + $0x190] sm:$0xff]
      %v5137 = vld [vmem:[%s4722 + $0x1a8] sm:$0xff]
      %v5138 = vld [vmem:[%s4722 + $0x1b0] sm:$0xff]
      %v5139 = vld [vmem:[%s4722 + $0x1c8] sm:$0xff]
      %v5140 = vld [vmem:[%s4722 + $0x1d0] sm:$0xff]
      %v5141 = vld [vmem:[%s4722 + $0x1e8] sm:$0xff]
      %v5142 = vld [vmem:[%s4722 + $0x1f0] sm:$0xff]
      %v5143 = vperm.slane %v4718, 1
      %v5144 = vmul.f32 %v5111, %v5143
      %v5145 = vmul.f32 %v5112, %v5143
      %v5146 = vmul.f32 %v5113, %v5143
      %v5147 = vmul.f32 %v5114, %v5143
      %v5148 = vmul.f32 %v5115, %v5143
      %v5149 = vmul.f32 %v5116, %v5143
      %v5150 = vmul.f32 %v5117, %v5143
      %v5151 = vmul.f32 %v5118, %v5143
      %v5152 = vmul.f32 %v5119, %v5143
      %v5153 = vmul.f32 %v5120, %v5143
      %v5154 = vmul.f32 %v5121, %v5143
      %v5155 = vmul.f32 %v5122, %v5143
      %v5156 = vmul.f32 %v5123, %v5143
      %v5157 = vmul.f32 %v5124, %v5143
      %v5158 = vmul.f32 %v5125, %v5143
      %v5159 = vmul.f32 %v5126, %v5143
      %v5160 = vmul.f32 %v5127, %v5143
      %v5161 = vmul.f32 %v5128, %v5143
      %v5162 = vmul.f32 %v5129, %v5143
      %v5163 = vmul.f32 %v5130, %v5143
      %v5164 = vmul.f32 %v5131, %v5143
      %v5165 = vmul.f32 %v5132, %v5143
      %v5166 = vmul.f32 %v5133, %v5143
      %v5167 = vmul.f32 %v5134, %v5143
      %v5168 = vmul.f32 %v5135, %v5143
      %v5169 = vmul.f32 %v5136, %v5143
      %v5170 = vmul.f32 %v5137, %v5143
      %v5171 = vmul.f32 %v5138, %v5143
      %v5172 = vmul.f32 %v5139, %v5143
      %v5173 = vmul.f32 %v5140, %v5143
      %v5174 = vmul.f32 %v5141, %v5143
      %v5175 = vmul.f32 %v5142, %v5143
      %v5176 = vadd.f32 %v5079, %v5144
      %v5177 = vadd.f32 %v5080, %v5145
      %v5178 = vadd.f32 %v5081, %v5146
      %v5179 = vadd.f32 %v5082, %v5147
      %v5180 = vadd.f32 %v5083, %v5148
      %v5181 = vadd.f32 %v5084, %v5149
      %v5182 = vadd.f32 %v5085, %v5150
      %v5183 = vadd.f32 %v5086, %v5151
      %v5184 = vadd.f32 %v5087, %v5152
      %v5185 = vadd.f32 %v5088, %v5153
      %v5186 = vadd.f32 %v5089, %v5154
      %v5187 = vadd.f32 %v5090, %v5155
      %v5188 = vadd.f32 %v5091, %v5156
      %v5189 = vadd.f32 %v5092, %v5157
      %v5190 = vadd.f32 %v5093, %v5158
      %v5191 = vadd.f32 %v5094, %v5159
      %v5192 = vadd.f32 %v5095, %v5160
      %v5193 = vadd.f32 %v5096, %v5161
      %v5194 = vadd.f32 %v5097, %v5162
      %v5195 = vadd.f32 %v5098, %v5163
      %v5196 = vadd.f32 %v5099, %v5164
      %v5197 = vadd.f32 %v5100, %v5165
      %v5198 = vadd.f32 %v5101, %v5166
      %v5199 = vadd.f32 %v5102, %v5167
      %v5200 = vadd.f32 %v5103, %v5168
      %v5201 = vadd.f32 %v5104, %v5169
      %v5202 = vadd.f32 %v5105, %v5170
      %v5203 = vadd.f32 %v5106, %v5171
      %v5204 = vadd.f32 %v5107, %v5172
      %v5205 = vadd.f32 %v5108, %v5173
      %v5206 = vadd.f32 %v5109, %v5174
      %v5207 = vadd.f32 %v5110, %v5175
      %v5208 = vld [vmem:[%s4722 + $0x9] sm:$0xff]
      %v5209 = vld [vmem:[%s4722 + $0x11] sm:$0xff]
      %v5210 = vld [vmem:[%s4722 + $0x29] sm:$0xff]
      %v5211 = vld [vmem:[%s4722 + $0x31] sm:$0xff]
      %v5212 = vld [vmem:[%s4722 + $0x49] sm:$0xff]
      %v5213 = vld [vmem:[%s4722 + $0x51] sm:$0xff]
      %v5214 = vld [vmem:[%s4722 + $0x69] sm:$0xff]
      %v5215 = vld [vmem:[%s4722 + $0x71] sm:$0xff]
      %v5216 = vld [vmem:[%s4722 + $0x89] sm:$0xff]
      %v5217 = vld [vmem:[%s4722 + $0x91] sm:$0xff]
      %v5218 = vld [vmem:[%s4722 + $0xa9] sm:$0xff]
      %v5219 = vld [vmem:[%s4722 + $0xb1] sm:$0xff]
      %v5220 = vld [vmem:[%s4722 + $0xc9] sm:$0xff]
      %v5221 = vld [vmem:[%s4722 + $0xd1] sm:$0xff]
      %v5222 = vld [vmem:[%s4722 + $0xe9] sm:$0xff]
      %v5223 = vld [vmem:[%s4722 + $0xf1] sm:$0xff]
      %v5224 = vld [vmem:[%s4722 + $0x109] sm:$0xff]
      %v5225 = vld [vmem:[%s4722 + $0x111] sm:$0xff]
      %v5226 = vld [vmem:[%s4722 + $0x129] sm:$0xff]
      %v5227 = vld [vmem:[%s4722 + $0x131] sm:$0xff]
      %v5228 = vld [vmem:[%s4722 + $0x149] sm:$0xff]
      %v5229 = vld [vmem:[%s4722 + $0x151] sm:$0xff]
      %v5230 = vld [vmem:[%s4722 + $0x169] sm:$0xff]
      %v5231 = vld [vmem:[%s4722 + $0x171] sm:$0xff]
      %v5232 = vld [vmem:[%s4722 + $0x189] sm:$0xff]
      %v5233 = vld [vmem:[%s4722 + $0x191] sm:$0xff]
      %v5234 = vld [vmem:[%s4722 + $0x1a9] sm:$0xff]
      %v5235 = vld [vmem:[%s4722 + $0x1b1] sm:$0xff]
      %v5236 = vld [vmem:[%s4722 + $0x1c9] sm:$0xff]
      %v5237 = vld [vmem:[%s4722 + $0x1d1] sm:$0xff]
      %v5238 = vld [vmem:[%s4722 + $0x1e9] sm:$0xff]
      %v5239 = vld [vmem:[%s4722 + $0x1f1] sm:$0xff]
      %v5240 = vperm.slane %v4718, 2
      %v5241 = vmul.f32 %v5208, %v5240
      %v5242 = vmul.f32 %v5209, %v5240
      %v5243 = vmul.f32 %v5210, %v5240
      %v5244 = vmul.f32 %v5211, %v5240
      %v5245 = vmul.f32 %v5212, %v5240
      %v5246 = vmul.f32 %v5213, %v5240
      %v5247 = vmul.f32 %v5214, %v5240
      %v5248 = vmul.f32 %v5215, %v5240
      %v5249 = vmul.f32 %v5216, %v5240
      %v5250 = vmul.f32 %v5217, %v5240
      %v5251 = vmul.f32 %v5218, %v5240
      %v5252 = vmul.f32 %v5219, %v5240
      %v5253 = vmul.f32 %v5220, %v5240
      %v5254 = vmul.f32 %v5221, %v5240
      %v5255 = vmul.f32 %v5222, %v5240
      %v5256 = vmul.f32 %v5223, %v5240
      %v5257 = vmul.f32 %v5224, %v5240
      %v5258 = vmul.f32 %v5225, %v5240
      %v5259 = vmul.f32 %v5226, %v5240
      %v5260 = vmul.f32 %v5227, %v5240
      %v5261 = vmul.f32 %v5228, %v5240
      %v5262 = vmul.f32 %v5229, %v5240
      %v5263 = vmul.f32 %v5230, %v5240
      %v5264 = vmul.f32 %v5231, %v5240
      %v5265 = vmul.f32 %v5232, %v5240
      %v5266 = vmul.f32 %v5233, %v5240
      %v5267 = vmul.f32 %v5234, %v5240
      %v5268 = vmul.f32 %v5235, %v5240
      %v5269 = vmul.f32 %v5236, %v5240
      %v5270 = vmul.f32 %v5237, %v5240
      %v5271 = vmul.f32 %v5238, %v5240
      %v5272 = vmul.f32 %v5239, %v5240
      %v5273 = vadd.f32 %v5176, %v5241
      %v5274 = vadd.f32 %v5177, %v5242
      %v5275 = vadd.f32 %v5178, %v5243
      %v5276 = vadd.f32 %v5179, %v5244
      %v5277 = vadd.f32 %v5180, %v5245
      %v5278 = vadd.f32 %v5181, %v5246
      %v5279 = vadd.f32 %v5182, %v5247
      %v5280 = vadd.f32 %v5183, %v5248
      %v5281 = vadd.f32 %v5184, %v5249
      %v5282 = vadd.f32 %v5185, %v5250
      %v5283 = vadd.f32 %v5186, %v5251
      %v5284 = vadd.f32 %v5187, %v5252
      %v5285 = vadd.f32 %v5188, %v5253
      %v5286 = vadd.f32 %v5189, %v5254
      %v5287 = vadd.f32 %v5190, %v5255
      %v5288 = vadd.f32 %v5191, %v5256
      %v5289 = vadd.f32 %v5192, %v5257
      %v5290 = vadd.f32 %v5193, %v5258
      %v5291 = vadd.f32 %v5194, %v5259
      %v5292 = vadd.f32 %v5195, %v5260
      %v5293 = vadd.f32 %v5196, %v5261
      %v5294 = vadd.f32 %v5197, %v5262
      %v5295 = vadd.f32 %v5198, %v5263
      %v5296 = vadd.f32 %v5199, %v5264
      %v5297 = vadd.f32 %v5200, %v5265
      %v5298 = vadd.f32 %v5201, %v5266
      %v5299 = vadd.f32 %v5202, %v5267
      %v5300 = vadd.f32 %v5203, %v5268
      %v5301 = vadd.f32 %v5204, %v5269
      %v5302 = vadd.f32 %v5205, %v5270
      %v5303 = vadd.f32 %v5206, %v5271
      %v5304 = vadd.f32 %v5207, %v5272
      %s5305 = scalar_lea.vmem [#allocation5], 64
      %v5306 = vld [vmem:[%s5305 + $0x7] sm:$0xff]
      %v5307 = vld [vmem:[%s5305 + $0xf] sm:$0xff]
      %v5308 = vld [vmem:[%s5305 + $0x27] sm:$0xff]
      %v5309 = vld [vmem:[%s5305 + $0x2f] sm:$0xff]
      %v5310 = vld [vmem:[%s5305 + $0x47] sm:$0xff]
      %v5311 = vld [vmem:[%s5305 + $0x4f] sm:$0xff]
      %v5312 = vld [vmem:[%s5305 + $0x67] sm:$0xff]
      %v5313 = vld [vmem:[%s5305 + $0x6f] sm:$0xff]
      %v5314 = vld [vmem:[%s5305 + $0x87] sm:$0xff]
      %v5315 = vld [vmem:[%s5305 + $0x8f] sm:$0xff]
      %v5316 = vld [vmem:[%s5305 + $0xa7] sm:$0xff]
      %v5317 = vld [vmem:[%s5305 + $0xaf] sm:$0xff]
      %v5318 = vld [vmem:[%s5305 + $0xc7] sm:$0xff]
      %v5319 = vld [vmem:[%s5305 + $0xcf] sm:$0xff]
      %v5320 = vld [vmem:[%s5305 + $0xe7] sm:$0xff]
      %v5321 = vld [vmem:[%s5305 + $0xef] sm:$0xff]
      %v5322 = vld [vmem:[%s5305 + $0x107] sm:$0xff]
      %v5323 = vld [vmem:[%s5305 + $0x10f] sm:$0xff]
      %v5324 = vld [vmem:[%s5305 + $0x127] sm:$0xff]
      %v5325 = vld [vmem:[%s5305 + $0x12f] sm:$0xff]
      %v5326 = vld [vmem:[%s5305 + $0x147] sm:$0xff]
      %v5327 = vld [vmem:[%s5305 + $0x14f] sm:$0xff]
      %v5328 = vld [vmem:[%s5305 + $0x167] sm:$0xff]
      %v5329 = vld [vmem:[%s5305 + $0x16f] sm:$0xff]
      %v5330 = vld [vmem:[%s5305 + $0x187] sm:$0xff]
      %v5331 = vld [vmem:[%s5305 + $0x18f] sm:$0xff]
      %v5332 = vld [vmem:[%s5305 + $0x1a7] sm:$0xff]
      %v5333 = vld [vmem:[%s5305 + $0x1af] sm:$0xff]
      %v5334 = vld [vmem:[%s5305 + $0x1c7] sm:$0xff]
      %v5335 = vld [vmem:[%s5305 + $0x1cf] sm:$0xff]
      %v5336 = vld [vmem:[%s5305 + $0x1e7] sm:$0xff]
      %v5337 = vld [vmem:[%s5305 + $0x1ef] sm:$0xff]
      %v5338 = vperm.slane %v4719, 0
      %v5339 = vmul.f32 %v5306, %v5338
      %v5340 = vmul.f32 %v5307, %v5338
      %v5341 = vmul.f32 %v5308, %v5338
      %v5342 = vmul.f32 %v5309, %v5338
      %v5343 = vmul.f32 %v5310, %v5338
      %v5344 = vmul.f32 %v5311, %v5338
      %v5345 = vmul.f32 %v5312, %v5338
      %v5346 = vmul.f32 %v5313, %v5338
      %v5347 = vmul.f32 %v5314, %v5338
      %v5348 = vmul.f32 %v5315, %v5338
      %v5349 = vmul.f32 %v5316, %v5338
      %v5350 = vmul.f32 %v5317, %v5338
      %v5351 = vmul.f32 %v5318, %v5338
      %v5352 = vmul.f32 %v5319, %v5338
      %v5353 = vmul.f32 %v5320, %v5338
      %v5354 = vmul.f32 %v5321, %v5338
      %v5355 = vmul.f32 %v5322, %v5338
      %v5356 = vmul.f32 %v5323, %v5338
      %v5357 = vmul.f32 %v5324, %v5338
      %v5358 = vmul.f32 %v5325, %v5338
      %v5359 = vmul.f32 %v5326, %v5338
      %v5360 = vmul.f32 %v5327, %v5338
      %v5361 = vmul.f32 %v5328, %v5338
      %v5362 = vmul.f32 %v5329, %v5338
      %v5363 = vmul.f32 %v5330, %v5338
      %v5364 = vmul.f32 %v5331, %v5338
      %v5365 = vmul.f32 %v5332, %v5338
      %v5366 = vmul.f32 %v5333, %v5338
      %v5367 = vmul.f32 %v5334, %v5338
      %v5368 = vmul.f32 %v5335, %v5338
      %v5369 = vmul.f32 %v5336, %v5338
      %v5370 = vmul.f32 %v5337, %v5338
      %v5371 = vadd.f32 %v5273, %v5339
      %v5372 = vadd.f32 %v5274, %v5340
      %v5373 = vadd.f32 %v5275, %v5341
      %v5374 = vadd.f32 %v5276, %v5342
      %v5375 = vadd.f32 %v5277, %v5343
      %v5376 = vadd.f32 %v5278, %v5344
      %v5377 = vadd.f32 %v5279, %v5345
      %v5378 = vadd.f32 %v5280, %v5346
      %v5379 = vadd.f32 %v5281, %v5347
      %v5380 = vadd.f32 %v5282, %v5348
      %v5381 = vadd.f32 %v5283, %v5349
      %v5382 = vadd.f32 %v5284, %v5350
      %v5383 = vadd.f32 %v5285, %v5351
      %v5384 = vadd.f32 %v5286, %v5352
      %v5385 = vadd.f32 %v5287, %v5353
      %v5386 = vadd.f32 %v5288, %v5354
      %v5387 = vadd.f32 %v5289, %v5355
      %v5388 = vadd.f32 %v5290, %v5356
      %v5389 = vadd.f32 %v5291, %v5357
      %v5390 = vadd.f32 %v5292, %v5358
      %v5391 = vadd.f32 %v5293, %v5359
      %v5392 = vadd.f32 %v5294, %v5360
      %v5393 = vadd.f32 %v5295, %v5361
      %v5394 = vadd.f32 %v5296, %v5362
      %v5395 = vadd.f32 %v5297, %v5363
      %v5396 = vadd.f32 %v5298, %v5364
      %v5397 = vadd.f32 %v5299, %v5365
      %v5398 = vadd.f32 %v5300, %v5366
      %v5399 = vadd.f32 %v5301, %v5367
      %v5400 = vadd.f32 %v5302, %v5368
      %v5401 = vadd.f32 %v5303, %v5369
      %v5402 = vadd.f32 %v5304, %v5370
      %v5403 = vld [vmem:[%s5305 + $0x8] sm:$0xff]
      %v5404 = vld [vmem:[%s5305 + $0x10] sm:$0xff]
      %v5405 = vld [vmem:[%s5305 + $0x28] sm:$0xff]
      %v5406 = vld [vmem:[%s5305 + $0x30] sm:$0xff]
      %v5407 = vld [vmem:[%s5305 + $0x48] sm:$0xff]
      %v5408 = vld [vmem:[%s5305 + $0x50] sm:$0xff]
      %v5409 = vld [vmem:[%s5305 + $0x68] sm:$0xff]
      %v5410 = vld [vmem:[%s5305 + $0x70] sm:$0xff]
      %v5411 = vld [vmem:[%s5305 + $0x88] sm:$0xff]
      %v5412 = vld [vmem:[%s5305 + $0x90] sm:$0xff]
      %v5413 = vld [vmem:[%s5305 + $0xa8] sm:$0xff]
      %v5414 = vld [vmem:[%s5305 + $0xb0] sm:$0xff]
      %v5415 = vld [vmem:[%s5305 + $0xc8] sm:$0xff]
      %v5416 = vld [vmem:[%s5305 + $0xd0] sm:$0xff]
      %v5417 = vld [vmem:[%s5305 + $0xe8] sm:$0xff]
      %v5418 = vld [vmem:[%s5305 + $0xf0] sm:$0xff]
      %v5419 = vld [vmem:[%s5305 + $0x108] sm:$0xff]
      %v5420 = vld [vmem:[%s5305 + $0x110] sm:$0xff]
      %v5421 = vld [vmem:[%s5305 + $0x128] sm:$0xff]
      %v5422 = vld [vmem:[%s5305 + $0x130] sm:$0xff]
      %v5423 = vld [vmem:[%s5305 + $0x148] sm:$0xff]
      %v5424 = vld [vmem:[%s5305 + $0x150] sm:$0xff]
      %v5425 = vld [vmem:[%s5305 + $0x168] sm:$0xff]
      %v5426 = vld [vmem:[%s5305 + $0x170] sm:$0xff]
      %v5427 = vld [vmem:[%s5305 + $0x188] sm:$0xff]
      %v5428 = vld [vmem:[%s5305 + $0x190] sm:$0xff]
      %v5429 = vld [vmem:[%s5305 + $0x1a8] sm:$0xff]
      %v5430 = vld [vmem:[%s5305 + $0x1b0] sm:$0xff]
      %v5431 = vld [vmem:[%s5305 + $0x1c8] sm:$0xff]
      %v5432 = vld [vmem:[%s5305 + $0x1d0] sm:$0xff]
      %v5433 = vld [vmem:[%s5305 + $0x1e8] sm:$0xff]
      %v5434 = vld [vmem:[%s5305 + $0x1f0] sm:$0xff]
      %v5435 = vperm.slane %v4719, 1
      %v5436 = vmul.f32 %v5403, %v5435
      %v5437 = vmul.f32 %v5404, %v5435
      %v5438 = vmul.f32 %v5405, %v5435
      %v5439 = vmul.f32 %v5406, %v5435
      %v5440 = vmul.f32 %v5407, %v5435
      %v5441 = vmul.f32 %v5408, %v5435
      %v5442 = vmul.f32 %v5409, %v5435
      %v5443 = vmul.f32 %v5410, %v5435
      %v5444 = vmul.f32 %v5411, %v5435
      %v5445 = vmul.f32 %v5412, %v5435
      %v5446 = vmul.f32 %v5413, %v5435
      %v5447 = vmul.f32 %v5414, %v5435
      %v5448 = vmul.f32 %v5415, %v5435
      %v5449 = vmul.f32 %v5416, %v5435
      %v5450 = vmul.f32 %v5417, %v5435
      %v5451 = vmul.f32 %v5418, %v5435
      %v5452 = vmul.f32 %v5419, %v5435
      %v5453 = vmul.f32 %v5420, %v5435
      %v5454 = vmul.f32 %v5421, %v5435
      %v5455 = vmul.f32 %v5422, %v5435
      %v5456 = vmul.f32 %v5423, %v5435
      %v5457 = vmul.f32 %v5424, %v5435
      %v5458 = vmul.f32 %v5425, %v5435
      %v5459 = vmul.f32 %v5426, %v5435
      %v5460 = vmul.f32 %v5427, %v5435
      %v5461 = vmul.f32 %v5428, %v5435
      %v5462 = vmul.f32 %v5429, %v5435
      %v5463 = vmul.f32 %v5430, %v5435
      %v5464 = vmul.f32 %v5431, %v5435
      %v5465 = vmul.f32 %v5432, %v5435
      %v5466 = vmul.f32 %v5433, %v5435
      %v5467 = vmul.f32 %v5434, %v5435
      %v5468 = vadd.f32 %v5371, %v5436
      %v5469 = vadd.f32 %v5372, %v5437
      %v5470 = vadd.f32 %v5373, %v5438
      %v5471 = vadd.f32 %v5374, %v5439
      %v5472 = vadd.f32 %v5375, %v5440
      %v5473 = vadd.f32 %v5376, %v5441
      %v5474 = vadd.f32 %v5377, %v5442
      %v5475 = vadd.f32 %v5378, %v5443
      %v5476 = vadd.f32 %v5379, %v5444
      %v5477 = vadd.f32 %v5380, %v5445
      %v5478 = vadd.f32 %v5381, %v5446
      %v5479 = vadd.f32 %v5382, %v5447
      %v5480 = vadd.f32 %v5383, %v5448
      %v5481 = vadd.f32 %v5384, %v5449
      %v5482 = vadd.f32 %v5385, %v5450
      %v5483 = vadd.f32 %v5386, %v5451
      %v5484 = vadd.f32 %v5387, %v5452
      %v5485 = vadd.f32 %v5388, %v5453
      %v5486 = vadd.f32 %v5389, %v5454
      %v5487 = vadd.f32 %v5390, %v5455
      %v5488 = vadd.f32 %v5391, %v5456
      %v5489 = vadd.f32 %v5392, %v5457
      %v5490 = vadd.f32 %v5393, %v5458
      %v5491 = vadd.f32 %v5394, %v5459
      %v5492 = vadd.f32 %v5395, %v5460
      %v5493 = vadd.f32 %v5396, %v5461
      %v5494 = vadd.f32 %v5397, %v5462
      %v5495 = vadd.f32 %v5398, %v5463
      %v5496 = vadd.f32 %v5399, %v5464
      %v5497 = vadd.f32 %v5400, %v5465
      %v5498 = vadd.f32 %v5401, %v5466
      %v5499 = vadd.f32 %v5402, %v5467
      %v5500 = vld [vmem:[%s5305 + $0x9] sm:$0xff]
      %v5501 = vld [vmem:[%s5305 + $0x11] sm:$0xff]
      %v5502 = vld [vmem:[%s5305 + $0x29] sm:$0xff]
      %v5503 = vld [vmem:[%s5305 + $0x31] sm:$0xff]
      %v5504 = vld [vmem:[%s5305 + $0x49] sm:$0xff]
      %v5505 = vld [vmem:[%s5305 + $0x51] sm:$0xff]
      %v5506 = vld [vmem:[%s5305 + $0x69] sm:$0xff]
      %v5507 = vld [vmem:[%s5305 + $0x71] sm:$0xff]
      %v5508 = vld [vmem:[%s5305 + $0x89] sm:$0xff]
      %v5509 = vld [vmem:[%s5305 + $0x91] sm:$0xff]
      %v5510 = vld [vmem:[%s5305 + $0xa9] sm:$0xff]
      %v5511 = vld [vmem:[%s5305 + $0xb1] sm:$0xff]
      %v5512 = vld [vmem:[%s5305 + $0xc9] sm:$0xff]
      %v5513 = vld [vmem:[%s5305 + $0xd1] sm:$0xff]
      %v5514 = vld [vmem:[%s5305 + $0xe9] sm:$0xff]
      %v5515 = vld [vmem:[%s5305 + $0xf1] sm:$0xff]
      %v5516 = vld [vmem:[%s5305 + $0x109] sm:$0xff]
      %v5517 = vld [vmem:[%s5305 + $0x111] sm:$0xff]
      %v5518 = vld [vmem:[%s5305 + $0x129] sm:$0xff]
      %v5519 = vld [vmem:[%s5305 + $0x131] sm:$0xff]
      %v5520 = vld [vmem:[%s5305 + $0x149] sm:$0xff]
      %v5521 = vld [vmem:[%s5305 + $0x151] sm:$0xff]
      %v5522 = vld [vmem:[%s5305 + $0x169] sm:$0xff]
      %v5523 = vld [vmem:[%s5305 + $0x171] sm:$0xff]
      %v5524 = vld [vmem:[%s5305 + $0x189] sm:$0xff]
      %v5525 = vld [vmem:[%s5305 + $0x191] sm:$0xff]
      %v5526 = vld [vmem:[%s5305 + $0x1a9] sm:$0xff]
      %v5527 = vld [vmem:[%s5305 + $0x1b1] sm:$0xff]
      %v5528 = vld [vmem:[%s5305 + $0x1c9] sm:$0xff]
      %v5529 = vld [vmem:[%s5305 + $0x1d1] sm:$0xff]
      %v5530 = vld [vmem:[%s5305 + $0x1e9] sm:$0xff]
      %v5531 = vld [vmem:[%s5305 + $0x1f1] sm:$0xff]
      %v5532 = vperm.slane %v4719, 2
      %v5533 = vmul.f32 %v5500, %v5532
      %v5534 = vmul.f32 %v5501, %v5532
      %v5535 = vmul.f32 %v5502, %v5532
      %v5536 = vmul.f32 %v5503, %v5532
      %v5537 = vmul.f32 %v5504, %v5532
      %v5538 = vmul.f32 %v5505, %v5532
      %v5539 = vmul.f32 %v5506, %v5532
      %v5540 = vmul.f32 %v5507, %v5532
      %v5541 = vmul.f32 %v5508, %v5532
      %v5542 = vmul.f32 %v5509, %v5532
      %v5543 = vmul.f32 %v5510, %v5532
      %v5544 = vmul.f32 %v5511, %v5532
      %v5545 = vmul.f32 %v5512, %v5532
      %v5546 = vmul.f32 %v5513, %v5532
      %v5547 = vmul.f32 %v5514, %v5532
      %v5548 = vmul.f32 %v5515, %v5532
      %v5549 = vmul.f32 %v5516, %v5532
      %v5550 = vmul.f32 %v5517, %v5532
      %v5551 = vmul.f32 %v5518, %v5532
      %v5552 = vmul.f32 %v5519, %v5532
      %v5553 = vmul.f32 %v5520, %v5532
      %v5554 = vmul.f32 %v5521, %v5532
      %v5555 = vmul.f32 %v5522, %v5532
      %v5556 = vmul.f32 %v5523, %v5532
      %v5557 = vmul.f32 %v5524, %v5532
      %v5558 = vmul.f32 %v5525, %v5532
      %v5559 = vmul.f32 %v5526, %v5532
      %v5560 = vmul.f32 %v5527, %v5532
      %v5561 = vmul.f32 %v5528, %v5532
      %v5562 = vmul.f32 %v5529, %v5532
      %v5563 = vmul.f32 %v5530, %v5532
      %v5564 = vmul.f32 %v5531, %v5532
      %v5565 = vadd.f32 %v5468, %v5533
      %v5566 = vadd.f32 %v5469, %v5534
      %v5567 = vadd.f32 %v5470, %v5535
      %v5568 = vadd.f32 %v5471, %v5536
      %v5569 = vadd.f32 %v5472, %v5537
      %v5570 = vadd.f32 %v5473, %v5538
      %v5571 = vadd.f32 %v5474, %v5539
      %v5572 = vadd.f32 %v5475, %v5540
      %v5573 = vadd.f32 %v5476, %v5541
      %v5574 = vadd.f32 %v5477, %v5542
      %v5575 = vadd.f32 %v5478, %v5543
      %v5576 = vadd.f32 %v5479, %v5544
      %v5577 = vadd.f32 %v5480, %v5545
      %v5578 = vadd.f32 %v5481, %v5546
      %v5579 = vadd.f32 %v5482, %v5547
      %v5580 = vadd.f32 %v5483, %v5548
      %v5581 = vadd.f32 %v5484, %v5549
      %v5582 = vadd.f32 %v5485, %v5550
      %v5583 = vadd.f32 %v5486, %v5551
      %v5584 = vadd.f32 %v5487, %v5552
      %v5585 = vadd.f32 %v5488, %v5553
      %v5586 = vadd.f32 %v5489, %v5554
      %v5587 = vadd.f32 %v5490, %v5555
      %v5588 = vadd.f32 %v5491, %v5556
      %v5589 = vadd.f32 %v5492, %v5557
      %v5590 = vadd.f32 %v5493, %v5558
      %v5591 = vadd.f32 %v5494, %v5559
      %v5592 = vadd.f32 %v5495, %v5560
      %v5593 = vadd.f32 %v5496, %v5561
      %v5594 = vadd.f32 %v5497, %v5562
      %v5595 = vadd.f32 %v5498, %v5563
      %v5596 = vadd.f32 %v5499, %v5564
      %v5598 = vperm.slane %v4720, 0
      %v5600 = vmul.f32 %v5565, %v5598
      %v5601 = vmul.f32 %v5566, %v5598
      %v5602 = vmul.f32 %v5567, %v5598
      %v5603 = vmul.f32 %v5568, %v5598
      %v5604 = vmul.f32 %v5569, %v5598
      %v5605 = vmul.f32 %v5570, %v5598
      %v5606 = vmul.f32 %v5571, %v5598
      %v5607 = vmul.f32 %v5572, %v5598
      %v5608 = vmul.f32 %v5573, %v5598
      %v5609 = vmul.f32 %v5574, %v5598
      %v5610 = vmul.f32 %v5575, %v5598
      %v5611 = vmul.f32 %v5576, %v5598
      %v5612 = vmul.f32 %v5577, %v5598
      %v5613 = vmul.f32 %v5578, %v5598
      %v5614 = vmul.f32 %v5579, %v5598
      %v5615 = vmul.f32 %v5580, %v5598
      %v5616 = vmul.f32 %v5581, %v5598
      %v5617 = vmul.f32 %v5582, %v5598
      %v5618 = vmul.f32 %v5583, %v5598
      %v5619 = vmul.f32 %v5584, %v5598
      %v5620 = vmul.f32 %v5585, %v5598
      %v5621 = vmul.f32 %v5586, %v5598
      %v5622 = vmul.f32 %v5587, %v5598
      %v5623 = vmul.f32 %v5588, %v5598
      %v5624 = vmul.f32 %v5589, %v5598
      %v5625 = vmul.f32 %v5590, %v5598
      %v5626 = vmul.f32 %v5591, %v5598
      %v5627 = vmul.f32 %v5592, %v5598
      %v5628 = vmul.f32 %v5593, %v5598
      %v5629 = vmul.f32 %v5594, %v5598
      %v5630 = vmul.f32 %v5595, %v5598
      %v5631 = vmul.f32 %v5596, %v5598
      %v5633 = vperm.slane %v4721, 0
      %v5635 = vadd.f32 %v5600, %v5633
      %v5636 = vadd.f32 %v5601, %v5633
      %v5637 = vadd.f32 %v5602, %v5633
      %v5638 = vadd.f32 %v5603, %v5633
      %v5639 = vadd.f32 %v5604, %v5633
      %v5640 = vadd.f32 %v5605, %v5633
      %v5641 = vadd.f32 %v5606, %v5633
      %v5642 = vadd.f32 %v5607, %v5633
      %v5643 = vadd.f32 %v5608, %v5633
      %v5644 = vadd.f32 %v5609, %v5633
      %v5645 = vadd.f32 %v5610, %v5633
      %v5646 = vadd.f32 %v5611, %v5633
      %v5647 = vadd.f32 %v5612, %v5633
      %v5648 = vadd.f32 %v5613, %v5633
      %v5649 = vadd.f32 %v5614, %v5633
      %v5650 = vadd.f32 %v5615, %v5633
      %v5651 = vadd.f32 %v5616, %v5633
      %v5652 = vadd.f32 %v5617, %v5633
      %v5653 = vadd.f32 %v5618, %v5633
      %v5654 = vadd.f32 %v5619, %v5633
      %v5655 = vadd.f32 %v5620, %v5633
      %v5656 = vadd.f32 %v5621, %v5633
      %v5657 = vadd.f32 %v5622, %v5633
      %v5658 = vadd.f32 %v5623, %v5633
      %v5659 = vadd.f32 %v5624, %v5633
      %v5660 = vadd.f32 %v5625, %v5633
      %v5661 = vadd.f32 %v5626, %v5633
      %v5662 = vadd.f32 %v5627, %v5633
      %v5663 = vadd.f32 %v5628, %v5633
      %v5664 = vadd.f32 %v5629, %v5633
      %v5665 = vadd.f32 %v5630, %v5633
      %v5666 = vadd.f32 %v5631, %v5633
      %v5667 = vmax.f32 %v4685, %v5635
      %v5668 = vmax.f32 %v4686, %v5636
      %v5669 = vmax.f32 %v4687, %v5637
      %v5670 = vmax.f32 %v4688, %v5638
      %v5671 = vmax.f32 %v4689, %v5639
      %v5672 = vmax.f32 %v4690, %v5640
      %v5673 = vmax.f32 %v4691, %v5641
      %v5674 = vmax.f32 %v4692, %v5642
      %v5675 = vmax.f32 %v4693, %v5643
      %v5676 = vmax.f32 %v4694, %v5644
      %v5677 = vmax.f32 %v4695, %v5645
      %v5678 = vmax.f32 %v4696, %v5646
      %v5679 = vmax.f32 %v4697, %v5647
      %v5680 = vmax.f32 %v4698, %v5648
      %v5681 = vmax.f32 %v4699, %v5649
      %v5682 = vmax.f32 %v4700, %v5650
      %v5683 = vmax.f32 %v4701, %v5651
      %v5684 = vmax.f32 %v4702, %v5652
      %v5685 = vmax.f32 %v4703, %v5653
      %v5686 = vmax.f32 %v4704, %v5654
      %v5687 = vmax.f32 %v4705, %v5655
      %v5688 = vmax.f32 %v4706, %v5656
      %v5689 = vmax.f32 %v4707, %v5657
      %v5690 = vmax.f32 %v4708, %v5658
      %v5691 = vmax.f32 %v4709, %v5659
      %v5692 = vmax.f32 %v4710, %v5660
      %v5693 = vmax.f32 %v4711, %v5661
      %v5694 = vmax.f32 %v4712, %v5662
      %v5695 = vmax.f32 %v4713, %v5663
      %v5696 = vmax.f32 %v4714, %v5664
      %v5697 = vmax.f32 %v4715, %v5665
      %v5698 = vmax.f32 %v4716, %v5666
      %5699 = vst.msk [vmem:[%s440] sm:$0xff] %vm489, %v5667
      %5700 = vst.msk [vmem:[%s440 + $0x8] sm:$0xff] %vm489, %v5668
      %5701 = vst.msk [vmem:[%s440 + $0x10] sm:$0xff] %vm489, %v5669
      %5702 = vst.msk [vmem:[%s440 + $0x18] sm:$0xff] %vm489, %v5670
      %5703 = vst.msk [vmem:[%s440 + $0x20] sm:$0xff] %vm489, %v5671
      %5704 = vst.msk [vmem:[%s440 + $0x28] sm:$0xff] %vm489, %v5672
      %5705 = vst.msk [vmem:[%s440 + $0x30] sm:$0xff] %vm489, %v5673
      %5706 = vst.msk [vmem:[%s440 + $0x38] sm:$0xff] %vm489, %v5674
      %5707 = vst.msk [vmem:[%s440 + $0x40] sm:$0xff] %vm489, %v5675
      %5708 = vst.msk [vmem:[%s440 + $0x48] sm:$0xff] %vm489, %v5676
      %5709 = vst.msk [vmem:[%s440 + $0x50] sm:$0xff] %vm489, %v5677
      %5710 = vst.msk [vmem:[%s440 + $0x58] sm:$0xff] %vm489, %v5678
      %5711 = vst.msk [vmem:[%s440 + $0x60] sm:$0xff] %vm489, %v5679
      %5712 = vst.msk [vmem:[%s440 + $0x68] sm:$0xff] %vm489, %v5680
      %5713 = vst.msk [vmem:[%s440 + $0x70] sm:$0xff] %vm489, %v5681
      %5714 = vst.msk [vmem:[%s440 + $0x78] sm:$0xff] %vm489, %v5682
      %5715 = vst.msk [vmem:[%s440 + $0x80] sm:$0xff] %vm489, %v5683
      %5716 = vst.msk [vmem:[%s440 + $0x88] sm:$0xff] %vm489, %v5684
      %5717 = vst.msk [vmem:[%s440 + $0x90] sm:$0xff] %vm489, %v5685
      %5718 = vst.msk [vmem:[%s440 + $0x98] sm:$0xff] %vm489, %v5686
      %5719 = vst.msk [vmem:[%s440 + $0xa0] sm:$0xff] %vm489, %v5687
      %5720 = vst.msk [vmem:[%s440 + $0xa8] sm:$0xff] %vm489, %v5688
      %5721 = vst.msk [vmem:[%s440 + $0xb0] sm:$0xff] %vm489, %v5689
      %5722 = vst.msk [vmem:[%s440 + $0xb8] sm:$0xff] %vm489, %v5690
      %5723 = vst.msk [vmem:[%s440 + $0xc0] sm:$0xff] %vm489, %v5691
      %5724 = vst.msk [vmem:[%s440 + $0xc8] sm:$0xff] %vm489, %v5692
      %5725 = vst.msk [vmem:[%s440 + $0xd0] sm:$0xff] %vm489, %v5693
      %5726 = vst.msk [vmem:[%s440 + $0xd8] sm:$0xff] %vm489, %v5694
      %5727 = vst.msk [vmem:[%s440 + $0xe0] sm:$0xff] %vm489, %v5695
      %5728 = vst.msk [vmem:[%s440 + $0xe8] sm:$0xff] %vm489, %v5696
      %5729 = vst.msk [vmem:[%s440 + $0xf0] sm:$0xff] %vm489, %v5697
      %5730 = vst.msk [vmem:[%s440 + $0xf8] sm:$0xff] %vm489, %v5698
      %p5731 = scmp.lt.s32.totalorder %s24, 1
      %s5732 = scalar_select %p5731, %s24, 1
      %s5733 = smul.addr %s5732, 32
      %s5734 = smul.addr %s5733, 8
      %s5735 = scalar_lea.vmem %s13, %s5734
      // Predicated region
      $region73: #{spp_forward.1} parent=71 // pred_check
        %p5736 = pneg %p320
      $region74: #{spp_forward.1} parent=71 // pred_check_branch
        %5738 = sbr.rel (%p5736) target = $region76
      $region75: #{spp_forward.1} parent=71 // pred_region
        _
      $region76: #{spp_forward.1} parent=71 // pred_fallthru
        _
    $region72: #{spp_forward.1} parent=5 // pred_fallthru
      _
    %p5739 = scmp.le.s32.totalorder 2, %s19
    // Predicated region
    $region77: #{spp_forward.1} parent=5 // pred_check
      %p5740 = pneg %p5739
    $region78: #{spp_forward.1} parent=5 // pred_check_branch
      %5742 = sbr.rel (%p5740) target = $region80
    $region79: #{spp_forward.1} parent=5 // pred_region
      %s5743 = ssub.s32 %s19, 2
      // Predicated region
      $region81: #{spp_forward.1} parent=79 // pred_check
        %p5744 = pneg %p326
      $region82: #{spp_forward.1} parent=79 // pred_check_branch
        %5746 = sbr.rel (%p5744) target = $region84
      $region83: #{spp_forward.1} parent=79 // pred_region
        %p5747 = scmp.lt.s32.totalorder %s25, 1
        %s5748 = scalar_select %p5747, %s25, 1
        %s5749 = smul.addr %s5748, 32
        %s5750 = smul.addr %s5749, 8
        %s5751 = scalar_lea.vmem %s13, %s5750
      $region84: #{spp_forward.1} parent=79 // pred_fallthru
        _
    $region80: #{spp_forward.1} parent=5 // pred_fallthru
      _
  $region6: #{spp_forward.1} parent=0 // loop_footer
    %s23 = sadd.s32 1, %s19
  $region7: #{spp_forward.1} parent=0 // loop_footer_branch
    %18 = sbr.rel target = $region3
  $region8: #{spp_forward.1} parent=0 // loop_exit
    _

</llo_original>
